<compile_context>
chip_gen: v7x
topology: tpu7x:2x2x1
jax: 0.10.0
libtpu: 0.0.40
codegen_flags: <defaults>
</compile_context>

<pallas_src>
import numpy as np

import jax
import jax.numpy as jnp
from jax.experimental import pallas as pl
from jax.experimental.pallas import tpu as pltpu


_TILE_B_MAX = 512                # max batch-tile rows per grid step
_VMEM_LIMIT = 32 * 1024 * 1024   # explicit scoped VMEM (v5e default is 16 MiB)


def _round_up(x, m):
    return ((x + m - 1) // m) * m


# ----------------------------------------------------------------------------
# Fused kernel: conv1+pool -> conv2+pool -> fc1+ReLU -> fc2, per batch tile
# ----------------------------------------------------------------------------
def _cnn_fused_kernel(xw_ref, g1_ref, b1_ref, g2_ref, b2_ref,
                      wf1_ref, bf1_ref, wf2_ref, bf2_ref,
                      out_ref, a1_ref, a2_ref):
    # ---- conv1 + bias + ReLU + 2x2 maxpool: one pooled row (hp) per step ----
    # xw lanes (per hp, 128-wide):  r*28 + col   (4 input rows, cols 0..27)
    # g1 columns: tap*256 + wp*16 + co           (13 wp, 16 co, padded to 256)
    g1 = g1_ref[...]                     # [128, 1024] bf16
    b1 = b1_ref[...]                     # [1, 256]    f32
    for hp in range(13):
        win = xw_ref[:, hp * 128:(hp + 1) * 128]                  # [TB, 128]
        d = jnp.dot(win, g1, preferred_element_type=jnp.float32)  # [TB, 1024]
        p = jnp.maximum(jnp.maximum(d[:, 0:256], d[:, 256:512]),
                        jnp.maximum(d[:, 512:768], d[:, 768:1024]))
        # relu(max(taps) + b) == max over taps of relu(conv + b)
        a1_ref[:, hp * 256:(hp + 1) * 256] = \
            jnp.maximum(p + b1, 0.0).astype(a1_ref.dtype)

    # ---- conv2 + bias + ReLU + 2x2 maxpool ----------------------------------
    # a1 lanes: hp*256 + wp*16 + ci ; window for pooled row hq = a1 rows
    # 2hq..2hq+3 = 1024 contiguous, 512-aligned lanes.
    g2 = g2_ref[...]                     # [1024, 1024] bf16
    b2 = b2_ref[...]                     # [1, 256]     f32
    for hq in range(5):
        win = a1_ref[:, hq * 512: hq * 512 + 1024]                # [TB, 1024]
        d = jnp.dot(win, g2, preferred_element_type=jnp.float32)  # [TB, 1024]
        p = jnp.maximum(jnp.maximum(d[:, 0:256], d[:, 256:512]),
                        jnp.maximum(d[:, 512:768], d[:, 768:1024]))
        a2_ref[:, hq * 256:(hq + 1) * 256] = \
            jnp.maximum(p + b2, 0.0).astype(a2_ref.dtype)

    # ---- fc1 + ReLU + fc2 ----------------------------------------------------
    h = jnp.dot(a2_ref[...], wf1_ref[...],
                preferred_element_type=jnp.float32)               # [TB, 32]
    h = jnp.maximum(h + bf1_ref[...], 0.0).astype(wf2_ref.dtype)
    o = jnp.dot(h, wf2_ref[...], preferred_element_type=jnp.float32)
    out_ref[...] = (o + bf2_ref[...]).astype(out_ref.dtype)      # [TB, 128]


# ----------------------------------------------------------------------------
# Wrapper
# ----------------------------------------------------------------------------
def cnn_fused_forward(prep, x_nchw, *, tile_b_max=_TILE_B_MAX):
    """Full CNN forward in one pallas_call. x: [B, 1, 28, 28] f32 (NCHW)."""
    B = x_nchw.shape[0]
    assert x_nchw.shape[1:] == (1, 28, 28), x_nchw.shape

    # Per-pooled-row input windows (the only XLA glue, on the tiny raw input):
    # window hp = input rows 2hp..2hp+3 (4*28=112 lanes), padded to 128 lanes.
    x2 = x_nchw[:, 0].astype(jnp.bfloat16)                        # [B, 28, 28]
    wins = [x2[:, 2 * hp:2 * hp + 4, :] for hp in range(13)]      # [B, 4, 28]
    xw = jnp.stack(wins, axis=1).reshape(B, 13, 112)
    xw = jnp.pad(xw, ((0, 0), (0, 0), (0, 16))).reshape(B, 13 * 128)

    # Batch tile: large, but >=2 grid steps whenever B allows (v7x: 2 TCs).
    tb = max(8, min(tile_b_max, _round_up(-(-B // 2), 8)))
    Bp = _round_up(B, tb)
    if Bp != B:                 # padded rows are garbage-in, sliced off below
        xw = jnp.pad(xw, ((0, Bp - B), (0, 0)))
    grid = (Bp // tb,)

    flops_per_img = (13 * 2 * 128 * 1024 + 5 * 2 * 1024 * 1024
                     + 2 * 1280 * 32 + 2 * 32 * 128)
    weight_bytes = ((128 * 1024 + 1024 * 1024 + 1280 * 32 + 32 * 128) * 2
                    + (256 + 256 + 32 + 128) * 4)
    bytes_accessed = Bp * 1664 * 2 + Bp * 128 * 4 + weight_bytes

    out = pl.pallas_call(
        _cnn_fused_kernel,
        out_shape=jax.ShapeDtypeStruct((Bp, 128), jnp.float32),
        grid=grid,
        in_specs=[
            pl.BlockSpec((tb, 13 * 128), lambda i: (i, 0)),   # input windows
            pl.BlockSpec((128, 1024),    lambda i: (0, 0)),   # conv1 Toeplitz
            pl.BlockSpec((1, 256),       lambda i: (0, 0)),   # conv1 bias
            pl.BlockSpec((1024, 1024),   lambda i: (0, 0)),   # conv2 Toeplitz
            pl.BlockSpec((1, 256),       lambda i: (0, 0)),   # conv2 bias
            pl.BlockSpec((1280, 32),     lambda i: (0, 0)),   # fc1 weight
            pl.BlockSpec((1, 32),        lambda i: (0, 0)),   # fc1 bias
            pl.BlockSpec((32, 128),      lambda i: (0, 0)),   # fc2 weight (padded)
            pl.BlockSpec((1, 128),       lambda i: (0, 0)),   # fc2 bias (padded)
        ],
        out_specs=pl.BlockSpec((tb, 128), lambda i: (i, 0)),
        scratch_shapes=[
            pltpu.VMEM((tb, 13 * 256), jnp.bfloat16),         # a1 (13x13x16, padded)
            pltpu.VMEM((tb, 5 * 256), jnp.bfloat16),          # a2 (5x5x32, padded)
        ],
        compiler_params=pltpu.CompilerParams(
            dimension_semantics=("parallel",),
            vmem_limit_bytes=_VMEM_LIMIT,
        ),
        cost_estimate=pl.CostEstimate(
            flops=int(Bp * flops_per_img), transcendentals=0,
            bytes_accessed=int(bytes_accessed)),
    )(xw, prep["g1"], prep["b1"], prep["g2"], prep["b2"],
      prep["wf1"], prep["bf1"], prep["wf2"], prep["bf2"])

    return out[:B, :10]


# ----------------------------------------------------------------------------
# Parameters: PyTorch-shaped init + one-time packing for the fused kernel
# ----------------------------------------------------------------------------
def init_params(key):
    """PyTorch-shaped parameters (Conv2d [O,I,kh,kw], Linear [out,in])."""
    def _uniform(k, shape, fan_in):
        bound = 1.0 / jnp.sqrt(jnp.float32(fan_in))
        return jax.random.uniform(k, shape, jnp.float32, -bound, bound)

    ks = jax.random.split(key, 8)
    return {
        "w1": _uniform(ks[0], (16, 1, 3, 3), 1 * 3 * 3),
        "b1": _uniform(ks[1], (16,), 1 * 3 * 3),
        "w2": _uniform(ks[2], (32, 16, 3, 3), 16 * 3 * 3),
        "b2": _uniform(ks[3], (32,), 16 * 3 * 3),
        "wf1": _uniform(ks[4], (32, 32 * 5 * 5), 32 * 5 * 5),
        "bf1": _uniform(ks[5], (32,), 32 * 5 * 5),
        "wf2": _uniform(ks[6], (10, 32), 32),
        "bf2": _uniform(ks[7], (10,), 32),
    }


def prepare_params(params):
    """One-time (outside the hot path) packing into fused-kernel operands."""
    w1 = np.asarray(params["w1"], np.float32)     # [16, 1, 3, 3]
    w2 = np.asarray(params["w2"], np.float32)     # [32, 16, 3, 3]
    wf1 = np.asarray(params["wf1"], np.float32)   # [32, 800]
    wf2 = np.asarray(params["wf2"], np.float32)   # [10, 32]
    b1 = np.asarray(params["b1"], np.float32)
    b2 = np.asarray(params["b2"], np.float32)

    taps = [(0, 0), (0, 1), (1, 0), (1, 1)]       # (dy, dx) of the 2x2 pool

    # conv1 Toeplitz: rows = 4-input-row window (r*28+col, padded to 128),
    # cols = tap*256 + wp*16 + co (wp<13, co<16; padded to 256 per tap).
    g1 = np.zeros((4, 128, 256), np.float32)
    for t, (dy, dx) in enumerate(taps):
        for wp in range(13):
            for ky in range(3):
                for kx in range(3):
                    row = (dy + ky) * 28 + (2 * wp + dx + kx)
                    g1[t, row, wp * 16 + np.arange(16)] = w1[:, 0, ky, kx]
    g1 = np.concatenate(list(g1), axis=1)         # [128, 1024]

    # conv2 Toeplitz: rows = 4-a1-row window (r*256 + w*16 + ci),
    # cols = tap*256 + wq*32 + co (wq<5, co<32; padded to 256 per tap).
    g2 = np.zeros((4, 1024, 256), np.float32)
    for t, (dy, dx) in enumerate(taps):
        for wq in range(5):
            for ky in range(3):
                for kx in range(3):
                    rows = (dy + ky) * 256 + (2 * wq + dx + kx) * 16 + np.arange(16)
                    cols = wq * 32 + np.arange(32)
                    g2[t][np.ix_(rows, cols)] = w2[:, :, ky, kx].T   # [ci, co]
    g2 = np.concatenate(list(g2), axis=1)         # [1024, 1024]

    # Biases tiled over the padded (w, c) lane layout.
    b1p = np.zeros((1, 256), np.float32)
    for wp in range(13):
        b1p[0, wp * 16:(wp + 1) * 16] = b1
    b2p = np.zeros((1, 256), np.float32)
    for wq in range(5):
        b2p[0, wq * 32:(wq + 1) * 32] = b2

    # fc1: fold PyTorch's NCHW flatten (c*25 + h*5 + w) into the padded a2
    # lane layout (h*256 + w*32 + c).
    wf1a = np.zeros((1280, 32), np.float32)
    for h in range(5):
        for w in range(5):
            rows = h * 256 + w * 32 + np.arange(32)
            wf1a[rows, :] = wf1[:, np.arange(32) * 25 + h * 5 + w].T

    # fc2 padded to 128 output lanes for a lane-dense final store.
    wf2p = np.zeros((32, 128), np.float32)
    wf2p[:, :10] = wf2.T
    bf2p = np.zeros((1, 128), np.float32)
    bf2p[0, :10] = np.asarray(params["bf2"], np.float32)

    return {
        "g1": jnp.asarray(g1, jnp.bfloat16),
        "b1": jnp.asarray(b1p, jnp.float32),
        "g2": jnp.asarray(g2, jnp.bfloat16),
        "b2": jnp.asarray(b2p, jnp.float32),
        "wf1": jnp.asarray(wf1a, jnp.bfloat16),
        "bf1": jnp.asarray(params["bf1"], jnp.float32).reshape(1, 32),
        "wf2": jnp.asarray(wf2p, jnp.bfloat16),
        "bf2": jnp.asarray(bf2p, jnp.float32),
    }


# ----------------------------------------------------------------------------
# Pure-XLA f32 reference (validation only)
# ----------------------------------------------------------------------------
def reference_forward(params, x):
    dn = ("NCHW", "OIHW", "NCHW")
    out = jax.lax.conv_general_dilated(x, params["w1"], (1, 1), "VALID",
                                       dimension_numbers=dn)
    out = jax.nn.relu(out + params["b1"][None, :, None, None])
    out = jax.lax.reduce_window(out, -jnp.inf, jax.lax.max,
                                (1, 1, 2, 2), (1, 1, 2, 2), "VALID")
    out = jax.lax.conv_general_dilated(out, params["w2"], (1, 1), "VALID",
                                       dimension_numbers=dn)
    out = jax.nn.relu(out + params["b2"][None, :, None, None])
    out = jax.lax.reduce_window(out, -jnp.inf, jax.lax.max,
                                (1, 1, 2, 2), (1, 1, 2, 2), "VALID")
    out = out.reshape(out.shape[0], -1)
    out = jax.nn.relu(out @ params["wf1"].T + params["bf1"])
    return out @ params["wf2"].T + params["bf2"]


if __name__ == "__main__":
    key = jax.random.PRNGKey(0)
    k_param, k_x = jax.random.split(key)
    params = init_params(k_param)
    prep = prepare_params(params)

    # 28x28 single-channel input so the flatten is 32*5*5 = 800, as in the spec.
    x = jax.random.normal(k_x, (2, 1, 28, 28), dtype=jnp.float32)

    fwd = jax.jit(cnn_fused_forward)
    logits = jax.block_until_ready(fwd(prep, x))

    assert logits.shape == (2, 10), logits.shape
    assert logits.dtype == jnp.float32, logits.dtype
    assert bool(jnp.all(jnp.isfinite(logits)))

    # Mixed-precision (bf16 GEMM inputs / f32 accumulation) tolerance check.
    ref = reference_forward(params, x)
    err = float(jnp.max(jnp.abs(logits - ref)))
    assert err < 5e-2, f"mismatch vs f32 reference: max_abs_err={err}"

    print("KERNEL_OK")
</pallas_src>

<mosaic_0001>
module attributes {stable_mosaic.version = 11 : i64} {
  func.func @_cnn_fused_kernel(%arg0: i32, %arg1: memref<8x1664xbf16, #tpu.memory_space<vmem>>, %arg2: memref<128x1024xbf16, #tpu.memory_space<vmem>>, %arg3: memref<1x256xf32, #tpu.memory_space<vmem>>, %arg4: memref<1024x1024xbf16, #tpu.memory_space<vmem>>, %arg5: memref<1x256xf32, #tpu.memory_space<vmem>>, %arg6: memref<1280x32xbf16, #tpu.memory_space<vmem>>, %arg7: memref<1x32xf32, #tpu.memory_space<vmem>>, %arg8: memref<32x128xbf16, #tpu.memory_space<vmem>>, %arg9: memref<1x128xf32, #tpu.memory_space<vmem>>, %arg10: memref<8x128xf32, #tpu.memory_space<vmem>>, %arg11: memref<8x3328xbf16, #tpu.memory_space<vmem>>, %arg12: memref<8x1280xbf16, #tpu.memory_space<vmem>>) attributes {dimension_semantics = [#tpu.dimension_semantics<parallel>], iteration_bounds = array<i64: 1>, scalar_prefetch = 0 : i64, scratch_operands = 2 : i64, tpu.core_type = #tpu.core_type<tc>, window_params = [{transform_indices = @transform_0, window_bounds = array<i64: 8, 1664>}, {pipeline_mode = #tpu.pipeline_mode<synchronous>, transform_indices = @transform_1, window_bounds = array<i64: 128, 1024>}, {pipeline_mode = #tpu.pipeline_mode<synchronous>, transform_indices = @transform_2, window_bounds = array<i64: 1, 256>}, {pipeline_mode = #tpu.pipeline_mode<synchronous>, transform_indices = @transform_3, window_bounds = array<i64: 1024, 1024>}, {pipeline_mode = #tpu.pipeline_mode<synchronous>, transform_indices = @transform_4, window_bounds = array<i64: 1, 256>}, {pipeline_mode = #tpu.pipeline_mode<synchronous>, transform_indices = @transform_5, window_bounds = array<i64: 1280, 32>}, {pipeline_mode = #tpu.pipeline_mode<synchronous>, transform_indices = @transform_6, window_bounds = array<i64: 1, 32>}, {pipeline_mode = #tpu.pipeline_mode<synchronous>, transform_indices = @transform_7, window_bounds = array<i64: 32, 128>}, {pipeline_mode = #tpu.pipeline_mode<synchronous>, transform_indices = @transform_8, window_bounds = array<i64: 1, 128>}, {transform_indices = @transform_9, window_bounds = array<i64: 8, 128>}]} {
    %c0 = arith.constant 0 : index
    %c0_0 = arith.constant 0 : index
    %0 = vector.load %arg2[%c0, %c0_0] : memref<128x1024xbf16, #tpu.memory_space<vmem>>, vector<128x1024xbf16>
    %c0_1 = arith.constant 0 : index
    %c0_2 = arith.constant 0 : index
    %1 = vector.load %arg3[%c0_1, %c0_2] : memref<1x256xf32, #tpu.memory_space<vmem>>, vector<1x256xf32>
    %c0_3 = arith.constant 0 : index
    %c0_4 = arith.constant 0 : index
    %2 = vector.load %arg1[%c0_3, %c0_4] : memref<8x1664xbf16, #tpu.memory_space<vmem>>, vector<8x128xbf16>
    %cst = arith.constant dense<0.000000e+00> : vector<8x1024xf32>
    %3 = tpu.matmul %2, %0, %cst {dimension_numbers = #tpu.dot_dimension_numbers<[1], [0], [0], [1], [0, 0, 1, 1], [], []>} : vector<8x128xbf16>, vector<128x1024xbf16>, vector<8x1024xf32> -> vector<8x1024xf32>
    %4 = vector.extract_strided_slice %3 {offsets = [0, 0], sizes = [8, 256], strides = [1, 1]} : vector<8x1024xf32> to vector<8x256xf32>
    %5 = vector.extract_strided_slice %3 {offsets = [0, 256], sizes = [8, 256], strides = [1, 1]} : vector<8x1024xf32> to vector<8x256xf32>
    %6 = arith.maximumf %4, %5 : vector<8x256xf32>
    %7 = vector.extract_strided_slice %3 {offsets = [0, 512], sizes = [8, 256], strides = [1, 1]} : vector<8x1024xf32> to vector<8x256xf32>
    %8 = vector.extract_strided_slice %3 {offsets = [0, 768], sizes = [8, 256], strides = [1, 1]} : vector<8x1024xf32> to vector<8x256xf32>
    %9 = arith.maximumf %7, %8 : vector<8x256xf32>
    %10 = arith.maximumf %6, %9 : vector<8x256xf32>
    %11 = vector.broadcast %1 : vector<1x256xf32> to vector<8x256xf32>
    %12 = arith.addf %10, %11 : vector<8x256xf32>
    %cst_5 = arith.constant 0.000000e+00 : f32
    %13 = vector.broadcast %cst_5 : f32 to vector<8x256xf32>
    %14 = arith.maximumf %12, %13 : vector<8x256xf32>
    %15 = arith.truncf %14 : vector<8x256xf32> to vector<8x256xbf16>
    %c0_6 = arith.constant 0 : index
    %c0_7 = arith.constant 0 : index
    %16 = vector.load %arg11[%c0_6, %c0_7] : memref<8x3328xbf16, #tpu.memory_space<vmem>>, vector<8x256xbf16>
    tpu.vector_store %arg11[%c0_6, %c0_7], %15 {strides = array<i32>} : memref<8x3328xbf16, #tpu.memory_space<vmem>>, vector<8x256xbf16>,
    %c0_8 = arith.constant 0 : index
    %c128 = arith.constant 128 : index
    %17 = vector.load %arg1[%c0_8, %c128] : memref<8x1664xbf16, #tpu.memory_space<vmem>>, vector<8x128xbf16>
    %cst_9 = arith.constant dense<0.000000e+00> : vector<8x1024xf32>
    %18 = tpu.matmul %17, %0, %cst_9 {dimension_numbers = #tpu.dot_dimension_numbers<[1], [0], [0], [1], [0, 0, 1, 1], [], []>} : vector<8x128xbf16>, vector<128x1024xbf16>, vector<8x1024xf32> -> vector<8x1024xf32>
    %19 = vector.extract_strided_slice %18 {offsets = [0, 0], sizes = [8, 256], strides = [1, 1]} : vector<8x1024xf32> to vector<8x256xf32>
    %20 = vector.extract_strided_slice %18 {offsets = [0, 256], sizes = [8, 256], strides = [1, 1]} : vector<8x1024xf32> to vector<8x256xf32>
    %21 = arith.maximumf %19, %20 : vector<8x256xf32>
    %22 = vector.extract_strided_slice %18 {offsets = [0, 512], sizes = [8, 256], strides = [1, 1]} : vector<8x1024xf32> to vector<8x256xf32>
    %23 = vector.extract_strided_slice %18 {offsets = [0, 768], sizes = [8, 256], strides = [1, 1]} : vector<8x1024xf32> to vector<8x256xf32>
    %24 = arith.maximumf %22, %23 : vector<8x256xf32>
    %25 = arith.maximumf %21, %24 : vector<8x256xf32>
    %26 = vector.broadcast %1 : vector<1x256xf32> to vector<8x256xf32>
    %27 = arith.addf %25, %26 : vector<8x256xf32>
    %cst_10 = arith.constant 0.000000e+00 : f32
    %28 = vector.broadcast %cst_10 : f32 to vector<8x256xf32>
    %29 = arith.maximumf %27, %28 : vector<8x256xf32>
    %30 = arith.truncf %29 : vector<8x256xf32> to vector<8x256xbf16>
    %c0_11 = arith.constant 0 : index
    %c256 = arith.constant 256 : index
    %31 = vector.load %arg11[%c0_11, %c256] : memref<8x3328xbf16, #tpu.memory_space<vmem>>, vector<8x256xbf16>
    tpu.vector_store %arg11[%c0_11, %c256], %30 {strides = array<i32>} : memref<8x3328xbf16, #tpu.memory_space<vmem>>, vector<8x256xbf16>,
    %c0_12 = arith.constant 0 : index
    %c256_13 = arith.constant 256 : index
    %32 = vector.load %arg1[%c0_12, %c256_13] : memref<8x1664xbf16, #tpu.memory_space<vmem>>, vector<8x128xbf16>
    %cst_14 = arith.constant dense<0.000000e+00> : vector<8x1024xf32>
    %33 = tpu.matmul %32, %0, %cst_14 {dimension_numbers = #tpu.dot_dimension_numbers<[1], [0], [0], [1], [0, 0, 1, 1], [], []>} : vector<8x128xbf16>, vector<128x1024xbf16>, vector<8x1024xf32> -> vector<8x1024xf32>
    %34 = vector.extract_strided_slice %33 {offsets = [0, 0], sizes = [8, 256], strides = [1, 1]} : vector<8x1024xf32> to vector<8x256xf32>
    %35 = vector.extract_strided_slice %33 {offsets = [0, 256], sizes = [8, 256], strides = [1, 1]} : vector<8x1024xf32> to vector<8x256xf32>
    %36 = arith.maximumf %34, %35 : vector<8x256xf32>
    %37 = vector.extract_strided_slice %33 {offsets = [0, 512], sizes = [8, 256], strides = [1, 1]} : vector<8x1024xf32> to vector<8x256xf32>
    %38 = vector.extract_strided_slice %33 {offsets = [0, 768], sizes = [8, 256], strides = [1, 1]} : vector<8x1024xf32> to vector<8x256xf32>
    %39 = arith.maximumf %37, %38 : vector<8x256xf32>
    %40 = arith.maximumf %36, %39 : vector<8x256xf32>
    %41 = vector.broadcast %1 : vector<1x256xf32> to vector<8x256xf32>
    %42 = arith.addf %40, %41 : vector<8x256xf32>
    %cst_15 = arith.constant 0.000000e+00 : f32
    %43 = vector.broadcast %cst_15 : f32 to vector<8x256xf32>
    %44 = arith.maximumf %42, %43 : vector<8x256xf32>
    %45 = arith.truncf %44 : vector<8x256xf32> to vector<8x256xbf16>
    %c0_16 = arith.constant 0 : index
    %c512 = arith.constant 512 : index
    %46 = vector.load %arg11[%c0_16, %c512] : memref<8x3328xbf16, #tpu.memory_space<vmem>>, vector<8x256xbf16>
    tpu.vector_store %arg11[%c0_16, %c512], %45 {strides = array<i32>} : memref<8x3328xbf16, #tpu.memory_space<vmem>>, vector<8x256xbf16>,
    %c0_17 = arith.constant 0 : index
    %c384 = arith.constant 384 : index
    %47 = vector.load %arg1[%c0_17, %c384] : memref<8x1664xbf16, #tpu.memory_space<vmem>>, vector<8x128xbf16>
    %cst_18 = arith.constant dense<0.000000e+00> : vector<8x1024xf32>
    %48 = tpu.matmul %47, %0, %cst_18 {dimension_numbers = #tpu.dot_dimension_numbers<[1], [0], [0], [1], [0, 0, 1, 1], [], []>} : vector<8x128xbf16>, vector<128x1024xbf16>, vector<8x1024xf32> -> vector<8x1024xf32>
    %49 = vector.extract_strided_slice %48 {offsets = [0, 0], sizes = [8, 256], strides = [1, 1]} : vector<8x1024xf32> to vector<8x256xf32>
    %50 = vector.extract_strided_slice %48 {offsets = [0, 256], sizes = [8, 256], strides = [1, 1]} : vector<8x1024xf32> to vector<8x256xf32>
    %51 = arith.maximumf %49, %50 : vector<8x256xf32>
    %52 = vector.extract_strided_slice %48 {offsets = [0, 512], sizes = [8, 256], strides = [1, 1]} : vector<8x1024xf32> to vector<8x256xf32>
    %53 = vector.extract_strided_slice %48 {offsets = [0, 768], sizes = [8, 256], strides = [1, 1]} : vector<8x1024xf32> to vector<8x256xf32>
    %54 = arith.maximumf %52, %53 : vector<8x256xf32>
    %55 = arith.maximumf %51, %54 : vector<8x256xf32>
    %56 = vector.broadcast %1 : vector<1x256xf32> to vector<8x256xf32>
    %57 = arith.addf %55, %56 : vector<8x256xf32>
    %cst_19 = arith.constant 0.000000e+00 : f32
    %58 = vector.broadcast %cst_19 : f32 to vector<8x256xf32>
    %59 = arith.maximumf %57, %58 : vector<8x256xf32>
    %60 = arith.truncf %59 : vector<8x256xf32> to vector<8x256xbf16>
    %c0_20 = arith.constant 0 : index
    %c768 = arith.constant 768 : index
    %61 = vector.load %arg11[%c0_20, %c768] : memref<8x3328xbf16, #tpu.memory_space<vmem>>, vector<8x256xbf16>
    tpu.vector_store %arg11[%c0_20, %c768], %60 {strides = array<i32>} : memref<8x3328xbf16, #tpu.memory_space<vmem>>, vector<8x256xbf16>,
    %c0_21 = arith.constant 0 : index
    %c512_22 = arith.constant 512 : index
    %62 = vector.load %arg1[%c0_21, %c512_22] : memref<8x1664xbf16, #tpu.memory_space<vmem>>, vector<8x128xbf16>
    %cst_23 = arith.constant dense<0.000000e+00> : vector<8x1024xf32>
    %63 = tpu.matmul %62, %0, %cst_23 {dimension_numbers = #tpu.dot_dimension_numbers<[1], [0], [0], [1], [0, 0, 1, 1], [], []>} : vector<8x128xbf16>, vector<128x1024xbf16>, vector<8x1024xf32> -> vector<8x1024xf32>
    %64 = vector.extract_strided_slice %63 {offsets = [0, 0], sizes = [8, 256], strides = [1, 1]} : vector<8x1024xf32> to vector<8x256xf32>
    %65 = vector.extract_strided_slice %63 {offsets = [0, 256], sizes = [8, 256], strides = [1, 1]} : vector<8x1024xf32> to vector<8x256xf32>
    %66 = arith.maximumf %64, %65 : vector<8x256xf32>
    %67 = vector.extract_strided_slice %63 {offsets = [0, 512], sizes = [8, 256], strides = [1, 1]} : vector<8x1024xf32> to vector<8x256xf32>
    %68 = vector.extract_strided_slice %63 {offsets = [0, 768], sizes = [8, 256], strides = [1, 1]} : vector<8x1024xf32> to vector<8x256xf32>
    %69 = arith.maximumf %67, %68 : vector<8x256xf32>
    %70 = arith.maximumf %66, %69 : vector<8x256xf32>
    %71 = vector.broadcast %1 : vector<1x256xf32> to vector<8x256xf32>
    %72 = arith.addf %70, %71 : vector<8x256xf32>
    %cst_24 = arith.constant 0.000000e+00 : f32
    %73 = vector.broadcast %cst_24 : f32 to vector<8x256xf32>
    %74 = arith.maximumf %72, %73 : vector<8x256xf32>
    %75 = arith.truncf %74 : vector<8x256xf32> to vector<8x256xbf16>
    %c0_25 = arith.constant 0 : index
    %c1024 = arith.constant 1024 : index
    %76 = vector.load %arg11[%c0_25, %c1024] : memref<8x3328xbf16, #tpu.memory_space<vmem>>, vector<8x256xbf16>
    tpu.vector_store %arg11[%c0_25, %c1024], %75 {strides = array<i32>} : memref<8x3328xbf16, #tpu.memory_space<vmem>>, vector<8x256xbf16>,
    %c0_26 = arith.constant 0 : index
    %c640 = arith.constant 640 : index
    %77 = vector.load %arg1[%c0_26, %c640] : memref<8x1664xbf16, #tpu.memory_space<vmem>>, vector<8x128xbf16>
    %cst_27 = arith.constant dense<0.000000e+00> : vector<8x1024xf32>
    %78 = tpu.matmul %77, %0, %cst_27 {dimension_numbers = #tpu.dot_dimension_numbers<[1], [0], [0], [1], [0, 0, 1, 1], [], []>} : vector<8x128xbf16>, vector<128x1024xbf16>, vector<8x1024xf32> -> vector<8x1024xf32>
    %79 = vector.extract_strided_slice %78 {offsets = [0, 0], sizes = [8, 256], strides = [1, 1]} : vector<8x1024xf32> to vector<8x256xf32>
    %80 = vector.extract_strided_slice %78 {offsets = [0, 256], sizes = [8, 256], strides = [1, 1]} : vector<8x1024xf32> to vector<8x256xf32>
    %81 = arith.maximumf %79, %80 : vector<8x256xf32>
    %82 = vector.extract_strided_slice %78 {offsets = [0, 512], sizes = [8, 256], strides = [1, 1]} : vector<8x1024xf32> to vector<8x256xf32>
    %83 = vector.extract_strided_slice %78 {offsets = [0, 768], sizes = [8, 256], strides = [1, 1]} : vector<8x1024xf32> to vector<8x256xf32>
    %84 = arith.maximumf %82, %83 : vector<8x256xf32>
    %85 = arith.maximumf %81, %84 : vector<8x256xf32>
    %86 = vector.broadcast %1 : vector<1x256xf32> to vector<8x256xf32>
    %87 = arith.addf %85, %86 : vector<8x256xf32>
    %cst_28 = arith.constant 0.000000e+00 : f32
    %88 = vector.broadcast %cst_28 : f32 to vector<8x256xf32>
    %89 = arith.maximumf %87, %88 : vector<8x256xf32>
    %90 = arith.truncf %89 : vector<8x256xf32> to vector<8x256xbf16>
    %c0_29 = arith.constant 0 : index
    %c1280 = arith.constant 1280 : index
    %91 = vector.load %arg11[%c0_29, %c1280] : memref<8x3328xbf16, #tpu.memory_space<vmem>>, vector<8x256xbf16>
    tpu.vector_store %arg11[%c0_29, %c1280], %90 {strides = array<i32>} : memref<8x3328xbf16, #tpu.memory_space<vmem>>, vector<8x256xbf16>,
    %c0_30 = arith.constant 0 : index
    %c768_31 = arith.constant 768 : index
    %92 = vector.load %arg1[%c0_30, %c768_31] : memref<8x1664xbf16, #tpu.memory_space<vmem>>, vector<8x128xbf16>
    %cst_32 = arith.constant dense<0.000000e+00> : vector<8x1024xf32>
    %93 = tpu.matmul %92, %0, %cst_32 {dimension_numbers = #tpu.dot_dimension_numbers<[1], [0], [0], [1], [0, 0, 1, 1], [], []>} : vector<8x128xbf16>, vector<128x1024xbf16>, vector<8x1024xf32> -> vector<8x1024xf32>
    %94 = vector.extract_strided_slice %93 {offsets = [0, 0], sizes = [8, 256], strides = [1, 1]} : vector<8x1024xf32> to vector<8x256xf32>
    %95 = vector.extract_strided_slice %93 {offsets = [0, 256], sizes = [8, 256], strides = [1, 1]} : vector<8x1024xf32> to vector<8x256xf32>
    %96 = arith.maximumf %94, %95 : vector<8x256xf32>
    %97 = vector.extract_strided_slice %93 {offsets = [0, 512], sizes = [8, 256], strides = [1, 1]} : vector<8x1024xf32> to vector<8x256xf32>
    %98 = vector.extract_strided_slice %93 {offsets = [0, 768], sizes = [8, 256], strides = [1, 1]} : vector<8x1024xf32> to vector<8x256xf32>
    %99 = arith.maximumf %97, %98 : vector<8x256xf32>
    %100 = arith.maximumf %96, %99 : vector<8x256xf32>
    %101 = vector.broadcast %1 : vector<1x256xf32> to vector<8x256xf32>
    %102 = arith.addf %100, %101 : vector<8x256xf32>
    %cst_33 = arith.constant 0.000000e+00 : f32
    %103 = vector.broadcast %cst_33 : f32 to vector<8x256xf32>
    %104 = arith.maximumf %102, %103 : vector<8x256xf32>
    %105 = arith.truncf %104 : vector<8x256xf32> to vector<8x256xbf16>
    %c0_34 = arith.constant 0 : index
    %c1536 = arith.constant 1536 : index
    %106 = vector.load %arg11[%c0_34, %c1536] : memref<8x3328xbf16, #tpu.memory_space<vmem>>, vector<8x256xbf16>
    tpu.vector_store %arg11[%c0_34, %c1536], %105 {strides = array<i32>} : memref<8x3328xbf16, #tpu.memory_space<vmem>>, vector<8x256xbf16>,
    %c0_35 = arith.constant 0 : index
    %c896 = arith.constant 896 : index
    %107 = vector.load %arg1[%c0_35, %c896] : memref<8x1664xbf16, #tpu.memory_space<vmem>>, vector<8x128xbf16>
    %cst_36 = arith.constant dense<0.000000e+00> : vector<8x1024xf32>
    %108 = tpu.matmul %107, %0, %cst_36 {dimension_numbers = #tpu.dot_dimension_numbers<[1], [0], [0], [1], [0, 0, 1, 1], [], []>} : vector<8x128xbf16>, vector<128x1024xbf16>, vector<8x1024xf32> -> vector<8x1024xf32>
    %109 = vector.extract_strided_slice %108 {offsets = [0, 0], sizes = [8, 256], strides = [1, 1]} : vector<8x1024xf32> to vector<8x256xf32>
    %110 = vector.extract_strided_slice %108 {offsets = [0, 256], sizes = [8, 256], strides = [1, 1]} : vector<8x1024xf32> to vector<8x256xf32>
    %111 = arith.maximumf %109, %110 : vector<8x256xf32>
    %112 = vector.extract_strided_slice %108 {offsets = [0, 512], sizes = [8, 256], strides = [1, 1]} : vector<8x1024xf32> to vector<8x256xf32>
    %113 = vector.extract_strided_slice %108 {offsets = [0, 768], sizes = [8, 256], strides = [1, 1]} : vector<8x1024xf32> to vector<8x256xf32>
    %114 = arith.maximumf %112, %113 : vector<8x256xf32>
    %115 = arith.maximumf %111, %114 : vector<8x256xf32>
    %116 = vector.broadcast %1 : vector<1x256xf32> to vector<8x256xf32>
    %117 = arith.addf %115, %116 : vector<8x256xf32>
    %cst_37 = arith.constant 0.000000e+00 : f32
    %118 = vector.broadcast %cst_37 : f32 to vector<8x256xf32>
    %119 = arith.maximumf %117, %118 : vector<8x256xf32>
    %120 = arith.truncf %119 : vector<8x256xf32> to vector<8x256xbf16>
    %c0_38 = arith.constant 0 : index
    %c1792 = arith.constant 1792 : index
    %121 = vector.load %arg11[%c0_38, %c1792] : memref<8x3328xbf16, #tpu.memory_space<vmem>>, vector<8x256xbf16>
    tpu.vector_store %arg11[%c0_38, %c1792], %120 {strides = array<i32>} : memref<8x3328xbf16, #tpu.memory_space<vmem>>, vector<8x256xbf16>,
    %c0_39 = arith.constant 0 : index
    %c1024_40 = arith.constant 1024 : index
    %122 = vector.load %arg1[%c0_39, %c1024_40] : memref<8x1664xbf16, #tpu.memory_space<vmem>>, vector<8x128xbf16>
    %cst_41 = arith.constant dense<0.000000e+00> : vector<8x1024xf32>
    %123 = tpu.matmul %122, %0, %cst_41 {dimension_numbers = #tpu.dot_dimension_numbers<[1], [0], [0], [1], [0, 0, 1, 1], [], []>} : vector<8x128xbf16>, vector<128x1024xbf16>, vector<8x1024xf32> -> vector<8x1024xf32>
    %124 = vector.extract_strided_slice %123 {offsets = [0, 0], sizes = [8, 256], strides = [1, 1]} : vector<8x1024xf32> to vector<8x256xf32>
    %125 = vector.extract_strided_slice %123 {offsets = [0, 256], sizes = [8, 256], strides = [1, 1]} : vector<8x1024xf32> to vector<8x256xf32>
    %126 = arith.maximumf %124, %125 : vector<8x256xf32>
    %127 = vector.extract_strided_slice %123 {offsets = [0, 512], sizes = [8, 256], strides = [1, 1]} : vector<8x1024xf32> to vector<8x256xf32>
    %128 = vector.extract_strided_slice %123 {offsets = [0, 768], sizes = [8, 256], strides = [1, 1]} : vector<8x1024xf32> to vector<8x256xf32>
    %129 = arith.maximumf %127, %128 : vector<8x256xf32>
    %130 = arith.maximumf %126, %129 : vector<8x256xf32>
    %131 = vector.broadcast %1 : vector<1x256xf32> to vector<8x256xf32>
    %132 = arith.addf %130, %131 : vector<8x256xf32>
    %cst_42 = arith.constant 0.000000e+00 : f32
    %133 = vector.broadcast %cst_42 : f32 to vector<8x256xf32>
    %134 = arith.maximumf %132, %133 : vector<8x256xf32>
    %135 = arith.truncf %134 : vector<8x256xf32> to vector<8x256xbf16>
    %c0_43 = arith.constant 0 : index
    %c2048 = arith.constant 2048 : index
    %136 = vector.load %arg11[%c0_43, %c2048] : memref<8x3328xbf16, #tpu.memory_space<vmem>>, vector<8x256xbf16>
    tpu.vector_store %arg11[%c0_43, %c2048], %135 {strides = array<i32>} : memref<8x3328xbf16, #tpu.memory_space<vmem>>, vector<8x256xbf16>,
    %c0_44 = arith.constant 0 : index
    %c1152 = arith.constant 1152 : index
    %137 = vector.load %arg1[%c0_44, %c1152] : memref<8x1664xbf16, #tpu.memory_space<vmem>>, vector<8x128xbf16>
    %cst_45 = arith.constant dense<0.000000e+00> : vector<8x1024xf32>
    %138 = tpu.matmul %137, %0, %cst_45 {dimension_numbers = #tpu.dot_dimension_numbers<[1], [0], [0], [1], [0, 0, 1, 1], [], []>} : vector<8x128xbf16>, vector<128x1024xbf16>, vector<8x1024xf32> -> vector<8x1024xf32>
    %139 = vector.extract_strided_slice %138 {offsets = [0, 0], sizes = [8, 256], strides = [1, 1]} : vector<8x1024xf32> to vector<8x256xf32>
    %140 = vector.extract_strided_slice %138 {offsets = [0, 256], sizes = [8, 256], strides = [1, 1]} : vector<8x1024xf32> to vector<8x256xf32>
    %141 = arith.maximumf %139, %140 : vector<8x256xf32>
    %142 = vector.extract_strided_slice %138 {offsets = [0, 512], sizes = [8, 256], strides = [1, 1]} : vector<8x1024xf32> to vector<8x256xf32>
    %143 = vector.extract_strided_slice %138 {offsets = [0, 768], sizes = [8, 256], strides = [1, 1]} : vector<8x1024xf32> to vector<8x256xf32>
    %144 = arith.maximumf %142, %143 : vector<8x256xf32>
    %145 = arith.maximumf %141, %144 : vector<8x256xf32>
    %146 = vector.broadcast %1 : vector<1x256xf32> to vector<8x256xf32>
    %147 = arith.addf %145, %146 : vector<8x256xf32>
    %cst_46 = arith.constant 0.000000e+00 : f32
    %148 = vector.broadcast %cst_46 : f32 to vector<8x256xf32>
    %149 = arith.maximumf %147, %148 : vector<8x256xf32>
    %150 = arith.truncf %149 : vector<8x256xf32> to vector<8x256xbf16>
    %c0_47 = arith.constant 0 : index
    %c2304 = arith.constant 2304 : index
    %151 = vector.load %arg11[%c0_47, %c2304] : memref<8x3328xbf16, #tpu.memory_space<vmem>>, vector<8x256xbf16>
    tpu.vector_store %arg11[%c0_47, %c2304], %150 {strides = array<i32>} : memref<8x3328xbf16, #tpu.memory_space<vmem>>, vector<8x256xbf16>,
    %c0_48 = arith.constant 0 : index
    %c1280_49 = arith.constant 1280 : index
    %152 = vector.load %arg1[%c0_48, %c1280_49] : memref<8x1664xbf16, #tpu.memory_space<vmem>>, vector<8x128xbf16>
    %cst_50 = arith.constant dense<0.000000e+00> : vector<8x1024xf32>
    %153 = tpu.matmul %152, %0, %cst_50 {dimension_numbers = #tpu.dot_dimension_numbers<[1], [0], [0], [1], [0, 0, 1, 1], [], []>} : vector<8x128xbf16>, vector<128x1024xbf16>, vector<8x1024xf32> -> vector<8x1024xf32>
    %154 = vector.extract_strided_slice %153 {offsets = [0, 0], sizes = [8, 256], strides = [1, 1]} : vector<8x1024xf32> to vector<8x256xf32>
    %155 = vector.extract_strided_slice %153 {offsets = [0, 256], sizes = [8, 256], strides = [1, 1]} : vector<8x1024xf32> to vector<8x256xf32>
    %156 = arith.maximumf %154, %155 : vector<8x256xf32>
    %157 = vector.extract_strided_slice %153 {offsets = [0, 512], sizes = [8, 256], strides = [1, 1]} : vector<8x1024xf32> to vector<8x256xf32>
    %158 = vector.extract_strided_slice %153 {offsets = [0, 768], sizes = [8, 256], strides = [1, 1]} : vector<8x1024xf32> to vector<8x256xf32>
    %159 = arith.maximumf %157, %158 : vector<8x256xf32>
    %160 = arith.maximumf %156, %159 : vector<8x256xf32>
    %161 = vector.broadcast %1 : vector<1x256xf32> to vector<8x256xf32>
    %162 = arith.addf %160, %161 : vector<8x256xf32>
    %cst_51 = arith.constant 0.000000e+00 : f32
    %163 = vector.broadcast %cst_51 : f32 to vector<8x256xf32>
    %164 = arith.maximumf %162, %163 : vector<8x256xf32>
    %165 = arith.truncf %164 : vector<8x256xf32> to vector<8x256xbf16>
    %c0_52 = arith.constant 0 : index
    %c2560 = arith.constant 2560 : index
    %166 = vector.load %arg11[%c0_52, %c2560] : memref<8x3328xbf16, #tpu.memory_space<vmem>>, vector<8x256xbf16>
    tpu.vector_store %arg11[%c0_52, %c2560], %165 {strides = array<i32>} : memref<8x3328xbf16, #tpu.memory_space<vmem>>, vector<8x256xbf16>,
    %c0_53 = arith.constant 0 : index
    %c1408 = arith.constant 1408 : index
    %167 = vector.load %arg1[%c0_53, %c1408] : memref<8x1664xbf16, #tpu.memory_space<vmem>>, vector<8x128xbf16>
    %cst_54 = arith.constant dense<0.000000e+00> : vector<8x1024xf32>
    %168 = tpu.matmul %167, %0, %cst_54 {dimension_numbers = #tpu.dot_dimension_numbers<[1], [0], [0], [1], [0, 0, 1, 1], [], []>} : vector<8x128xbf16>, vector<128x1024xbf16>, vector<8x1024xf32> -> vector<8x1024xf32>
    %169 = vector.extract_strided_slice %168 {offsets = [0, 0], sizes = [8, 256], strides = [1, 1]} : vector<8x1024xf32> to vector<8x256xf32>
    %170 = vector.extract_strided_slice %168 {offsets = [0, 256], sizes = [8, 256], strides = [1, 1]} : vector<8x1024xf32> to vector<8x256xf32>
    %171 = arith.maximumf %169, %170 : vector<8x256xf32>
    %172 = vector.extract_strided_slice %168 {offsets = [0, 512], sizes = [8, 256], strides = [1, 1]} : vector<8x1024xf32> to vector<8x256xf32>
    %173 = vector.extract_strided_slice %168 {offsets = [0, 768], sizes = [8, 256], strides = [1, 1]} : vector<8x1024xf32> to vector<8x256xf32>
    %174 = arith.maximumf %172, %173 : vector<8x256xf32>
    %175 = arith.maximumf %171, %174 : vector<8x256xf32>
    %176 = vector.broadcast %1 : vector<1x256xf32> to vector<8x256xf32>
    %177 = arith.addf %175, %176 : vector<8x256xf32>
    %cst_55 = arith.constant 0.000000e+00 : f32
    %178 = vector.broadcast %cst_55 : f32 to vector<8x256xf32>
    %179 = arith.maximumf %177, %178 : vector<8x256xf32>
    %180 = arith.truncf %179 : vector<8x256xf32> to vector<8x256xbf16>
    %c0_56 = arith.constant 0 : index
    %c2816 = arith.constant 2816 : index
    %181 = vector.load %arg11[%c0_56, %c2816] : memref<8x3328xbf16, #tpu.memory_space<vmem>>, vector<8x256xbf16>
    tpu.vector_store %arg11[%c0_56, %c2816], %180 {strides = array<i32>} : memref<8x3328xbf16, #tpu.memory_space<vmem>>, vector<8x256xbf16>,
    %c0_57 = arith.constant 0 : index
    %c1536_58 = arith.constant 1536 : index
    %182 = vector.load %arg1[%c0_57, %c1536_58] : memref<8x1664xbf16, #tpu.memory_space<vmem>>, vector<8x128xbf16>
    %cst_59 = arith.constant dense<0.000000e+00> : vector<8x1024xf32>
    %183 = tpu.matmul %182, %0, %cst_59 {dimension_numbers = #tpu.dot_dimension_numbers<[1], [0], [0], [1], [0, 0, 1, 1], [], []>} : vector<8x128xbf16>, vector<128x1024xbf16>, vector<8x1024xf32> -> vector<8x1024xf32>
    %184 = vector.extract_strided_slice %183 {offsets = [0, 0], sizes = [8, 256], strides = [1, 1]} : vector<8x1024xf32> to vector<8x256xf32>
    %185 = vector.extract_strided_slice %183 {offsets = [0, 256], sizes = [8, 256], strides = [1, 1]} : vector<8x1024xf32> to vector<8x256xf32>
    %186 = arith.maximumf %184, %185 : vector<8x256xf32>
    %187 = vector.extract_strided_slice %183 {offsets = [0, 512], sizes = [8, 256], strides = [1, 1]} : vector<8x1024xf32> to vector<8x256xf32>
    %188 = vector.extract_strided_slice %183 {offsets = [0, 768], sizes = [8, 256], strides = [1, 1]} : vector<8x1024xf32> to vector<8x256xf32>
    %189 = arith.maximumf %187, %188 : vector<8x256xf32>
    %190 = arith.maximumf %186, %189 : vector<8x256xf32>
    %191 = vector.broadcast %1 : vector<1x256xf32> to vector<8x256xf32>
    %192 = arith.addf %190, %191 : vector<8x256xf32>
    %cst_60 = arith.constant 0.000000e+00 : f32
    %193 = vector.broadcast %cst_60 : f32 to vector<8x256xf32>
    %194 = arith.maximumf %192, %193 : vector<8x256xf32>
    %195 = arith.truncf %194 : vector<8x256xf32> to vector<8x256xbf16>
    %c0_61 = arith.constant 0 : index
    %c3072 = arith.constant 3072 : index
    %196 = vector.load %arg11[%c0_61, %c3072] : memref<8x3328xbf16, #tpu.memory_space<vmem>>, vector<8x256xbf16>
    tpu.vector_store %arg11[%c0_61, %c3072], %195 {strides = array<i32>} : memref<8x3328xbf16, #tpu.memory_space<vmem>>, vector<8x256xbf16>,
    %c0_62 = arith.constant 0 : index
    %c0_63 = arith.constant 0 : index
    %197 = vector.load %arg4[%c0_62, %c0_63] : memref<1024x1024xbf16, #tpu.memory_space<vmem>>, vector<1024x1024xbf16>
    %c0_64 = arith.constant 0 : index
    %c0_65 = arith.constant 0 : index
    %198 = vector.load %arg5[%c0_64, %c0_65] : memref<1x256xf32, #tpu.memory_space<vmem>>, vector<1x256xf32>
    %c0_66 = arith.constant 0 : index
    %c0_67 = arith.constant 0 : index
    %199 = vector.load %arg11[%c0_66, %c0_67] : memref<8x3328xbf16, #tpu.memory_space<vmem>>, vector<8x1024xbf16>
    %cst_68 = arith.constant dense<0.000000e+00> : vector<8x1024xf32>
    %200 = tpu.matmul %199, %197, %cst_68 {dimension_numbers = #tpu.dot_dimension_numbers<[1], [0], [0], [1], [0, 0, 1, 1], [], []>} : vector<8x1024xbf16>, vector<1024x1024xbf16>, vector<8x1024xf32> -> vector<8x1024xf32>
    %201 = vector.extract_strided_slice %200 {offsets = [0, 0], sizes = [8, 256], strides = [1, 1]} : vector<8x1024xf32> to vector<8x256xf32>
    %202 = vector.extract_strided_slice %200 {offsets = [0, 256], sizes = [8, 256], strides = [1, 1]} : vector<8x1024xf32> to vector<8x256xf32>
    %203 = arith.maximumf %201, %202 : vector<8x256xf32>
    %204 = vector.extract_strided_slice %200 {offsets = [0, 512], sizes = [8, 256], strides = [1, 1]} : vector<8x1024xf32> to vector<8x256xf32>
    %205 = vector.extract_strided_slice %200 {offsets = [0, 768], sizes = [8, 256], strides = [1, 1]} : vector<8x1024xf32> to vector<8x256xf32>
    %206 = arith.maximumf %204, %205 : vector<8x256xf32>
    %207 = arith.maximumf %203, %206 : vector<8x256xf32>
    %208 = vector.broadcast %198 : vector<1x256xf32> to vector<8x256xf32>
    %209 = arith.addf %207, %208 : vector<8x256xf32>
    %cst_69 = arith.constant 0.000000e+00 : f32
    %210 = vector.broadcast %cst_69 : f32 to vector<8x256xf32>
    %211 = arith.maximumf %209, %210 : vector<8x256xf32>
    %212 = arith.truncf %211 : vector<8x256xf32> to vector<8x256xbf16>
    %c0_70 = arith.constant 0 : index
    %c0_71 = arith.constant 0 : index
    %213 = vector.load %arg12[%c0_70, %c0_71] : memref<8x1280xbf16, #tpu.memory_space<vmem>>, vector<8x256xbf16>
    tpu.vector_store %arg12[%c0_70, %c0_71], %212 {strides = array<i32>} : memref<8x1280xbf16, #tpu.memory_space<vmem>>, vector<8x256xbf16>,
    %c0_72 = arith.constant 0 : index
    %c512_73 = arith.constant 512 : index
    %214 = vector.load %arg11[%c0_72, %c512_73] : memref<8x3328xbf16, #tpu.memory_space<vmem>>, vector<8x1024xbf16>
    %cst_74 = arith.constant dense<0.000000e+00> : vector<8x1024xf32>
    %215 = tpu.matmul %214, %197, %cst_74 {dimension_numbers = #tpu.dot_dimension_numbers<[1], [0], [0], [1], [0, 0, 1, 1], [], []>} : vector<8x1024xbf16>, vector<1024x1024xbf16>, vector<8x1024xf32> -> vector<8x1024xf32>
    %216 = vector.extract_strided_slice %215 {offsets = [0, 0], sizes = [8, 256], strides = [1, 1]} : vector<8x1024xf32> to vector<8x256xf32>
    %217 = vector.extract_strided_slice %215 {offsets = [0, 256], sizes = [8, 256], strides = [1, 1]} : vector<8x1024xf32> to vector<8x256xf32>
    %218 = arith.maximumf %216, %217 : vector<8x256xf32>
    %219 = vector.extract_strided_slice %215 {offsets = [0, 512], sizes = [8, 256], strides = [1, 1]} : vector<8x1024xf32> to vector<8x256xf32>
    %220 = vector.extract_strided_slice %215 {offsets = [0, 768], sizes = [8, 256], strides = [1, 1]} : vector<8x1024xf32> to vector<8x256xf32>
    %221 = arith.maximumf %219, %220 : vector<8x256xf32>
    %222 = arith.maximumf %218, %221 : vector<8x256xf32>
    %223 = vector.broadcast %198 : vector<1x256xf32> to vector<8x256xf32>
    %224 = arith.addf %222, %223 : vector<8x256xf32>
    %cst_75 = arith.constant 0.000000e+00 : f32
    %225 = vector.broadcast %cst_75 : f32 to vector<8x256xf32>
    %226 = arith.maximumf %224, %225 : vector<8x256xf32>
    %227 = arith.truncf %226 : vector<8x256xf32> to vector<8x256xbf16>
    %c0_76 = arith.constant 0 : index
    %c256_77 = arith.constant 256 : index
    %228 = vector.load %arg12[%c0_76, %c256_77] : memref<8x1280xbf16, #tpu.memory_space<vmem>>, vector<8x256xbf16>
    tpu.vector_store %arg12[%c0_76, %c256_77], %227 {strides = array<i32>} : memref<8x1280xbf16, #tpu.memory_space<vmem>>, vector<8x256xbf16>,
    %c0_78 = arith.constant 0 : index
    %c1024_79 = arith.constant 1024 : index
    %229 = vector.load %arg11[%c0_78, %c1024_79] : memref<8x3328xbf16, #tpu.memory_space<vmem>>, vector<8x1024xbf16>
    %cst_80 = arith.constant dense<0.000000e+00> : vector<8x1024xf32>
    %230 = tpu.matmul %229, %197, %cst_80 {dimension_numbers = #tpu.dot_dimension_numbers<[1], [0], [0], [1], [0, 0, 1, 1], [], []>} : vector<8x1024xbf16>, vector<1024x1024xbf16>, vector<8x1024xf32> -> vector<8x1024xf32>
    %231 = vector.extract_strided_slice %230 {offsets = [0, 0], sizes = [8, 256], strides = [1, 1]} : vector<8x1024xf32> to vector<8x256xf32>
    %232 = vector.extract_strided_slice %230 {offsets = [0, 256], sizes = [8, 256], strides = [1, 1]} : vector<8x1024xf32> to vector<8x256xf32>
    %233 = arith.maximumf %231, %232 : vector<8x256xf32>
    %234 = vector.extract_strided_slice %230 {offsets = [0, 512], sizes = [8, 256], strides = [1, 1]} : vector<8x1024xf32> to vector<8x256xf32>
    %235 = vector.extract_strided_slice %230 {offsets = [0, 768], sizes = [8, 256], strides = [1, 1]} : vector<8x1024xf32> to vector<8x256xf32>
    %236 = arith.maximumf %234, %235 : vector<8x256xf32>
    %237 = arith.maximumf %233, %236 : vector<8x256xf32>
    %238 = vector.broadcast %198 : vector<1x256xf32> to vector<8x256xf32>
    %239 = arith.addf %237, %238 : vector<8x256xf32>
    %cst_81 = arith.constant 0.000000e+00 : f32
    %240 = vector.broadcast %cst_81 : f32 to vector<8x256xf32>
    %241 = arith.maximumf %239, %240 : vector<8x256xf32>
    %242 = arith.truncf %241 : vector<8x256xf32> to vector<8x256xbf16>
    %c0_82 = arith.constant 0 : index
    %c512_83 = arith.constant 512 : index
    %243 = vector.load %arg12[%c0_82, %c512_83] : memref<8x1280xbf16, #tpu.memory_space<vmem>>, vector<8x256xbf16>
    tpu.vector_store %arg12[%c0_82, %c512_83], %242 {strides = array<i32>} : memref<8x1280xbf16, #tpu.memory_space<vmem>>, vector<8x256xbf16>,
    %c0_84 = arith.constant 0 : index
    %c1536_85 = arith.constant 1536 : index
    %244 = vector.load %arg11[%c0_84, %c1536_85] : memref<8x3328xbf16, #tpu.memory_space<vmem>>, vector<8x1024xbf16>
    %cst_86 = arith.constant dense<0.000000e+00> : vector<8x1024xf32>
    %245 = tpu.matmul %244, %197, %cst_86 {dimension_numbers = #tpu.dot_dimension_numbers<[1], [0], [0], [1], [0, 0, 1, 1], [], []>} : vector<8x1024xbf16>, vector<1024x1024xbf16>, vector<8x1024xf32> -> vector<8x1024xf32>
    %246 = vector.extract_strided_slice %245 {offsets = [0, 0], sizes = [8, 256], strides = [1, 1]} : vector<8x1024xf32> to vector<8x256xf32>
    %247 = vector.extract_strided_slice %245 {offsets = [0, 256], sizes = [8, 256], strides = [1, 1]} : vector<8x1024xf32> to vector<8x256xf32>
    %248 = arith.maximumf %246, %247 : vector<8x256xf32>
    %249 = vector.extract_strided_slice %245 {offsets = [0, 512], sizes = [8, 256], strides = [1, 1]} : vector<8x1024xf32> to vector<8x256xf32>
    %250 = vector.extract_strided_slice %245 {offsets = [0, 768], sizes = [8, 256], strides = [1, 1]} : vector<8x1024xf32> to vector<8x256xf32>
    %251 = arith.maximumf %249, %250 : vector<8x256xf32>
    %252 = arith.maximumf %248, %251 : vector<8x256xf32>
    %253 = vector.broadcast %198 : vector<1x256xf32> to vector<8x256xf32>
    %254 = arith.addf %252, %253 : vector<8x256xf32>
    %cst_87 = arith.constant 0.000000e+00 : f32
    %255 = vector.broadcast %cst_87 : f32 to vector<8x256xf32>
    %256 = arith.maximumf %254, %255 : vector<8x256xf32>
    %257 = arith.truncf %256 : vector<8x256xf32> to vector<8x256xbf16>
    %c0_88 = arith.constant 0 : index
    %c768_89 = arith.constant 768 : index
    %258 = vector.load %arg12[%c0_88, %c768_89] : memref<8x1280xbf16, #tpu.memory_space<vmem>>, vector<8x256xbf16>
    tpu.vector_store %arg12[%c0_88, %c768_89], %257 {strides = array<i32>} : memref<8x1280xbf16, #tpu.memory_space<vmem>>, vector<8x256xbf16>,
    %c0_90 = arith.constant 0 : index
    %c2048_91 = arith.constant 2048 : index
    %259 = vector.load %arg11[%c0_90, %c2048_91] : memref<8x3328xbf16, #tpu.memory_space<vmem>>, vector<8x1024xbf16>
    %cst_92 = arith.constant dense<0.000000e+00> : vector<8x1024xf32>
    %260 = tpu.matmul %259, %197, %cst_92 {dimension_numbers = #tpu.dot_dimension_numbers<[1], [0], [0], [1], [0, 0, 1, 1], [], []>} : vector<8x1024xbf16>, vector<1024x1024xbf16>, vector<8x1024xf32> -> vector<8x1024xf32>
    %261 = vector.extract_strided_slice %260 {offsets = [0, 0], sizes = [8, 256], strides = [1, 1]} : vector<8x1024xf32> to vector<8x256xf32>
    %262 = vector.extract_strided_slice %260 {offsets = [0, 256], sizes = [8, 256], strides = [1, 1]} : vector<8x1024xf32> to vector<8x256xf32>
    %263 = arith.maximumf %261, %262 : vector<8x256xf32>
    %264 = vector.extract_strided_slice %260 {offsets = [0, 512], sizes = [8, 256], strides = [1, 1]} : vector<8x1024xf32> to vector<8x256xf32>
    %265 = vector.extract_strided_slice %260 {offsets = [0, 768], sizes = [8, 256], strides = [1, 1]} : vector<8x1024xf32> to vector<8x256xf32>
    %266 = arith.maximumf %264, %265 : vector<8x256xf32>
    %267 = arith.maximumf %263, %266 : vector<8x256xf32>
    %268 = vector.broadcast %198 : vector<1x256xf32> to vector<8x256xf32>
    %269 = arith.addf %267, %268 : vector<8x256xf32>
    %cst_93 = arith.constant 0.000000e+00 : f32
    %270 = vector.broadcast %cst_93 : f32 to vector<8x256xf32>
    %271 = arith.maximumf %269, %270 : vector<8x256xf32>
    %272 = arith.truncf %271 : vector<8x256xf32> to vector<8x256xbf16>
    %c0_94 = arith.constant 0 : index
    %c1024_95 = arith.constant 1024 : index
    %273 = vector.load %arg12[%c0_94, %c1024_95] : memref<8x1280xbf16, #tpu.memory_space<vmem>>, vector<8x256xbf16>
    tpu.vector_store %arg12[%c0_94, %c1024_95], %272 {strides = array<i32>} : memref<8x1280xbf16, #tpu.memory_space<vmem>>, vector<8x256xbf16>,
    %c0_96 = arith.constant 0 : index
    %c0_97 = arith.constant 0 : index
    %274 = vector.load %arg12[%c0_96, %c0_97] : memref<8x1280xbf16, #tpu.memory_space<vmem>>, vector<8x1280xbf16>
    %c0_98 = arith.constant 0 : index
    %c0_99 = arith.constant 0 : index
    %275 = vector.load %arg6[%c0_98, %c0_99] : memref<1280x32xbf16, #tpu.memory_space<vmem>>, vector<1280x32xbf16>
    %cst_100 = arith.constant dense<0.000000e+00> : vector<8x32xf32>
    %276 = tpu.matmul %274, %275, %cst_100 {dimension_numbers = #tpu.dot_dimension_numbers<[1], [0], [0], [1], [0, 0, 1, 1], [], []>} : vector<8x1280xbf16>, vector<1280x32xbf16>, vector<8x32xf32> -> vector<8x32xf32>
    %c0_101 = arith.constant 0 : index
    %c0_102 = arith.constant 0 : index
    %277 = vector.load %arg7[%c0_101, %c0_102] : memref<1x32xf32, #tpu.memory_space<vmem>>, vector<1x32xf32>
    %278 = vector.broadcast %277 : vector<1x32xf32> to vector<8x32xf32>
    %279 = arith.addf %276, %278 : vector<8x32xf32>
    %cst_103 = arith.constant 0.000000e+00 : f32
    %280 = vector.broadcast %cst_103 : f32 to vector<8x32xf32>
    %281 = arith.maximumf %279, %280 : vector<8x32xf32>
    %282 = arith.truncf %281 : vector<8x32xf32> to vector<8x32xbf16>
    %c0_104 = arith.constant 0 : index
    %c0_105 = arith.constant 0 : index
    %283 = vector.load %arg8[%c0_104, %c0_105] : memref<32x128xbf16, #tpu.memory_space<vmem>>, vector<32x128xbf16>
    %cst_106 = arith.constant dense<0.000000e+00> : vector<8x128xf32>
    %284 = tpu.matmul %282, %283, %cst_106 {dimension_numbers = #tpu.dot_dimension_numbers<[1], [0], [0], [1], [0, 0, 1, 1], [], []>} : vector<8x32xbf16>, vector<32x128xbf16>, vector<8x128xf32> -> vector<8x128xf32>
    %c0_107 = arith.constant 0 : index
    %c0_108 = arith.constant 0 : index
    %285 = vector.load %arg9[%c0_107, %c0_108] : memref<1x128xf32, #tpu.memory_space<vmem>>, vector<1x128xf32>
    %286 = vector.broadcast %285 : vector<1x128xf32> to vector<8x128xf32>
    %287 = arith.addf %284, %286 : vector<8x128xf32>
    %c0_109 = arith.constant 0 : index
    %c0_110 = arith.constant 0 : index
    %288 = vector.load %arg10[%c0_109, %c0_110] : memref<8x128xf32, #tpu.memory_space<vmem>>, vector<8x128xf32>
    tpu.vector_store %arg10[%c0_109, %c0_110], %287 {strides = array<i32>} : memref<8x128xf32, #tpu.memory_space<vmem>>, vector<8x128xf32>,
    return
  }
  func.func @transform_0(%arg0: i32) -> (i32, i32) {
    %c0_i32 = arith.constant 0 : i32
    %c0_i32_0 = arith.constant 0 : i32
    return %arg0, %c0_i32 : i32, i32
  }
  func.func @transform_1(%arg0: i32) -> (i32, i32) {
    %c0_i32 = arith.constant 0 : i32
    %c0_i32_0 = arith.constant 0 : i32
    %c0_i32_1 = arith.constant 0 : i32
    return %c0_i32, %c0_i32_0 : i32, i32
  }
  func.func @transform_2(%arg0: i32) -> (i32, i32) {
    %c0_i32 = arith.constant 0 : i32
    %c0_i32_0 = arith.constant 0 : i32
    %c0_i32_1 = arith.constant 0 : i32
    return %c0_i32, %c0_i32_0 : i32, i32
  }
  func.func @transform_3(%arg0: i32) -> (i32, i32) {
    %c0_i32 = arith.constant 0 : i32
    %c0_i32_0 = arith.constant 0 : i32
    %c0_i32_1 = arith.constant 0 : i32
    return %c0_i32, %c0_i32_0 : i32, i32
  }
  func.func @transform_4(%arg0: i32) -> (i32, i32) {
    %c0_i32 = arith.constant 0 : i32
    %c0_i32_0 = arith.constant 0 : i32
    %c0_i32_1 = arith.constant 0 : i32
    return %c0_i32, %c0_i32_0 : i32, i32
  }
  func.func @transform_5(%arg0: i32) -> (i32, i32) {
    %c0_i32 = arith.constant 0 : i32
    %c0_i32_0 = arith.constant 0 : i32
    %c0_i32_1 = arith.constant 0 : i32
    return %c0_i32, %c0_i32_0 : i32, i32
  }
  func.func @transform_6(%arg0: i32) -> (i32, i32) {
    %c0_i32 = arith.constant 0 : i32
    %c0_i32_0 = arith.constant 0 : i32
    %c0_i32_1 = arith.constant 0 : i32
    return %c0_i32, %c0_i32_0 : i32, i32
  }
  func.func @transform_7(%arg0: i32) -> (i32, i32) {
    %c0_i32 = arith.constant 0 : i32
    %c0_i32_0 = arith.constant 0 : i32
    %c0_i32_1 = arith.constant 0 : i32
    return %c0_i32, %c0_i32_0 : i32, i32
  }
  func.func @transform_8(%arg0: i32) -> (i32, i32) {
    %c0_i32 = arith.constant 0 : i32
    %c0_i32_0 = arith.constant 0 : i32
    %c0_i32_1 = arith.constant 0 : i32
    return %c0_i32, %c0_i32_0 : i32, i32
  }
  func.func @transform_9(%arg0: i32) -> (i32, i32) {
    %c0_i32 = arith.constant 0 : i32
    %c0_i32_0 = arith.constant 0 : i32
    return %arg0, %c0_i32 : i32, i32
  }
}

</mosaic_0001>

<llo_original>
// kernel: cnn_fused_forward.1
$region0: #{cnn_fused_forward.1}
  #allocation0 [shape = 'u32[]', space=smem, size = 0x4, offset = 0x4, fixed_abs, tag = 'smem constant byte address 0x4 - core index']
  #allocation1 [shape = 'u32[144,128]{1,0:T(1,128)}', space=vmem, size = 0x12000, scoped, tag = 'internal scratch']
  #allocation2 [shape = 'bf16[8,3328]{1,0:T(8,128)(2,1)}', space=vmem, size = 0xd000, scoped, tag = 'scratch operand']
  #allocation3 [shape = 'bf16[8,1280]{1,0:T(8,128)(2,1)}', space=vmem, size = 0x5000, scoped, tag = 'scratch operand']
  %s0 = inlined_call_operand.vmem [shape: bf16[8,1664], index: 0, kind: input, shape index: {}]
  %s1 = inlined_call_operand.hbm [shape: bf16[128,1024], index: 1, kind: input, shape index: {}]
  %s2 = inlined_call_operand.hbm [shape: f32[1,256], index: 2, kind: input, shape index: {}]
  %s3 = inlined_call_operand.hbm [shape: bf16[1024,1024], index: 3, kind: input, shape index: {}]
  %s4 = inlined_call_operand.hbm [shape: f32[1,256], index: 4, kind: input, shape index: {}]
  %s5 = inlined_call_operand.vmem [shape: bf16[1280,32], index: 5, kind: input, shape index: {}]
  %s6 = inlined_call_operand.hbm [shape: f32[1,32], index: 6, kind: input, shape index: {}]
  %s7 = inlined_call_operand.hbm [shape: bf16[32,128], index: 7, kind: input, shape index: {}]
  %s8 = inlined_call_operand.hbm [shape: f32[1,128], index: 8, kind: input, shape index: {}]
  %s9 = inlined_call_operand.vmem [shape: f32[8,128], index: 9, kind: output, shape index: {}]
  %s10 = sld [smem:[#allocation0]]
  $region74: #{cnn_fused_forward.1} parent=0
    _
  %s12 = ssub.s32 1, %s10
  %s13 = scalar_select 0, %s12, %s10
  $region1: #{cnn_fused_forward.1} parent=0
    #allocation4 [shape = 'u8[262144]{0}', space=vmem, size = 0x40000, scoped, tag = 'input window, operand 1, single buffered']
    #allocation5 [shape = 's32[1]{0}', space=sflag, size = 0x4, scoped, tag = 'scoped memory for cnn_fused_forward.1']
    #allocation6 [shape = 'u8[1024]{0}', space=vmem, size = 0x400, scoped, tag = 'input window, operand 2, single buffered']
    #allocation7 [shape = 's32[1]{0}', space=sflag, size = 0x4, scoped, tag = 'scoped memory for cnn_fused_forward.1']
    #allocation8 [shape = 'u8[2097152]{0}', space=vmem, size = 0x200000, scoped, tag = 'input window, operand 3, single buffered']
    #allocation9 [shape = 'u8[1024]{0}', space=vmem, size = 0x400, scoped, tag = 'input window, operand 4, single buffered']
    #allocation10 [shape = 's32[1]{0}', space=sflag, size = 0x4, scoped, tag = 'scoped memory for cnn_fused_forward.1']
    #allocation11 [shape = 'u8[512]{0}', space=vmem, size = 0x400, scoped, tag = 'input window, operand 6, single buffered']
    #allocation12 [shape = 'u8[8192]{0}', space=vmem, size = 0x2000, scoped, tag = 'input window, operand 7, single buffered']
    #allocation13 [shape = 's32[1]{0}', space=sflag, size = 0x4, scoped, tag = 'scoped memory for cnn_fused_forward.1']
    #allocation14 [shape = 'u8[512]{0}', space=vmem, size = 0x400, scoped, tag = 'input window, operand 8, single buffered']
    %14 = vsyncpa [#allocation5], 0
    %15 = vsyncpa [#allocation7], 0
    %16 = vsyncpa [#allocation10], 0
    %17 = vsyncpa [#allocation13], 0
    // Predicated region
    $region2: #{cnn_fused_forward.1} parent=1 // pred_check
      _
    $region3: #{cnn_fused_forward.1} parent=1 // pred_check_branch
      %19 = sbr.rel (0) target = $region5
    $region4: #{cnn_fused_forward.1} parent=1 // pred_region
      _
    $region5: #{cnn_fused_forward.1} parent=1 // pred_fallthru
      _
    // Predicated region
    $region6: #{cnn_fused_forward.1} parent=1 // pred_check
      _
    $region7: #{cnn_fused_forward.1} parent=1 // pred_check_branch
      %21 = sbr.rel (0) target = $region9
    $region8: #{cnn_fused_forward.1} parent=1 // pred_region
      %s23 = ssub.s32 8192, 8192
      %24 = vsyncadd [#allocation5], %s23
      %s25 = sshll.u32 [#allocation4], 4
      %s26 = int_to_ptr.vmem [resolvable:$true] %s25
      %31 = dma.hbm_to_vmem [thread:$0]  %s1, 8192, %s26, [#allocation5], 512, 512, 32
    $region9: #{cnn_fused_forward.1} parent=1 // pred_fallthru
      _
    // Predicated region
    $region10: #{cnn_fused_forward.1} parent=1 // pred_check
      _
    $region11: #{cnn_fused_forward.1} parent=1 // pred_check_branch
      %33 = sbr.rel (0) target = $region13
    $region12: #{cnn_fused_forward.1} parent=1 // pred_region
      %s35 = ssub.s32 32, 32
      %36 = vsyncadd [#allocation7], %s35
      %s38 = sshll.u32 [#allocation6], 4
      %s39 = int_to_ptr.vmem [resolvable:$true] %s38
      %41 = dma.hbm_to_vmem [thread:$0]  %s2, 32, %s39, [#allocation7]
    $region13: #{cnn_fused_forward.1} parent=1 // pred_fallthru
      _
    // Predicated region
    $region14: #{cnn_fused_forward.1} parent=1 // pred_check
      _
    $region15: #{cnn_fused_forward.1} parent=1 // pred_check_branch
      %43 = sbr.rel (0) target = $region17
    $region16: #{cnn_fused_forward.1} parent=1 // pred_region
      %s45 = ssub.s32 65536, 65536
      %46 = vsyncadd [#allocation7], %s45
      %s47 = sshll.u32 [#allocation8], 4
      %s48 = int_to_ptr.vmem [resolvable:$true] %s47
      %53 = dma.hbm_to_vmem [thread:$0]  %s3, 65536, %s48, [#allocation7], 512, 512, 32
    $region17: #{cnn_fused_forward.1} parent=1 // pred_fallthru
      _
    // Predicated region
    $region18: #{cnn_fused_forward.1} parent=1 // pred_check
      _
    $region19: #{cnn_fused_forward.1} parent=1 // pred_check_branch
      %55 = sbr.rel (0) target = $region21
    $region20: #{cnn_fused_forward.1} parent=1 // pred_region
      %s57 = ssub.s32 32, 32
      %58 = vsyncadd [#allocation10], %s57
      %s60 = sshll.u32 [#allocation9], 4
      %s61 = int_to_ptr.vmem [resolvable:$true] %s60
      %63 = dma.hbm_to_vmem [thread:$0]  %s4, 32, %s61, [#allocation10]
    $region21: #{cnn_fused_forward.1} parent=1 // pred_fallthru
      _
    // Predicated region
    $region22: #{cnn_fused_forward.1} parent=1 // pred_check
      _
    $region23: #{cnn_fused_forward.1} parent=1 // pred_check_branch
      %65 = sbr.rel (0) target = $region25
    $region24: #{cnn_fused_forward.1} parent=1 // pred_region
      _
    $region25: #{cnn_fused_forward.1} parent=1 // pred_fallthru
      _
    // Predicated region
    $region26: #{cnn_fused_forward.1} parent=1 // pred_check
      _
    $region27: #{cnn_fused_forward.1} parent=1 // pred_check_branch
      %67 = sbr.rel (0) target = $region29
    $region28: #{cnn_fused_forward.1} parent=1 // pred_region
      %s69 = ssub.s32 16, 16
      %70 = vsyncadd [#allocation10], %s69
      %s72 = sshll.u32 [#allocation11], 4
      %s73 = int_to_ptr.vmem [resolvable:$true] %s72
      %75 = dma.hbm_to_vmem [thread:$0]  %s6, 16, %s73, [#allocation10]
    $region29: #{cnn_fused_forward.1} parent=1 // pred_fallthru
      _
    // Predicated region
    $region30: #{cnn_fused_forward.1} parent=1 // pred_check
      _
    $region31: #{cnn_fused_forward.1} parent=1 // pred_check_branch
      %77 = sbr.rel (0) target = $region33
    $region32: #{cnn_fused_forward.1} parent=1 // pred_region
      %s79 = ssub.s32 256, 256
      %80 = vsyncadd [#allocation13], %s79
      %s81 = sshll.u32 [#allocation12], 4
      %s82 = int_to_ptr.vmem [resolvable:$true] %s81
      %87 = dma.hbm_to_vmem [thread:$0]  %s7, 256, %s82, [#allocation13], 64, 64, 4
    $region33: #{cnn_fused_forward.1} parent=1 // pred_fallthru
      _
    // Predicated region
    $region34: #{cnn_fused_forward.1} parent=1 // pred_check
      _
    $region35: #{cnn_fused_forward.1} parent=1 // pred_check_branch
      %89 = sbr.rel (0) target = $region37
    $region36: #{cnn_fused_forward.1} parent=1 // pred_region
      %s91 = ssub.s32 16, 16
      %92 = vsyncadd [#allocation13], %s91
      %s94 = sshll.u32 [#allocation14], 4
      %s95 = int_to_ptr.vmem [resolvable:$true] %s94
      %97 = dma.hbm_to_vmem [thread:$0]  %s8, 16, %s95, [#allocation13]
    $region37: #{cnn_fused_forward.1} parent=1 // pred_fallthru
      _
    // Predicated region
    $region38: #{cnn_fused_forward.1} parent=1 // pred_check
      _
    $region39: #{cnn_fused_forward.1} parent=1 // pred_check_branch
      %99 = sbr.rel (0) target = $region41
    $region40: #{cnn_fused_forward.1} parent=1 // pred_region
      %100 = dma.done [#allocation5], 8192
    $region41: #{cnn_fused_forward.1} parent=1 // pred_fallthru
      _
    // Predicated region
    $region42: #{cnn_fused_forward.1} parent=1 // pred_check
      _
    $region43: #{cnn_fused_forward.1} parent=1 // pred_check_branch
      %102 = sbr.rel (0) target = $region45
    $region44: #{cnn_fused_forward.1} parent=1 // pred_region
      %103 = dma.done [#allocation7], 32
    $region45: #{cnn_fused_forward.1} parent=1 // pred_fallthru
      _
    // Predicated region
    $region46: #{cnn_fused_forward.1} parent=1 // pred_check
      _
    $region47: #{cnn_fused_forward.1} parent=1 // pred_check_branch
      %105 = sbr.rel (0) target = $region49
    $region48: #{cnn_fused_forward.1} parent=1 // pred_region
      %106 = dma.done [#allocation7], 65536
    $region49: #{cnn_fused_forward.1} parent=1 // pred_fallthru
      _
    // Predicated region
    $region50: #{cnn_fused_forward.1} parent=1 // pred_check
      _
    $region51: #{cnn_fused_forward.1} parent=1 // pred_check_branch
      %108 = sbr.rel (0) target = $region53
    $region52: #{cnn_fused_forward.1} parent=1 // pred_region
      %109 = dma.done [#allocation10], 32
    $region53: #{cnn_fused_forward.1} parent=1 // pred_fallthru
      _
    // Predicated region
    $region54: #{cnn_fused_forward.1} parent=1 // pred_check
      _
    $region55: #{cnn_fused_forward.1} parent=1 // pred_check_branch
      %111 = sbr.rel (0) target = $region57
    $region56: #{cnn_fused_forward.1} parent=1 // pred_region
      %112 = dma.done [#allocation10], 16
    $region57: #{cnn_fused_forward.1} parent=1 // pred_fallthru
      _
    // Predicated region
    $region58: #{cnn_fused_forward.1} parent=1 // pred_check
      _
    $region59: #{cnn_fused_forward.1} parent=1 // pred_check_branch
      %114 = sbr.rel (0) target = $region61
    $region60: #{cnn_fused_forward.1} parent=1 // pred_region
      %115 = dma.done [#allocation13], 256
    $region61: #{cnn_fused_forward.1} parent=1 // pred_fallthru
      _
    // Predicated region
    $region62: #{cnn_fused_forward.1} parent=1 // pred_check
      _
    $region63: #{cnn_fused_forward.1} parent=1 // pred_check_branch
      %117 = sbr.rel (0) target = $region65
    $region64: #{cnn_fused_forward.1} parent=1 // pred_region
      %118 = dma.done [#allocation13], 16
    $region65: #{cnn_fused_forward.1} parent=1 // pred_fallthru
      _
    %v120 = vld [vmem:[#allocation4] sm:$0xff]
    %v121 = vld [vmem:[#allocation4 + $0x8] sm:$0xff]
    %v122 = vld [vmem:[#allocation4 + $0x10] sm:$0xff]
    %v123 = vld [vmem:[#allocation4 + $0x18] sm:$0xff]
    %v124 = vld [vmem:[#allocation4 + $0x20] sm:$0xff]
    %v125 = vld [vmem:[#allocation4 + $0x28] sm:$0xff]
    %v126 = vld [vmem:[#allocation4 + $0x30] sm:$0xff]
    %v127 = vld [vmem:[#allocation4 + $0x38] sm:$0xff]
    %v128 = vld [vmem:[#allocation4 + $0x40] sm:$0xff]
    %v129 = vld [vmem:[#allocation4 + $0x48] sm:$0xff]
    %v130 = vld [vmem:[#allocation4 + $0x50] sm:$0xff]
    %v131 = vld [vmem:[#allocation4 + $0x58] sm:$0xff]
    %v132 = vld [vmem:[#allocation4 + $0x60] sm:$0xff]
    %v133 = vld [vmem:[#allocation4 + $0x68] sm:$0xff]
    %v134 = vld [vmem:[#allocation4 + $0x70] sm:$0xff]
    %v135 = vld [vmem:[#allocation4 + $0x78] sm:$0xff]
    %v136 = vld [vmem:[#allocation4 + $0x80] sm:$0xff]
    %v137 = vld [vmem:[#allocation4 + $0x88] sm:$0xff]
    %v138 = vld [vmem:[#allocation4 + $0x90] sm:$0xff]
    %v139 = vld [vmem:[#allocation4 + $0x98] sm:$0xff]
    %v140 = vld [vmem:[#allocation4 + $0xa0] sm:$0xff]
    %v141 = vld [vmem:[#allocation4 + $0xa8] sm:$0xff]
    %v142 = vld [vmem:[#allocation4 + $0xb0] sm:$0xff]
    %v143 = vld [vmem:[#allocation4 + $0xb8] sm:$0xff]
    %v144 = vld [vmem:[#allocation4 + $0xc0] sm:$0xff]
    %v145 = vld [vmem:[#allocation4 + $0xc8] sm:$0xff]
    %v146 = vld [vmem:[#allocation4 + $0xd0] sm:$0xff]
    %v147 = vld [vmem:[#allocation4 + $0xd8] sm:$0xff]
    %v148 = vld [vmem:[#allocation4 + $0xe0] sm:$0xff]
    %v149 = vld [vmem:[#allocation4 + $0xe8] sm:$0xff]
    %v150 = vld [vmem:[#allocation4 + $0xf0] sm:$0xff]
    %v151 = vld [vmem:[#allocation4 + $0xf8] sm:$0xff]
    %v152 = vld [vmem:[#allocation4 + $0x100] sm:$0xff]
    %v153 = vld [vmem:[#allocation4 + $0x108] sm:$0xff]
    %v154 = vld [vmem:[#allocation4 + $0x110] sm:$0xff]
    %v155 = vld [vmem:[#allocation4 + $0x118] sm:$0xff]
    %v156 = vld [vmem:[#allocation4 + $0x120] sm:$0xff]
    %v157 = vld [vmem:[#allocation4 + $0x128] sm:$0xff]
    %v158 = vld [vmem:[#allocation4 + $0x130] sm:$0xff]
    %v159 = vld [vmem:[#allocation4 + $0x138] sm:$0xff]
    %v160 = vld [vmem:[#allocation4 + $0x140] sm:$0xff]
    %v161 = vld [vmem:[#allocation4 + $0x148] sm:$0xff]
    %v162 = vld [vmem:[#allocation4 + $0x150] sm:$0xff]
    %v163 = vld [vmem:[#allocation4 + $0x158] sm:$0xff]
    %v164 = vld [vmem:[#allocation4 + $0x160] sm:$0xff]
    %v165 = vld [vmem:[#allocation4 + $0x168] sm:$0xff]
    %v166 = vld [vmem:[#allocation4 + $0x170] sm:$0xff]
    %v167 = vld [vmem:[#allocation4 + $0x178] sm:$0xff]
    %v168 = vld [vmem:[#allocation4 + $0x180] sm:$0xff]
    %v169 = vld [vmem:[#allocation4 + $0x188] sm:$0xff]
    %v170 = vld [vmem:[#allocation4 + $0x190] sm:$0xff]
    %v171 = vld [vmem:[#allocation4 + $0x198] sm:$0xff]
    %v172 = vld [vmem:[#allocation4 + $0x1a0] sm:$0xff]
    %v173 = vld [vmem:[#allocation4 + $0x1a8] sm:$0xff]
    %v174 = vld [vmem:[#allocation4 + $0x1b0] sm:$0xff]
    %v175 = vld [vmem:[#allocation4 + $0x1b8] sm:$0xff]
    %v176 = vld [vmem:[#allocation4 + $0x1c0] sm:$0xff]
    %v177 = vld [vmem:[#allocation4 + $0x1c8] sm:$0xff]
    %v178 = vld [vmem:[#allocation4 + $0x1d0] sm:$0xff]
    %v179 = vld [vmem:[#allocation4 + $0x1d8] sm:$0xff]
    %v180 = vld [vmem:[#allocation4 + $0x1e0] sm:$0xff]
    %v181 = vld [vmem:[#allocation4 + $0x1e8] sm:$0xff]
    %v182 = vld [vmem:[#allocation4 + $0x1f0] sm:$0xff]
    %v183 = vld [vmem:[#allocation4 + $0x1f8] sm:$0xff]
    %v184 = vld [vmem:[#allocation6] sm:$0x3]
    %v185 = vld [vmem:[%s0] sm:$0xf]
    %v250 = vunpack.c.l.b16 %v120
    %v251 = vunpack.c.h.b16 %v120
    %v252 = vunpack.c.l.b16 %v121
    %v253 = vunpack.c.h.b16 %v121
    %v254 = vunpack.c.l.b16 %v122
    %v255 = vunpack.c.h.b16 %v122
    %v256 = vunpack.c.l.b16 %v123
    %v257 = vunpack.c.h.b16 %v123
    %v258 = vunpack.c.l.b16 %v124
    %v259 = vunpack.c.h.b16 %v124
    %v260 = vunpack.c.l.b16 %v125
    %v261 = vunpack.c.h.b16 %v125
    %v262 = vunpack.c.l.b16 %v126
    %v263 = vunpack.c.h.b16 %v126
    %v264 = vunpack.c.l.b16 %v127
    %v265 = vunpack.c.h.b16 %v127
    %v266 = vunpack.c.l.b16 %v128
    %v267 = vunpack.c.h.b16 %v128
    %v268 = vunpack.c.l.b16 %v129
    %v269 = vunpack.c.h.b16 %v129
    %v270 = vunpack.c.l.b16 %v130
    %v271 = vunpack.c.h.b16 %v130
    %v272 = vunpack.c.l.b16 %v131
    %v273 = vunpack.c.h.b16 %v131
    %v274 = vunpack.c.l.b16 %v132
    %v275 = vunpack.c.h.b16 %v132
    %v276 = vunpack.c.l.b16 %v133
    %v277 = vunpack.c.h.b16 %v133
    %v278 = vunpack.c.l.b16 %v134
    %v279 = vunpack.c.h.b16 %v134
    %v280 = vunpack.c.l.b16 %v135
    %v281 = vunpack.c.h.b16 %v135
    %v282 = vunpack.c.l.b16 %v136
    %v283 = vunpack.c.h.b16 %v136
    %v284 = vunpack.c.l.b16 %v137
    %v285 = vunpack.c.h.b16 %v137
    %v286 = vunpack.c.l.b16 %v138
    %v287 = vunpack.c.h.b16 %v138
    %v288 = vunpack.c.l.b16 %v139
    %v289 = vunpack.c.h.b16 %v139
    %v290 = vunpack.c.l.b16 %v140
    %v291 = vunpack.c.h.b16 %v140
    %v292 = vunpack.c.l.b16 %v141
    %v293 = vunpack.c.h.b16 %v141
    %v294 = vunpack.c.l.b16 %v142
    %v295 = vunpack.c.h.b16 %v142
    %v296 = vunpack.c.l.b16 %v143
    %v297 = vunpack.c.h.b16 %v143
    %v298 = vunpack.c.l.b16 %v144
    %v299 = vunpack.c.h.b16 %v144
    %v300 = vunpack.c.l.b16 %v145
    %v301 = vunpack.c.h.b16 %v145
    %v302 = vunpack.c.l.b16 %v146
    %v303 = vunpack.c.h.b16 %v146
    %v304 = vunpack.c.l.b16 %v147
    %v305 = vunpack.c.h.b16 %v147
    %v306 = vunpack.c.l.b16 %v148
    %v307 = vunpack.c.h.b16 %v148
    %v308 = vunpack.c.l.b16 %v149
    %v309 = vunpack.c.h.b16 %v149
    %v310 = vunpack.c.l.b16 %v150
    %v311 = vunpack.c.h.b16 %v150
    %v312 = vunpack.c.l.b16 %v151
    %v313 = vunpack.c.h.b16 %v151
    %v314 = vunpack.c.l.b16 %v152
    %v315 = vunpack.c.h.b16 %v152
    %v316 = vunpack.c.l.b16 %v153
    %v317 = vunpack.c.h.b16 %v153
    %v318 = vunpack.c.l.b16 %v154
    %v319 = vunpack.c.h.b16 %v154
    %v320 = vunpack.c.l.b16 %v155
    %v321 = vunpack.c.h.b16 %v155
    %v322 = vunpack.c.l.b16 %v156
    %v323 = vunpack.c.h.b16 %v156
    %v324 = vunpack.c.l.b16 %v157
    %v325 = vunpack.c.h.b16 %v157
    %v326 = vunpack.c.l.b16 %v158
    %v327 = vunpack.c.h.b16 %v158
    %v328 = vunpack.c.l.b16 %v159
    %v329 = vunpack.c.h.b16 %v159
    %v330 = vunpack.c.l.b16 %v160
    %v331 = vunpack.c.h.b16 %v160
    %v332 = vunpack.c.l.b16 %v161
    %v333 = vunpack.c.h.b16 %v161
    %v334 = vunpack.c.l.b16 %v162
    %v335 = vunpack.c.h.b16 %v162
    %v336 = vunpack.c.l.b16 %v163
    %v337 = vunpack.c.h.b16 %v163
    %v338 = vunpack.c.l.b16 %v164
    %v339 = vunpack.c.h.b16 %v164
    %v340 = vunpack.c.l.b16 %v165
    %v341 = vunpack.c.h.b16 %v165
    %v342 = vunpack.c.l.b16 %v166
    %v343 = vunpack.c.h.b16 %v166
    %v344 = vunpack.c.l.b16 %v167
    %v345 = vunpack.c.h.b16 %v167
    %v346 = vunpack.c.l.b16 %v168
    %v347 = vunpack.c.h.b16 %v168
    %v348 = vunpack.c.l.b16 %v169
    %v349 = vunpack.c.h.b16 %v169
    %v350 = vunpack.c.l.b16 %v170
    %v351 = vunpack.c.h.b16 %v170
    %v352 = vunpack.c.l.b16 %v171
    %v353 = vunpack.c.h.b16 %v171
    %v354 = vunpack.c.l.b16 %v172
    %v355 = vunpack.c.h.b16 %v172
    %v356 = vunpack.c.l.b16 %v173
    %v357 = vunpack.c.h.b16 %v173
    %v358 = vunpack.c.l.b16 %v174
    %v359 = vunpack.c.h.b16 %v174
    %v360 = vunpack.c.l.b16 %v175
    %v361 = vunpack.c.h.b16 %v175
    %v362 = vunpack.c.l.b16 %v176
    %v363 = vunpack.c.h.b16 %v176
    %v364 = vunpack.c.l.b16 %v177
    %v365 = vunpack.c.h.b16 %v177
    %v366 = vunpack.c.l.b16 %v178
    %v367 = vunpack.c.h.b16 %v178
    %v368 = vunpack.c.l.b16 %v179
    %v369 = vunpack.c.h.b16 %v179
    %v370 = vunpack.c.l.b16 %v180
    %v371 = vunpack.c.h.b16 %v180
    %v372 = vunpack.c.l.b16 %v181
    %v373 = vunpack.c.h.b16 %v181
    %v374 = vunpack.c.l.b16 %v182
    %v375 = vunpack.c.h.b16 %v182
    %v376 = vunpack.c.l.b16 %v183
    %v377 = vunpack.c.h.b16 %v183
    %v378 = vpack.c.b16 %v258, %v250
    %v379 = vpack.c.b16 %v259, %v251
    %v380 = vpack.c.b16 %v260, %v252
    %v381 = vpack.c.b16 %v261, %v253
    %v382 = vpack.c.b16 %v262, %v254
    %v383 = vpack.c.b16 %v263, %v255
    %v384 = vpack.c.b16 %v264, %v256
    %v385 = vpack.c.b16 %v265, %v257
    %v386 = vpack.c.b16 %v274, %v266
    %v387 = vpack.c.b16 %v275, %v267
    %v388 = vpack.c.b16 %v276, %v268
    %v389 = vpack.c.b16 %v277, %v269
    %v390 = vpack.c.b16 %v278, %v270
    %v391 = vpack.c.b16 %v279, %v271
    %v392 = vpack.c.b16 %v280, %v272
    %v393 = vpack.c.b16 %v281, %v273
    %v394 = vpack.c.b16 %v290, %v282
    %v395 = vpack.c.b16 %v291, %v283
    %v396 = vpack.c.b16 %v292, %v284
    %v397 = vpack.c.b16 %v293, %v285
    %v398 = vpack.c.b16 %v294, %v286
    %v399 = vpack.c.b16 %v295, %v287
    %v400 = vpack.c.b16 %v296, %v288
    %v401 = vpack.c.b16 %v297, %v289
    %v402 = vpack.c.b16 %v306, %v298
    %v403 = vpack.c.b16 %v307, %v299
    %v404 = vpack.c.b16 %v308, %v300
    %v405 = vpack.c.b16 %v309, %v301
    %v406 = vpack.c.b16 %v310, %v302
    %v407 = vpack.c.b16 %v311, %v303
    %v408 = vpack.c.b16 %v312, %v304
    %v409 = vpack.c.b16 %v313, %v305
    %v410 = vpack.c.b16 %v322, %v314
    %v411 = vpack.c.b16 %v323, %v315
    %v412 = vpack.c.b16 %v324, %v316
    %v413 = vpack.c.b16 %v325, %v317
    %v414 = vpack.c.b16 %v326, %v318
    %v415 = vpack.c.b16 %v327, %v319
    %v416 = vpack.c.b16 %v328, %v320
    %v417 = vpack.c.b16 %v329, %v321
    %v418 = vpack.c.b16 %v338, %v330
    %v419 = vpack.c.b16 %v339, %v331
    %v420 = vpack.c.b16 %v340, %v332
    %v421 = vpack.c.b16 %v341, %v333
    %v422 = vpack.c.b16 %v342, %v334
    %v423 = vpack.c.b16 %v343, %v335
    %v424 = vpack.c.b16 %v344, %v336
    %v425 = vpack.c.b16 %v345, %v337
    %v426 = vpack.c.b16 %v354, %v346
    %v427 = vpack.c.b16 %v355, %v347
    %v428 = vpack.c.b16 %v356, %v348
    %v429 = vpack.c.b16 %v357, %v349
    %v430 = vpack.c.b16 %v358, %v350
    %v431 = vpack.c.b16 %v359, %v351
    %v432 = vpack.c.b16 %v360, %v352
    %v433 = vpack.c.b16 %v361, %v353
    %v434 = vpack.c.b16 %v370, %v362
    %v435 = vpack.c.b16 %v371, %v363
    %v436 = vpack.c.b16 %v372, %v364
    %v437 = vpack.c.b16 %v373, %v365
    %v438 = vpack.c.b16 %v374, %v366
    %v439 = vpack.c.b16 %v375, %v367
    %v440 = vpack.c.b16 %v376, %v368
    %v441 = vpack.c.b16 %v377, %v369
    %506 = vmatprep.subr.bf16.mxu0 %v379
    %507 = vmatpush1.bf16.msra.mxu0 %v378
    %508 = vmatprep.subr.bf16.mxu0 %v387
    %509 = vmatpush1.bf16.msra.mxu0 %v386
    %510 = vmatprep.subr.bf16.mxu0 %v395
    %511 = vmatpush1.bf16.msra.mxu0 %v394
    %512 = vmatprep.subr.bf16.mxu0 %v403
    %513 = vmatpush1.bf16.msra.mxu0 %v402
    %514 = vmatprep.subr.bf16.mxu0 %v411
    %515 = vmatpush1.bf16.msra.mxu0 %v410
    %516 = vmatprep.subr.bf16.mxu0 %v419
    %517 = vmatpush1.bf16.msra.mxu0 %v418
    %518 = vmatprep.subr.bf16.mxu0 %v427
    %519 = vmatpush1.bf16.msra.mxu0 %v426
    %520 = vmatprep.subr.bf16.mxu0 %v435
    %521 = vmatpush1.bf16.msra.mxu0 %v434
    %522 = vmatprep.subr.bf16.mxu0 0
    %523 = vmatpush1.bf16.msra.mxu0 0
    %524 = vmatprep.subr.bf16.mxu0 0
    %525 = vmatpush1.bf16.msra.mxu0 0
    %526 = vmatprep.subr.bf16.mxu0 0
    %527 = vmatpush1.bf16.msra.mxu0 0
    %528 = vmatprep.subr.bf16.mxu0 0
    %529 = vmatpush1.bf16.msra.mxu0 0
    %530 = vmatprep.subr.bf16.mxu0 0
    %531 = vmatpush1.bf16.msra.mxu0 0
    %532 = vmatprep.subr.bf16.mxu0 0
    %533 = vmatpush1.bf16.msra.mxu0 0
    %534 = vmatprep.subr.bf16.mxu0 0
    %535 = vmatpush1.bf16.msra.mxu0 0
    %536 = vmatprep.subr.bf16.mxu0 0
    %537 = vmatpush1.bf16.msra.mxu0 0
    %538 = vmatprep.mubr.bf16.mxu0 0
    %539 = vmatmul.mubr.bf16.gmra.mrb[0].mxu0 %v185
    %v540 = vpop.f32.mrb[0].mxu0
    %v541 = vadd.f32 0.0, %v540
    %v542 = vpop.f32.mrb[0].mxu0
    %v543 = vadd.f32 0.0, %v542
    %v544 = vpop.f32.mrb[0].mxu0
    %v545 = vpop.f32.mrb[0].mxu0
    %546 = vdwg.mxu0
    %547 = vmatprep.subr.bf16.mxu0 %v381
    %548 = vmatpush1.bf16.msra.mxu0 %v380
    %549 = vmatprep.subr.bf16.mxu0 %v389
    %550 = vmatpush1.bf16.msra.mxu0 %v388
    %551 = vmatprep.subr.bf16.mxu0 %v397
    %552 = vmatpush1.bf16.msra.mxu0 %v396
    %553 = vmatprep.subr.bf16.mxu0 %v405
    %554 = vmatpush1.bf16.msra.mxu0 %v404
    %555 = vmatprep.subr.bf16.mxu0 %v413
    %556 = vmatpush1.bf16.msra.mxu0 %v412
    %557 = vmatprep.subr.bf16.mxu0 %v421
    %558 = vmatpush1.bf16.msra.mxu0 %v420
    %559 = vmatprep.subr.bf16.mxu0 %v429
    %560 = vmatpush1.bf16.msra.mxu0 %v428
    %561 = vmatprep.subr.bf16.mxu0 %v437
    %562 = vmatpush1.bf16.msra.mxu0 %v436
    %563 = vmatprep.subr.bf16.mxu0 0
    %564 = vmatpush1.bf16.msra.mxu0 0
    %565 = vmatprep.subr.bf16.mxu0 0
    %566 = vmatpush1.bf16.msra.mxu0 0
    %567 = vmatprep.subr.bf16.mxu0 0
    %568 = vmatpush1.bf16.msra.mxu0 0
    %569 = vmatprep.subr.bf16.mxu0 0
    %570 = vmatpush1.bf16.msra.mxu0 0
    %571 = vmatprep.subr.bf16.mxu0 0
    %572 = vmatpush1.bf16.msra.mxu0 0
    %573 = vmatprep.subr.bf16.mxu0 0
    %574 = vmatpush1.bf16.msra.mxu0 0
    %575 = vmatprep.subr.bf16.mxu0 0
    %576 = vmatpush1.bf16.msra.mxu0 0
    %577 = vmatprep.subr.bf16.mxu0 0
    %578 = vmatpush1.bf16.msra.mxu0 0
    %579 = vmatprep.mubr.bf16.mxu0 0
    %580 = vmatmul.mubr.bf16.gmra.mrb[0].mxu0 %v185
    %v581 = vpop.f32.mrb[0].mxu0
    %v582 = vadd.f32 0.0, %v581
    %v583 = vpop.f32.mrb[0].mxu0
    %v584 = vadd.f32 0.0, %v583
    %v585 = vpop.f32.mrb[0].mxu0
    %v586 = vpop.f32.mrb[0].mxu0
    %587 = vdwg.mxu0
    %588 = vmatprep.subr.bf16.mxu0 %v383
    %589 = vmatpush1.bf16.msra.mxu0 %v382
    %590 = vmatprep.subr.bf16.mxu0 %v391
    %591 = vmatpush1.bf16.msra.mxu0 %v390
    %592 = vmatprep.subr.bf16.mxu0 %v399
    %593 = vmatpush1.bf16.msra.mxu0 %v398
    %594 = vmatprep.subr.bf16.mxu0 %v407
    %595 = vmatpush1.bf16.msra.mxu0 %v406
    %596 = vmatprep.subr.bf16.mxu0 %v415
    %597 = vmatpush1.bf16.msra.mxu0 %v414
    %598 = vmatprep.subr.bf16.mxu0 %v423
    %599 = vmatpush1.bf16.msra.mxu0 %v422
    %600 = vmatprep.subr.bf16.mxu0 %v431
    %601 = vmatpush1.bf16.msra.mxu0 %v430
    %602 = vmatprep.subr.bf16.mxu0 %v439
    %603 = vmatpush1.bf16.msra.mxu0 %v438
    %604 = vmatprep.subr.bf16.mxu0 0
    %605 = vmatpush1.bf16.msra.mxu0 0
    %606 = vmatprep.subr.bf16.mxu0 0
    %607 = vmatpush1.bf16.msra.mxu0 0
    %608 = vmatprep.subr.bf16.mxu0 0
    %609 = vmatpush1.bf16.msra.mxu0 0
    %610 = vmatprep.subr.bf16.mxu0 0
    %611 = vmatpush1.bf16.msra.mxu0 0
    %612 = vmatprep.subr.bf16.mxu0 0
    %613 = vmatpush1.bf16.msra.mxu0 0
    %614 = vmatprep.subr.bf16.mxu0 0
    %615 = vmatpush1.bf16.msra.mxu0 0
    %616 = vmatprep.subr.bf16.mxu0 0
    %617 = vmatpush1.bf16.msra.mxu0 0
    %618 = vmatprep.subr.bf16.mxu0 0
    %619 = vmatpush1.bf16.msra.mxu0 0
    %620 = vmatprep.mubr.bf16.mxu0 0
    %621 = vmatmul.mubr.bf16.gmra.mrb[0].mxu0 %v185
    %v622 = vpop.f32.mrb[0].mxu0
    %v623 = vadd.f32 0.0, %v622
    %v624 = vpop.f32.mrb[0].mxu0
    %v625 = vadd.f32 0.0, %v624
    %v626 = vpop.f32.mrb[0].mxu0
    %v627 = vpop.f32.mrb[0].mxu0
    %628 = vdwg.mxu0
    %629 = vmatprep.subr.bf16.mxu0 %v385
    %630 = vmatpush1.bf16.msra.mxu0 %v384
    %631 = vmatprep.subr.bf16.mxu0 %v393
    %632 = vmatpush1.bf16.msra.mxu0 %v392
    %633 = vmatprep.subr.bf16.mxu0 %v401
    %634 = vmatpush1.bf16.msra.mxu0 %v400
    %635 = vmatprep.subr.bf16.mxu0 %v409
    %636 = vmatpush1.bf16.msra.mxu0 %v408
    %637 = vmatprep.subr.bf16.mxu0 %v417
    %638 = vmatpush1.bf16.msra.mxu0 %v416
    %639 = vmatprep.subr.bf16.mxu0 %v425
    %640 = vmatpush1.bf16.msra.mxu0 %v424
    %641 = vmatprep.subr.bf16.mxu0 %v433
    %642 = vmatpush1.bf16.msra.mxu0 %v432
    %643 = vmatprep.subr.bf16.mxu0 %v441
    %644 = vmatpush1.bf16.msra.mxu0 %v440
    %645 = vmatprep.subr.bf16.mxu0 0
    %646 = vmatpush1.bf16.msra.mxu0 0
    %647 = vmatprep.subr.bf16.mxu0 0
    %648 = vmatpush1.bf16.msra.mxu0 0
    %649 = vmatprep.subr.bf16.mxu0 0
    %650 = vmatpush1.bf16.msra.mxu0 0
    %651 = vmatprep.subr.bf16.mxu0 0
    %652 = vmatpush1.bf16.msra.mxu0 0
    %653 = vmatprep.subr.bf16.mxu0 0
    %654 = vmatpush1.bf16.msra.mxu0 0
    %655 = vmatprep.subr.bf16.mxu0 0
    %656 = vmatpush1.bf16.msra.mxu0 0
    %657 = vmatprep.subr.bf16.mxu0 0
    %658 = vmatpush1.bf16.msra.mxu0 0
    %659 = vmatprep.subr.bf16.mxu0 0
    %660 = vmatpush1.bf16.msra.mxu0 0
    %661 = vmatprep.mubr.bf16.mxu0 0
    %662 = vmatmul.mubr.bf16.gmra.mrb[0].mxu0 %v185
    %v663 = vpop.f32.mrb[0].mxu0
    %v664 = vadd.f32 0.0, %v663
    %v665 = vpop.f32.mrb[0].mxu0
    %v666 = vadd.f32 0.0, %v665
    %v667 = vpop.f32.mrb[0].mxu0
    %v668 = vpop.f32.mrb[0].mxu0
    %669 = vdwg.mxu0
    %v670 = vmax.f32 %v541, %v582
    %v671 = vmax.f32 %v543, %v584
    %v672 = vmax.f32 %v623, %v664
    %v673 = vmax.f32 %v625, %v666
    %v674 = vmax.f32 %v670, %v672
    %v675 = vmax.f32 %v671, %v673
    %v677 = vlaneseq
    %v678 = vshrl.u32 %v677, 7
    %v679 = vsub.s32 0, %v678
    %v680 = vrot.slane %v184, %v679
    %v681 = vlaneseq
    %v682 = vshrl.u32 %v681, 7
    %v683 = vsub.s32 1, %v682
    %v684 = vrot.slane %v184, %v683
    %v687 = vadd.f32 %v674, %v680
    %v688 = vadd.f32 %v675, %v684
    %v689 = vmax.f32 %v687, 0.0
    %v690 = vmax.f32 %v688, 0.0
    %v691 = vpack.c.bf16 %v689, %v689
    %v692 = vpack.c.bf16 %v690, %v690
    %v695 = vunpack.c.l.b16 %v691
    %v696 = vunpack.c.l.b16 %v692
    %v697 = vpack.c.b16 %v696, %v695
    %699 = vst [vmem:[#allocation2] sm:$0xff] %v697
    %v700 = vld [vmem:[%s0 + $0x4] sm:$0xf]
    %701 = vmatprep.subr.bf16.mxu0 %v379
    %702 = vmatpush1.bf16.msra.mxu0 %v378
    %703 = vmatprep.subr.bf16.mxu0 %v387
    %704 = vmatpush1.bf16.msra.mxu0 %v386
    %705 = vmatprep.subr.bf16.mxu0 %v395
    %706 = vmatpush1.bf16.msra.mxu0 %v394
    %707 = vmatprep.subr.bf16.mxu0 %v403
    %708 = vmatpush1.bf16.msra.mxu0 %v402
    %709 = vmatprep.subr.bf16.mxu0 %v411
    %710 = vmatpush1.bf16.msra.mxu0 %v410
    %711 = vmatprep.subr.bf16.mxu0 %v419
    %712 = vmatpush1.bf16.msra.mxu0 %v418
    %713 = vmatprep.subr.bf16.mxu0 %v427
    %714 = vmatpush1.bf16.msra.mxu0 %v426
    %715 = vmatprep.subr.bf16.mxu0 %v435
    %716 = vmatpush1.bf16.msra.mxu0 %v434
    %717 = vmatprep.subr.bf16.mxu0 0
    %718 = vmatpush1.bf16.msra.mxu0 0
    %719 = vmatprep.subr.bf16.mxu0 0
    %720 = vmatpush1.bf16.msra.mxu0 0
    %721 = vmatprep.subr.bf16.mxu0 0
    %722 = vmatpush1.bf16.msra.mxu0 0
    %723 = vmatprep.subr.bf16.mxu0 0
    %724 = vmatpush1.bf16.msra.mxu0 0
    %725 = vmatprep.subr.bf16.mxu0 0
    %726 = vmatpush1.bf16.msra.mxu0 0
    %727 = vmatprep.subr.bf16.mxu0 0
    %728 = vmatpush1.bf16.msra.mxu0 0
    %729 = vmatprep.subr.bf16.mxu0 0
    %730 = vmatpush1.bf16.msra.mxu0 0
    %731 = vmatprep.subr.bf16.mxu0 0
    %732 = vmatpush1.bf16.msra.mxu0 0
    %733 = vmatprep.mubr.bf16.mxu0 0
    %734 = vmatmul.mubr.bf16.gmra.mrb[0].mxu0 %v700
    %v735 = vpop.f32.mrb[0].mxu0
    %v736 = vadd.f32 0.0, %v735
    %v737 = vpop.f32.mrb[0].mxu0
    %v738 = vadd.f32 0.0, %v737
    %v739 = vpop.f32.mrb[0].mxu0
    %v740 = vpop.f32.mrb[0].mxu0
    %741 = vdwg.mxu0
    %742 = vmatprep.subr.bf16.mxu0 %v381
    %743 = vmatpush1.bf16.msra.mxu0 %v380
    %744 = vmatprep.subr.bf16.mxu0 %v389
    %745 = vmatpush1.bf16.msra.mxu0 %v388
    %746 = vmatprep.subr.bf16.mxu0 %v397
    %747 = vmatpush1.bf16.msra.mxu0 %v396
    %748 = vmatprep.subr.bf16.mxu0 %v405
    %749 = vmatpush1.bf16.msra.mxu0 %v404
    %750 = vmatprep.subr.bf16.mxu0 %v413
    %751 = vmatpush1.bf16.msra.mxu0 %v412
    %752 = vmatprep.subr.bf16.mxu0 %v421
    %753 = vmatpush1.bf16.msra.mxu0 %v420
    %754 = vmatprep.subr.bf16.mxu0 %v429
    %755 = vmatpush1.bf16.msra.mxu0 %v428
    %756 = vmatprep.subr.bf16.mxu0 %v437
    %757 = vmatpush1.bf16.msra.mxu0 %v436
    %758 = vmatprep.subr.bf16.mxu0 0
    %759 = vmatpush1.bf16.msra.mxu0 0
    %760 = vmatprep.subr.bf16.mxu0 0
    %761 = vmatpush1.bf16.msra.mxu0 0
    %762 = vmatprep.subr.bf16.mxu0 0
    %763 = vmatpush1.bf16.msra.mxu0 0
    %764 = vmatprep.subr.bf16.mxu0 0
    %765 = vmatpush1.bf16.msra.mxu0 0
    %766 = vmatprep.subr.bf16.mxu0 0
    %767 = vmatpush1.bf16.msra.mxu0 0
    %768 = vmatprep.subr.bf16.mxu0 0
    %769 = vmatpush1.bf16.msra.mxu0 0
    %770 = vmatprep.subr.bf16.mxu0 0
    %771 = vmatpush1.bf16.msra.mxu0 0
    %772 = vmatprep.subr.bf16.mxu0 0
    %773 = vmatpush1.bf16.msra.mxu0 0
    %774 = vmatprep.mubr.bf16.mxu0 0
    %775 = vmatmul.mubr.bf16.gmra.mrb[0].mxu0 %v700
    %v776 = vpop.f32.mrb[0].mxu0
    %v777 = vadd.f32 0.0, %v776
    %v778 = vpop.f32.mrb[0].mxu0
    %v779 = vadd.f32 0.0, %v778
    %v780 = vpop.f32.mrb[0].mxu0
    %v781 = vpop.f32.mrb[0].mxu0
    %782 = vdwg.mxu0
    %783 = vmatprep.subr.bf16.mxu0 %v383
    %784 = vmatpush1.bf16.msra.mxu0 %v382
    %785 = vmatprep.subr.bf16.mxu0 %v391
    %786 = vmatpush1.bf16.msra.mxu0 %v390
    %787 = vmatprep.subr.bf16.mxu0 %v399
    %788 = vmatpush1.bf16.msra.mxu0 %v398
    %789 = vmatprep.subr.bf16.mxu0 %v407
    %790 = vmatpush1.bf16.msra.mxu0 %v406
    %791 = vmatprep.subr.bf16.mxu0 %v415
    %792 = vmatpush1.bf16.msra.mxu0 %v414
    %793 = vmatprep.subr.bf16.mxu0 %v423
    %794 = vmatpush1.bf16.msra.mxu0 %v422
    %795 = vmatprep.subr.bf16.mxu0 %v431
    %796 = vmatpush1.bf16.msra.mxu0 %v430
    %797 = vmatprep.subr.bf16.mxu0 %v439
    %798 = vmatpush1.bf16.msra.mxu0 %v438
    %799 = vmatprep.subr.bf16.mxu0 0
    %800 = vmatpush1.bf16.msra.mxu0 0
    %801 = vmatprep.subr.bf16.mxu0 0
    %802 = vmatpush1.bf16.msra.mxu0 0
    %803 = vmatprep.subr.bf16.mxu0 0
    %804 = vmatpush1.bf16.msra.mxu0 0
    %805 = vmatprep.subr.bf16.mxu0 0
    %806 = vmatpush1.bf16.msra.mxu0 0
    %807 = vmatprep.subr.bf16.mxu0 0
    %808 = vmatpush1.bf16.msra.mxu0 0
    %809 = vmatprep.subr.bf16.mxu0 0
    %810 = vmatpush1.bf16.msra.mxu0 0
    %811 = vmatprep.subr.bf16.mxu0 0
    %812 = vmatpush1.bf16.msra.mxu0 0
    %813 = vmatprep.subr.bf16.mxu0 0
    %814 = vmatpush1.bf16.msra.mxu0 0
    %815 = vmatprep.mubr.bf16.mxu0 0
    %816 = vmatmul.mubr.bf16.gmra.mrb[0].mxu0 %v700
    %v817 = vpop.f32.mrb[0].mxu0
    %v818 = vadd.f32 0.0, %v817
    %v819 = vpop.f32.mrb[0].mxu0
    %v820 = vadd.f32 0.0, %v819
    %v821 = vpop.f32.mrb[0].mxu0
    %v822 = vpop.f32.mrb[0].mxu0
    %823 = vdwg.mxu0
    %824 = vmatprep.subr.bf16.mxu0 %v385
    %825 = vmatpush1.bf16.msra.mxu0 %v384
    %826 = vmatprep.subr.bf16.mxu0 %v393
    %827 = vmatpush1.bf16.msra.mxu0 %v392
    %828 = vmatprep.subr.bf16.mxu0 %v401
    %829 = vmatpush1.bf16.msra.mxu0 %v400
    %830 = vmatprep.subr.bf16.mxu0 %v409
    %831 = vmatpush1.bf16.msra.mxu0 %v408
    %832 = vmatprep.subr.bf16.mxu0 %v417
    %833 = vmatpush1.bf16.msra.mxu0 %v416
    %834 = vmatprep.subr.bf16.mxu0 %v425
    %835 = vmatpush1.bf16.msra.mxu0 %v424
    %836 = vmatprep.subr.bf16.mxu0 %v433
    %837 = vmatpush1.bf16.msra.mxu0 %v432
    %838 = vmatprep.subr.bf16.mxu0 %v441
    %839 = vmatpush1.bf16.msra.mxu0 %v440
    %840 = vmatprep.subr.bf16.mxu0 0
    %841 = vmatpush1.bf16.msra.mxu0 0
    %842 = vmatprep.subr.bf16.mxu0 0
    %843 = vmatpush1.bf16.msra.mxu0 0
    %844 = vmatprep.subr.bf16.mxu0 0
    %845 = vmatpush1.bf16.msra.mxu0 0
    %846 = vmatprep.subr.bf16.mxu0 0
    %847 = vmatpush1.bf16.msra.mxu0 0
    %848 = vmatprep.subr.bf16.mxu0 0
    %849 = vmatpush1.bf16.msra.mxu0 0
    %850 = vmatprep.subr.bf16.mxu0 0
    %851 = vmatpush1.bf16.msra.mxu0 0
    %852 = vmatprep.subr.bf16.mxu0 0
    %853 = vmatpush1.bf16.msra.mxu0 0
    %854 = vmatprep.subr.bf16.mxu0 0
    %855 = vmatpush1.bf16.msra.mxu0 0
    %856 = vmatprep.mubr.bf16.mxu0 0
    %857 = vmatmul.mubr.bf16.gmra.mrb[0].mxu0 %v700
    %v858 = vpop.f32.mrb[0].mxu0
    %v859 = vadd.f32 0.0, %v858
    %v860 = vpop.f32.mrb[0].mxu0
    %v861 = vadd.f32 0.0, %v860
    %v862 = vpop.f32.mrb[0].mxu0
    %v863 = vpop.f32.mrb[0].mxu0
    %864 = vdwg.mxu0
    %v865 = vmax.f32 %v736, %v777
    %v866 = vmax.f32 %v738, %v779
    %v867 = vmax.f32 %v818, %v859
    %v868 = vmax.f32 %v820, %v861
    %v869 = vmax.f32 %v865, %v867
    %v870 = vmax.f32 %v866, %v868
    %v871 = vadd.f32 %v869, %v680
    %v872 = vadd.f32 %v870, %v684
    %v873 = vmax.f32 %v871, 0.0
    %v874 = vmax.f32 %v872, 0.0
    %v875 = vpack.c.bf16 %v873, %v873
    %v876 = vpack.c.bf16 %v874, %v874
    %v879 = vunpack.c.l.b16 %v875
    %v880 = vunpack.c.l.b16 %v876
    %v881 = vpack.c.b16 %v880, %v879
    %883 = vst [vmem:[#allocation2 + $0x8] sm:$0xff] %v881
    %v884 = vld [vmem:[%s0 + $0x8] sm:$0xf]
    %885 = vmatprep.subr.bf16.mxu0 %v379
    %886 = vmatpush1.bf16.msra.mxu0 %v378
    %887 = vmatprep.subr.bf16.mxu0 %v387
    %888 = vmatpush1.bf16.msra.mxu0 %v386
    %889 = vmatprep.subr.bf16.mxu0 %v395
    %890 = vmatpush1.bf16.msra.mxu0 %v394
    %891 = vmatprep.subr.bf16.mxu0 %v403
    %892 = vmatpush1.bf16.msra.mxu0 %v402
    %893 = vmatprep.subr.bf16.mxu0 %v411
    %894 = vmatpush1.bf16.msra.mxu0 %v410
    %895 = vmatprep.subr.bf16.mxu0 %v419
    %896 = vmatpush1.bf16.msra.mxu0 %v418
    %897 = vmatprep.subr.bf16.mxu0 %v427
    %898 = vmatpush1.bf16.msra.mxu0 %v426
    %899 = vmatprep.subr.bf16.mxu0 %v435
    %900 = vmatpush1.bf16.msra.mxu0 %v434
    %901 = vmatprep.subr.bf16.mxu0 0
    %902 = vmatpush1.bf16.msra.mxu0 0
    %903 = vmatprep.subr.bf16.mxu0 0
    %904 = vmatpush1.bf16.msra.mxu0 0
    %905 = vmatprep.subr.bf16.mxu0 0
    %906 = vmatpush1.bf16.msra.mxu0 0
    %907 = vmatprep.subr.bf16.mxu0 0
    %908 = vmatpush1.bf16.msra.mxu0 0
    %909 = vmatprep.subr.bf16.mxu0 0
    %910 = vmatpush1.bf16.msra.mxu0 0
    %911 = vmatprep.subr.bf16.mxu0 0
    %912 = vmatpush1.bf16.msra.mxu0 0
    %913 = vmatprep.subr.bf16.mxu0 0
    %914 = vmatpush1.bf16.msra.mxu0 0
    %915 = vmatprep.subr.bf16.mxu0 0
    %916 = vmatpush1.bf16.msra.mxu0 0
    %917 = vmatprep.mubr.bf16.mxu0 0
    %918 = vmatmul.mubr.bf16.gmra.mrb[0].mxu0 %v884
    %v919 = vpop.f32.mrb[0].mxu0
    %v920 = vadd.f32 0.0, %v919
    %v921 = vpop.f32.mrb[0].mxu0
    %v922 = vadd.f32 0.0, %v921
    %v923 = vpop.f32.mrb[0].mxu0
    %v924 = vpop.f32.mrb[0].mxu0
    %925 = vdwg.mxu0
    %926 = vmatprep.subr.bf16.mxu0 %v381
    %927 = vmatpush1.bf16.msra.mxu0 %v380
    %928 = vmatprep.subr.bf16.mxu0 %v389
    %929 = vmatpush1.bf16.msra.mxu0 %v388
    %930 = vmatprep.subr.bf16.mxu0 %v397
    %931 = vmatpush1.bf16.msra.mxu0 %v396
    %932 = vmatprep.subr.bf16.mxu0 %v405
    %933 = vmatpush1.bf16.msra.mxu0 %v404
    %934 = vmatprep.subr.bf16.mxu0 %v413
    %935 = vmatpush1.bf16.msra.mxu0 %v412
    %936 = vmatprep.subr.bf16.mxu0 %v421
    %937 = vmatpush1.bf16.msra.mxu0 %v420
    %938 = vmatprep.subr.bf16.mxu0 %v429
    %939 = vmatpush1.bf16.msra.mxu0 %v428
    %940 = vmatprep.subr.bf16.mxu0 %v437
    %941 = vmatpush1.bf16.msra.mxu0 %v436
    %942 = vmatprep.subr.bf16.mxu0 0
    %943 = vmatpush1.bf16.msra.mxu0 0
    %944 = vmatprep.subr.bf16.mxu0 0
    %945 = vmatpush1.bf16.msra.mxu0 0
    %946 = vmatprep.subr.bf16.mxu0 0
    %947 = vmatpush1.bf16.msra.mxu0 0
    %948 = vmatprep.subr.bf16.mxu0 0
    %949 = vmatpush1.bf16.msra.mxu0 0
    %950 = vmatprep.subr.bf16.mxu0 0
    %951 = vmatpush1.bf16.msra.mxu0 0
    %952 = vmatprep.subr.bf16.mxu0 0
    %953 = vmatpush1.bf16.msra.mxu0 0
    %954 = vmatprep.subr.bf16.mxu0 0
    %955 = vmatpush1.bf16.msra.mxu0 0
    %956 = vmatprep.subr.bf16.mxu0 0
    %957 = vmatpush1.bf16.msra.mxu0 0
    %958 = vmatprep.mubr.bf16.mxu0 0
    %959 = vmatmul.mubr.bf16.gmra.mrb[0].mxu0 %v884
    %v960 = vpop.f32.mrb[0].mxu0
    %v961 = vadd.f32 0.0, %v960
    %v962 = vpop.f32.mrb[0].mxu0
    %v963 = vadd.f32 0.0, %v962
    %v964 = vpop.f32.mrb[0].mxu0
    %v965 = vpop.f32.mrb[0].mxu0
    %966 = vdwg.mxu0
    %967 = vmatprep.subr.bf16.mxu0 %v383
    %968 = vmatpush1.bf16.msra.mxu0 %v382
    %969 = vmatprep.subr.bf16.mxu0 %v391
    %970 = vmatpush1.bf16.msra.mxu0 %v390
    %971 = vmatprep.subr.bf16.mxu0 %v399
    %972 = vmatpush1.bf16.msra.mxu0 %v398
    %973 = vmatprep.subr.bf16.mxu0 %v407
    %974 = vmatpush1.bf16.msra.mxu0 %v406
    %975 = vmatprep.subr.bf16.mxu0 %v415
    %976 = vmatpush1.bf16.msra.mxu0 %v414
    %977 = vmatprep.subr.bf16.mxu0 %v423
    %978 = vmatpush1.bf16.msra.mxu0 %v422
    %979 = vmatprep.subr.bf16.mxu0 %v431
    %980 = vmatpush1.bf16.msra.mxu0 %v430
    %981 = vmatprep.subr.bf16.mxu0 %v439
    %982 = vmatpush1.bf16.msra.mxu0 %v438
    %983 = vmatprep.subr.bf16.mxu0 0
    %984 = vmatpush1.bf16.msra.mxu0 0
    %985 = vmatprep.subr.bf16.mxu0 0
    %986 = vmatpush1.bf16.msra.mxu0 0
    %987 = vmatprep.subr.bf16.mxu0 0
    %988 = vmatpush1.bf16.msra.mxu0 0
    %989 = vmatprep.subr.bf16.mxu0 0
    %990 = vmatpush1.bf16.msra.mxu0 0
    %991 = vmatprep.subr.bf16.mxu0 0
    %992 = vmatpush1.bf16.msra.mxu0 0
    %993 = vmatprep.subr.bf16.mxu0 0
    %994 = vmatpush1.bf16.msra.mxu0 0
    %995 = vmatprep.subr.bf16.mxu0 0
    %996 = vmatpush1.bf16.msra.mxu0 0
    %997 = vmatprep.subr.bf16.mxu0 0
    %998 = vmatpush1.bf16.msra.mxu0 0
    %999 = vmatprep.mubr.bf16.mxu0 0
    %1000 = vmatmul.mubr.bf16.gmra.mrb[0].mxu0 %v884
    %v1001 = vpop.f32.mrb[0].mxu0
    %v1002 = vadd.f32 0.0, %v1001
    %v1003 = vpop.f32.mrb[0].mxu0
    %v1004 = vadd.f32 0.0, %v1003
    %v1005 = vpop.f32.mrb[0].mxu0
    %v1006 = vpop.f32.mrb[0].mxu0
    %1007 = vdwg.mxu0
    %1008 = vmatprep.subr.bf16.mxu0 %v385
    %1009 = vmatpush1.bf16.msra.mxu0 %v384
    %1010 = vmatprep.subr.bf16.mxu0 %v393
    %1011 = vmatpush1.bf16.msra.mxu0 %v392
    %1012 = vmatprep.subr.bf16.mxu0 %v401
    %1013 = vmatpush1.bf16.msra.mxu0 %v400
    %1014 = vmatprep.subr.bf16.mxu0 %v409
    %1015 = vmatpush1.bf16.msra.mxu0 %v408
    %1016 = vmatprep.subr.bf16.mxu0 %v417
    %1017 = vmatpush1.bf16.msra.mxu0 %v416
    %1018 = vmatprep.subr.bf16.mxu0 %v425
    %1019 = vmatpush1.bf16.msra.mxu0 %v424
    %1020 = vmatprep.subr.bf16.mxu0 %v433
    %1021 = vmatpush1.bf16.msra.mxu0 %v432
    %1022 = vmatprep.subr.bf16.mxu0 %v441
    %1023 = vmatpush1.bf16.msra.mxu0 %v440
    %1024 = vmatprep.subr.bf16.mxu0 0
    %1025 = vmatpush1.bf16.msra.mxu0 0
    %1026 = vmatprep.subr.bf16.mxu0 0
    %1027 = vmatpush1.bf16.msra.mxu0 0
    %1028 = vmatprep.subr.bf16.mxu0 0
    %1029 = vmatpush1.bf16.msra.mxu0 0
    %1030 = vmatprep.subr.bf16.mxu0 0
    %1031 = vmatpush1.bf16.msra.mxu0 0
    %1032 = vmatprep.subr.bf16.mxu0 0
    %1033 = vmatpush1.bf16.msra.mxu0 0
    %1034 = vmatprep.subr.bf16.mxu0 0
    %1035 = vmatpush1.bf16.msra.mxu0 0
    %1036 = vmatprep.subr.bf16.mxu0 0
    %1037 = vmatpush1.bf16.msra.mxu0 0
    %1038 = vmatprep.subr.bf16.mxu0 0
    %1039 = vmatpush1.bf16.msra.mxu0 0
    %1040 = vmatprep.mubr.bf16.mxu0 0
    %1041 = vmatmul.mubr.bf16.gmra.mrb[0].mxu0 %v884
    %v1042 = vpop.f32.mrb[0].mxu0
    %v1043 = vadd.f32 0.0, %v1042
    %v1044 = vpop.f32.mrb[0].mxu0
    %v1045 = vadd.f32 0.0, %v1044
    %v1046 = vpop.f32.mrb[0].mxu0
    %v1047 = vpop.f32.mrb[0].mxu0
    %1048 = vdwg.mxu0
    %v1049 = vmax.f32 %v920, %v961
    %v1050 = vmax.f32 %v922, %v963
    %v1051 = vmax.f32 %v1002, %v1043
    %v1052 = vmax.f32 %v1004, %v1045
    %v1053 = vmax.f32 %v1049, %v1051
    %v1054 = vmax.f32 %v1050, %v1052
    %v1055 = vadd.f32 %v1053, %v680
    %v1056 = vadd.f32 %v1054, %v684
    %v1057 = vmax.f32 %v1055, 0.0
    %v1058 = vmax.f32 %v1056, 0.0
    %v1059 = vpack.c.bf16 %v1057, %v1057
    %v1060 = vpack.c.bf16 %v1058, %v1058
    %v1063 = vunpack.c.l.b16 %v1059
    %v1064 = vunpack.c.l.b16 %v1060
    %v1065 = vpack.c.b16 %v1064, %v1063
    %1067 = vst [vmem:[#allocation2 + $0x10] sm:$0xff] %v1065
    %v1068 = vld [vmem:[%s0 + $0xc] sm:$0xf]
    %1069 = vmatprep.subr.bf16.mxu0 %v379
    %1070 = vmatpush1.bf16.msra.mxu0 %v378
    %1071 = vmatprep.subr.bf16.mxu0 %v387
    %1072 = vmatpush1.bf16.msra.mxu0 %v386
    %1073 = vmatprep.subr.bf16.mxu0 %v395
    %1074 = vmatpush1.bf16.msra.mxu0 %v394
    %1075 = vmatprep.subr.bf16.mxu0 %v403
    %1076 = vmatpush1.bf16.msra.mxu0 %v402
    %1077 = vmatprep.subr.bf16.mxu0 %v411
    %1078 = vmatpush1.bf16.msra.mxu0 %v410
    %1079 = vmatprep.subr.bf16.mxu0 %v419
    %1080 = vmatpush1.bf16.msra.mxu0 %v418
    %1081 = vmatprep.subr.bf16.mxu0 %v427
    %1082 = vmatpush1.bf16.msra.mxu0 %v426
    %1083 = vmatprep.subr.bf16.mxu0 %v435
    %1084 = vmatpush1.bf16.msra.mxu0 %v434
    %1085 = vmatprep.subr.bf16.mxu0 0
    %1086 = vmatpush1.bf16.msra.mxu0 0
    %1087 = vmatprep.subr.bf16.mxu0 0
    %1088 = vmatpush1.bf16.msra.mxu0 0
    %1089 = vmatprep.subr.bf16.mxu0 0
    %1090 = vmatpush1.bf16.msra.mxu0 0
    %1091 = vmatprep.subr.bf16.mxu0 0
    %1092 = vmatpush1.bf16.msra.mxu0 0
    %1093 = vmatprep.subr.bf16.mxu0 0
    %1094 = vmatpush1.bf16.msra.mxu0 0
    %1095 = vmatprep.subr.bf16.mxu0 0
    %1096 = vmatpush1.bf16.msra.mxu0 0
    %1097 = vmatprep.subr.bf16.mxu0 0
    %1098 = vmatpush1.bf16.msra.mxu0 0
    %1099 = vmatprep.subr.bf16.mxu0 0
    %1100 = vmatpush1.bf16.msra.mxu0 0
    %1101 = vmatprep.mubr.bf16.mxu0 0
    %1102 = vmatmul.mubr.bf16.gmra.mrb[0].mxu0 %v1068
    %v1103 = vpop.f32.mrb[0].mxu0
    %v1104 = vadd.f32 0.0, %v1103
    %v1105 = vpop.f32.mrb[0].mxu0
    %v1106 = vadd.f32 0.0, %v1105
    %v1107 = vpop.f32.mrb[0].mxu0
    %v1108 = vpop.f32.mrb[0].mxu0
    %1109 = vdwg.mxu0
    %1110 = vmatprep.subr.bf16.mxu0 %v381
    %1111 = vmatpush1.bf16.msra.mxu0 %v380
    %1112 = vmatprep.subr.bf16.mxu0 %v389
    %1113 = vmatpush1.bf16.msra.mxu0 %v388
    %1114 = vmatprep.subr.bf16.mxu0 %v397
    %1115 = vmatpush1.bf16.msra.mxu0 %v396
    %1116 = vmatprep.subr.bf16.mxu0 %v405
    %1117 = vmatpush1.bf16.msra.mxu0 %v404
    %1118 = vmatprep.subr.bf16.mxu0 %v413
    %1119 = vmatpush1.bf16.msra.mxu0 %v412
    %1120 = vmatprep.subr.bf16.mxu0 %v421
    %1121 = vmatpush1.bf16.msra.mxu0 %v420
    %1122 = vmatprep.subr.bf16.mxu0 %v429
    %1123 = vmatpush1.bf16.msra.mxu0 %v428
    %1124 = vmatprep.subr.bf16.mxu0 %v437
    %1125 = vmatpush1.bf16.msra.mxu0 %v436
    %1126 = vmatprep.subr.bf16.mxu0 0
    %1127 = vmatpush1.bf16.msra.mxu0 0
    %1128 = vmatprep.subr.bf16.mxu0 0
    %1129 = vmatpush1.bf16.msra.mxu0 0
    %1130 = vmatprep.subr.bf16.mxu0 0
    %1131 = vmatpush1.bf16.msra.mxu0 0
    %1132 = vmatprep.subr.bf16.mxu0 0
    %1133 = vmatpush1.bf16.msra.mxu0 0
    %1134 = vmatprep.subr.bf16.mxu0 0
    %1135 = vmatpush1.bf16.msra.mxu0 0
    %1136 = vmatprep.subr.bf16.mxu0 0
    %1137 = vmatpush1.bf16.msra.mxu0 0
    %1138 = vmatprep.subr.bf16.mxu0 0
    %1139 = vmatpush1.bf16.msra.mxu0 0
    %1140 = vmatprep.subr.bf16.mxu0 0
    %1141 = vmatpush1.bf16.msra.mxu0 0
    %1142 = vmatprep.mubr.bf16.mxu0 0
    %1143 = vmatmul.mubr.bf16.gmra.mrb[0].mxu0 %v1068
    %v1144 = vpop.f32.mrb[0].mxu0
    %v1145 = vadd.f32 0.0, %v1144
    %v1146 = vpop.f32.mrb[0].mxu0
    %v1147 = vadd.f32 0.0, %v1146
    %v1148 = vpop.f32.mrb[0].mxu0
    %v1149 = vpop.f32.mrb[0].mxu0
    %1150 = vdwg.mxu0
    %1151 = vmatprep.subr.bf16.mxu0 %v383
    %1152 = vmatpush1.bf16.msra.mxu0 %v382
    %1153 = vmatprep.subr.bf16.mxu0 %v391
    %1154 = vmatpush1.bf16.msra.mxu0 %v390
    %1155 = vmatprep.subr.bf16.mxu0 %v399
    %1156 = vmatpush1.bf16.msra.mxu0 %v398
    %1157 = vmatprep.subr.bf16.mxu0 %v407
    %1158 = vmatpush1.bf16.msra.mxu0 %v406
    %1159 = vmatprep.subr.bf16.mxu0 %v415
    %1160 = vmatpush1.bf16.msra.mxu0 %v414
    %1161 = vmatprep.subr.bf16.mxu0 %v423
    %1162 = vmatpush1.bf16.msra.mxu0 %v422
    %1163 = vmatprep.subr.bf16.mxu0 %v431
    %1164 = vmatpush1.bf16.msra.mxu0 %v430
    %1165 = vmatprep.subr.bf16.mxu0 %v439
    %1166 = vmatpush1.bf16.msra.mxu0 %v438
    %1167 = vmatprep.subr.bf16.mxu0 0
    %1168 = vmatpush1.bf16.msra.mxu0 0
    %1169 = vmatprep.subr.bf16.mxu0 0
    %1170 = vmatpush1.bf16.msra.mxu0 0
    %1171 = vmatprep.subr.bf16.mxu0 0
    %1172 = vmatpush1.bf16.msra.mxu0 0
    %1173 = vmatprep.subr.bf16.mxu0 0
    %1174 = vmatpush1.bf16.msra.mxu0 0
    %1175 = vmatprep.subr.bf16.mxu0 0
    %1176 = vmatpush1.bf16.msra.mxu0 0
    %1177 = vmatprep.subr.bf16.mxu0 0
    %1178 = vmatpush1.bf16.msra.mxu0 0
    %1179 = vmatprep.subr.bf16.mxu0 0
    %1180 = vmatpush1.bf16.msra.mxu0 0
    %1181 = vmatprep.subr.bf16.mxu0 0
    %1182 = vmatpush1.bf16.msra.mxu0 0
    %1183 = vmatprep.mubr.bf16.mxu0 0
    %1184 = vmatmul.mubr.bf16.gmra.mrb[0].mxu0 %v1068
    %v1185 = vpop.f32.mrb[0].mxu0
    %v1186 = vadd.f32 0.0, %v1185
    %v1187 = vpop.f32.mrb[0].mxu0
    %v1188 = vadd.f32 0.0, %v1187
    %v1189 = vpop.f32.mrb[0].mxu0
    %v1190 = vpop.f32.mrb[0].mxu0
    %1191 = vdwg.mxu0
    %1192 = vmatprep.subr.bf16.mxu0 %v385
    %1193 = vmatpush1.bf16.msra.mxu0 %v384
    %1194 = vmatprep.subr.bf16.mxu0 %v393
    %1195 = vmatpush1.bf16.msra.mxu0 %v392
    %1196 = vmatprep.subr.bf16.mxu0 %v401
    %1197 = vmatpush1.bf16.msra.mxu0 %v400
    %1198 = vmatprep.subr.bf16.mxu0 %v409
    %1199 = vmatpush1.bf16.msra.mxu0 %v408
    %1200 = vmatprep.subr.bf16.mxu0 %v417
    %1201 = vmatpush1.bf16.msra.mxu0 %v416
    %1202 = vmatprep.subr.bf16.mxu0 %v425
    %1203 = vmatpush1.bf16.msra.mxu0 %v424
    %1204 = vmatprep.subr.bf16.mxu0 %v433
    %1205 = vmatpush1.bf16.msra.mxu0 %v432
    %1206 = vmatprep.subr.bf16.mxu0 %v441
    %1207 = vmatpush1.bf16.msra.mxu0 %v440
    %1208 = vmatprep.subr.bf16.mxu0 0
    %1209 = vmatpush1.bf16.msra.mxu0 0
    %1210 = vmatprep.subr.bf16.mxu0 0
    %1211 = vmatpush1.bf16.msra.mxu0 0
    %1212 = vmatprep.subr.bf16.mxu0 0
    %1213 = vmatpush1.bf16.msra.mxu0 0
    %1214 = vmatprep.subr.bf16.mxu0 0
    %1215 = vmatpush1.bf16.msra.mxu0 0
    %1216 = vmatprep.subr.bf16.mxu0 0
    %1217 = vmatpush1.bf16.msra.mxu0 0
    %1218 = vmatprep.subr.bf16.mxu0 0
    %1219 = vmatpush1.bf16.msra.mxu0 0
    %1220 = vmatprep.subr.bf16.mxu0 0
    %1221 = vmatpush1.bf16.msra.mxu0 0
    %1222 = vmatprep.subr.bf16.mxu0 0
    %1223 = vmatpush1.bf16.msra.mxu0 0
    %1224 = vmatprep.mubr.bf16.mxu0 0
    %1225 = vmatmul.mubr.bf16.gmra.mrb[0].mxu0 %v1068
    %v1226 = vpop.f32.mrb[0].mxu0
    %v1227 = vadd.f32 0.0, %v1226
    %v1228 = vpop.f32.mrb[0].mxu0
    %v1229 = vadd.f32 0.0, %v1228
    %v1230 = vpop.f32.mrb[0].mxu0
    %v1231 = vpop.f32.mrb[0].mxu0
    %1232 = vdwg.mxu0
    %v1233 = vmax.f32 %v1104, %v1145
    %v1234 = vmax.f32 %v1106, %v1147
    %v1235 = vmax.f32 %v1186, %v1227
    %v1236 = vmax.f32 %v1188, %v1229
    %v1237 = vmax.f32 %v1233, %v1235
    %v1238 = vmax.f32 %v1234, %v1236
    %v1239 = vadd.f32 %v1237, %v680
    %v1240 = vadd.f32 %v1238, %v684
    %v1241 = vmax.f32 %v1239, 0.0
    %v1242 = vmax.f32 %v1240, 0.0
    %v1243 = vpack.c.bf16 %v1241, %v1241
    %v1244 = vpack.c.bf16 %v1242, %v1242
    %v1247 = vunpack.c.l.b16 %v1243
    %v1248 = vunpack.c.l.b16 %v1244
    %v1249 = vpack.c.b16 %v1248, %v1247
    %1251 = vst [vmem:[#allocation2 + $0x18] sm:$0xff] %v1249
    %v1252 = vld [vmem:[%s0 + $0x10] sm:$0xf]
    %1253 = vmatprep.subr.bf16.mxu0 %v379
    %1254 = vmatpush1.bf16.msra.mxu0 %v378
    %1255 = vmatprep.subr.bf16.mxu0 %v387
    %1256 = vmatpush1.bf16.msra.mxu0 %v386
    %1257 = vmatprep.subr.bf16.mxu0 %v395
    %1258 = vmatpush1.bf16.msra.mxu0 %v394
    %1259 = vmatprep.subr.bf16.mxu0 %v403
    %1260 = vmatpush1.bf16.msra.mxu0 %v402
    %1261 = vmatprep.subr.bf16.mxu0 %v411
    %1262 = vmatpush1.bf16.msra.mxu0 %v410
    %1263 = vmatprep.subr.bf16.mxu0 %v419
    %1264 = vmatpush1.bf16.msra.mxu0 %v418
    %1265 = vmatprep.subr.bf16.mxu0 %v427
    %1266 = vmatpush1.bf16.msra.mxu0 %v426
    %1267 = vmatprep.subr.bf16.mxu0 %v435
    %1268 = vmatpush1.bf16.msra.mxu0 %v434
    %1269 = vmatprep.subr.bf16.mxu0 0
    %1270 = vmatpush1.bf16.msra.mxu0 0
    %1271 = vmatprep.subr.bf16.mxu0 0
    %1272 = vmatpush1.bf16.msra.mxu0 0
    %1273 = vmatprep.subr.bf16.mxu0 0
    %1274 = vmatpush1.bf16.msra.mxu0 0
    %1275 = vmatprep.subr.bf16.mxu0 0
    %1276 = vmatpush1.bf16.msra.mxu0 0
    %1277 = vmatprep.subr.bf16.mxu0 0
    %1278 = vmatpush1.bf16.msra.mxu0 0
    %1279 = vmatprep.subr.bf16.mxu0 0
    %1280 = vmatpush1.bf16.msra.mxu0 0
    %1281 = vmatprep.subr.bf16.mxu0 0
    %1282 = vmatpush1.bf16.msra.mxu0 0
    %1283 = vmatprep.subr.bf16.mxu0 0
    %1284 = vmatpush1.bf16.msra.mxu0 0
    %1285 = vmatprep.mubr.bf16.mxu0 0
    %1286 = vmatmul.mubr.bf16.gmra.mrb[0].mxu0 %v1252
    %v1287 = vpop.f32.mrb[0].mxu0
    %v1288 = vadd.f32 0.0, %v1287
    %v1289 = vpop.f32.mrb[0].mxu0
    %v1290 = vadd.f32 0.0, %v1289
    %v1291 = vpop.f32.mrb[0].mxu0
    %v1292 = vpop.f32.mrb[0].mxu0
    %1293 = vdwg.mxu0
    %1294 = vmatprep.subr.bf16.mxu0 %v381
    %1295 = vmatpush1.bf16.msra.mxu0 %v380
    %1296 = vmatprep.subr.bf16.mxu0 %v389
    %1297 = vmatpush1.bf16.msra.mxu0 %v388
    %1298 = vmatprep.subr.bf16.mxu0 %v397
    %1299 = vmatpush1.bf16.msra.mxu0 %v396
    %1300 = vmatprep.subr.bf16.mxu0 %v405
    %1301 = vmatpush1.bf16.msra.mxu0 %v404
    %1302 = vmatprep.subr.bf16.mxu0 %v413
    %1303 = vmatpush1.bf16.msra.mxu0 %v412
    %1304 = vmatprep.subr.bf16.mxu0 %v421
    %1305 = vmatpush1.bf16.msra.mxu0 %v420
    %1306 = vmatprep.subr.bf16.mxu0 %v429
    %1307 = vmatpush1.bf16.msra.mxu0 %v428
    %1308 = vmatprep.subr.bf16.mxu0 %v437
    %1309 = vmatpush1.bf16.msra.mxu0 %v436
    %1310 = vmatprep.subr.bf16.mxu0 0
    %1311 = vmatpush1.bf16.msra.mxu0 0
    %1312 = vmatprep.subr.bf16.mxu0 0
    %1313 = vmatpush1.bf16.msra.mxu0 0
    %1314 = vmatprep.subr.bf16.mxu0 0
    %1315 = vmatpush1.bf16.msra.mxu0 0
    %1316 = vmatprep.subr.bf16.mxu0 0
    %1317 = vmatpush1.bf16.msra.mxu0 0
    %1318 = vmatprep.subr.bf16.mxu0 0
    %1319 = vmatpush1.bf16.msra.mxu0 0
    %1320 = vmatprep.subr.bf16.mxu0 0
    %1321 = vmatpush1.bf16.msra.mxu0 0
    %1322 = vmatprep.subr.bf16.mxu0 0
    %1323 = vmatpush1.bf16.msra.mxu0 0
    %1324 = vmatprep.subr.bf16.mxu0 0
    %1325 = vmatpush1.bf16.msra.mxu0 0
    %1326 = vmatprep.mubr.bf16.mxu0 0
    %1327 = vmatmul.mubr.bf16.gmra.mrb[0].mxu0 %v1252
    %v1328 = vpop.f32.mrb[0].mxu0
    %v1329 = vadd.f32 0.0, %v1328
    %v1330 = vpop.f32.mrb[0].mxu0
    %v1331 = vadd.f32 0.0, %v1330
    %v1332 = vpop.f32.mrb[0].mxu0
    %v1333 = vpop.f32.mrb[0].mxu0
    %1334 = vdwg.mxu0
    %1335 = vmatprep.subr.bf16.mxu0 %v383
    %1336 = vmatpush1.bf16.msra.mxu0 %v382
    %1337 = vmatprep.subr.bf16.mxu0 %v391
    %1338 = vmatpush1.bf16.msra.mxu0 %v390
    %1339 = vmatprep.subr.bf16.mxu0 %v399
    %1340 = vmatpush1.bf16.msra.mxu0 %v398
    %1341 = vmatprep.subr.bf16.mxu0 %v407
    %1342 = vmatpush1.bf16.msra.mxu0 %v406
    %1343 = vmatprep.subr.bf16.mxu0 %v415
    %1344 = vmatpush1.bf16.msra.mxu0 %v414
    %1345 = vmatprep.subr.bf16.mxu0 %v423
    %1346 = vmatpush1.bf16.msra.mxu0 %v422
    %1347 = vmatprep.subr.bf16.mxu0 %v431
    %1348 = vmatpush1.bf16.msra.mxu0 %v430
    %1349 = vmatprep.subr.bf16.mxu0 %v439
    %1350 = vmatpush1.bf16.msra.mxu0 %v438
    %1351 = vmatprep.subr.bf16.mxu0 0
    %1352 = vmatpush1.bf16.msra.mxu0 0
    %1353 = vmatprep.subr.bf16.mxu0 0
    %1354 = vmatpush1.bf16.msra.mxu0 0
    %1355 = vmatprep.subr.bf16.mxu0 0
    %1356 = vmatpush1.bf16.msra.mxu0 0
    %1357 = vmatprep.subr.bf16.mxu0 0
    %1358 = vmatpush1.bf16.msra.mxu0 0
    %1359 = vmatprep.subr.bf16.mxu0 0
    %1360 = vmatpush1.bf16.msra.mxu0 0
    %1361 = vmatprep.subr.bf16.mxu0 0
    %1362 = vmatpush1.bf16.msra.mxu0 0
    %1363 = vmatprep.subr.bf16.mxu0 0
    %1364 = vmatpush1.bf16.msra.mxu0 0
    %1365 = vmatprep.subr.bf16.mxu0 0
    %1366 = vmatpush1.bf16.msra.mxu0 0
    %1367 = vmatprep.mubr.bf16.mxu0 0
    %1368 = vmatmul.mubr.bf16.gmra.mrb[0].mxu0 %v1252
    %v1369 = vpop.f32.mrb[0].mxu0
    %v1370 = vadd.f32 0.0, %v1369
    %v1371 = vpop.f32.mrb[0].mxu0
    %v1372 = vadd.f32 0.0, %v1371
    %v1373 = vpop.f32.mrb[0].mxu0
    %v1374 = vpop.f32.mrb[0].mxu0
    %1375 = vdwg.mxu0
    %1376 = vmatprep.subr.bf16.mxu0 %v385
    %1377 = vmatpush1.bf16.msra.mxu0 %v384
    %1378 = vmatprep.subr.bf16.mxu0 %v393
    %1379 = vmatpush1.bf16.msra.mxu0 %v392
    %1380 = vmatprep.subr.bf16.mxu0 %v401
    %1381 = vmatpush1.bf16.msra.mxu0 %v400
    %1382 = vmatprep.subr.bf16.mxu0 %v409
    %1383 = vmatpush1.bf16.msra.mxu0 %v408
    %1384 = vmatprep.subr.bf16.mxu0 %v417
    %1385 = vmatpush1.bf16.msra.mxu0 %v416
    %1386 = vmatprep.subr.bf16.mxu0 %v425
    %1387 = vmatpush1.bf16.msra.mxu0 %v424
    %1388 = vmatprep.subr.bf16.mxu0 %v433
    %1389 = vmatpush1.bf16.msra.mxu0 %v432
    %1390 = vmatprep.subr.bf16.mxu0 %v441
    %1391 = vmatpush1.bf16.msra.mxu0 %v440
    %1392 = vmatprep.subr.bf16.mxu0 0
    %1393 = vmatpush1.bf16.msra.mxu0 0
    %1394 = vmatprep.subr.bf16.mxu0 0
    %1395 = vmatpush1.bf16.msra.mxu0 0
    %1396 = vmatprep.subr.bf16.mxu0 0
    %1397 = vmatpush1.bf16.msra.mxu0 0
    %1398 = vmatprep.subr.bf16.mxu0 0
    %1399 = vmatpush1.bf16.msra.mxu0 0
    %1400 = vmatprep.subr.bf16.mxu0 0
    %1401 = vmatpush1.bf16.msra.mxu0 0
    %1402 = vmatprep.subr.bf16.mxu0 0
    %1403 = vmatpush1.bf16.msra.mxu0 0
    %1404 = vmatprep.subr.bf16.mxu0 0
    %1405 = vmatpush1.bf16.msra.mxu0 0
    %1406 = vmatprep.subr.bf16.mxu0 0
    %1407 = vmatpush1.bf16.msra.mxu0 0
    %1408 = vmatprep.mubr.bf16.mxu0 0
    %1409 = vmatmul.mubr.bf16.gmra.mrb[0].mxu0 %v1252
    %v1410 = vpop.f32.mrb[0].mxu0
    %v1411 = vadd.f32 0.0, %v1410
    %v1412 = vpop.f32.mrb[0].mxu0
    %v1413 = vadd.f32 0.0, %v1412
    %v1414 = vpop.f32.mrb[0].mxu0
    %v1415 = vpop.f32.mrb[0].mxu0
    %1416 = vdwg.mxu0
    %v1417 = vmax.f32 %v1288, %v1329
    %v1418 = vmax.f32 %v1290, %v1331
    %v1419 = vmax.f32 %v1370, %v1411
    %v1420 = vmax.f32 %v1372, %v1413
    %v1421 = vmax.f32 %v1417, %v1419
    %v1422 = vmax.f32 %v1418, %v1420
    %v1423 = vadd.f32 %v1421, %v680
    %v1424 = vadd.f32 %v1422, %v684
    %v1425 = vmax.f32 %v1423, 0.0
    %v1426 = vmax.f32 %v1424, 0.0
    %v1427 = vpack.c.bf16 %v1425, %v1425
    %v1428 = vpack.c.bf16 %v1426, %v1426
    %v1431 = vunpack.c.l.b16 %v1427
    %v1432 = vunpack.c.l.b16 %v1428
    %v1433 = vpack.c.b16 %v1432, %v1431
    %1435 = vst [vmem:[#allocation2 + $0x20] sm:$0xff] %v1433
    %v1436 = vld [vmem:[%s0 + $0x14] sm:$0xf]
    %1437 = vmatprep.subr.bf16.mxu0 %v379
    %1438 = vmatpush1.bf16.msra.mxu0 %v378
    %1439 = vmatprep.subr.bf16.mxu0 %v387
    %1440 = vmatpush1.bf16.msra.mxu0 %v386
    %1441 = vmatprep.subr.bf16.mxu0 %v395
    %1442 = vmatpush1.bf16.msra.mxu0 %v394
    %1443 = vmatprep.subr.bf16.mxu0 %v403
    %1444 = vmatpush1.bf16.msra.mxu0 %v402
    %1445 = vmatprep.subr.bf16.mxu0 %v411
    %1446 = vmatpush1.bf16.msra.mxu0 %v410
    %1447 = vmatprep.subr.bf16.mxu0 %v419
    %1448 = vmatpush1.bf16.msra.mxu0 %v418
    %1449 = vmatprep.subr.bf16.mxu0 %v427
    %1450 = vmatpush1.bf16.msra.mxu0 %v426
    %1451 = vmatprep.subr.bf16.mxu0 %v435
    %1452 = vmatpush1.bf16.msra.mxu0 %v434
    %1453 = vmatprep.subr.bf16.mxu0 0
    %1454 = vmatpush1.bf16.msra.mxu0 0
    %1455 = vmatprep.subr.bf16.mxu0 0
    %1456 = vmatpush1.bf16.msra.mxu0 0
    %1457 = vmatprep.subr.bf16.mxu0 0
    %1458 = vmatpush1.bf16.msra.mxu0 0
    %1459 = vmatprep.subr.bf16.mxu0 0
    %1460 = vmatpush1.bf16.msra.mxu0 0
    %1461 = vmatprep.subr.bf16.mxu0 0
    %1462 = vmatpush1.bf16.msra.mxu0 0
    %1463 = vmatprep.subr.bf16.mxu0 0
    %1464 = vmatpush1.bf16.msra.mxu0 0
    %1465 = vmatprep.subr.bf16.mxu0 0
    %1466 = vmatpush1.bf16.msra.mxu0 0
    %1467 = vmatprep.subr.bf16.mxu0 0
    %1468 = vmatpush1.bf16.msra.mxu0 0
    %1469 = vmatprep.mubr.bf16.mxu0 0
    %1470 = vmatmul.mubr.bf16.gmra.mrb[0].mxu0 %v1436
    %v1471 = vpop.f32.mrb[0].mxu0
    %v1472 = vadd.f32 0.0, %v1471
    %v1473 = vpop.f32.mrb[0].mxu0
    %v1474 = vadd.f32 0.0, %v1473
    %v1475 = vpop.f32.mrb[0].mxu0
    %v1476 = vpop.f32.mrb[0].mxu0
    %1477 = vdwg.mxu0
    %1478 = vmatprep.subr.bf16.mxu0 %v381
    %1479 = vmatpush1.bf16.msra.mxu0 %v380
    %1480 = vmatprep.subr.bf16.mxu0 %v389
    %1481 = vmatpush1.bf16.msra.mxu0 %v388
    %1482 = vmatprep.subr.bf16.mxu0 %v397
    %1483 = vmatpush1.bf16.msra.mxu0 %v396
    %1484 = vmatprep.subr.bf16.mxu0 %v405
    %1485 = vmatpush1.bf16.msra.mxu0 %v404
    %1486 = vmatprep.subr.bf16.mxu0 %v413
    %1487 = vmatpush1.bf16.msra.mxu0 %v412
    %1488 = vmatprep.subr.bf16.mxu0 %v421
    %1489 = vmatpush1.bf16.msra.mxu0 %v420
    %1490 = vmatprep.subr.bf16.mxu0 %v429
    %1491 = vmatpush1.bf16.msra.mxu0 %v428
    %1492 = vmatprep.subr.bf16.mxu0 %v437
    %1493 = vmatpush1.bf16.msra.mxu0 %v436
    %1494 = vmatprep.subr.bf16.mxu0 0
    %1495 = vmatpush1.bf16.msra.mxu0 0
    %1496 = vmatprep.subr.bf16.mxu0 0
    %1497 = vmatpush1.bf16.msra.mxu0 0
    %1498 = vmatprep.subr.bf16.mxu0 0
    %1499 = vmatpush1.bf16.msra.mxu0 0
    %1500 = vmatprep.subr.bf16.mxu0 0
    %1501 = vmatpush1.bf16.msra.mxu0 0
    %1502 = vmatprep.subr.bf16.mxu0 0
    %1503 = vmatpush1.bf16.msra.mxu0 0
    %1504 = vmatprep.subr.bf16.mxu0 0
    %1505 = vmatpush1.bf16.msra.mxu0 0
    %1506 = vmatprep.subr.bf16.mxu0 0
    %1507 = vmatpush1.bf16.msra.mxu0 0
    %1508 = vmatprep.subr.bf16.mxu0 0
    %1509 = vmatpush1.bf16.msra.mxu0 0
    %1510 = vmatprep.mubr.bf16.mxu0 0
    %1511 = vmatmul.mubr.bf16.gmra.mrb[0].mxu0 %v1436
    %v1512 = vpop.f32.mrb[0].mxu0
    %v1513 = vadd.f32 0.0, %v1512
    %v1514 = vpop.f32.mrb[0].mxu0
    %v1515 = vadd.f32 0.0, %v1514
    %v1516 = vpop.f32.mrb[0].mxu0
    %v1517 = vpop.f32.mrb[0].mxu0
    %1518 = vdwg.mxu0
    %1519 = vmatprep.subr.bf16.mxu0 %v383
    %1520 = vmatpush1.bf16.msra.mxu0 %v382
    %1521 = vmatprep.subr.bf16.mxu0 %v391
    %1522 = vmatpush1.bf16.msra.mxu0 %v390
    %1523 = vmatprep.subr.bf16.mxu0 %v399
    %1524 = vmatpush1.bf16.msra.mxu0 %v398
    %1525 = vmatprep.subr.bf16.mxu0 %v407
    %1526 = vmatpush1.bf16.msra.mxu0 %v406
    %1527 = vmatprep.subr.bf16.mxu0 %v415
    %1528 = vmatpush1.bf16.msra.mxu0 %v414
    %1529 = vmatprep.subr.bf16.mxu0 %v423
    %1530 = vmatpush1.bf16.msra.mxu0 %v422
    %1531 = vmatprep.subr.bf16.mxu0 %v431
    %1532 = vmatpush1.bf16.msra.mxu0 %v430
    %1533 = vmatprep.subr.bf16.mxu0 %v439
    %1534 = vmatpush1.bf16.msra.mxu0 %v438
    %1535 = vmatprep.subr.bf16.mxu0 0
    %1536 = vmatpush1.bf16.msra.mxu0 0
    %1537 = vmatprep.subr.bf16.mxu0 0
    %1538 = vmatpush1.bf16.msra.mxu0 0
    %1539 = vmatprep.subr.bf16.mxu0 0
    %1540 = vmatpush1.bf16.msra.mxu0 0
    %1541 = vmatprep.subr.bf16.mxu0 0
    %1542 = vmatpush1.bf16.msra.mxu0 0
    %1543 = vmatprep.subr.bf16.mxu0 0
    %1544 = vmatpush1.bf16.msra.mxu0 0
    %1545 = vmatprep.subr.bf16.mxu0 0
    %1546 = vmatpush1.bf16.msra.mxu0 0
    %1547 = vmatprep.subr.bf16.mxu0 0
    %1548 = vmatpush1.bf16.msra.mxu0 0
    %1549 = vmatprep.subr.bf16.mxu0 0
    %1550 = vmatpush1.bf16.msra.mxu0 0
    %1551 = vmatprep.mubr.bf16.mxu0 0
    %1552 = vmatmul.mubr.bf16.gmra.mrb[0].mxu0 %v1436
    %v1553 = vpop.f32.mrb[0].mxu0
    %v1554 = vadd.f32 0.0, %v1553
    %v1555 = vpop.f32.mrb[0].mxu0
    %v1556 = vadd.f32 0.0, %v1555
    %v1557 = vpop.f32.mrb[0].mxu0
    %v1558 = vpop.f32.mrb[0].mxu0
    %1559 = vdwg.mxu0
    %1560 = vmatprep.subr.bf16.mxu0 %v385
    %1561 = vmatpush1.bf16.msra.mxu0 %v384
    %1562 = vmatprep.subr.bf16.mxu0 %v393
    %1563 = vmatpush1.bf16.msra.mxu0 %v392
    %1564 = vmatprep.subr.bf16.mxu0 %v401
    %1565 = vmatpush1.bf16.msra.mxu0 %v400
    %1566 = vmatprep.subr.bf16.mxu0 %v409
    %1567 = vmatpush1.bf16.msra.mxu0 %v408
    %1568 = vmatprep.subr.bf16.mxu0 %v417
    %1569 = vmatpush1.bf16.msra.mxu0 %v416
    %1570 = vmatprep.subr.bf16.mxu0 %v425
    %1571 = vmatpush1.bf16.msra.mxu0 %v424
    %1572 = vmatprep.subr.bf16.mxu0 %v433
    %1573 = vmatpush1.bf16.msra.mxu0 %v432
    %1574 = vmatprep.subr.bf16.mxu0 %v441
    %1575 = vmatpush1.bf16.msra.mxu0 %v440
    %1576 = vmatprep.subr.bf16.mxu0 0
    %1577 = vmatpush1.bf16.msra.mxu0 0
    %1578 = vmatprep.subr.bf16.mxu0 0
    %1579 = vmatpush1.bf16.msra.mxu0 0
    %1580 = vmatprep.subr.bf16.mxu0 0
    %1581 = vmatpush1.bf16.msra.mxu0 0
    %1582 = vmatprep.subr.bf16.mxu0 0
    %1583 = vmatpush1.bf16.msra.mxu0 0
    %1584 = vmatprep.subr.bf16.mxu0 0
    %1585 = vmatpush1.bf16.msra.mxu0 0
    %1586 = vmatprep.subr.bf16.mxu0 0
    %1587 = vmatpush1.bf16.msra.mxu0 0
    %1588 = vmatprep.subr.bf16.mxu0 0
    %1589 = vmatpush1.bf16.msra.mxu0 0
    %1590 = vmatprep.subr.bf16.mxu0 0
    %1591 = vmatpush1.bf16.msra.mxu0 0
    %1592 = vmatprep.mubr.bf16.mxu0 0
    %1593 = vmatmul.mubr.bf16.gmra.mrb[0].mxu0 %v1436
    %v1594 = vpop.f32.mrb[0].mxu0
    %v1595 = vadd.f32 0.0, %v1594
    %v1596 = vpop.f32.mrb[0].mxu0
    %v1597 = vadd.f32 0.0, %v1596
    %v1598 = vpop.f32.mrb[0].mxu0
    %v1599 = vpop.f32.mrb[0].mxu0
    %1600 = vdwg.mxu0
    %v1601 = vmax.f32 %v1472, %v1513
    %v1602 = vmax.f32 %v1474, %v1515
    %v1603 = vmax.f32 %v1554, %v1595
    %v1604 = vmax.f32 %v1556, %v1597
    %v1605 = vmax.f32 %v1601, %v1603
    %v1606 = vmax.f32 %v1602, %v1604
    %v1607 = vadd.f32 %v1605, %v680
    %v1608 = vadd.f32 %v1606, %v684
    %v1609 = vmax.f32 %v1607, 0.0
    %v1610 = vmax.f32 %v1608, 0.0
    %v1611 = vpack.c.bf16 %v1609, %v1609
    %v1612 = vpack.c.bf16 %v1610, %v1610
    %v1615 = vunpack.c.l.b16 %v1611
    %v1616 = vunpack.c.l.b16 %v1612
    %v1617 = vpack.c.b16 %v1616, %v1615
    %1619 = vst [vmem:[#allocation2 + $0x28] sm:$0xff] %v1617
    %v1620 = vld [vmem:[%s0 + $0x18] sm:$0xf]
    %1621 = vmatprep.subr.bf16.mxu0 %v379
    %1622 = vmatpush1.bf16.msra.mxu0 %v378
    %1623 = vmatprep.subr.bf16.mxu0 %v387
    %1624 = vmatpush1.bf16.msra.mxu0 %v386
    %1625 = vmatprep.subr.bf16.mxu0 %v395
    %1626 = vmatpush1.bf16.msra.mxu0 %v394
    %1627 = vmatprep.subr.bf16.mxu0 %v403
    %1628 = vmatpush1.bf16.msra.mxu0 %v402
    %1629 = vmatprep.subr.bf16.mxu0 %v411
    %1630 = vmatpush1.bf16.msra.mxu0 %v410
    %1631 = vmatprep.subr.bf16.mxu0 %v419
    %1632 = vmatpush1.bf16.msra.mxu0 %v418
    %1633 = vmatprep.subr.bf16.mxu0 %v427
    %1634 = vmatpush1.bf16.msra.mxu0 %v426
    %1635 = vmatprep.subr.bf16.mxu0 %v435
    %1636 = vmatpush1.bf16.msra.mxu0 %v434
    %1637 = vmatprep.subr.bf16.mxu0 0
    %1638 = vmatpush1.bf16.msra.mxu0 0
    %1639 = vmatprep.subr.bf16.mxu0 0
    %1640 = vmatpush1.bf16.msra.mxu0 0
    %1641 = vmatprep.subr.bf16.mxu0 0
    %1642 = vmatpush1.bf16.msra.mxu0 0
    %1643 = vmatprep.subr.bf16.mxu0 0
    %1644 = vmatpush1.bf16.msra.mxu0 0
    %1645 = vmatprep.subr.bf16.mxu0 0
    %1646 = vmatpush1.bf16.msra.mxu0 0
    %1647 = vmatprep.subr.bf16.mxu0 0
    %1648 = vmatpush1.bf16.msra.mxu0 0
    %1649 = vmatprep.subr.bf16.mxu0 0
    %1650 = vmatpush1.bf16.msra.mxu0 0
    %1651 = vmatprep.subr.bf16.mxu0 0
    %1652 = vmatpush1.bf16.msra.mxu0 0
    %1653 = vmatprep.mubr.bf16.mxu0 0
    %1654 = vmatmul.mubr.bf16.gmra.mrb[0].mxu0 %v1620
    %v1655 = vpop.f32.mrb[0].mxu0
    %v1656 = vadd.f32 0.0, %v1655
    %v1657 = vpop.f32.mrb[0].mxu0
    %v1658 = vadd.f32 0.0, %v1657
    %v1659 = vpop.f32.mrb[0].mxu0
    %v1660 = vpop.f32.mrb[0].mxu0
    %1661 = vdwg.mxu0
    %1662 = vmatprep.subr.bf16.mxu0 %v381
    %1663 = vmatpush1.bf16.msra.mxu0 %v380
    %1664 = vmatprep.subr.bf16.mxu0 %v389
    %1665 = vmatpush1.bf16.msra.mxu0 %v388
    %1666 = vmatprep.subr.bf16.mxu0 %v397
    %1667 = vmatpush1.bf16.msra.mxu0 %v396
    %1668 = vmatprep.subr.bf16.mxu0 %v405
    %1669 = vmatpush1.bf16.msra.mxu0 %v404
    %1670 = vmatprep.subr.bf16.mxu0 %v413
    %1671 = vmatpush1.bf16.msra.mxu0 %v412
    %1672 = vmatprep.subr.bf16.mxu0 %v421
    %1673 = vmatpush1.bf16.msra.mxu0 %v420
    %1674 = vmatprep.subr.bf16.mxu0 %v429
    %1675 = vmatpush1.bf16.msra.mxu0 %v428
    %1676 = vmatprep.subr.bf16.mxu0 %v437
    %1677 = vmatpush1.bf16.msra.mxu0 %v436
    %1678 = vmatprep.subr.bf16.mxu0 0
    %1679 = vmatpush1.bf16.msra.mxu0 0
    %1680 = vmatprep.subr.bf16.mxu0 0
    %1681 = vmatpush1.bf16.msra.mxu0 0
    %1682 = vmatprep.subr.bf16.mxu0 0
    %1683 = vmatpush1.bf16.msra.mxu0 0
    %1684 = vmatprep.subr.bf16.mxu0 0
    %1685 = vmatpush1.bf16.msra.mxu0 0
    %1686 = vmatprep.subr.bf16.mxu0 0
    %1687 = vmatpush1.bf16.msra.mxu0 0
    %1688 = vmatprep.subr.bf16.mxu0 0
    %1689 = vmatpush1.bf16.msra.mxu0 0
    %1690 = vmatprep.subr.bf16.mxu0 0
    %1691 = vmatpush1.bf16.msra.mxu0 0
    %1692 = vmatprep.subr.bf16.mxu0 0
    %1693 = vmatpush1.bf16.msra.mxu0 0
    %1694 = vmatprep.mubr.bf16.mxu0 0
    %1695 = vmatmul.mubr.bf16.gmra.mrb[0].mxu0 %v1620
    %v1696 = vpop.f32.mrb[0].mxu0
    %v1697 = vadd.f32 0.0, %v1696
    %v1698 = vpop.f32.mrb[0].mxu0
    %v1699 = vadd.f32 0.0, %v1698
    %v1700 = vpop.f32.mrb[0].mxu0
    %v1701 = vpop.f32.mrb[0].mxu0
    %1702 = vdwg.mxu0
    %1703 = vmatprep.subr.bf16.mxu0 %v383
    %1704 = vmatpush1.bf16.msra.mxu0 %v382
    %1705 = vmatprep.subr.bf16.mxu0 %v391
    %1706 = vmatpush1.bf16.msra.mxu0 %v390
    %1707 = vmatprep.subr.bf16.mxu0 %v399
    %1708 = vmatpush1.bf16.msra.mxu0 %v398
    %1709 = vmatprep.subr.bf16.mxu0 %v407
    %1710 = vmatpush1.bf16.msra.mxu0 %v406
    %1711 = vmatprep.subr.bf16.mxu0 %v415
    %1712 = vmatpush1.bf16.msra.mxu0 %v414
    %1713 = vmatprep.subr.bf16.mxu0 %v423
    %1714 = vmatpush1.bf16.msra.mxu0 %v422
    %1715 = vmatprep.subr.bf16.mxu0 %v431
    %1716 = vmatpush1.bf16.msra.mxu0 %v430
    %1717 = vmatprep.subr.bf16.mxu0 %v439
    %1718 = vmatpush1.bf16.msra.mxu0 %v438
    %1719 = vmatprep.subr.bf16.mxu0 0
    %1720 = vmatpush1.bf16.msra.mxu0 0
    %1721 = vmatprep.subr.bf16.mxu0 0
    %1722 = vmatpush1.bf16.msra.mxu0 0
    %1723 = vmatprep.subr.bf16.mxu0 0
    %1724 = vmatpush1.bf16.msra.mxu0 0
    %1725 = vmatprep.subr.bf16.mxu0 0
    %1726 = vmatpush1.bf16.msra.mxu0 0
    %1727 = vmatprep.subr.bf16.mxu0 0
    %1728 = vmatpush1.bf16.msra.mxu0 0
    %1729 = vmatprep.subr.bf16.mxu0 0
    %1730 = vmatpush1.bf16.msra.mxu0 0
    %1731 = vmatprep.subr.bf16.mxu0 0
    %1732 = vmatpush1.bf16.msra.mxu0 0
    %1733 = vmatprep.subr.bf16.mxu0 0
    %1734 = vmatpush1.bf16.msra.mxu0 0
    %1735 = vmatprep.mubr.bf16.mxu0 0
    %1736 = vmatmul.mubr.bf16.gmra.mrb[0].mxu0 %v1620
    %v1737 = vpop.f32.mrb[0].mxu0
    %v1738 = vadd.f32 0.0, %v1737
    %v1739 = vpop.f32.mrb[0].mxu0
    %v1740 = vadd.f32 0.0, %v1739
    %v1741 = vpop.f32.mrb[0].mxu0
    %v1742 = vpop.f32.mrb[0].mxu0
    %1743 = vdwg.mxu0
    %1744 = vmatprep.subr.bf16.mxu0 %v385
    %1745 = vmatpush1.bf16.msra.mxu0 %v384
    %1746 = vmatprep.subr.bf16.mxu0 %v393
    %1747 = vmatpush1.bf16.msra.mxu0 %v392
    %1748 = vmatprep.subr.bf16.mxu0 %v401
    %1749 = vmatpush1.bf16.msra.mxu0 %v400
    %1750 = vmatprep.subr.bf16.mxu0 %v409
    %1751 = vmatpush1.bf16.msra.mxu0 %v408
    %1752 = vmatprep.subr.bf16.mxu0 %v417
    %1753 = vmatpush1.bf16.msra.mxu0 %v416
    %1754 = vmatprep.subr.bf16.mxu0 %v425
    %1755 = vmatpush1.bf16.msra.mxu0 %v424
    %1756 = vmatprep.subr.bf16.mxu0 %v433
    %1757 = vmatpush1.bf16.msra.mxu0 %v432
    %1758 = vmatprep.subr.bf16.mxu0 %v441
    %1759 = vmatpush1.bf16.msra.mxu0 %v440
    %1760 = vmatprep.subr.bf16.mxu0 0
    %1761 = vmatpush1.bf16.msra.mxu0 0
    %1762 = vmatprep.subr.bf16.mxu0 0
    %1763 = vmatpush1.bf16.msra.mxu0 0
    %1764 = vmatprep.subr.bf16.mxu0 0
    %1765 = vmatpush1.bf16.msra.mxu0 0
    %1766 = vmatprep.subr.bf16.mxu0 0
    %1767 = vmatpush1.bf16.msra.mxu0 0
    %1768 = vmatprep.subr.bf16.mxu0 0
    %1769 = vmatpush1.bf16.msra.mxu0 0
    %1770 = vmatprep.subr.bf16.mxu0 0
    %1771 = vmatpush1.bf16.msra.mxu0 0
    %1772 = vmatprep.subr.bf16.mxu0 0
    %1773 = vmatpush1.bf16.msra.mxu0 0
    %1774 = vmatprep.subr.bf16.mxu0 0
    %1775 = vmatpush1.bf16.msra.mxu0 0
    %1776 = vmatprep.mubr.bf16.mxu0 0
    %1777 = vmatmul.mubr.bf16.gmra.mrb[0].mxu0 %v1620
    %v1778 = vpop.f32.mrb[0].mxu0
    %v1779 = vadd.f32 0.0, %v1778
    %v1780 = vpop.f32.mrb[0].mxu0
    %v1781 = vadd.f32 0.0, %v1780
    %v1782 = vpop.f32.mrb[0].mxu0
    %v1783 = vpop.f32.mrb[0].mxu0
    %1784 = vdwg.mxu0
    %v1785 = vmax.f32 %v1656, %v1697
    %v1786 = vmax.f32 %v1658, %v1699
    %v1787 = vmax.f32 %v1738, %v1779
    %v1788 = vmax.f32 %v1740, %v1781
    %v1789 = vmax.f32 %v1785, %v1787
    %v1790 = vmax.f32 %v1786, %v1788
    %v1791 = vadd.f32 %v1789, %v680
    %v1792 = vadd.f32 %v1790, %v684
    %v1793 = vmax.f32 %v1791, 0.0
    %v1794 = vmax.f32 %v1792, 0.0
    %v1795 = vpack.c.bf16 %v1793, %v1793
    %v1796 = vpack.c.bf16 %v1794, %v1794
    %v1799 = vunpack.c.l.b16 %v1795
    %v1800 = vunpack.c.l.b16 %v1796
    %v1801 = vpack.c.b16 %v1800, %v1799
    %1803 = vst [vmem:[#allocation2 + $0x30] sm:$0xff] %v1801
    %v1804 = vld [vmem:[%s0 + $0x1c] sm:$0xf]
    %1805 = vmatprep.subr.bf16.mxu0 %v379
    %1806 = vmatpush1.bf16.msra.mxu0 %v378
    %1807 = vmatprep.subr.bf16.mxu0 %v387
    %1808 = vmatpush1.bf16.msra.mxu0 %v386
    %1809 = vmatprep.subr.bf16.mxu0 %v395
    %1810 = vmatpush1.bf16.msra.mxu0 %v394
    %1811 = vmatprep.subr.bf16.mxu0 %v403
    %1812 = vmatpush1.bf16.msra.mxu0 %v402
    %1813 = vmatprep.subr.bf16.mxu0 %v411
    %1814 = vmatpush1.bf16.msra.mxu0 %v410
    %1815 = vmatprep.subr.bf16.mxu0 %v419
    %1816 = vmatpush1.bf16.msra.mxu0 %v418
    %1817 = vmatprep.subr.bf16.mxu0 %v427
    %1818 = vmatpush1.bf16.msra.mxu0 %v426
    %1819 = vmatprep.subr.bf16.mxu0 %v435
    %1820 = vmatpush1.bf16.msra.mxu0 %v434
    %1821 = vmatprep.subr.bf16.mxu0 0
    %1822 = vmatpush1.bf16.msra.mxu0 0
    %1823 = vmatprep.subr.bf16.mxu0 0
    %1824 = vmatpush1.bf16.msra.mxu0 0
    %1825 = vmatprep.subr.bf16.mxu0 0
    %1826 = vmatpush1.bf16.msra.mxu0 0
    %1827 = vmatprep.subr.bf16.mxu0 0
    %1828 = vmatpush1.bf16.msra.mxu0 0
    %1829 = vmatprep.subr.bf16.mxu0 0
    %1830 = vmatpush1.bf16.msra.mxu0 0
    %1831 = vmatprep.subr.bf16.mxu0 0
    %1832 = vmatpush1.bf16.msra.mxu0 0
    %1833 = vmatprep.subr.bf16.mxu0 0
    %1834 = vmatpush1.bf16.msra.mxu0 0
    %1835 = vmatprep.subr.bf16.mxu0 0
    %1836 = vmatpush1.bf16.msra.mxu0 0
    %1837 = vmatprep.mubr.bf16.mxu0 0
    %1838 = vmatmul.mubr.bf16.gmra.mrb[0].mxu0 %v1804
    %v1839 = vpop.f32.mrb[0].mxu0
    %v1840 = vadd.f32 0.0, %v1839
    %v1841 = vpop.f32.mrb[0].mxu0
    %v1842 = vadd.f32 0.0, %v1841
    %v1843 = vpop.f32.mrb[0].mxu0
    %v1844 = vpop.f32.mrb[0].mxu0
    %1845 = vdwg.mxu0
    %1846 = vmatprep.subr.bf16.mxu0 %v381
    %1847 = vmatpush1.bf16.msra.mxu0 %v380
    %1848 = vmatprep.subr.bf16.mxu0 %v389
    %1849 = vmatpush1.bf16.msra.mxu0 %v388
    %1850 = vmatprep.subr.bf16.mxu0 %v397
    %1851 = vmatpush1.bf16.msra.mxu0 %v396
    %1852 = vmatprep.subr.bf16.mxu0 %v405
    %1853 = vmatpush1.bf16.msra.mxu0 %v404
    %1854 = vmatprep.subr.bf16.mxu0 %v413
    %1855 = vmatpush1.bf16.msra.mxu0 %v412
    %1856 = vmatprep.subr.bf16.mxu0 %v421
    %1857 = vmatpush1.bf16.msra.mxu0 %v420
    %1858 = vmatprep.subr.bf16.mxu0 %v429
    %1859 = vmatpush1.bf16.msra.mxu0 %v428
    %1860 = vmatprep.subr.bf16.mxu0 %v437
    %1861 = vmatpush1.bf16.msra.mxu0 %v436
    %1862 = vmatprep.subr.bf16.mxu0 0
    %1863 = vmatpush1.bf16.msra.mxu0 0
    %1864 = vmatprep.subr.bf16.mxu0 0
    %1865 = vmatpush1.bf16.msra.mxu0 0
    %1866 = vmatprep.subr.bf16.mxu0 0
    %1867 = vmatpush1.bf16.msra.mxu0 0
    %1868 = vmatprep.subr.bf16.mxu0 0
    %1869 = vmatpush1.bf16.msra.mxu0 0
    %1870 = vmatprep.subr.bf16.mxu0 0
    %1871 = vmatpush1.bf16.msra.mxu0 0
    %1872 = vmatprep.subr.bf16.mxu0 0
    %1873 = vmatpush1.bf16.msra.mxu0 0
    %1874 = vmatprep.subr.bf16.mxu0 0
    %1875 = vmatpush1.bf16.msra.mxu0 0
    %1876 = vmatprep.subr.bf16.mxu0 0
    %1877 = vmatpush1.bf16.msra.mxu0 0
    %1878 = vmatprep.mubr.bf16.mxu0 0
    %1879 = vmatmul.mubr.bf16.gmra.mrb[0].mxu0 %v1804
    %v1880 = vpop.f32.mrb[0].mxu0
    %v1881 = vadd.f32 0.0, %v1880
    %v1882 = vpop.f32.mrb[0].mxu0
    %v1883 = vadd.f32 0.0, %v1882
    %v1884 = vpop.f32.mrb[0].mxu0
    %v1885 = vpop.f32.mrb[0].mxu0
    %1886 = vdwg.mxu0
    %1887 = vmatprep.subr.bf16.mxu0 %v383
    %1888 = vmatpush1.bf16.msra.mxu0 %v382
    %1889 = vmatprep.subr.bf16.mxu0 %v391
    %1890 = vmatpush1.bf16.msra.mxu0 %v390
    %1891 = vmatprep.subr.bf16.mxu0 %v399
    %1892 = vmatpush1.bf16.msra.mxu0 %v398
    %1893 = vmatprep.subr.bf16.mxu0 %v407
    %1894 = vmatpush1.bf16.msra.mxu0 %v406
    %1895 = vmatprep.subr.bf16.mxu0 %v415
    %1896 = vmatpush1.bf16.msra.mxu0 %v414
    %1897 = vmatprep.subr.bf16.mxu0 %v423
    %1898 = vmatpush1.bf16.msra.mxu0 %v422
    %1899 = vmatprep.subr.bf16.mxu0 %v431
    %1900 = vmatpush1.bf16.msra.mxu0 %v430
    %1901 = vmatprep.subr.bf16.mxu0 %v439
    %1902 = vmatpush1.bf16.msra.mxu0 %v438
    %1903 = vmatprep.subr.bf16.mxu0 0
    %1904 = vmatpush1.bf16.msra.mxu0 0
    %1905 = vmatprep.subr.bf16.mxu0 0
    %1906 = vmatpush1.bf16.msra.mxu0 0
    %1907 = vmatprep.subr.bf16.mxu0 0
    %1908 = vmatpush1.bf16.msra.mxu0 0
    %1909 = vmatprep.subr.bf16.mxu0 0
    %1910 = vmatpush1.bf16.msra.mxu0 0
    %1911 = vmatprep.subr.bf16.mxu0 0
    %1912 = vmatpush1.bf16.msra.mxu0 0
    %1913 = vmatprep.subr.bf16.mxu0 0
    %1914 = vmatpush1.bf16.msra.mxu0 0
    %1915 = vmatprep.subr.bf16.mxu0 0
    %1916 = vmatpush1.bf16.msra.mxu0 0
    %1917 = vmatprep.subr.bf16.mxu0 0
    %1918 = vmatpush1.bf16.msra.mxu0 0
    %1919 = vmatprep.mubr.bf16.mxu0 0
    %1920 = vmatmul.mubr.bf16.gmra.mrb[0].mxu0 %v1804
    %v1921 = vpop.f32.mrb[0].mxu0
    %v1922 = vadd.f32 0.0, %v1921
    %v1923 = vpop.f32.mrb[0].mxu0
    %v1924 = vadd.f32 0.0, %v1923
    %v1925 = vpop.f32.mrb[0].mxu0
    %v1926 = vpop.f32.mrb[0].mxu0
    %1927 = vdwg.mxu0
    %1928 = vmatprep.subr.bf16.mxu0 %v385
    %1929 = vmatpush1.bf16.msra.mxu0 %v384
    %1930 = vmatprep.subr.bf16.mxu0 %v393
    %1931 = vmatpush1.bf16.msra.mxu0 %v392
    %1932 = vmatprep.subr.bf16.mxu0 %v401
    %1933 = vmatpush1.bf16.msra.mxu0 %v400
    %1934 = vmatprep.subr.bf16.mxu0 %v409
    %1935 = vmatpush1.bf16.msra.mxu0 %v408
    %1936 = vmatprep.subr.bf16.mxu0 %v417
    %1937 = vmatpush1.bf16.msra.mxu0 %v416
    %1938 = vmatprep.subr.bf16.mxu0 %v425
    %1939 = vmatpush1.bf16.msra.mxu0 %v424
    %1940 = vmatprep.subr.bf16.mxu0 %v433
    %1941 = vmatpush1.bf16.msra.mxu0 %v432
    %1942 = vmatprep.subr.bf16.mxu0 %v441
    %1943 = vmatpush1.bf16.msra.mxu0 %v440
    %1944 = vmatprep.subr.bf16.mxu0 0
    %1945 = vmatpush1.bf16.msra.mxu0 0
    %1946 = vmatprep.subr.bf16.mxu0 0
    %1947 = vmatpush1.bf16.msra.mxu0 0
    %1948 = vmatprep.subr.bf16.mxu0 0
    %1949 = vmatpush1.bf16.msra.mxu0 0
    %1950 = vmatprep.subr.bf16.mxu0 0
    %1951 = vmatpush1.bf16.msra.mxu0 0
    %1952 = vmatprep.subr.bf16.mxu0 0
    %1953 = vmatpush1.bf16.msra.mxu0 0
    %1954 = vmatprep.subr.bf16.mxu0 0
    %1955 = vmatpush1.bf16.msra.mxu0 0
    %1956 = vmatprep.subr.bf16.mxu0 0
    %1957 = vmatpush1.bf16.msra.mxu0 0
    %1958 = vmatprep.subr.bf16.mxu0 0
    %1959 = vmatpush1.bf16.msra.mxu0 0
    %1960 = vmatprep.mubr.bf16.mxu0 0
    %1961 = vmatmul.mubr.bf16.gmra.mrb[0].mxu0 %v1804
    %v1962 = vpop.f32.mrb[0].mxu0
    %v1963 = vadd.f32 0.0, %v1962
    %v1964 = vpop.f32.mrb[0].mxu0
    %v1965 = vadd.f32 0.0, %v1964
    %v1966 = vpop.f32.mrb[0].mxu0
    %v1967 = vpop.f32.mrb[0].mxu0
    %1968 = vdwg.mxu0
    %v1969 = vmax.f32 %v1840, %v1881
    %v1970 = vmax.f32 %v1842, %v1883
    %v1971 = vmax.f32 %v1922, %v1963
    %v1972 = vmax.f32 %v1924, %v1965
    %v1973 = vmax.f32 %v1969, %v1971
    %v1974 = vmax.f32 %v1970, %v1972
    %v1975 = vadd.f32 %v1973, %v680
    %v1976 = vadd.f32 %v1974, %v684
    %v1977 = vmax.f32 %v1975, 0.0
    %v1978 = vmax.f32 %v1976, 0.0
    %v1979 = vpack.c.bf16 %v1977, %v1977
    %v1980 = vpack.c.bf16 %v1978, %v1978
    %v1983 = vunpack.c.l.b16 %v1979
    %v1984 = vunpack.c.l.b16 %v1980
    %v1985 = vpack.c.b16 %v1984, %v1983
    %1987 = vst [vmem:[#allocation2 + $0x38] sm:$0xff] %v1985
    %v1988 = vld [vmem:[%s0 + $0x20] sm:$0xf]
    %1989 = vmatprep.subr.bf16.mxu0 %v379
    %1990 = vmatpush1.bf16.msra.mxu0 %v378
    %1991 = vmatprep.subr.bf16.mxu0 %v387
    %1992 = vmatpush1.bf16.msra.mxu0 %v386
    %1993 = vmatprep.subr.bf16.mxu0 %v395
    %1994 = vmatpush1.bf16.msra.mxu0 %v394
    %1995 = vmatprep.subr.bf16.mxu0 %v403
    %1996 = vmatpush1.bf16.msra.mxu0 %v402
    %1997 = vmatprep.subr.bf16.mxu0 %v411
    %1998 = vmatpush1.bf16.msra.mxu0 %v410
    %1999 = vmatprep.subr.bf16.mxu0 %v419
    %2000 = vmatpush1.bf16.msra.mxu0 %v418
    %2001 = vmatprep.subr.bf16.mxu0 %v427
    %2002 = vmatpush1.bf16.msra.mxu0 %v426
    %2003 = vmatprep.subr.bf16.mxu0 %v435
    %2004 = vmatpush1.bf16.msra.mxu0 %v434
    %2005 = vmatprep.subr.bf16.mxu0 0
    %2006 = vmatpush1.bf16.msra.mxu0 0
    %2007 = vmatprep.subr.bf16.mxu0 0
    %2008 = vmatpush1.bf16.msra.mxu0 0
    %2009 = vmatprep.subr.bf16.mxu0 0
    %2010 = vmatpush1.bf16.msra.mxu0 0
    %2011 = vmatprep.subr.bf16.mxu0 0
    %2012 = vmatpush1.bf16.msra.mxu0 0
    %2013 = vmatprep.subr.bf16.mxu0 0
    %2014 = vmatpush1.bf16.msra.mxu0 0
    %2015 = vmatprep.subr.bf16.mxu0 0
    %2016 = vmatpush1.bf16.msra.mxu0 0
    %2017 = vmatprep.subr.bf16.mxu0 0
    %2018 = vmatpush1.bf16.msra.mxu0 0
    %2019 = vmatprep.subr.bf16.mxu0 0
    %2020 = vmatpush1.bf16.msra.mxu0 0
    %2021 = vmatprep.mubr.bf16.mxu0 0
    %2022 = vmatmul.mubr.bf16.gmra.mrb[0].mxu0 %v1988
    %v2023 = vpop.f32.mrb[0].mxu0
    %v2024 = vadd.f32 0.0, %v2023
    %v2025 = vpop.f32.mrb[0].mxu0
    %v2026 = vadd.f32 0.0, %v2025
    %v2027 = vpop.f32.mrb[0].mxu0
    %v2028 = vpop.f32.mrb[0].mxu0
    %2029 = vdwg.mxu0
    %2030 = vmatprep.subr.bf16.mxu0 %v381
    %2031 = vmatpush1.bf16.msra.mxu0 %v380
    %2032 = vmatprep.subr.bf16.mxu0 %v389
    %2033 = vmatpush1.bf16.msra.mxu0 %v388
    %2034 = vmatprep.subr.bf16.mxu0 %v397
    %2035 = vmatpush1.bf16.msra.mxu0 %v396
    %2036 = vmatprep.subr.bf16.mxu0 %v405
    %2037 = vmatpush1.bf16.msra.mxu0 %v404
    %2038 = vmatprep.subr.bf16.mxu0 %v413
    %2039 = vmatpush1.bf16.msra.mxu0 %v412
    %2040 = vmatprep.subr.bf16.mxu0 %v421
    %2041 = vmatpush1.bf16.msra.mxu0 %v420
    %2042 = vmatprep.subr.bf16.mxu0 %v429
    %2043 = vmatpush1.bf16.msra.mxu0 %v428
    %2044 = vmatprep.subr.bf16.mxu0 %v437
    %2045 = vmatpush1.bf16.msra.mxu0 %v436
    %2046 = vmatprep.subr.bf16.mxu0 0
    %2047 = vmatpush1.bf16.msra.mxu0 0
    %2048 = vmatprep.subr.bf16.mxu0 0
    %2049 = vmatpush1.bf16.msra.mxu0 0
    %2050 = vmatprep.subr.bf16.mxu0 0
    %2051 = vmatpush1.bf16.msra.mxu0 0
    %2052 = vmatprep.subr.bf16.mxu0 0
    %2053 = vmatpush1.bf16.msra.mxu0 0
    %2054 = vmatprep.subr.bf16.mxu0 0
    %2055 = vmatpush1.bf16.msra.mxu0 0
    %2056 = vmatprep.subr.bf16.mxu0 0
    %2057 = vmatpush1.bf16.msra.mxu0 0
    %2058 = vmatprep.subr.bf16.mxu0 0
    %2059 = vmatpush1.bf16.msra.mxu0 0
    %2060 = vmatprep.subr.bf16.mxu0 0
    %2061 = vmatpush1.bf16.msra.mxu0 0
    %2062 = vmatprep.mubr.bf16.mxu0 0
    %2063 = vmatmul.mubr.bf16.gmra.mrb[0].mxu0 %v1988
    %v2064 = vpop.f32.mrb[0].mxu0
    %v2065 = vadd.f32 0.0, %v2064
    %v2066 = vpop.f32.mrb[0].mxu0
    %v2067 = vadd.f32 0.0, %v2066
    %v2068 = vpop.f32.mrb[0].mxu0
    %v2069 = vpop.f32.mrb[0].mxu0
    %2070 = vdwg.mxu0
    %2071 = vmatprep.subr.bf16.mxu0 %v383
    %2072 = vmatpush1.bf16.msra.mxu0 %v382
    %2073 = vmatprep.subr.bf16.mxu0 %v391
    %2074 = vmatpush1.bf16.msra.mxu0 %v390
    %2075 = vmatprep.subr.bf16.mxu0 %v399
    %2076 = vmatpush1.bf16.msra.mxu0 %v398
    %2077 = vmatprep.subr.bf16.mxu0 %v407
    %2078 = vmatpush1.bf16.msra.mxu0 %v406
    %2079 = vmatprep.subr.bf16.mxu0 %v415
    %2080 = vmatpush1.bf16.msra.mxu0 %v414
    %2081 = vmatprep.subr.bf16.mxu0 %v423
    %2082 = vmatpush1.bf16.msra.mxu0 %v422
    %2083 = vmatprep.subr.bf16.mxu0 %v431
    %2084 = vmatpush1.bf16.msra.mxu0 %v430
    %2085 = vmatprep.subr.bf16.mxu0 %v439
    %2086 = vmatpush1.bf16.msra.mxu0 %v438
    %2087 = vmatprep.subr.bf16.mxu0 0
    %2088 = vmatpush1.bf16.msra.mxu0 0
    %2089 = vmatprep.subr.bf16.mxu0 0
    %2090 = vmatpush1.bf16.msra.mxu0 0
    %2091 = vmatprep.subr.bf16.mxu0 0
    %2092 = vmatpush1.bf16.msra.mxu0 0
    %2093 = vmatprep.subr.bf16.mxu0 0
    %2094 = vmatpush1.bf16.msra.mxu0 0
    %2095 = vmatprep.subr.bf16.mxu0 0
    %2096 = vmatpush1.bf16.msra.mxu0 0
    %2097 = vmatprep.subr.bf16.mxu0 0
    %2098 = vmatpush1.bf16.msra.mxu0 0
    %2099 = vmatprep.subr.bf16.mxu0 0
    %2100 = vmatpush1.bf16.msra.mxu0 0
    %2101 = vmatprep.subr.bf16.mxu0 0
    %2102 = vmatpush1.bf16.msra.mxu0 0
    %2103 = vmatprep.mubr.bf16.mxu0 0
    %2104 = vmatmul.mubr.bf16.gmra.mrb[0].mxu0 %v1988
    %v2105 = vpop.f32.mrb[0].mxu0
    %v2106 = vadd.f32 0.0, %v2105
    %v2107 = vpop.f32.mrb[0].mxu0
    %v2108 = vadd.f32 0.0, %v2107
    %v2109 = vpop.f32.mrb[0].mxu0
    %v2110 = vpop.f32.mrb[0].mxu0
    %2111 = vdwg.mxu0
    %2112 = vmatprep.subr.bf16.mxu0 %v385
    %2113 = vmatpush1.bf16.msra.mxu0 %v384
    %2114 = vmatprep.subr.bf16.mxu0 %v393
    %2115 = vmatpush1.bf16.msra.mxu0 %v392
    %2116 = vmatprep.subr.bf16.mxu0 %v401
    %2117 = vmatpush1.bf16.msra.mxu0 %v400
    %2118 = vmatprep.subr.bf16.mxu0 %v409
    %2119 = vmatpush1.bf16.msra.mxu0 %v408
    %2120 = vmatprep.subr.bf16.mxu0 %v417
    %2121 = vmatpush1.bf16.msra.mxu0 %v416
    %2122 = vmatprep.subr.bf16.mxu0 %v425
    %2123 = vmatpush1.bf16.msra.mxu0 %v424
    %2124 = vmatprep.subr.bf16.mxu0 %v433
    %2125 = vmatpush1.bf16.msra.mxu0 %v432
    %2126 = vmatprep.subr.bf16.mxu0 %v441
    %2127 = vmatpush1.bf16.msra.mxu0 %v440
    %2128 = vmatprep.subr.bf16.mxu0 0
    %2129 = vmatpush1.bf16.msra.mxu0 0
    %2130 = vmatprep.subr.bf16.mxu0 0
    %2131 = vmatpush1.bf16.msra.mxu0 0
    %2132 = vmatprep.subr.bf16.mxu0 0
    %2133 = vmatpush1.bf16.msra.mxu0 0
    %2134 = vmatprep.subr.bf16.mxu0 0
    %2135 = vmatpush1.bf16.msra.mxu0 0
    %2136 = vmatprep.subr.bf16.mxu0 0
    %2137 = vmatpush1.bf16.msra.mxu0 0
    %2138 = vmatprep.subr.bf16.mxu0 0
    %2139 = vmatpush1.bf16.msra.mxu0 0
    %2140 = vmatprep.subr.bf16.mxu0 0
    %2141 = vmatpush1.bf16.msra.mxu0 0
    %2142 = vmatprep.subr.bf16.mxu0 0
    %2143 = vmatpush1.bf16.msra.mxu0 0
    %2144 = vmatprep.mubr.bf16.mxu0 0
    %2145 = vmatmul.mubr.bf16.gmra.mrb[0].mxu0 %v1988
    %v2146 = vpop.f32.mrb[0].mxu0
    %v2147 = vadd.f32 0.0, %v2146
    %v2148 = vpop.f32.mrb[0].mxu0
    %v2149 = vadd.f32 0.0, %v2148
    %v2150 = vpop.f32.mrb[0].mxu0
    %v2151 = vpop.f32.mrb[0].mxu0
    %2152 = vdwg.mxu0
    %v2153 = vmax.f32 %v2024, %v2065
    %v2154 = vmax.f32 %v2026, %v2067
    %v2155 = vmax.f32 %v2106, %v2147
    %v2156 = vmax.f32 %v2108, %v2149
    %v2157 = vmax.f32 %v2153, %v2155
    %v2158 = vmax.f32 %v2154, %v2156
    %v2159 = vadd.f32 %v2157, %v680
    %v2160 = vadd.f32 %v2158, %v684
    %v2161 = vmax.f32 %v2159, 0.0
    %v2162 = vmax.f32 %v2160, 0.0
    %v2163 = vpack.c.bf16 %v2161, %v2161
    %v2164 = vpack.c.bf16 %v2162, %v2162
    %v2167 = vunpack.c.l.b16 %v2163
    %v2168 = vunpack.c.l.b16 %v2164
    %v2169 = vpack.c.b16 %v2168, %v2167
    %2171 = vst [vmem:[#allocation2 + $0x40] sm:$0xff] %v2169
    %v2172 = vld [vmem:[%s0 + $0x24] sm:$0xf]
    %2173 = vmatprep.subr.bf16.mxu0 %v379
    %2174 = vmatpush1.bf16.msra.mxu0 %v378
    %2175 = vmatprep.subr.bf16.mxu0 %v387
    %2176 = vmatpush1.bf16.msra.mxu0 %v386
    %2177 = vmatprep.subr.bf16.mxu0 %v395
    %2178 = vmatpush1.bf16.msra.mxu0 %v394
    %2179 = vmatprep.subr.bf16.mxu0 %v403
    %2180 = vmatpush1.bf16.msra.mxu0 %v402
    %2181 = vmatprep.subr.bf16.mxu0 %v411
    %2182 = vmatpush1.bf16.msra.mxu0 %v410
    %2183 = vmatprep.subr.bf16.mxu0 %v419
    %2184 = vmatpush1.bf16.msra.mxu0 %v418
    %2185 = vmatprep.subr.bf16.mxu0 %v427
    %2186 = vmatpush1.bf16.msra.mxu0 %v426
    %2187 = vmatprep.subr.bf16.mxu0 %v435
    %2188 = vmatpush1.bf16.msra.mxu0 %v434
    %2189 = vmatprep.subr.bf16.mxu0 0
    %2190 = vmatpush1.bf16.msra.mxu0 0
    %2191 = vmatprep.subr.bf16.mxu0 0
    %2192 = vmatpush1.bf16.msra.mxu0 0
    %2193 = vmatprep.subr.bf16.mxu0 0
    %2194 = vmatpush1.bf16.msra.mxu0 0
    %2195 = vmatprep.subr.bf16.mxu0 0
    %2196 = vmatpush1.bf16.msra.mxu0 0
    %2197 = vmatprep.subr.bf16.mxu0 0
    %2198 = vmatpush1.bf16.msra.mxu0 0
    %2199 = vmatprep.subr.bf16.mxu0 0
    %2200 = vmatpush1.bf16.msra.mxu0 0
    %2201 = vmatprep.subr.bf16.mxu0 0
    %2202 = vmatpush1.bf16.msra.mxu0 0
    %2203 = vmatprep.subr.bf16.mxu0 0
    %2204 = vmatpush1.bf16.msra.mxu0 0
    %2205 = vmatprep.mubr.bf16.mxu0 0
    %2206 = vmatmul.mubr.bf16.gmra.mrb[0].mxu0 %v2172
    %v2207 = vpop.f32.mrb[0].mxu0
    %v2208 = vadd.f32 0.0, %v2207
    %v2209 = vpop.f32.mrb[0].mxu0
    %v2210 = vadd.f32 0.0, %v2209
    %v2211 = vpop.f32.mrb[0].mxu0
    %v2212 = vpop.f32.mrb[0].mxu0
    %2213 = vdwg.mxu0
    %2214 = vmatprep.subr.bf16.mxu0 %v381
    %2215 = vmatpush1.bf16.msra.mxu0 %v380
    %2216 = vmatprep.subr.bf16.mxu0 %v389
    %2217 = vmatpush1.bf16.msra.mxu0 %v388
    %2218 = vmatprep.subr.bf16.mxu0 %v397
    %2219 = vmatpush1.bf16.msra.mxu0 %v396
    %2220 = vmatprep.subr.bf16.mxu0 %v405
    %2221 = vmatpush1.bf16.msra.mxu0 %v404
    %2222 = vmatprep.subr.bf16.mxu0 %v413
    %2223 = vmatpush1.bf16.msra.mxu0 %v412
    %2224 = vmatprep.subr.bf16.mxu0 %v421
    %2225 = vmatpush1.bf16.msra.mxu0 %v420
    %2226 = vmatprep.subr.bf16.mxu0 %v429
    %2227 = vmatpush1.bf16.msra.mxu0 %v428
    %2228 = vmatprep.subr.bf16.mxu0 %v437
    %2229 = vmatpush1.bf16.msra.mxu0 %v436
    %2230 = vmatprep.subr.bf16.mxu0 0
    %2231 = vmatpush1.bf16.msra.mxu0 0
    %2232 = vmatprep.subr.bf16.mxu0 0
    %2233 = vmatpush1.bf16.msra.mxu0 0
    %2234 = vmatprep.subr.bf16.mxu0 0
    %2235 = vmatpush1.bf16.msra.mxu0 0
    %2236 = vmatprep.subr.bf16.mxu0 0
    %2237 = vmatpush1.bf16.msra.mxu0 0
    %2238 = vmatprep.subr.bf16.mxu0 0
    %2239 = vmatpush1.bf16.msra.mxu0 0
    %2240 = vmatprep.subr.bf16.mxu0 0
    %2241 = vmatpush1.bf16.msra.mxu0 0
    %2242 = vmatprep.subr.bf16.mxu0 0
    %2243 = vmatpush1.bf16.msra.mxu0 0
    %2244 = vmatprep.subr.bf16.mxu0 0
    %2245 = vmatpush1.bf16.msra.mxu0 0
    %2246 = vmatprep.mubr.bf16.mxu0 0
    %2247 = vmatmul.mubr.bf16.gmra.mrb[0].mxu0 %v2172
    %v2248 = vpop.f32.mrb[0].mxu0
    %v2249 = vadd.f32 0.0, %v2248
    %v2250 = vpop.f32.mrb[0].mxu0
    %v2251 = vadd.f32 0.0, %v2250
    %v2252 = vpop.f32.mrb[0].mxu0
    %v2253 = vpop.f32.mrb[0].mxu0
    %2254 = vdwg.mxu0
    %2255 = vmatprep.subr.bf16.mxu0 %v383
    %2256 = vmatpush1.bf16.msra.mxu0 %v382
    %2257 = vmatprep.subr.bf16.mxu0 %v391
    %2258 = vmatpush1.bf16.msra.mxu0 %v390
    %2259 = vmatprep.subr.bf16.mxu0 %v399
    %2260 = vmatpush1.bf16.msra.mxu0 %v398
    %2261 = vmatprep.subr.bf16.mxu0 %v407
    %2262 = vmatpush1.bf16.msra.mxu0 %v406
    %2263 = vmatprep.subr.bf16.mxu0 %v415
    %2264 = vmatpush1.bf16.msra.mxu0 %v414
    %2265 = vmatprep.subr.bf16.mxu0 %v423
    %2266 = vmatpush1.bf16.msra.mxu0 %v422
    %2267 = vmatprep.subr.bf16.mxu0 %v431
    %2268 = vmatpush1.bf16.msra.mxu0 %v430
    %2269 = vmatprep.subr.bf16.mxu0 %v439
    %2270 = vmatpush1.bf16.msra.mxu0 %v438
    %2271 = vmatprep.subr.bf16.mxu0 0
    %2272 = vmatpush1.bf16.msra.mxu0 0
    %2273 = vmatprep.subr.bf16.mxu0 0
    %2274 = vmatpush1.bf16.msra.mxu0 0
    %2275 = vmatprep.subr.bf16.mxu0 0
    %2276 = vmatpush1.bf16.msra.mxu0 0
    %2277 = vmatprep.subr.bf16.mxu0 0
    %2278 = vmatpush1.bf16.msra.mxu0 0
    %2279 = vmatprep.subr.bf16.mxu0 0
    %2280 = vmatpush1.bf16.msra.mxu0 0
    %2281 = vmatprep.subr.bf16.mxu0 0
    %2282 = vmatpush1.bf16.msra.mxu0 0
    %2283 = vmatprep.subr.bf16.mxu0 0
    %2284 = vmatpush1.bf16.msra.mxu0 0
    %2285 = vmatprep.subr.bf16.mxu0 0
    %2286 = vmatpush1.bf16.msra.mxu0 0
    %2287 = vmatprep.mubr.bf16.mxu0 0
    %2288 = vmatmul.mubr.bf16.gmra.mrb[0].mxu0 %v2172
    %v2289 = vpop.f32.mrb[0].mxu0
    %v2290 = vadd.f32 0.0, %v2289
    %v2291 = vpop.f32.mrb[0].mxu0
    %v2292 = vadd.f32 0.0, %v2291
    %v2293 = vpop.f32.mrb[0].mxu0
    %v2294 = vpop.f32.mrb[0].mxu0
    %2295 = vdwg.mxu0
    %2296 = vmatprep.subr.bf16.mxu0 %v385
    %2297 = vmatpush1.bf16.msra.mxu0 %v384
    %2298 = vmatprep.subr.bf16.mxu0 %v393
    %2299 = vmatpush1.bf16.msra.mxu0 %v392
    %2300 = vmatprep.subr.bf16.mxu0 %v401
    %2301 = vmatpush1.bf16.msra.mxu0 %v400
    %2302 = vmatprep.subr.bf16.mxu0 %v409
    %2303 = vmatpush1.bf16.msra.mxu0 %v408
    %2304 = vmatprep.subr.bf16.mxu0 %v417
    %2305 = vmatpush1.bf16.msra.mxu0 %v416
    %2306 = vmatprep.subr.bf16.mxu0 %v425
    %2307 = vmatpush1.bf16.msra.mxu0 %v424
    %2308 = vmatprep.subr.bf16.mxu0 %v433
    %2309 = vmatpush1.bf16.msra.mxu0 %v432
    %2310 = vmatprep.subr.bf16.mxu0 %v441
    %2311 = vmatpush1.bf16.msra.mxu0 %v440
    %2312 = vmatprep.subr.bf16.mxu0 0
    %2313 = vmatpush1.bf16.msra.mxu0 0
    %2314 = vmatprep.subr.bf16.mxu0 0
    %2315 = vmatpush1.bf16.msra.mxu0 0
    %2316 = vmatprep.subr.bf16.mxu0 0
    %2317 = vmatpush1.bf16.msra.mxu0 0
    %2318 = vmatprep.subr.bf16.mxu0 0
    %2319 = vmatpush1.bf16.msra.mxu0 0
    %2320 = vmatprep.subr.bf16.mxu0 0
    %2321 = vmatpush1.bf16.msra.mxu0 0
    %2322 = vmatprep.subr.bf16.mxu0 0
    %2323 = vmatpush1.bf16.msra.mxu0 0
    %2324 = vmatprep.subr.bf16.mxu0 0
    %2325 = vmatpush1.bf16.msra.mxu0 0
    %2326 = vmatprep.subr.bf16.mxu0 0
    %2327 = vmatpush1.bf16.msra.mxu0 0
    %2328 = vmatprep.mubr.bf16.mxu0 0
    %2329 = vmatmul.mubr.bf16.gmra.mrb[0].mxu0 %v2172
    %v2330 = vpop.f32.mrb[0].mxu0
    %v2331 = vadd.f32 0.0, %v2330
    %v2332 = vpop.f32.mrb[0].mxu0
    %v2333 = vadd.f32 0.0, %v2332
    %v2334 = vpop.f32.mrb[0].mxu0
    %v2335 = vpop.f32.mrb[0].mxu0
    %2336 = vdwg.mxu0
    %v2337 = vmax.f32 %v2208, %v2249
    %v2338 = vmax.f32 %v2210, %v2251
    %v2339 = vmax.f32 %v2290, %v2331
    %v2340 = vmax.f32 %v2292, %v2333
    %v2341 = vmax.f32 %v2337, %v2339
    %v2342 = vmax.f32 %v2338, %v2340
    %v2343 = vadd.f32 %v2341, %v680
    %v2344 = vadd.f32 %v2342, %v684
    %v2345 = vmax.f32 %v2343, 0.0
    %v2346 = vmax.f32 %v2344, 0.0
    %v2347 = vpack.c.bf16 %v2345, %v2345
    %v2348 = vpack.c.bf16 %v2346, %v2346
    %v2351 = vunpack.c.l.b16 %v2347
    %v2352 = vunpack.c.l.b16 %v2348
    %v2353 = vpack.c.b16 %v2352, %v2351
    %2355 = vst [vmem:[#allocation2 + $0x48] sm:$0xff] %v2353
    %v2356 = vld [vmem:[%s0 + $0x28] sm:$0xf]
    %2357 = vmatprep.subr.bf16.mxu0 %v379
    %2358 = vmatpush1.bf16.msra.mxu0 %v378
    %2359 = vmatprep.subr.bf16.mxu0 %v387
    %2360 = vmatpush1.bf16.msra.mxu0 %v386
    %2361 = vmatprep.subr.bf16.mxu0 %v395
    %2362 = vmatpush1.bf16.msra.mxu0 %v394
    %2363 = vmatprep.subr.bf16.mxu0 %v403
    %2364 = vmatpush1.bf16.msra.mxu0 %v402
    %2365 = vmatprep.subr.bf16.mxu0 %v411
    %2366 = vmatpush1.bf16.msra.mxu0 %v410
    %2367 = vmatprep.subr.bf16.mxu0 %v419
    %2368 = vmatpush1.bf16.msra.mxu0 %v418
    %2369 = vmatprep.subr.bf16.mxu0 %v427
    %2370 = vmatpush1.bf16.msra.mxu0 %v426
    %2371 = vmatprep.subr.bf16.mxu0 %v435
    %2372 = vmatpush1.bf16.msra.mxu0 %v434
    %2373 = vmatprep.subr.bf16.mxu0 0
    %2374 = vmatpush1.bf16.msra.mxu0 0
    %2375 = vmatprep.subr.bf16.mxu0 0
    %2376 = vmatpush1.bf16.msra.mxu0 0
    %2377 = vmatprep.subr.bf16.mxu0 0
    %2378 = vmatpush1.bf16.msra.mxu0 0
    %2379 = vmatprep.subr.bf16.mxu0 0
    %2380 = vmatpush1.bf16.msra.mxu0 0
    %2381 = vmatprep.subr.bf16.mxu0 0
    %2382 = vmatpush1.bf16.msra.mxu0 0
    %2383 = vmatprep.subr.bf16.mxu0 0
    %2384 = vmatpush1.bf16.msra.mxu0 0
    %2385 = vmatprep.subr.bf16.mxu0 0
    %2386 = vmatpush1.bf16.msra.mxu0 0
    %2387 = vmatprep.subr.bf16.mxu0 0
    %2388 = vmatpush1.bf16.msra.mxu0 0
    %2389 = vmatprep.mubr.bf16.mxu0 0
    %2390 = vmatmul.mubr.bf16.gmra.mrb[0].mxu0 %v2356
    %v2391 = vpop.f32.mrb[0].mxu0
    %v2392 = vadd.f32 0.0, %v2391
    %v2393 = vpop.f32.mrb[0].mxu0
    %v2394 = vadd.f32 0.0, %v2393
    %v2395 = vpop.f32.mrb[0].mxu0
    %v2396 = vpop.f32.mrb[0].mxu0
    %2397 = vdwg.mxu0
    %2398 = vmatprep.subr.bf16.mxu0 %v381
    %2399 = vmatpush1.bf16.msra.mxu0 %v380
    %2400 = vmatprep.subr.bf16.mxu0 %v389
    %2401 = vmatpush1.bf16.msra.mxu0 %v388
    %2402 = vmatprep.subr.bf16.mxu0 %v397
    %2403 = vmatpush1.bf16.msra.mxu0 %v396
    %2404 = vmatprep.subr.bf16.mxu0 %v405
    %2405 = vmatpush1.bf16.msra.mxu0 %v404
    %2406 = vmatprep.subr.bf16.mxu0 %v413
    %2407 = vmatpush1.bf16.msra.mxu0 %v412
    %2408 = vmatprep.subr.bf16.mxu0 %v421
    %2409 = vmatpush1.bf16.msra.mxu0 %v420
    %2410 = vmatprep.subr.bf16.mxu0 %v429
    %2411 = vmatpush1.bf16.msra.mxu0 %v428
    %2412 = vmatprep.subr.bf16.mxu0 %v437
    %2413 = vmatpush1.bf16.msra.mxu0 %v436
    %2414 = vmatprep.subr.bf16.mxu0 0
    %2415 = vmatpush1.bf16.msra.mxu0 0
    %2416 = vmatprep.subr.bf16.mxu0 0
    %2417 = vmatpush1.bf16.msra.mxu0 0
    %2418 = vmatprep.subr.bf16.mxu0 0
    %2419 = vmatpush1.bf16.msra.mxu0 0
    %2420 = vmatprep.subr.bf16.mxu0 0
    %2421 = vmatpush1.bf16.msra.mxu0 0
    %2422 = vmatprep.subr.bf16.mxu0 0
    %2423 = vmatpush1.bf16.msra.mxu0 0
    %2424 = vmatprep.subr.bf16.mxu0 0
    %2425 = vmatpush1.bf16.msra.mxu0 0
    %2426 = vmatprep.subr.bf16.mxu0 0
    %2427 = vmatpush1.bf16.msra.mxu0 0
    %2428 = vmatprep.subr.bf16.mxu0 0
    %2429 = vmatpush1.bf16.msra.mxu0 0
    %2430 = vmatprep.mubr.bf16.mxu0 0
    %2431 = vmatmul.mubr.bf16.gmra.mrb[0].mxu0 %v2356
    %v2432 = vpop.f32.mrb[0].mxu0
    %v2433 = vadd.f32 0.0, %v2432
    %v2434 = vpop.f32.mrb[0].mxu0
    %v2435 = vadd.f32 0.0, %v2434
    %v2436 = vpop.f32.mrb[0].mxu0
    %v2437 = vpop.f32.mrb[0].mxu0
    %2438 = vdwg.mxu0
    %2439 = vmatprep.subr.bf16.mxu0 %v383
    %2440 = vmatpush1.bf16.msra.mxu0 %v382
    %2441 = vmatprep.subr.bf16.mxu0 %v391
    %2442 = vmatpush1.bf16.msra.mxu0 %v390
    %2443 = vmatprep.subr.bf16.mxu0 %v399
    %2444 = vmatpush1.bf16.msra.mxu0 %v398
    %2445 = vmatprep.subr.bf16.mxu0 %v407
    %2446 = vmatpush1.bf16.msra.mxu0 %v406
    %2447 = vmatprep.subr.bf16.mxu0 %v415
    %2448 = vmatpush1.bf16.msra.mxu0 %v414
    %2449 = vmatprep.subr.bf16.mxu0 %v423
    %2450 = vmatpush1.bf16.msra.mxu0 %v422
    %2451 = vmatprep.subr.bf16.mxu0 %v431
    %2452 = vmatpush1.bf16.msra.mxu0 %v430
    %2453 = vmatprep.subr.bf16.mxu0 %v439
    %2454 = vmatpush1.bf16.msra.mxu0 %v438
    %2455 = vmatprep.subr.bf16.mxu0 0
    %2456 = vmatpush1.bf16.msra.mxu0 0
    %2457 = vmatprep.subr.bf16.mxu0 0
    %2458 = vmatpush1.bf16.msra.mxu0 0
    %2459 = vmatprep.subr.bf16.mxu0 0
    %2460 = vmatpush1.bf16.msra.mxu0 0
    %2461 = vmatprep.subr.bf16.mxu0 0
    %2462 = vmatpush1.bf16.msra.mxu0 0
    %2463 = vmatprep.subr.bf16.mxu0 0
    %2464 = vmatpush1.bf16.msra.mxu0 0
    %2465 = vmatprep.subr.bf16.mxu0 0
    %2466 = vmatpush1.bf16.msra.mxu0 0
    %2467 = vmatprep.subr.bf16.mxu0 0
    %2468 = vmatpush1.bf16.msra.mxu0 0
    %2469 = vmatprep.subr.bf16.mxu0 0
    %2470 = vmatpush1.bf16.msra.mxu0 0
    %2471 = vmatprep.mubr.bf16.mxu0 0
    %2472 = vmatmul.mubr.bf16.gmra.mrb[0].mxu0 %v2356
    %v2473 = vpop.f32.mrb[0].mxu0
    %v2474 = vadd.f32 0.0, %v2473
    %v2475 = vpop.f32.mrb[0].mxu0
    %v2476 = vadd.f32 0.0, %v2475
    %v2477 = vpop.f32.mrb[0].mxu0
    %v2478 = vpop.f32.mrb[0].mxu0
    %2479 = vdwg.mxu0
    %2480 = vmatprep.subr.bf16.mxu0 %v385
    %2481 = vmatpush1.bf16.msra.mxu0 %v384
    %2482 = vmatprep.subr.bf16.mxu0 %v393
    %2483 = vmatpush1.bf16.msra.mxu0 %v392
    %2484 = vmatprep.subr.bf16.mxu0 %v401
    %2485 = vmatpush1.bf16.msra.mxu0 %v400
    %2486 = vmatprep.subr.bf16.mxu0 %v409
    %2487 = vmatpush1.bf16.msra.mxu0 %v408
    %2488 = vmatprep.subr.bf16.mxu0 %v417
    %2489 = vmatpush1.bf16.msra.mxu0 %v416
    %2490 = vmatprep.subr.bf16.mxu0 %v425
    %2491 = vmatpush1.bf16.msra.mxu0 %v424
    %2492 = vmatprep.subr.bf16.mxu0 %v433
    %2493 = vmatpush1.bf16.msra.mxu0 %v432
    %2494 = vmatprep.subr.bf16.mxu0 %v441
    %2495 = vmatpush1.bf16.msra.mxu0 %v440
    %2496 = vmatprep.subr.bf16.mxu0 0
    %2497 = vmatpush1.bf16.msra.mxu0 0
    %2498 = vmatprep.subr.bf16.mxu0 0
    %2499 = vmatpush1.bf16.msra.mxu0 0
    %2500 = vmatprep.subr.bf16.mxu0 0
    %2501 = vmatpush1.bf16.msra.mxu0 0
    %2502 = vmatprep.subr.bf16.mxu0 0
    %2503 = vmatpush1.bf16.msra.mxu0 0
    %2504 = vmatprep.subr.bf16.mxu0 0
    %2505 = vmatpush1.bf16.msra.mxu0 0
    %2506 = vmatprep.subr.bf16.mxu0 0
    %2507 = vmatpush1.bf16.msra.mxu0 0
    %2508 = vmatprep.subr.bf16.mxu0 0
    %2509 = vmatpush1.bf16.msra.mxu0 0
    %2510 = vmatprep.subr.bf16.mxu0 0
    %2511 = vmatpush1.bf16.msra.mxu0 0
    %2512 = vmatprep.mubr.bf16.mxu0 0
    %2513 = vmatmul.mubr.bf16.gmra.mrb[0].mxu0 %v2356
    %v2514 = vpop.f32.mrb[0].mxu0
    %v2515 = vadd.f32 0.0, %v2514
    %v2516 = vpop.f32.mrb[0].mxu0
    %v2517 = vadd.f32 0.0, %v2516
    %v2518 = vpop.f32.mrb[0].mxu0
    %v2519 = vpop.f32.mrb[0].mxu0
    %2520 = vdwg.mxu0
    %v2521 = vmax.f32 %v2392, %v2433
    %v2522 = vmax.f32 %v2394, %v2435
    %v2523 = vmax.f32 %v2474, %v2515
    %v2524 = vmax.f32 %v2476, %v2517
    %v2525 = vmax.f32 %v2521, %v2523
    %v2526 = vmax.f32 %v2522, %v2524
    %v2527 = vadd.f32 %v2525, %v680
    %v2528 = vadd.f32 %v2526, %v684
    %v2529 = vmax.f32 %v2527, 0.0
    %v2530 = vmax.f32 %v2528, 0.0
    %v2531 = vpack.c.bf16 %v2529, %v2529
    %v2532 = vpack.c.bf16 %v2530, %v2530
    %v2535 = vunpack.c.l.b16 %v2531
    %v2536 = vunpack.c.l.b16 %v2532
    %v2537 = vpack.c.b16 %v2536, %v2535
    %2539 = vst [vmem:[#allocation2 + $0x50] sm:$0xff] %v2537
    %v2540 = vld [vmem:[%s0 + $0x2c] sm:$0xf]
    %2541 = vmatprep.subr.bf16.mxu0 %v379
    %2542 = vmatpush1.bf16.msra.mxu0 %v378
    %2543 = vmatprep.subr.bf16.mxu0 %v387
    %2544 = vmatpush1.bf16.msra.mxu0 %v386
    %2545 = vmatprep.subr.bf16.mxu0 %v395
    %2546 = vmatpush1.bf16.msra.mxu0 %v394
    %2547 = vmatprep.subr.bf16.mxu0 %v403
    %2548 = vmatpush1.bf16.msra.mxu0 %v402
    %2549 = vmatprep.subr.bf16.mxu0 %v411
    %2550 = vmatpush1.bf16.msra.mxu0 %v410
    %2551 = vmatprep.subr.bf16.mxu0 %v419
    %2552 = vmatpush1.bf16.msra.mxu0 %v418
    %2553 = vmatprep.subr.bf16.mxu0 %v427
    %2554 = vmatpush1.bf16.msra.mxu0 %v426
    %2555 = vmatprep.subr.bf16.mxu0 %v435
    %2556 = vmatpush1.bf16.msra.mxu0 %v434
    %2557 = vmatprep.subr.bf16.mxu0 0
    %2558 = vmatpush1.bf16.msra.mxu0 0
    %2559 = vmatprep.subr.bf16.mxu0 0
    %2560 = vmatpush1.bf16.msra.mxu0 0
    %2561 = vmatprep.subr.bf16.mxu0 0
    %2562 = vmatpush1.bf16.msra.mxu0 0
    %2563 = vmatprep.subr.bf16.mxu0 0
    %2564 = vmatpush1.bf16.msra.mxu0 0
    %2565 = vmatprep.subr.bf16.mxu0 0
    %2566 = vmatpush1.bf16.msra.mxu0 0
    %2567 = vmatprep.subr.bf16.mxu0 0
    %2568 = vmatpush1.bf16.msra.mxu0 0
    %2569 = vmatprep.subr.bf16.mxu0 0
    %2570 = vmatpush1.bf16.msra.mxu0 0
    %2571 = vmatprep.subr.bf16.mxu0 0
    %2572 = vmatpush1.bf16.msra.mxu0 0
    %2573 = vmatprep.mubr.bf16.mxu0 0
    %2574 = vmatmul.mubr.bf16.gmra.mrb[0].mxu0 %v2540
    %v2575 = vpop.f32.mrb[0].mxu0
    %v2576 = vadd.f32 0.0, %v2575
    %v2577 = vpop.f32.mrb[0].mxu0
    %v2578 = vadd.f32 0.0, %v2577
    %v2579 = vpop.f32.mrb[0].mxu0
    %v2580 = vpop.f32.mrb[0].mxu0
    %2581 = vdwg.mxu0
    %2582 = vmatprep.subr.bf16.mxu0 %v381
    %2583 = vmatpush1.bf16.msra.mxu0 %v380
    %2584 = vmatprep.subr.bf16.mxu0 %v389
    %2585 = vmatpush1.bf16.msra.mxu0 %v388
    %2586 = vmatprep.subr.bf16.mxu0 %v397
    %2587 = vmatpush1.bf16.msra.mxu0 %v396
    %2588 = vmatprep.subr.bf16.mxu0 %v405
    %2589 = vmatpush1.bf16.msra.mxu0 %v404
    %2590 = vmatprep.subr.bf16.mxu0 %v413
    %2591 = vmatpush1.bf16.msra.mxu0 %v412
    %2592 = vmatprep.subr.bf16.mxu0 %v421
    %2593 = vmatpush1.bf16.msra.mxu0 %v420
    %2594 = vmatprep.subr.bf16.mxu0 %v429
    %2595 = vmatpush1.bf16.msra.mxu0 %v428
    %2596 = vmatprep.subr.bf16.mxu0 %v437
    %2597 = vmatpush1.bf16.msra.mxu0 %v436
    %2598 = vmatprep.subr.bf16.mxu0 0
    %2599 = vmatpush1.bf16.msra.mxu0 0
    %2600 = vmatprep.subr.bf16.mxu0 0
    %2601 = vmatpush1.bf16.msra.mxu0 0
    %2602 = vmatprep.subr.bf16.mxu0 0
    %2603 = vmatpush1.bf16.msra.mxu0 0
    %2604 = vmatprep.subr.bf16.mxu0 0
    %2605 = vmatpush1.bf16.msra.mxu0 0
    %2606 = vmatprep.subr.bf16.mxu0 0
    %2607 = vmatpush1.bf16.msra.mxu0 0
    %2608 = vmatprep.subr.bf16.mxu0 0
    %2609 = vmatpush1.bf16.msra.mxu0 0
    %2610 = vmatprep.subr.bf16.mxu0 0
    %2611 = vmatpush1.bf16.msra.mxu0 0
    %2612 = vmatprep.subr.bf16.mxu0 0
    %2613 = vmatpush1.bf16.msra.mxu0 0
    %2614 = vmatprep.mubr.bf16.mxu0 0
    %2615 = vmatmul.mubr.bf16.gmra.mrb[0].mxu0 %v2540
    %v2616 = vpop.f32.mrb[0].mxu0
    %v2617 = vadd.f32 0.0, %v2616
    %v2618 = vpop.f32.mrb[0].mxu0
    %v2619 = vadd.f32 0.0, %v2618
    %v2620 = vpop.f32.mrb[0].mxu0
    %v2621 = vpop.f32.mrb[0].mxu0
    %2622 = vdwg.mxu0
    %2623 = vmatprep.subr.bf16.mxu0 %v383
    %2624 = vmatpush1.bf16.msra.mxu0 %v382
    %2625 = vmatprep.subr.bf16.mxu0 %v391
    %2626 = vmatpush1.bf16.msra.mxu0 %v390
    %2627 = vmatprep.subr.bf16.mxu0 %v399
    %2628 = vmatpush1.bf16.msra.mxu0 %v398
    %2629 = vmatprep.subr.bf16.mxu0 %v407
    %2630 = vmatpush1.bf16.msra.mxu0 %v406
    %2631 = vmatprep.subr.bf16.mxu0 %v415
    %2632 = vmatpush1.bf16.msra.mxu0 %v414
    %2633 = vmatprep.subr.bf16.mxu0 %v423
    %2634 = vmatpush1.bf16.msra.mxu0 %v422
    %2635 = vmatprep.subr.bf16.mxu0 %v431
    %2636 = vmatpush1.bf16.msra.mxu0 %v430
    %2637 = vmatprep.subr.bf16.mxu0 %v439
    %2638 = vmatpush1.bf16.msra.mxu0 %v438
    %2639 = vmatprep.subr.bf16.mxu0 0
    %2640 = vmatpush1.bf16.msra.mxu0 0
    %2641 = vmatprep.subr.bf16.mxu0 0
    %2642 = vmatpush1.bf16.msra.mxu0 0
    %2643 = vmatprep.subr.bf16.mxu0 0
    %2644 = vmatpush1.bf16.msra.mxu0 0
    %2645 = vmatprep.subr.bf16.mxu0 0
    %2646 = vmatpush1.bf16.msra.mxu0 0
    %2647 = vmatprep.subr.bf16.mxu0 0
    %2648 = vmatpush1.bf16.msra.mxu0 0
    %2649 = vmatprep.subr.bf16.mxu0 0
    %2650 = vmatpush1.bf16.msra.mxu0 0
    %2651 = vmatprep.subr.bf16.mxu0 0
    %2652 = vmatpush1.bf16.msra.mxu0 0
    %2653 = vmatprep.subr.bf16.mxu0 0
    %2654 = vmatpush1.bf16.msra.mxu0 0
    %2655 = vmatprep.mubr.bf16.mxu0 0
    %2656 = vmatmul.mubr.bf16.gmra.mrb[0].mxu0 %v2540
    %v2657 = vpop.f32.mrb[0].mxu0
    %v2658 = vadd.f32 0.0, %v2657
    %v2659 = vpop.f32.mrb[0].mxu0
    %v2660 = vadd.f32 0.0, %v2659
    %v2661 = vpop.f32.mrb[0].mxu0
    %v2662 = vpop.f32.mrb[0].mxu0
    %2663 = vdwg.mxu0
    %2664 = vmatprep.subr.bf16.mxu0 %v385
    %2665 = vmatpush1.bf16.msra.mxu0 %v384
    %2666 = vmatprep.subr.bf16.mxu0 %v393
    %2667 = vmatpush1.bf16.msra.mxu0 %v392
    %2668 = vmatprep.subr.bf16.mxu0 %v401
    %2669 = vmatpush1.bf16.msra.mxu0 %v400
    %2670 = vmatprep.subr.bf16.mxu0 %v409
    %2671 = vmatpush1.bf16.msra.mxu0 %v408
    %2672 = vmatprep.subr.bf16.mxu0 %v417
    %2673 = vmatpush1.bf16.msra.mxu0 %v416
    %2674 = vmatprep.subr.bf16.mxu0 %v425
    %2675 = vmatpush1.bf16.msra.mxu0 %v424
    %2676 = vmatprep.subr.bf16.mxu0 %v433
    %2677 = vmatpush1.bf16.msra.mxu0 %v432
    %2678 = vmatprep.subr.bf16.mxu0 %v441
    %2679 = vmatpush1.bf16.msra.mxu0 %v440
    %2680 = vmatprep.subr.bf16.mxu0 0
    %2681 = vmatpush1.bf16.msra.mxu0 0
    %2682 = vmatprep.subr.bf16.mxu0 0
    %2683 = vmatpush1.bf16.msra.mxu0 0
    %2684 = vmatprep.subr.bf16.mxu0 0
    %2685 = vmatpush1.bf16.msra.mxu0 0
    %2686 = vmatprep.subr.bf16.mxu0 0
    %2687 = vmatpush1.bf16.msra.mxu0 0
    %2688 = vmatprep.subr.bf16.mxu0 0
    %2689 = vmatpush1.bf16.msra.mxu0 0
    %2690 = vmatprep.subr.bf16.mxu0 0
    %2691 = vmatpush1.bf16.msra.mxu0 0
    %2692 = vmatprep.subr.bf16.mxu0 0
    %2693 = vmatpush1.bf16.msra.mxu0 0
    %2694 = vmatprep.subr.bf16.mxu0 0
    %2695 = vmatpush1.bf16.msra.mxu0 0
    %2696 = vmatprep.mubr.bf16.mxu0 0
    %2697 = vmatmul.mubr.bf16.gmra.mrb[0].mxu0 %v2540
    %v2698 = vpop.f32.mrb[0].mxu0
    %v2699 = vadd.f32 0.0, %v2698
    %v2700 = vpop.f32.mrb[0].mxu0
    %v2701 = vadd.f32 0.0, %v2700
    %v2702 = vpop.f32.mrb[0].mxu0
    %v2703 = vpop.f32.mrb[0].mxu0
    %2704 = vdwg.mxu0
    %v2705 = vmax.f32 %v2576, %v2617
    %v2706 = vmax.f32 %v2578, %v2619
    %v2707 = vmax.f32 %v2658, %v2699
    %v2708 = vmax.f32 %v2660, %v2701
    %v2709 = vmax.f32 %v2705, %v2707
    %v2710 = vmax.f32 %v2706, %v2708
    %v2711 = vadd.f32 %v2709, %v680
    %v2712 = vadd.f32 %v2710, %v684
    %v2713 = vmax.f32 %v2711, 0.0
    %v2714 = vmax.f32 %v2712, 0.0
    %v2715 = vpack.c.bf16 %v2713, %v2713
    %v2716 = vpack.c.bf16 %v2714, %v2714
    %v2719 = vunpack.c.l.b16 %v2715
    %v2720 = vunpack.c.l.b16 %v2716
    %v2721 = vpack.c.b16 %v2720, %v2719
    %2723 = vst [vmem:[#allocation2 + $0x58] sm:$0xff] %v2721
    %v2724 = vld [vmem:[%s0 + $0x30] sm:$0xf]
    %2725 = vmatprep.subr.bf16.mxu0 %v379
    %2726 = vmatpush1.bf16.msra.mxu0 %v378
    %2727 = vmatprep.subr.bf16.mxu0 %v387
    %2728 = vmatpush1.bf16.msra.mxu0 %v386
    %2729 = vmatprep.subr.bf16.mxu0 %v395
    %2730 = vmatpush1.bf16.msra.mxu0 %v394
    %2731 = vmatprep.subr.bf16.mxu0 %v403
    %2732 = vmatpush1.bf16.msra.mxu0 %v402
    %2733 = vmatprep.subr.bf16.mxu0 %v411
    %2734 = vmatpush1.bf16.msra.mxu0 %v410
    %2735 = vmatprep.subr.bf16.mxu0 %v419
    %2736 = vmatpush1.bf16.msra.mxu0 %v418
    %2737 = vmatprep.subr.bf16.mxu0 %v427
    %2738 = vmatpush1.bf16.msra.mxu0 %v426
    %2739 = vmatprep.subr.bf16.mxu0 %v435
    %2740 = vmatpush1.bf16.msra.mxu0 %v434
    %2741 = vmatprep.subr.bf16.mxu0 0
    %2742 = vmatpush1.bf16.msra.mxu0 0
    %2743 = vmatprep.subr.bf16.mxu0 0
    %2744 = vmatpush1.bf16.msra.mxu0 0
    %2745 = vmatprep.subr.bf16.mxu0 0
    %2746 = vmatpush1.bf16.msra.mxu0 0
    %2747 = vmatprep.subr.bf16.mxu0 0
    %2748 = vmatpush1.bf16.msra.mxu0 0
    %2749 = vmatprep.subr.bf16.mxu0 0
    %2750 = vmatpush1.bf16.msra.mxu0 0
    %2751 = vmatprep.subr.bf16.mxu0 0
    %2752 = vmatpush1.bf16.msra.mxu0 0
    %2753 = vmatprep.subr.bf16.mxu0 0
    %2754 = vmatpush1.bf16.msra.mxu0 0
    %2755 = vmatprep.subr.bf16.mxu0 0
    %2756 = vmatpush1.bf16.msra.mxu0 0
    %2757 = vmatprep.mubr.bf16.mxu0 0
    %2758 = vmatmul.mubr.bf16.gmra.mrb[0].mxu0 %v2724
    %v2759 = vpop.f32.mrb[0].mxu0
    %v2760 = vadd.f32 0.0, %v2759
    %v2761 = vpop.f32.mrb[0].mxu0
    %v2762 = vadd.f32 0.0, %v2761
    %v2763 = vpop.f32.mrb[0].mxu0
    %v2764 = vpop.f32.mrb[0].mxu0
    %2765 = vdwg.mxu0
    %2766 = vmatprep.subr.bf16.mxu0 %v381
    %2767 = vmatpush1.bf16.msra.mxu0 %v380
    %2768 = vmatprep.subr.bf16.mxu0 %v389
    %2769 = vmatpush1.bf16.msra.mxu0 %v388
    %2770 = vmatprep.subr.bf16.mxu0 %v397
    %2771 = vmatpush1.bf16.msra.mxu0 %v396
    %2772 = vmatprep.subr.bf16.mxu0 %v405
    %2773 = vmatpush1.bf16.msra.mxu0 %v404
    %2774 = vmatprep.subr.bf16.mxu0 %v413
    %2775 = vmatpush1.bf16.msra.mxu0 %v412
    %2776 = vmatprep.subr.bf16.mxu0 %v421
    %2777 = vmatpush1.bf16.msra.mxu0 %v420
    %2778 = vmatprep.subr.bf16.mxu0 %v429
    %2779 = vmatpush1.bf16.msra.mxu0 %v428
    %2780 = vmatprep.subr.bf16.mxu0 %v437
    %2781 = vmatpush1.bf16.msra.mxu0 %v436
    %2782 = vmatprep.subr.bf16.mxu0 0
    %2783 = vmatpush1.bf16.msra.mxu0 0
    %2784 = vmatprep.subr.bf16.mxu0 0
    %2785 = vmatpush1.bf16.msra.mxu0 0
    %2786 = vmatprep.subr.bf16.mxu0 0
    %2787 = vmatpush1.bf16.msra.mxu0 0
    %2788 = vmatprep.subr.bf16.mxu0 0
    %2789 = vmatpush1.bf16.msra.mxu0 0
    %2790 = vmatprep.subr.bf16.mxu0 0
    %2791 = vmatpush1.bf16.msra.mxu0 0
    %2792 = vmatprep.subr.bf16.mxu0 0
    %2793 = vmatpush1.bf16.msra.mxu0 0
    %2794 = vmatprep.subr.bf16.mxu0 0
    %2795 = vmatpush1.bf16.msra.mxu0 0
    %2796 = vmatprep.subr.bf16.mxu0 0
    %2797 = vmatpush1.bf16.msra.mxu0 0
    %2798 = vmatprep.mubr.bf16.mxu0 0
    %2799 = vmatmul.mubr.bf16.gmra.mrb[0].mxu0 %v2724
    %v2800 = vpop.f32.mrb[0].mxu0
    %v2801 = vadd.f32 0.0, %v2800
    %v2802 = vpop.f32.mrb[0].mxu0
    %v2803 = vadd.f32 0.0, %v2802
    %v2804 = vpop.f32.mrb[0].mxu0
    %v2805 = vpop.f32.mrb[0].mxu0
    %2806 = vdwg.mxu0
    %2807 = vmatprep.subr.bf16.mxu0 %v383
    %2808 = vmatpush1.bf16.msra.mxu0 %v382
    %2809 = vmatprep.subr.bf16.mxu0 %v391
    %2810 = vmatpush1.bf16.msra.mxu0 %v390
    %2811 = vmatprep.subr.bf16.mxu0 %v399
    %2812 = vmatpush1.bf16.msra.mxu0 %v398
    %2813 = vmatprep.subr.bf16.mxu0 %v407
    %2814 = vmatpush1.bf16.msra.mxu0 %v406
    %2815 = vmatprep.subr.bf16.mxu0 %v415
    %2816 = vmatpush1.bf16.msra.mxu0 %v414
    %2817 = vmatprep.subr.bf16.mxu0 %v423
    %2818 = vmatpush1.bf16.msra.mxu0 %v422
    %2819 = vmatprep.subr.bf16.mxu0 %v431
    %2820 = vmatpush1.bf16.msra.mxu0 %v430
    %2821 = vmatprep.subr.bf16.mxu0 %v439
    %2822 = vmatpush1.bf16.msra.mxu0 %v438
    %2823 = vmatprep.subr.bf16.mxu0 0
    %2824 = vmatpush1.bf16.msra.mxu0 0
    %2825 = vmatprep.subr.bf16.mxu0 0
    %2826 = vmatpush1.bf16.msra.mxu0 0
    %2827 = vmatprep.subr.bf16.mxu0 0
    %2828 = vmatpush1.bf16.msra.mxu0 0
    %2829 = vmatprep.subr.bf16.mxu0 0
    %2830 = vmatpush1.bf16.msra.mxu0 0
    %2831 = vmatprep.subr.bf16.mxu0 0
    %2832 = vmatpush1.bf16.msra.mxu0 0
    %2833 = vmatprep.subr.bf16.mxu0 0
    %2834 = vmatpush1.bf16.msra.mxu0 0
    %2835 = vmatprep.subr.bf16.mxu0 0
    %2836 = vmatpush1.bf16.msra.mxu0 0
    %2837 = vmatprep.subr.bf16.mxu0 0
    %2838 = vmatpush1.bf16.msra.mxu0 0
    %2839 = vmatprep.mubr.bf16.mxu0 0
    %2840 = vmatmul.mubr.bf16.gmra.mrb[0].mxu0 %v2724
    %v2841 = vpop.f32.mrb[0].mxu0
    %v2842 = vadd.f32 0.0, %v2841
    %v2843 = vpop.f32.mrb[0].mxu0
    %v2844 = vadd.f32 0.0, %v2843
    %v2845 = vpop.f32.mrb[0].mxu0
    %v2846 = vpop.f32.mrb[0].mxu0
    %2847 = vdwg.mxu0
    %2848 = vmatprep.subr.bf16.mxu0 %v385
    %2849 = vmatpush1.bf16.msra.mxu0 %v384
    %2850 = vmatprep.subr.bf16.mxu0 %v393
    %2851 = vmatpush1.bf16.msra.mxu0 %v392
    %2852 = vmatprep.subr.bf16.mxu0 %v401
    %2853 = vmatpush1.bf16.msra.mxu0 %v400
    %2854 = vmatprep.subr.bf16.mxu0 %v409
    %2855 = vmatpush1.bf16.msra.mxu0 %v408
    %2856 = vmatprep.subr.bf16.mxu0 %v417
    %2857 = vmatpush1.bf16.msra.mxu0 %v416
    %2858 = vmatprep.subr.bf16.mxu0 %v425
    %2859 = vmatpush1.bf16.msra.mxu0 %v424
    %2860 = vmatprep.subr.bf16.mxu0 %v433
    %2861 = vmatpush1.bf16.msra.mxu0 %v432
    %2862 = vmatprep.subr.bf16.mxu0 %v441
    %2863 = vmatpush1.bf16.msra.mxu0 %v440
    %2864 = vmatprep.subr.bf16.mxu0 0
    %2865 = vmatpush1.bf16.msra.mxu0 0
    %2866 = vmatprep.subr.bf16.mxu0 0
    %2867 = vmatpush1.bf16.msra.mxu0 0
    %2868 = vmatprep.subr.bf16.mxu0 0
    %2869 = vmatpush1.bf16.msra.mxu0 0
    %2870 = vmatprep.subr.bf16.mxu0 0
    %2871 = vmatpush1.bf16.msra.mxu0 0
    %2872 = vmatprep.subr.bf16.mxu0 0
    %2873 = vmatpush1.bf16.msra.mxu0 0
    %2874 = vmatprep.subr.bf16.mxu0 0
    %2875 = vmatpush1.bf16.msra.mxu0 0
    %2876 = vmatprep.subr.bf16.mxu0 0
    %2877 = vmatpush1.bf16.msra.mxu0 0
    %2878 = vmatprep.subr.bf16.mxu0 0
    %2879 = vmatpush1.bf16.msra.mxu0 0
    %2880 = vmatprep.mubr.bf16.mxu0 0
    %2881 = vmatmul.mubr.bf16.gmra.mrb[0].mxu0 %v2724
    %v2882 = vpop.f32.mrb[0].mxu0
    %v2883 = vadd.f32 0.0, %v2882
    %v2884 = vpop.f32.mrb[0].mxu0
    %v2885 = vadd.f32 0.0, %v2884
    %v2886 = vpop.f32.mrb[0].mxu0
    %v2887 = vpop.f32.mrb[0].mxu0
    %2888 = vdwg.mxu0
    %v2889 = vmax.f32 %v2760, %v2801
    %v2890 = vmax.f32 %v2762, %v2803
    %v2891 = vmax.f32 %v2842, %v2883
    %v2892 = vmax.f32 %v2844, %v2885
    %v2893 = vmax.f32 %v2889, %v2891
    %v2894 = vmax.f32 %v2890, %v2892
    %v2895 = vadd.f32 %v2893, %v680
    %v2896 = vadd.f32 %v2894, %v684
    %v2897 = vmax.f32 %v2895, 0.0
    %v2898 = vmax.f32 %v2896, 0.0
    %v2899 = vpack.c.bf16 %v2897, %v2897
    %v2900 = vpack.c.bf16 %v2898, %v2898
    %v2903 = vunpack.c.l.b16 %v2899
    %v2904 = vunpack.c.l.b16 %v2900
    %v2905 = vpack.c.b16 %v2904, %v2903
    %2907 = vst [vmem:[#allocation2 + $0x60] sm:$0xff] %v2905
    %v2908 = vld [vmem:[#allocation8] sm:$0xff]
    %v2909 = vld [vmem:[#allocation8 + $0x8] sm:$0xff]
    %v2910 = vld [vmem:[#allocation8 + $0x10] sm:$0xff]
    %v2911 = vld [vmem:[#allocation8 + $0x18] sm:$0xff]
    %v2912 = vld [vmem:[#allocation8 + $0x20] sm:$0xff]
    %v2913 = vld [vmem:[#allocation8 + $0x28] sm:$0xff]
    %v2914 = vld [vmem:[#allocation8 + $0x30] sm:$0xff]
    %v2915 = vld [vmem:[#allocation8 + $0x38] sm:$0xff]
    %v2916 = vld [vmem:[#allocation8 + $0x40] sm:$0xff]
    %v2917 = vld [vmem:[#allocation8 + $0x48] sm:$0xff]
    %v2918 = vld [vmem:[#allocation8 + $0x50] sm:$0xff]
    %v2919 = vld [vmem:[#allocation8 + $0x58] sm:$0xff]
    %v2920 = vld [vmem:[#allocation8 + $0x60] sm:$0xff]
    %v2921 = vld [vmem:[#allocation8 + $0x68] sm:$0xff]
    %v2922 = vld [vmem:[#allocation8 + $0x70] sm:$0xff]
    %v2923 = vld [vmem:[#allocation8 + $0x78] sm:$0xff]
    %v2924 = vld [vmem:[#allocation8 + $0x80] sm:$0xff]
    %v2925 = vld [vmem:[#allocation8 + $0x88] sm:$0xff]
    %v2926 = vld [vmem:[#allocation8 + $0x90] sm:$0xff]
    %v2927 = vld [vmem:[#allocation8 + $0x98] sm:$0xff]
    %v2928 = vld [vmem:[#allocation8 + $0xa0] sm:$0xff]
    %v2929 = vld [vmem:[#allocation8 + $0xa8] sm:$0xff]
    %v2930 = vld [vmem:[#allocation8 + $0xb0] sm:$0xff]
    %v2931 = vld [vmem:[#allocation8 + $0xb8] sm:$0xff]
    %v2932 = vld [vmem:[#allocation8 + $0xc0] sm:$0xff]
    %v2933 = vld [vmem:[#allocation8 + $0xc8] sm:$0xff]
    %v2934 = vld [vmem:[#allocation8 + $0xd0] sm:$0xff]
    %v2935 = vld [vmem:[#allocation8 + $0xd8] sm:$0xff]
    %v2936 = vld [vmem:[#allocation8 + $0xe0] sm:$0xff]
    %v2937 = vld [vmem:[#allocation8 + $0xe8] sm:$0xff]
    %v2938 = vld [vmem:[#allocation8 + $0xf0] sm:$0xff]
    %v2939 = vld [vmem:[#allocation8 + $0xf8] sm:$0xff]
    %v2940 = vld [vmem:[#allocation8 + $0x100] sm:$0xff]
    %v2941 = vld [vmem:[#allocation8 + $0x108] sm:$0xff]
    %v2942 = vld [vmem:[#allocation8 + $0x110] sm:$0xff]
    %v2943 = vld [vmem:[#allocation8 + $0x118] sm:$0xff]
    %v2944 = vld [vmem:[#allocation8 + $0x120] sm:$0xff]
    %v2945 = vld [vmem:[#allocation8 + $0x128] sm:$0xff]
    %v2946 = vld [vmem:[#allocation8 + $0x130] sm:$0xff]
    %v2947 = vld [vmem:[#allocation8 + $0x138] sm:$0xff]
    %v2948 = vld [vmem:[#allocation8 + $0x140] sm:$0xff]
    %v2949 = vld [vmem:[#allocation8 + $0x148] sm:$0xff]
    %v2950 = vld [vmem:[#allocation8 + $0x150] sm:$0xff]
    %v2951 = vld [vmem:[#allocation8 + $0x158] sm:$0xff]
    %v2952 = vld [vmem:[#allocation8 + $0x160] sm:$0xff]
    %v2953 = vld [vmem:[#allocation8 + $0x168] sm:$0xff]
    %v2954 = vld [vmem:[#allocation8 + $0x170] sm:$0xff]
    %v2955 = vld [vmem:[#allocation8 + $0x178] sm:$0xff]
    %v2956 = vld [vmem:[#allocation8 + $0x180] sm:$0xff]
    %v2957 = vld [vmem:[#allocation8 + $0x188] sm:$0xff]
    %v2958 = vld [vmem:[#allocation8 + $0x190] sm:$0xff]
    %v2959 = vld [vmem:[#allocation8 + $0x198] sm:$0xff]
    %v2960 = vld [vmem:[#allocation8 + $0x1a0] sm:$0xff]
    %v2961 = vld [vmem:[#allocation8 + $0x1a8] sm:$0xff]
    %v2962 = vld [vmem:[#allocation8 + $0x1b0] sm:$0xff]
    %v2963 = vld [vmem:[#allocation8 + $0x1b8] sm:$0xff]
    %v2964 = vld [vmem:[#allocation8 + $0x1c0] sm:$0xff]
    %v2965 = vld [vmem:[#allocation8 + $0x1c8] sm:$0xff]
    %v2966 = vld [vmem:[#allocation8 + $0x1d0] sm:$0xff]
    %v2967 = vld [vmem:[#allocation8 + $0x1d8] sm:$0xff]
    %v2968 = vld [vmem:[#allocation8 + $0x1e0] sm:$0xff]
    %v2969 = vld [vmem:[#allocation8 + $0x1e8] sm:$0xff]
    %v2970 = vld [vmem:[#allocation8 + $0x1f0] sm:$0xff]
    %v2971 = vld [vmem:[#allocation8 + $0x1f8] sm:$0xff]
    %v2972 = vld [vmem:[#allocation8 + $0x200] sm:$0xff]
    %v2973 = vld [vmem:[#allocation8 + $0x208] sm:$0xff]
    %v2974 = vld [vmem:[#allocation8 + $0x210] sm:$0xff]
    %v2975 = vld [vmem:[#allocation8 + $0x218] sm:$0xff]
    %v2976 = vld [vmem:[#allocation8 + $0x220] sm:$0xff]
    %v2977 = vld [vmem:[#allocation8 + $0x228] sm:$0xff]
    %v2978 = vld [vmem:[#allocation8 + $0x230] sm:$0xff]
    %v2979 = vld [vmem:[#allocation8 + $0x238] sm:$0xff]
    %v2980 = vld [vmem:[#allocation8 + $0x240] sm:$0xff]
    %v2981 = vld [vmem:[#allocation8 + $0x248] sm:$0xff]
    %v2982 = vld [vmem:[#allocation8 + $0x250] sm:$0xff]
    %v2983 = vld [vmem:[#allocation8 + $0x258] sm:$0xff]
    %v2984 = vld [vmem:[#allocation8 + $0x260] sm:$0xff]
    %v2985 = vld [vmem:[#allocation8 + $0x268] sm:$0xff]
    %v2986 = vld [vmem:[#allocation8 + $0x270] sm:$0xff]
    %v2987 = vld [vmem:[#allocation8 + $0x278] sm:$0xff]
    %v2988 = vld [vmem:[#allocation8 + $0x280] sm:$0xff]
    %v2989 = vld [vmem:[#allocation8 + $0x288] sm:$0xff]
    %v2990 = vld [vmem:[#allocation8 + $0x290] sm:$0xff]
    %v2991 = vld [vmem:[#allocation8 + $0x298] sm:$0xff]
    %v2992 = vld [vmem:[#allocation8 + $0x2a0] sm:$0xff]
    %v2993 = vld [vmem:[#allocation8 + $0x2a8] sm:$0xff]
    %v2994 = vld [vmem:[#allocation8 + $0x2b0] sm:$0xff]
    %v2995 = vld [vmem:[#allocation8 + $0x2b8] sm:$0xff]
    %v2996 = vld [vmem:[#allocation8 + $0x2c0] sm:$0xff]
    %v2997 = vld [vmem:[#allocation8 + $0x2c8] sm:$0xff]
    %v2998 = vld [vmem:[#allocation8 + $0x2d0] sm:$0xff]
    %v2999 = vld [vmem:[#allocation8 + $0x2d8] sm:$0xff]
    %v3000 = vld [vmem:[#allocation8 + $0x2e0] sm:$0xff]
    %v3001 = vld [vmem:[#allocation8 + $0x2e8] sm:$0xff]
    %v3002 = vld [vmem:[#allocation8 + $0x2f0] sm:$0xff]
    %v3003 = vld [vmem:[#allocation8 + $0x2f8] sm:$0xff]
    %v3004 = vld [vmem:[#allocation8 + $0x300] sm:$0xff]
    %v3005 = vld [vmem:[#allocation8 + $0x308] sm:$0xff]
    %v3006 = vld [vmem:[#allocation8 + $0x310] sm:$0xff]
    %v3007 = vld [vmem:[#allocation8 + $0x318] sm:$0xff]
    %v3008 = vld [vmem:[#allocation8 + $0x320] sm:$0xff]
    %v3009 = vld [vmem:[#allocation8 + $0x328] sm:$0xff]
    %v3010 = vld [vmem:[#allocation8 + $0x330] sm:$0xff]
    %v3011 = vld [vmem:[#allocation8 + $0x338] sm:$0xff]
    %v3012 = vld [vmem:[#allocation8 + $0x340] sm:$0xff]
    %v3013 = vld [vmem:[#allocation8 + $0x348] sm:$0xff]
    %v3014 = vld [vmem:[#allocation8 + $0x350] sm:$0xff]
    %v3015 = vld [vmem:[#allocation8 + $0x358] sm:$0xff]
    %v3016 = vld [vmem:[#allocation8 + $0x360] sm:$0xff]
    %v3017 = vld [vmem:[#allocation8 + $0x368] sm:$0xff]
    %v3018 = vld [vmem:[#allocation8 + $0x370] sm:$0xff]
    %v3019 = vld [vmem:[#allocation8 + $0x378] sm:$0xff]
    %v3020 = vld [vmem:[#allocation8 + $0x380] sm:$0xff]
    %v3021 = vld [vmem:[#allocation8 + $0x388] sm:$0xff]
    %v3022 = vld [vmem:[#allocation8 + $0x390] sm:$0xff]
    %v3023 = vld [vmem:[#allocation8 + $0x398] sm:$0xff]
    %v3024 = vld [vmem:[#allocation8 + $0x3a0] sm:$0xff]
    %v3025 = vld [vmem:[#allocation8 + $0x3a8] sm:$0xff]
    %v3026 = vld [vmem:[#allocation8 + $0x3b0] sm:$0xff]
    %v3027 = vld [vmem:[#allocation8 + $0x3b8] sm:$0xff]
    %v3028 = vld [vmem:[#allocation8 + $0x3c0] sm:$0xff]
    %v3029 = vld [vmem:[#allocation8 + $0x3c8] sm:$0xff]
    %v3030 = vld [vmem:[#allocation8 + $0x3d0] sm:$0xff]
    %v3031 = vld [vmem:[#allocation8 + $0x3d8] sm:$0xff]
    %v3032 = vld [vmem:[#allocation8 + $0x3e0] sm:$0xff]
    %v3033 = vld [vmem:[#allocation8 + $0x3e8] sm:$0xff]
    %v3034 = vld [vmem:[#allocation8 + $0x3f0] sm:$0xff]
    %v3035 = vld [vmem:[#allocation8 + $0x3f8] sm:$0xff]
    %v3036 = vld [vmem:[#allocation8 + $0x400] sm:$0xff]
    %v3037 = vld [vmem:[#allocation8 + $0x408] sm:$0xff]
    %v3038 = vld [vmem:[#allocation8 + $0x410] sm:$0xff]
    %v3039 = vld [vmem:[#allocation8 + $0x418] sm:$0xff]
    %v3040 = vld [vmem:[#allocation8 + $0x420] sm:$0xff]
    %v3041 = vld [vmem:[#allocation8 + $0x428] sm:$0xff]
    %v3042 = vld [vmem:[#allocation8 + $0x430] sm:$0xff]
    %v3043 = vld [vmem:[#allocation8 + $0x438] sm:$0xff]
    %v3044 = vld [vmem:[#allocation8 + $0x440] sm:$0xff]
    %v3045 = vld [vmem:[#allocation8 + $0x448] sm:$0xff]
    %v3046 = vld [vmem:[#allocation8 + $0x450] sm:$0xff]
    %v3047 = vld [vmem:[#allocation8 + $0x458] sm:$0xff]
    %v3048 = vld [vmem:[#allocation8 + $0x460] sm:$0xff]
    %v3049 = vld [vmem:[#allocation8 + $0x468] sm:$0xff]
    %v3050 = vld [vmem:[#allocation8 + $0x470] sm:$0xff]
    %v3051 = vld [vmem:[#allocation8 + $0x478] sm:$0xff]
    %v3052 = vld [vmem:[#allocation8 + $0x480] sm:$0xff]
    %v3053 = vld [vmem:[#allocation8 + $0x488] sm:$0xff]
    %v3054 = vld [vmem:[#allocation8 + $0x490] sm:$0xff]
    %v3055 = vld [vmem:[#allocation8 + $0x498] sm:$0xff]
    %v3056 = vld [vmem:[#allocation8 + $0x4a0] sm:$0xff]
    %v3057 = vld [vmem:[#allocation8 + $0x4a8] sm:$0xff]
    %v3058 = vld [vmem:[#allocation8 + $0x4b0] sm:$0xff]
    %v3059 = vld [vmem:[#allocation8 + $0x4b8] sm:$0xff]
    %v3060 = vld [vmem:[#allocation8 + $0x4c0] sm:$0xff]
    %v3061 = vld [vmem:[#allocation8 + $0x4c8] sm:$0xff]
    %v3062 = vld [vmem:[#allocation8 + $0x4d0] sm:$0xff]
    %v3063 = vld [vmem:[#allocation8 + $0x4d8] sm:$0xff]
    %v3064 = vld [vmem:[#allocation8 + $0x4e0] sm:$0xff]
    %v3065 = vld [vmem:[#allocation8 + $0x4e8] sm:$0xff]
    %v3066 = vld [vmem:[#allocation8 + $0x4f0] sm:$0xff]
    %v3067 = vld [vmem:[#allocation8 + $0x4f8] sm:$0xff]
    %v3068 = vld [vmem:[#allocation8 + $0x500] sm:$0xff]
    %v3069 = vld [vmem:[#allocation8 + $0x508] sm:$0xff]
    %v3070 = vld [vmem:[#allocation8 + $0x510] sm:$0xff]
    %v3071 = vld [vmem:[#allocation8 + $0x518] sm:$0xff]
    %v3072 = vld [vmem:[#allocation8 + $0x520] sm:$0xff]
    %v3073 = vld [vmem:[#allocation8 + $0x528] sm:$0xff]
    %v3074 = vld [vmem:[#allocation8 + $0x530] sm:$0xff]
    %v3075 = vld [vmem:[#allocation8 + $0x538] sm:$0xff]
    %v3076 = vld [vmem:[#allocation8 + $0x540] sm:$0xff]
    %v3077 = vld [vmem:[#allocation8 + $0x548] sm:$0xff]
    %v3078 = vld [vmem:[#allocation8 + $0x550] sm:$0xff]
    %v3079 = vld [vmem:[#allocation8 + $0x558] sm:$0xff]
    %v3080 = vld [vmem:[#allocation8 + $0x560] sm:$0xff]
    %v3081 = vld [vmem:[#allocation8 + $0x568] sm:$0xff]
    %v3082 = vld [vmem:[#allocation8 + $0x570] sm:$0xff]
    %v3083 = vld [vmem:[#allocation8 + $0x578] sm:$0xff]
    %v3084 = vld [vmem:[#allocation8 + $0x580] sm:$0xff]
    %v3085 = vld [vmem:[#allocation8 + $0x588] sm:$0xff]
    %v3086 = vld [vmem:[#allocation8 + $0x590] sm:$0xff]
    %v3087 = vld [vmem:[#allocation8 + $0x598] sm:$0xff]
    %v3088 = vld [vmem:[#allocation8 + $0x5a0] sm:$0xff]
    %v3089 = vld [vmem:[#allocation8 + $0x5a8] sm:$0xff]
    %v3090 = vld [vmem:[#allocation8 + $0x5b0] sm:$0xff]
    %v3091 = vld [vmem:[#allocation8 + $0x5b8] sm:$0xff]
    %v3092 = vld [vmem:[#allocation8 + $0x5c0] sm:$0xff]
    %v3093 = vld [vmem:[#allocation8 + $0x5c8] sm:$0xff]
    %v3094 = vld [vmem:[#allocation8 + $0x5d0] sm:$0xff]
    %v3095 = vld [vmem:[#allocation8 + $0x5d8] sm:$0xff]
    %v3096 = vld [vmem:[#allocation8 + $0x5e0] sm:$0xff]
    %v3097 = vld [vmem:[#allocation8 + $0x5e8] sm:$0xff]
    %v3098 = vld [vmem:[#allocation8 + $0x5f0] sm:$0xff]
    %v3099 = vld [vmem:[#allocation8 + $0x5f8] sm:$0xff]
    %v3100 = vld [vmem:[#allocation8 + $0x600] sm:$0xff]
    %v3101 = vld [vmem:[#allocation8 + $0x608] sm:$0xff]
    %v3102 = vld [vmem:[#allocation8 + $0x610] sm:$0xff]
    %v3103 = vld [vmem:[#allocation8 + $0x618] sm:$0xff]
    %v3104 = vld [vmem:[#allocation8 + $0x620] sm:$0xff]
    %v3105 = vld [vmem:[#allocation8 + $0x628] sm:$0xff]
    %v3106 = vld [vmem:[#allocation8 + $0x630] sm:$0xff]
    %v3107 = vld [vmem:[#allocation8 + $0x638] sm:$0xff]
    %v3108 = vld [vmem:[#allocation8 + $0x640] sm:$0xff]
    %v3109 = vld [vmem:[#allocation8 + $0x648] sm:$0xff]
    %v3110 = vld [vmem:[#allocation8 + $0x650] sm:$0xff]
    %v3111 = vld [vmem:[#allocation8 + $0x658] sm:$0xff]
    %v3112 = vld [vmem:[#allocation8 + $0x660] sm:$0xff]
    %v3113 = vld [vmem:[#allocation8 + $0x668] sm:$0xff]
    %v3114 = vld [vmem:[#allocation8 + $0x670] sm:$0xff]
    %v3115 = vld [vmem:[#allocation8 + $0x678] sm:$0xff]
    %v3116 = vld [vmem:[#allocation8 + $0x680] sm:$0xff]
    %v3117 = vld [vmem:[#allocation8 + $0x688] sm:$0xff]
    %v3118 = vld [vmem:[#allocation8 + $0x690] sm:$0xff]
    %v3119 = vld [vmem:[#allocation8 + $0x698] sm:$0xff]
    %v3120 = vld [vmem:[#allocation8 + $0x6a0] sm:$0xff]
    %v3121 = vld [vmem:[#allocation8 + $0x6a8] sm:$0xff]
    %v3122 = vld [vmem:[#allocation8 + $0x6b0] sm:$0xff]
    %v3123 = vld [vmem:[#allocation8 + $0x6b8] sm:$0xff]
    %v3124 = vld [vmem:[#allocation8 + $0x6c0] sm:$0xff]
    %v3125 = vld [vmem:[#allocation8 + $0x6c8] sm:$0xff]
    %v3126 = vld [vmem:[#allocation8 + $0x6d0] sm:$0xff]
    %v3127 = vld [vmem:[#allocation8 + $0x6d8] sm:$0xff]
    %v3128 = vld [vmem:[#allocation8 + $0x6e0] sm:$0xff]
    %v3129 = vld [vmem:[#allocation8 + $0x6e8] sm:$0xff]
    %v3130 = vld [vmem:[#allocation8 + $0x6f0] sm:$0xff]
    %v3131 = vld [vmem:[#allocation8 + $0x6f8] sm:$0xff]
    %v3132 = vld [vmem:[#allocation8 + $0x700] sm:$0xff]
    %v3133 = vld [vmem:[#allocation8 + $0x708] sm:$0xff]
    %v3134 = vld [vmem:[#allocation8 + $0x710] sm:$0xff]
    %v3135 = vld [vmem:[#allocation8 + $0x718] sm:$0xff]
    %v3136 = vld [vmem:[#allocation8 + $0x720] sm:$0xff]
    %v3137 = vld [vmem:[#allocation8 + $0x728] sm:$0xff]
    %v3138 = vld [vmem:[#allocation8 + $0x730] sm:$0xff]
    %v3139 = vld [vmem:[#allocation8 + $0x738] sm:$0xff]
    %v3140 = vld [vmem:[#allocation8 + $0x740] sm:$0xff]
    %v3141 = vld [vmem:[#allocation8 + $0x748] sm:$0xff]
    %v3142 = vld [vmem:[#allocation8 + $0x750] sm:$0xff]
    %v3143 = vld [vmem:[#allocation8 + $0x758] sm:$0xff]
    %v3144 = vld [vmem:[#allocation8 + $0x760] sm:$0xff]
    %v3145 = vld [vmem:[#allocation8 + $0x768] sm:$0xff]
    %v3146 = vld [vmem:[#allocation8 + $0x770] sm:$0xff]
    %v3147 = vld [vmem:[#allocation8 + $0x778] sm:$0xff]
    %v3148 = vld [vmem:[#allocation8 + $0x780] sm:$0xff]
    %v3149 = vld [vmem:[#allocation8 + $0x788] sm:$0xff]
    %v3150 = vld [vmem:[#allocation8 + $0x790] sm:$0xff]
    %v3151 = vld [vmem:[#allocation8 + $0x798] sm:$0xff]
    %v3152 = vld [vmem:[#allocation8 + $0x7a0] sm:$0xff]
    %v3153 = vld [vmem:[#allocation8 + $0x7a8] sm:$0xff]
    %v3154 = vld [vmem:[#allocation8 + $0x7b0] sm:$0xff]
    %v3155 = vld [vmem:[#allocation8 + $0x7b8] sm:$0xff]
    %v3156 = vld [vmem:[#allocation8 + $0x7c0] sm:$0xff]
    %v3157 = vld [vmem:[#allocation8 + $0x7c8] sm:$0xff]
    %v3158 = vld [vmem:[#allocation8 + $0x7d0] sm:$0xff]
    %v3159 = vld [vmem:[#allocation8 + $0x7d8] sm:$0xff]
    %v3160 = vld [vmem:[#allocation8 + $0x7e0] sm:$0xff]
    %v3161 = vld [vmem:[#allocation8 + $0x7e8] sm:$0xff]
    %v3162 = vld [vmem:[#allocation8 + $0x7f0] sm:$0xff]
    %v3163 = vld [vmem:[#allocation8 + $0x7f8] sm:$0xff]
    %v3164 = vld [vmem:[#allocation8 + $0x800] sm:$0xff]
    %v3165 = vld [vmem:[#allocation8 + $0x808] sm:$0xff]
    %v3166 = vld [vmem:[#allocation8 + $0x810] sm:$0xff]
    %v3167 = vld [vmem:[#allocation8 + $0x818] sm:$0xff]
    %v3168 = vld [vmem:[#allocation8 + $0x820] sm:$0xff]
    %v3169 = vld [vmem:[#allocation8 + $0x828] sm:$0xff]
    %v3170 = vld [vmem:[#allocation8 + $0x830] sm:$0xff]
    %v3171 = vld [vmem:[#allocation8 + $0x838] sm:$0xff]
    %v3172 = vld [vmem:[#allocation8 + $0x840] sm:$0xff]
    %v3173 = vld [vmem:[#allocation8 + $0x848] sm:$0xff]
    %v3174 = vld [vmem:[#allocation8 + $0x850] sm:$0xff]
    %v3175 = vld [vmem:[#allocation8 + $0x858] sm:$0xff]
    %v3176 = vld [vmem:[#allocation8 + $0x860] sm:$0xff]
    %v3177 = vld [vmem:[#allocation8 + $0x868] sm:$0xff]
    %v3178 = vld [vmem:[#allocation8 + $0x870] sm:$0xff]
    %v3179 = vld [vmem:[#allocation8 + $0x878] sm:$0xff]
    %v3180 = vld [vmem:[#allocation8 + $0x880] sm:$0xff]
    %v3181 = vld [vmem:[#allocation8 + $0x888] sm:$0xff]
    %v3182 = vld [vmem:[#allocation8 + $0x890] sm:$0xff]
    %v3183 = vld [vmem:[#allocation8 + $0x898] sm:$0xff]
    %v3184 = vld [vmem:[#allocation8 + $0x8a0] sm:$0xff]
    %v3185 = vld [vmem:[#allocation8 + $0x8a8] sm:$0xff]
    %v3186 = vld [vmem:[#allocation8 + $0x8b0] sm:$0xff]
    %v3187 = vld [vmem:[#allocation8 + $0x8b8] sm:$0xff]
    %v3188 = vld [vmem:[#allocation8 + $0x8c0] sm:$0xff]
    %v3189 = vld [vmem:[#allocation8 + $0x8c8] sm:$0xff]
    %v3190 = vld [vmem:[#allocation8 + $0x8d0] sm:$0xff]
    %v3191 = vld [vmem:[#allocation8 + $0x8d8] sm:$0xff]
    %v3192 = vld [vmem:[#allocation8 + $0x8e0] sm:$0xff]
    %v3193 = vld [vmem:[#allocation8 + $0x8e8] sm:$0xff]
    %v3194 = vld [vmem:[#allocation8 + $0x8f0] sm:$0xff]
    %v3195 = vld [vmem:[#allocation8 + $0x8f8] sm:$0xff]
    %v3196 = vld [vmem:[#allocation8 + $0x900] sm:$0xff]
    %v3197 = vld [vmem:[#allocation8 + $0x908] sm:$0xff]
    %v3198 = vld [vmem:[#allocation8 + $0x910] sm:$0xff]
    %v3199 = vld [vmem:[#allocation8 + $0x918] sm:$0xff]
    %v3200 = vld [vmem:[#allocation8 + $0x920] sm:$0xff]
    %v3201 = vld [vmem:[#allocation8 + $0x928] sm:$0xff]
    %v3202 = vld [vmem:[#allocation8 + $0x930] sm:$0xff]
    %v3203 = vld [vmem:[#allocation8 + $0x938] sm:$0xff]
    %v3204 = vld [vmem:[#allocation8 + $0x940] sm:$0xff]
    %v3205 = vld [vmem:[#allocation8 + $0x948] sm:$0xff]
    %v3206 = vld [vmem:[#allocation8 + $0x950] sm:$0xff]
    %v3207 = vld [vmem:[#allocation8 + $0x958] sm:$0xff]
    %v3208 = vld [vmem:[#allocation8 + $0x960] sm:$0xff]
    %v3209 = vld [vmem:[#allocation8 + $0x968] sm:$0xff]
    %v3210 = vld [vmem:[#allocation8 + $0x970] sm:$0xff]
    %v3211 = vld [vmem:[#allocation8 + $0x978] sm:$0xff]
    %v3212 = vld [vmem:[#allocation8 + $0x980] sm:$0xff]
    %v3213 = vld [vmem:[#allocation8 + $0x988] sm:$0xff]
    %v3214 = vld [vmem:[#allocation8 + $0x990] sm:$0xff]
    %v3215 = vld [vmem:[#allocation8 + $0x998] sm:$0xff]
    %v3216 = vld [vmem:[#allocation8 + $0x9a0] sm:$0xff]
    %v3217 = vld [vmem:[#allocation8 + $0x9a8] sm:$0xff]
    %v3218 = vld [vmem:[#allocation8 + $0x9b0] sm:$0xff]
    %v3219 = vld [vmem:[#allocation8 + $0x9b8] sm:$0xff]
    %v3220 = vld [vmem:[#allocation8 + $0x9c0] sm:$0xff]
    %v3221 = vld [vmem:[#allocation8 + $0x9c8] sm:$0xff]
    %v3222 = vld [vmem:[#allocation8 + $0x9d0] sm:$0xff]
    %v3223 = vld [vmem:[#allocation8 + $0x9d8] sm:$0xff]
    %v3224 = vld [vmem:[#allocation8 + $0x9e0] sm:$0xff]
    %v3225 = vld [vmem:[#allocation8 + $0x9e8] sm:$0xff]
    %v3226 = vld [vmem:[#allocation8 + $0x9f0] sm:$0xff]
    %v3227 = vld [vmem:[#allocation8 + $0x9f8] sm:$0xff]
    %v3228 = vld [vmem:[#allocation8 + $0xa00] sm:$0xff]
    %v3229 = vld [vmem:[#allocation8 + $0xa08] sm:$0xff]
    %v3230 = vld [vmem:[#allocation8 + $0xa10] sm:$0xff]
    %v3231 = vld [vmem:[#allocation8 + $0xa18] sm:$0xff]
    %v3232 = vld [vmem:[#allocation8 + $0xa20] sm:$0xff]
    %v3233 = vld [vmem:[#allocation8 + $0xa28] sm:$0xff]
    %v3234 = vld [vmem:[#allocation8 + $0xa30] sm:$0xff]
    %v3235 = vld [vmem:[#allocation8 + $0xa38] sm:$0xff]
    %v3236 = vld [vmem:[#allocation8 + $0xa40] sm:$0xff]
    %v3237 = vld [vmem:[#allocation8 + $0xa48] sm:$0xff]
    %v3238 = vld [vmem:[#allocation8 + $0xa50] sm:$0xff]
    %v3239 = vld [vmem:[#allocation8 + $0xa58] sm:$0xff]
    %v3240 = vld [vmem:[#allocation8 + $0xa60] sm:$0xff]
    %v3241 = vld [vmem:[#allocation8 + $0xa68] sm:$0xff]
    %v3242 = vld [vmem:[#allocation8 + $0xa70] sm:$0xff]
    %v3243 = vld [vmem:[#allocation8 + $0xa78] sm:$0xff]
    %v3244 = vld [vmem:[#allocation8 + $0xa80] sm:$0xff]
    %v3245 = vld [vmem:[#allocation8 + $0xa88] sm:$0xff]
    %v3246 = vld [vmem:[#allocation8 + $0xa90] sm:$0xff]
    %v3247 = vld [vmem:[#allocation8 + $0xa98] sm:$0xff]
    %v3248 = vld [vmem:[#allocation8 + $0xaa0] sm:$0xff]
    %v3249 = vld [vmem:[#allocation8 + $0xaa8] sm:$0xff]
    %v3250 = vld [vmem:[#allocation8 + $0xab0] sm:$0xff]
    %v3251 = vld [vmem:[#allocation8 + $0xab8] sm:$0xff]
    %v3252 = vld [vmem:[#allocation8 + $0xac0] sm:$0xff]
    %v3253 = vld [vmem:[#allocation8 + $0xac8] sm:$0xff]
    %v3254 = vld [vmem:[#allocation8 + $0xad0] sm:$0xff]
    %v3255 = vld [vmem:[#allocation8 + $0xad8] sm:$0xff]
    %v3256 = vld [vmem:[#allocation8 + $0xae0] sm:$0xff]
    %v3257 = vld [vmem:[#allocation8 + $0xae8] sm:$0xff]
    %v3258 = vld [vmem:[#allocation8 + $0xaf0] sm:$0xff]
    %v3259 = vld [vmem:[#allocation8 + $0xaf8] sm:$0xff]
    %v3260 = vld [vmem:[#allocation8 + $0xb00] sm:$0xff]
    %v3261 = vld [vmem:[#allocation8 + $0xb08] sm:$0xff]
    %v3262 = vld [vmem:[#allocation8 + $0xb10] sm:$0xff]
    %v3263 = vld [vmem:[#allocation8 + $0xb18] sm:$0xff]
    %v3264 = vld [vmem:[#allocation8 + $0xb20] sm:$0xff]
    %v3265 = vld [vmem:[#allocation8 + $0xb28] sm:$0xff]
    %v3266 = vld [vmem:[#allocation8 + $0xb30] sm:$0xff]
    %v3267 = vld [vmem:[#allocation8 + $0xb38] sm:$0xff]
    %v3268 = vld [vmem:[#allocation8 + $0xb40] sm:$0xff]
    %v3269 = vld [vmem:[#allocation8 + $0xb48] sm:$0xff]
    %v3270 = vld [vmem:[#allocation8 + $0xb50] sm:$0xff]
    %v3271 = vld [vmem:[#allocation8 + $0xb58] sm:$0xff]
    %v3272 = vld [vmem:[#allocation8 + $0xb60] sm:$0xff]
    %v3273 = vld [vmem:[#allocation8 + $0xb68] sm:$0xff]
    %v3274 = vld [vmem:[#allocation8 + $0xb70] sm:$0xff]
    %v3275 = vld [vmem:[#allocation8 + $0xb78] sm:$0xff]
    %v3276 = vld [vmem:[#allocation8 + $0xb80] sm:$0xff]
    %v3277 = vld [vmem:[#allocation8 + $0xb88] sm:$0xff]
    %v3278 = vld [vmem:[#allocation8 + $0xb90] sm:$0xff]
    %v3279 = vld [vmem:[#allocation8 + $0xb98] sm:$0xff]
    %v3280 = vld [vmem:[#allocation8 + $0xba0] sm:$0xff]
    %v3281 = vld [vmem:[#allocation8 + $0xba8] sm:$0xff]
    %v3282 = vld [vmem:[#allocation8 + $0xbb0] sm:$0xff]
    %v3283 = vld [vmem:[#allocation8 + $0xbb8] sm:$0xff]
    %v3284 = vld [vmem:[#allocation8 + $0xbc0] sm:$0xff]
    %v3285 = vld [vmem:[#allocation8 + $0xbc8] sm:$0xff]
    %v3286 = vld [vmem:[#allocation8 + $0xbd0] sm:$0xff]
    %v3287 = vld [vmem:[#allocation8 + $0xbd8] sm:$0xff]
    %v3288 = vld [vmem:[#allocation8 + $0xbe0] sm:$0xff]
    %v3289 = vld [vmem:[#allocation8 + $0xbe8] sm:$0xff]
    %v3290 = vld [vmem:[#allocation8 + $0xbf0] sm:$0xff]
    %v3291 = vld [vmem:[#allocation8 + $0xbf8] sm:$0xff]
    %v3292 = vld [vmem:[#allocation8 + $0xc00] sm:$0xff]
    %v3293 = vld [vmem:[#allocation8 + $0xc08] sm:$0xff]
    %v3294 = vld [vmem:[#allocation8 + $0xc10] sm:$0xff]
    %v3295 = vld [vmem:[#allocation8 + $0xc18] sm:$0xff]
    %v3296 = vld [vmem:[#allocation8 + $0xc20] sm:$0xff]
    %v3297 = vld [vmem:[#allocation8 + $0xc28] sm:$0xff]
    %v3298 = vld [vmem:[#allocation8 + $0xc30] sm:$0xff]
    %v3299 = vld [vmem:[#allocation8 + $0xc38] sm:$0xff]
    %v3300 = vld [vmem:[#allocation8 + $0xc40] sm:$0xff]
    %v3301 = vld [vmem:[#allocation8 + $0xc48] sm:$0xff]
    %v3302 = vld [vmem:[#allocation8 + $0xc50] sm:$0xff]
    %v3303 = vld [vmem:[#allocation8 + $0xc58] sm:$0xff]
    %v3304 = vld [vmem:[#allocation8 + $0xc60] sm:$0xff]
    %v3305 = vld [vmem:[#allocation8 + $0xc68] sm:$0xff]
    %v3306 = vld [vmem:[#allocation8 + $0xc70] sm:$0xff]
    %v3307 = vld [vmem:[#allocation8 + $0xc78] sm:$0xff]
    %v3308 = vld [vmem:[#allocation8 + $0xc80] sm:$0xff]
    %v3309 = vld [vmem:[#allocation8 + $0xc88] sm:$0xff]
    %v3310 = vld [vmem:[#allocation8 + $0xc90] sm:$0xff]
    %v3311 = vld [vmem:[#allocation8 + $0xc98] sm:$0xff]
    %v3312 = vld [vmem:[#allocation8 + $0xca0] sm:$0xff]
    %v3313 = vld [vmem:[#allocation8 + $0xca8] sm:$0xff]
    %v3314 = vld [vmem:[#allocation8 + $0xcb0] sm:$0xff]
    %v3315 = vld [vmem:[#allocation8 + $0xcb8] sm:$0xff]
    %v3316 = vld [vmem:[#allocation8 + $0xcc0] sm:$0xff]
    %v3317 = vld [vmem:[#allocation8 + $0xcc8] sm:$0xff]
    %v3318 = vld [vmem:[#allocation8 + $0xcd0] sm:$0xff]
    %v3319 = vld [vmem:[#allocation8 + $0xcd8] sm:$0xff]
    %v3320 = vld [vmem:[#allocation8 + $0xce0] sm:$0xff]
    %v3321 = vld [vmem:[#allocation8 + $0xce8] sm:$0xff]
    %v3322 = vld [vmem:[#allocation8 + $0xcf0] sm:$0xff]
    %v3323 = vld [vmem:[#allocation8 + $0xcf8] sm:$0xff]
    %v3324 = vld [vmem:[#allocation8 + $0xd00] sm:$0xff]
    %v3325 = vld [vmem:[#allocation8 + $0xd08] sm:$0xff]
    %v3326 = vld [vmem:[#allocation8 + $0xd10] sm:$0xff]
    %v3327 = vld [vmem:[#allocation8 + $0xd18] sm:$0xff]
    %v3328 = vld [vmem:[#allocation8 + $0xd20] sm:$0xff]
    %v3329 = vld [vmem:[#allocation8 + $0xd28] sm:$0xff]
    %v3330 = vld [vmem:[#allocation8 + $0xd30] sm:$0xff]
    %v3331 = vld [vmem:[#allocation8 + $0xd38] sm:$0xff]
    %v3332 = vld [vmem:[#allocation8 + $0xd40] sm:$0xff]
    %v3333 = vld [vmem:[#allocation8 + $0xd48] sm:$0xff]
    %v3334 = vld [vmem:[#allocation8 + $0xd50] sm:$0xff]
    %v3335 = vld [vmem:[#allocation8 + $0xd58] sm:$0xff]
    %v3336 = vld [vmem:[#allocation8 + $0xd60] sm:$0xff]
    %v3337 = vld [vmem:[#allocation8 + $0xd68] sm:$0xff]
    %v3338 = vld [vmem:[#allocation8 + $0xd70] sm:$0xff]
    %v3339 = vld [vmem:[#allocation8 + $0xd78] sm:$0xff]
    %v3340 = vld [vmem:[#allocation8 + $0xd80] sm:$0xff]
    %v3341 = vld [vmem:[#allocation8 + $0xd88] sm:$0xff]
    %v3342 = vld [vmem:[#allocation8 + $0xd90] sm:$0xff]
    %v3343 = vld [vmem:[#allocation8 + $0xd98] sm:$0xff]
    %v3344 = vld [vmem:[#allocation8 + $0xda0] sm:$0xff]
    %v3345 = vld [vmem:[#allocation8 + $0xda8] sm:$0xff]
    %v3346 = vld [vmem:[#allocation8 + $0xdb0] sm:$0xff]
    %v3347 = vld [vmem:[#allocation8 + $0xdb8] sm:$0xff]
    %v3348 = vld [vmem:[#allocation8 + $0xdc0] sm:$0xff]
    %v3349 = vld [vmem:[#allocation8 + $0xdc8] sm:$0xff]
    %v3350 = vld [vmem:[#allocation8 + $0xdd0] sm:$0xff]
    %v3351 = vld [vmem:[#allocation8 + $0xdd8] sm:$0xff]
    %v3352 = vld [vmem:[#allocation8 + $0xde0] sm:$0xff]
    %v3353 = vld [vmem:[#allocation8 + $0xde8] sm:$0xff]
    %v3354 = vld [vmem:[#allocation8 + $0xdf0] sm:$0xff]
    %v3355 = vld [vmem:[#allocation8 + $0xdf8] sm:$0xff]
    %v3356 = vld [vmem:[#allocation8 + $0xe00] sm:$0xff]
    %v3357 = vld [vmem:[#allocation8 + $0xe08] sm:$0xff]
    %v3358 = vld [vmem:[#allocation8 + $0xe10] sm:$0xff]
    %v3359 = vld [vmem:[#allocation8 + $0xe18] sm:$0xff]
    %v3360 = vld [vmem:[#allocation8 + $0xe20] sm:$0xff]
    %v3361 = vld [vmem:[#allocation8 + $0xe28] sm:$0xff]
    %v3362 = vld [vmem:[#allocation8 + $0xe30] sm:$0xff]
    %v3363 = vld [vmem:[#allocation8 + $0xe38] sm:$0xff]
    %v3364 = vld [vmem:[#allocation8 + $0xe40] sm:$0xff]
    %v3365 = vld [vmem:[#allocation8 + $0xe48] sm:$0xff]
    %v3366 = vld [vmem:[#allocation8 + $0xe50] sm:$0xff]
    %v3367 = vld [vmem:[#allocation8 + $0xe58] sm:$0xff]
    %v3368 = vld [vmem:[#allocation8 + $0xe60] sm:$0xff]
    %v3369 = vld [vmem:[#allocation8 + $0xe68] sm:$0xff]
    %v3370 = vld [vmem:[#allocation8 + $0xe70] sm:$0xff]
    %v3371 = vld [vmem:[#allocation8 + $0xe78] sm:$0xff]
    %v3372 = vld [vmem:[#allocation8 + $0xe80] sm:$0xff]
    %v3373 = vld [vmem:[#allocation8 + $0xe88] sm:$0xff]
    %v3374 = vld [vmem:[#allocation8 + $0xe90] sm:$0xff]
    %v3375 = vld [vmem:[#allocation8 + $0xe98] sm:$0xff]
    %v3376 = vld [vmem:[#allocation8 + $0xea0] sm:$0xff]
    %v3377 = vld [vmem:[#allocation8 + $0xea8] sm:$0xff]
    %v3378 = vld [vmem:[#allocation8 + $0xeb0] sm:$0xff]
    %v3379 = vld [vmem:[#allocation8 + $0xeb8] sm:$0xff]
    %v3380 = vld [vmem:[#allocation8 + $0xec0] sm:$0xff]
    %v3381 = vld [vmem:[#allocation8 + $0xec8] sm:$0xff]
    %v3382 = vld [vmem:[#allocation8 + $0xed0] sm:$0xff]
    %v3383 = vld [vmem:[#allocation8 + $0xed8] sm:$0xff]
    %v3384 = vld [vmem:[#allocation8 + $0xee0] sm:$0xff]
    %v3385 = vld [vmem:[#allocation8 + $0xee8] sm:$0xff]
    %v3386 = vld [vmem:[#allocation8 + $0xef0] sm:$0xff]
    %v3387 = vld [vmem:[#allocation8 + $0xef8] sm:$0xff]
    %v3388 = vld [vmem:[#allocation8 + $0xf00] sm:$0xff]
    %v3389 = vld [vmem:[#allocation8 + $0xf08] sm:$0xff]
    %v3390 = vld [vmem:[#allocation8 + $0xf10] sm:$0xff]
    %v3391 = vld [vmem:[#allocation8 + $0xf18] sm:$0xff]
    %v3392 = vld [vmem:[#allocation8 + $0xf20] sm:$0xff]
    %v3393 = vld [vmem:[#allocation8 + $0xf28] sm:$0xff]
    %v3394 = vld [vmem:[#allocation8 + $0xf30] sm:$0xff]
    %v3395 = vld [vmem:[#allocation8 + $0xf38] sm:$0xff]
    %v3396 = vld [vmem:[#allocation8 + $0xf40] sm:$0xff]
    %v3397 = vld [vmem:[#allocation8 + $0xf48] sm:$0xff]
    %v3398 = vld [vmem:[#allocation8 + $0xf50] sm:$0xff]
    %v3399 = vld [vmem:[#allocation8 + $0xf58] sm:$0xff]
    %v3400 = vld [vmem:[#allocation8 + $0xf60] sm:$0xff]
    %v3401 = vld [vmem:[#allocation8 + $0xf68] sm:$0xff]
    %v3402 = vld [vmem:[#allocation8 + $0xf70] sm:$0xff]
    %v3403 = vld [vmem:[#allocation8 + $0xf78] sm:$0xff]
    %v3404 = vld [vmem:[#allocation8 + $0xf80] sm:$0xff]
    %v3405 = vld [vmem:[#allocation8 + $0xf88] sm:$0xff]
    %v3406 = vld [vmem:[#allocation8 + $0xf90] sm:$0xff]
    %v3407 = vld [vmem:[#allocation8 + $0xf98] sm:$0xff]
    %v3408 = vld [vmem:[#allocation8 + $0xfa0] sm:$0xff]
    %v3409 = vld [vmem:[#allocation8 + $0xfa8] sm:$0xff]
    %v3410 = vld [vmem:[#allocation8 + $0xfb0] sm:$0xff]
    %v3411 = vld [vmem:[#allocation8 + $0xfb8] sm:$0xff]
    %v3412 = vld [vmem:[#allocation8 + $0xfc0] sm:$0xff]
    %v3413 = vld [vmem:[#allocation8 + $0xfc8] sm:$0xff]
    %v3414 = vld [vmem:[#allocation8 + $0xfd0] sm:$0xff]
    %v3415 = vld [vmem:[#allocation8 + $0xfd8] sm:$0xff]
    %v3416 = vld [vmem:[#allocation8 + $0xfe0] sm:$0xff]
    %v3417 = vld [vmem:[#allocation8 + $0xfe8] sm:$0xff]
    %v3418 = vld [vmem:[#allocation8 + $0xff0] sm:$0xff]
    %v3419 = vld [vmem:[#allocation8 + $0xff8] sm:$0xff]
    %v3420 = vld [vmem:[#allocation9] sm:$0x3]
    %v3421 = vld [vmem:[#allocation2] sm:$0xff]
    %v3422 = vld [vmem:[#allocation2 + $0x8] sm:$0xff]
    %v3423 = vld [vmem:[#allocation2 + $0x10] sm:$0xff]
    %v3424 = vld [vmem:[#allocation2 + $0x18] sm:$0xff]
    %v3429 = vunpack.c.l.b16 %v3421
    %v3430 = vunpack.c.h.b16 %v3421
    %v3431 = vunpack.c.l.b16 %v3422
    %v3432 = vunpack.c.h.b16 %v3422
    %v3433 = vunpack.c.l.b16 %v3423
    %v3434 = vunpack.c.h.b16 %v3423
    %v3435 = vunpack.c.l.b16 %v3424
    %v3436 = vunpack.c.h.b16 %v3424
    %v3437 = vpack.c.b16 %v3429, %v3429
    %v3438 = vpack.c.b16 %v3430, %v3430
    %v3439 = vpack.c.b16 %v3431, %v3431
    %v3440 = vpack.c.b16 %v3432, %v3432
    %v3441 = vpack.c.b16 %v3433, %v3433
    %v3442 = vpack.c.b16 %v3434, %v3434
    %v3443 = vpack.c.b16 %v3435, %v3435
    %v3444 = vpack.c.b16 %v3436, %v3436
    %v3965 = vunpack.c.l.b16 %v2908
    %v3966 = vunpack.c.h.b16 %v2908
    %v3967 = vunpack.c.l.b16 %v2909
    %v3968 = vunpack.c.h.b16 %v2909
    %v3969 = vunpack.c.l.b16 %v2910
    %v3970 = vunpack.c.h.b16 %v2910
    %v3971 = vunpack.c.l.b16 %v2911
    %v3972 = vunpack.c.h.b16 %v2911
    %v3973 = vunpack.c.l.b16 %v2912
    %v3974 = vunpack.c.h.b16 %v2912
    %v3975 = vunpack.c.l.b16 %v2913
    %v3976 = vunpack.c.h.b16 %v2913
    %v3977 = vunpack.c.l.b16 %v2914
    %v3978 = vunpack.c.h.b16 %v2914
    %v3979 = vunpack.c.l.b16 %v2915
    %v3980 = vunpack.c.h.b16 %v2915
    %v3981 = vunpack.c.l.b16 %v2916
    %v3982 = vunpack.c.h.b16 %v2916
    %v3983 = vunpack.c.l.b16 %v2917
    %v3984 = vunpack.c.h.b16 %v2917
    %v3985 = vunpack.c.l.b16 %v2918
    %v3986 = vunpack.c.h.b16 %v2918
    %v3987 = vunpack.c.l.b16 %v2919
    %v3988 = vunpack.c.h.b16 %v2919
    %v3989 = vunpack.c.l.b16 %v2920
    %v3990 = vunpack.c.h.b16 %v2920
    %v3991 = vunpack.c.l.b16 %v2921
    %v3992 = vunpack.c.h.b16 %v2921
    %v3993 = vunpack.c.l.b16 %v2922
    %v3994 = vunpack.c.h.b16 %v2922
    %v3995 = vunpack.c.l.b16 %v2923
    %v3996 = vunpack.c.h.b16 %v2923
    %v3997 = vunpack.c.l.b16 %v2924
    %v3998 = vunpack.c.h.b16 %v2924
    %v3999 = vunpack.c.l.b16 %v2925
    %v4000 = vunpack.c.h.b16 %v2925
    %v4001 = vunpack.c.l.b16 %v2926
    %v4002 = vunpack.c.h.b16 %v2926
    %v4003 = vunpack.c.l.b16 %v2927
    %v4004 = vunpack.c.h.b16 %v2927
    %v4005 = vunpack.c.l.b16 %v2928
    %v4006 = vunpack.c.h.b16 %v2928
    %v4007 = vunpack.c.l.b16 %v2929
    %v4008 = vunpack.c.h.b16 %v2929
    %v4009 = vunpack.c.l.b16 %v2930
    %v4010 = vunpack.c.h.b16 %v2930
    %v4011 = vunpack.c.l.b16 %v2931
    %v4012 = vunpack.c.h.b16 %v2931
    %v4013 = vunpack.c.l.b16 %v2932
    %v4014 = vunpack.c.h.b16 %v2932
    %v4015 = vunpack.c.l.b16 %v2933
    %v4016 = vunpack.c.h.b16 %v2933
    %v4017 = vunpack.c.l.b16 %v2934
    %v4018 = vunpack.c.h.b16 %v2934
    %v4019 = vunpack.c.l.b16 %v2935
    %v4020 = vunpack.c.h.b16 %v2935
    %v4021 = vunpack.c.l.b16 %v2936
    %v4022 = vunpack.c.h.b16 %v2936
    %v4023 = vunpack.c.l.b16 %v2937
    %v4024 = vunpack.c.h.b16 %v2937
    %v4025 = vunpack.c.l.b16 %v2938
    %v4026 = vunpack.c.h.b16 %v2938
    %v4027 = vunpack.c.l.b16 %v2939
    %v4028 = vunpack.c.h.b16 %v2939
    %v4029 = vunpack.c.l.b16 %v2940
    %v4030 = vunpack.c.h.b16 %v2940
    %v4031 = vunpack.c.l.b16 %v2941
    %v4032 = vunpack.c.h.b16 %v2941
    %v4033 = vunpack.c.l.b16 %v2942
    %v4034 = vunpack.c.h.b16 %v2942
    %v4035 = vunpack.c.l.b16 %v2943
    %v4036 = vunpack.c.h.b16 %v2943
    %v4037 = vunpack.c.l.b16 %v2944
    %v4038 = vunpack.c.h.b16 %v2944
    %v4039 = vunpack.c.l.b16 %v2945
    %v4040 = vunpack.c.h.b16 %v2945
    %v4041 = vunpack.c.l.b16 %v2946
    %v4042 = vunpack.c.h.b16 %v2946
    %v4043 = vunpack.c.l.b16 %v2947
    %v4044 = vunpack.c.h.b16 %v2947
    %v4045 = vunpack.c.l.b16 %v2948
    %v4046 = vunpack.c.h.b16 %v2948
    %v4047 = vunpack.c.l.b16 %v2949
    %v4048 = vunpack.c.h.b16 %v2949
    %v4049 = vunpack.c.l.b16 %v2950
    %v4050 = vunpack.c.h.b16 %v2950
    %v4051 = vunpack.c.l.b16 %v2951
    %v4052 = vunpack.c.h.b16 %v2951
    %v4053 = vunpack.c.l.b16 %v2952
    %v4054 = vunpack.c.h.b16 %v2952
    %v4055 = vunpack.c.l.b16 %v2953
    %v4056 = vunpack.c.h.b16 %v2953
    %v4057 = vunpack.c.l.b16 %v2954
    %v4058 = vunpack.c.h.b16 %v2954
    %v4059 = vunpack.c.l.b16 %v2955
    %v4060 = vunpack.c.h.b16 %v2955
    %v4061 = vunpack.c.l.b16 %v2956
    %v4062 = vunpack.c.h.b16 %v2956
    %v4063 = vunpack.c.l.b16 %v2957
    %v4064 = vunpack.c.h.b16 %v2957
    %v4065 = vunpack.c.l.b16 %v2958
    %v4066 = vunpack.c.h.b16 %v2958
    %v4067 = vunpack.c.l.b16 %v2959
    %v4068 = vunpack.c.h.b16 %v2959
    %v4069 = vunpack.c.l.b16 %v2960
    %v4070 = vunpack.c.h.b16 %v2960
    %v4071 = vunpack.c.l.b16 %v2961
    %v4072 = vunpack.c.h.b16 %v2961
    %v4073 = vunpack.c.l.b16 %v2962
    %v4074 = vunpack.c.h.b16 %v2962
    %v4075 = vunpack.c.l.b16 %v2963
    %v4076 = vunpack.c.h.b16 %v2963
    %v4077 = vunpack.c.l.b16 %v2964
    %v4078 = vunpack.c.h.b16 %v2964
    %v4079 = vunpack.c.l.b16 %v2965
    %v4080 = vunpack.c.h.b16 %v2965
    %v4081 = vunpack.c.l.b16 %v2966
    %v4082 = vunpack.c.h.b16 %v2966
    %v4083 = vunpack.c.l.b16 %v2967
    %v4084 = vunpack.c.h.b16 %v2967
    %v4085 = vunpack.c.l.b16 %v2968
    %v4086 = vunpack.c.h.b16 %v2968
    %v4087 = vunpack.c.l.b16 %v2969
    %v4088 = vunpack.c.h.b16 %v2969
    %v4089 = vunpack.c.l.b16 %v2970
    %v4090 = vunpack.c.h.b16 %v2970
    %v4091 = vunpack.c.l.b16 %v2971
    %v4092 = vunpack.c.h.b16 %v2971
    %v4093 = vunpack.c.l.b16 %v2972
    %v4094 = vunpack.c.h.b16 %v2972
    %v4095 = vunpack.c.l.b16 %v2973
    %v4096 = vunpack.c.h.b16 %v2973
    %v4097 = vunpack.c.l.b16 %v2974
    %v4098 = vunpack.c.h.b16 %v2974
    %v4099 = vunpack.c.l.b16 %v2975
    %v4100 = vunpack.c.h.b16 %v2975
    %v4101 = vunpack.c.l.b16 %v2976
    %v4102 = vunpack.c.h.b16 %v2976
    %v4103 = vunpack.c.l.b16 %v2977
    %v4104 = vunpack.c.h.b16 %v2977
    %v4105 = vunpack.c.l.b16 %v2978
    %v4106 = vunpack.c.h.b16 %v2978
    %v4107 = vunpack.c.l.b16 %v2979
    %v4108 = vunpack.c.h.b16 %v2979
    %v4109 = vunpack.c.l.b16 %v2980
    %v4110 = vunpack.c.h.b16 %v2980
    %v4111 = vunpack.c.l.b16 %v2981
    %v4112 = vunpack.c.h.b16 %v2981
    %v4113 = vunpack.c.l.b16 %v2982
    %v4114 = vunpack.c.h.b16 %v2982
    %v4115 = vunpack.c.l.b16 %v2983
    %v4116 = vunpack.c.h.b16 %v2983
    %v4117 = vunpack.c.l.b16 %v2984
    %v4118 = vunpack.c.h.b16 %v2984
    %v4119 = vunpack.c.l.b16 %v2985
    %v4120 = vunpack.c.h.b16 %v2985
    %v4121 = vunpack.c.l.b16 %v2986
    %v4122 = vunpack.c.h.b16 %v2986
    %v4123 = vunpack.c.l.b16 %v2987
    %v4124 = vunpack.c.h.b16 %v2987
    %v4125 = vunpack.c.l.b16 %v2988
    %v4126 = vunpack.c.h.b16 %v2988
    %v4127 = vunpack.c.l.b16 %v2989
    %v4128 = vunpack.c.h.b16 %v2989
    %v4129 = vunpack.c.l.b16 %v2990
    %v4130 = vunpack.c.h.b16 %v2990
    %v4131 = vunpack.c.l.b16 %v2991
    %v4132 = vunpack.c.h.b16 %v2991
    %v4133 = vunpack.c.l.b16 %v2992
    %v4134 = vunpack.c.h.b16 %v2992
    %v4135 = vunpack.c.l.b16 %v2993
    %v4136 = vunpack.c.h.b16 %v2993
    %v4137 = vunpack.c.l.b16 %v2994
    %v4138 = vunpack.c.h.b16 %v2994
    %v4139 = vunpack.c.l.b16 %v2995
    %v4140 = vunpack.c.h.b16 %v2995
    %v4141 = vunpack.c.l.b16 %v2996
    %v4142 = vunpack.c.h.b16 %v2996
    %v4143 = vunpack.c.l.b16 %v2997
    %v4144 = vunpack.c.h.b16 %v2997
    %v4145 = vunpack.c.l.b16 %v2998
    %v4146 = vunpack.c.h.b16 %v2998
    %v4147 = vunpack.c.l.b16 %v2999
    %v4148 = vunpack.c.h.b16 %v2999
    %v4149 = vunpack.c.l.b16 %v3000
    %v4150 = vunpack.c.h.b16 %v3000
    %v4151 = vunpack.c.l.b16 %v3001
    %v4152 = vunpack.c.h.b16 %v3001
    %v4153 = vunpack.c.l.b16 %v3002
    %v4154 = vunpack.c.h.b16 %v3002
    %v4155 = vunpack.c.l.b16 %v3003
    %v4156 = vunpack.c.h.b16 %v3003
    %v4157 = vunpack.c.l.b16 %v3004
    %v4158 = vunpack.c.h.b16 %v3004
    %v4159 = vunpack.c.l.b16 %v3005
    %v4160 = vunpack.c.h.b16 %v3005
    %v4161 = vunpack.c.l.b16 %v3006
    %v4162 = vunpack.c.h.b16 %v3006
    %v4163 = vunpack.c.l.b16 %v3007
    %v4164 = vunpack.c.h.b16 %v3007
    %v4165 = vunpack.c.l.b16 %v3008
    %v4166 = vunpack.c.h.b16 %v3008
    %v4167 = vunpack.c.l.b16 %v3009
    %v4168 = vunpack.c.h.b16 %v3009
    %v4169 = vunpack.c.l.b16 %v3010
    %v4170 = vunpack.c.h.b16 %v3010
    %v4171 = vunpack.c.l.b16 %v3011
    %v4172 = vunpack.c.h.b16 %v3011
    %v4173 = vunpack.c.l.b16 %v3012
    %v4174 = vunpack.c.h.b16 %v3012
    %v4175 = vunpack.c.l.b16 %v3013
    %v4176 = vunpack.c.h.b16 %v3013
    %v4177 = vunpack.c.l.b16 %v3014
    %v4178 = vunpack.c.h.b16 %v3014
    %v4179 = vunpack.c.l.b16 %v3015
    %v4180 = vunpack.c.h.b16 %v3015
    %v4181 = vunpack.c.l.b16 %v3016
    %v4182 = vunpack.c.h.b16 %v3016
    %v4183 = vunpack.c.l.b16 %v3017
    %v4184 = vunpack.c.h.b16 %v3017
    %v4185 = vunpack.c.l.b16 %v3018
    %v4186 = vunpack.c.h.b16 %v3018
    %v4187 = vunpack.c.l.b16 %v3019
    %v4188 = vunpack.c.h.b16 %v3019
    %v4189 = vunpack.c.l.b16 %v3020
    %v4190 = vunpack.c.h.b16 %v3020
    %v4191 = vunpack.c.l.b16 %v3021
    %v4192 = vunpack.c.h.b16 %v3021
    %v4193 = vunpack.c.l.b16 %v3022
    %v4194 = vunpack.c.h.b16 %v3022
    %v4195 = vunpack.c.l.b16 %v3023
    %v4196 = vunpack.c.h.b16 %v3023
    %v4197 = vunpack.c.l.b16 %v3024
    %v4198 = vunpack.c.h.b16 %v3024
    %v4199 = vunpack.c.l.b16 %v3025
    %v4200 = vunpack.c.h.b16 %v3025
    %v4201 = vunpack.c.l.b16 %v3026
    %v4202 = vunpack.c.h.b16 %v3026
    %v4203 = vunpack.c.l.b16 %v3027
    %v4204 = vunpack.c.h.b16 %v3027
    %v4205 = vunpack.c.l.b16 %v3028
    %v4206 = vunpack.c.h.b16 %v3028
    %v4207 = vunpack.c.l.b16 %v3029
    %v4208 = vunpack.c.h.b16 %v3029
    %v4209 = vunpack.c.l.b16 %v3030
    %v4210 = vunpack.c.h.b16 %v3030
    %v4211 = vunpack.c.l.b16 %v3031
    %v4212 = vunpack.c.h.b16 %v3031
    %v4213 = vunpack.c.l.b16 %v3032
    %v4214 = vunpack.c.h.b16 %v3032
    %v4215 = vunpack.c.l.b16 %v3033
    %v4216 = vunpack.c.h.b16 %v3033
    %v4217 = vunpack.c.l.b16 %v3034
    %v4218 = vunpack.c.h.b16 %v3034
    %v4219 = vunpack.c.l.b16 %v3035
    %v4220 = vunpack.c.h.b16 %v3035
    %v4221 = vunpack.c.l.b16 %v3036
    %v4222 = vunpack.c.h.b16 %v3036
    %v4223 = vunpack.c.l.b16 %v3037
    %v4224 = vunpack.c.h.b16 %v3037
    %v4225 = vunpack.c.l.b16 %v3038
    %v4226 = vunpack.c.h.b16 %v3038
    %v4227 = vunpack.c.l.b16 %v3039
    %v4228 = vunpack.c.h.b16 %v3039
    %v4229 = vunpack.c.l.b16 %v3040
    %v4230 = vunpack.c.h.b16 %v3040
    %v4231 = vunpack.c.l.b16 %v3041
    %v4232 = vunpack.c.h.b16 %v3041
    %v4233 = vunpack.c.l.b16 %v3042
    %v4234 = vunpack.c.h.b16 %v3042
    %v4235 = vunpack.c.l.b16 %v3043
    %v4236 = vunpack.c.h.b16 %v3043
    %v4237 = vunpack.c.l.b16 %v3044
    %v4238 = vunpack.c.h.b16 %v3044
    %v4239 = vunpack.c.l.b16 %v3045
    %v4240 = vunpack.c.h.b16 %v3045
    %v4241 = vunpack.c.l.b16 %v3046
    %v4242 = vunpack.c.h.b16 %v3046
    %v4243 = vunpack.c.l.b16 %v3047
    %v4244 = vunpack.c.h.b16 %v3047
    %v4245 = vunpack.c.l.b16 %v3048
    %v4246 = vunpack.c.h.b16 %v3048
    %v4247 = vunpack.c.l.b16 %v3049
    %v4248 = vunpack.c.h.b16 %v3049
    %v4249 = vunpack.c.l.b16 %v3050
    %v4250 = vunpack.c.h.b16 %v3050
    %v4251 = vunpack.c.l.b16 %v3051
    %v4252 = vunpack.c.h.b16 %v3051
    %v4253 = vunpack.c.l.b16 %v3052
    %v4254 = vunpack.c.h.b16 %v3052
    %v4255 = vunpack.c.l.b16 %v3053
    %v4256 = vunpack.c.h.b16 %v3053
    %v4257 = vunpack.c.l.b16 %v3054
    %v4258 = vunpack.c.h.b16 %v3054
    %v4259 = vunpack.c.l.b16 %v3055
    %v4260 = vunpack.c.h.b16 %v3055
    %v4261 = vunpack.c.l.b16 %v3056
    %v4262 = vunpack.c.h.b16 %v3056
    %v4263 = vunpack.c.l.b16 %v3057
    %v4264 = vunpack.c.h.b16 %v3057
    %v4265 = vunpack.c.l.b16 %v3058
    %v4266 = vunpack.c.h.b16 %v3058
    %v4267 = vunpack.c.l.b16 %v3059
    %v4268 = vunpack.c.h.b16 %v3059
    %v4269 = vunpack.c.l.b16 %v3060
    %v4270 = vunpack.c.h.b16 %v3060
    %v4271 = vunpack.c.l.b16 %v3061
    %v4272 = vunpack.c.h.b16 %v3061
    %v4273 = vunpack.c.l.b16 %v3062
    %v4274 = vunpack.c.h.b16 %v3062
    %v4275 = vunpack.c.l.b16 %v3063
    %v4276 = vunpack.c.h.b16 %v3063
    %v4277 = vunpack.c.l.b16 %v3064
    %v4278 = vunpack.c.h.b16 %v3064
    %v4279 = vunpack.c.l.b16 %v3065
    %v4280 = vunpack.c.h.b16 %v3065
    %v4281 = vunpack.c.l.b16 %v3066
    %v4282 = vunpack.c.h.b16 %v3066
    %v4283 = vunpack.c.l.b16 %v3067
    %v4284 = vunpack.c.h.b16 %v3067
    %v4285 = vunpack.c.l.b16 %v3068
    %v4286 = vunpack.c.h.b16 %v3068
    %v4287 = vunpack.c.l.b16 %v3069
    %v4288 = vunpack.c.h.b16 %v3069
    %v4289 = vunpack.c.l.b16 %v3070
    %v4290 = vunpack.c.h.b16 %v3070
    %v4291 = vunpack.c.l.b16 %v3071
    %v4292 = vunpack.c.h.b16 %v3071
    %v4293 = vunpack.c.l.b16 %v3072
    %v4294 = vunpack.c.h.b16 %v3072
    %v4295 = vunpack.c.l.b16 %v3073
    %v4296 = vunpack.c.h.b16 %v3073
    %v4297 = vunpack.c.l.b16 %v3074
    %v4298 = vunpack.c.h.b16 %v3074
    %v4299 = vunpack.c.l.b16 %v3075
    %v4300 = vunpack.c.h.b16 %v3075
    %v4301 = vunpack.c.l.b16 %v3076
    %v4302 = vunpack.c.h.b16 %v3076
    %v4303 = vunpack.c.l.b16 %v3077
    %v4304 = vunpack.c.h.b16 %v3077
    %v4305 = vunpack.c.l.b16 %v3078
    %v4306 = vunpack.c.h.b16 %v3078
    %v4307 = vunpack.c.l.b16 %v3079
    %v4308 = vunpack.c.h.b16 %v3079
    %v4309 = vunpack.c.l.b16 %v3080
    %v4310 = vunpack.c.h.b16 %v3080
    %v4311 = vunpack.c.l.b16 %v3081
    %v4312 = vunpack.c.h.b16 %v3081
    %v4313 = vunpack.c.l.b16 %v3082
    %v4314 = vunpack.c.h.b16 %v3082
    %v4315 = vunpack.c.l.b16 %v3083
    %v4316 = vunpack.c.h.b16 %v3083
    %v4317 = vunpack.c.l.b16 %v3084
    %v4318 = vunpack.c.h.b16 %v3084
    %v4319 = vunpack.c.l.b16 %v3085
    %v4320 = vunpack.c.h.b16 %v3085
    %v4321 = vunpack.c.l.b16 %v3086
    %v4322 = vunpack.c.h.b16 %v3086
    %v4323 = vunpack.c.l.b16 %v3087
    %v4324 = vunpack.c.h.b16 %v3087
    %v4325 = vunpack.c.l.b16 %v3088
    %v4326 = vunpack.c.h.b16 %v3088
    %v4327 = vunpack.c.l.b16 %v3089
    %v4328 = vunpack.c.h.b16 %v3089
    %v4329 = vunpack.c.l.b16 %v3090
    %v4330 = vunpack.c.h.b16 %v3090
    %v4331 = vunpack.c.l.b16 %v3091
    %v4332 = vunpack.c.h.b16 %v3091
    %v4333 = vunpack.c.l.b16 %v3092
    %v4334 = vunpack.c.h.b16 %v3092
    %v4335 = vunpack.c.l.b16 %v3093
    %v4336 = vunpack.c.h.b16 %v3093
    %v4337 = vunpack.c.l.b16 %v3094
    %v4338 = vunpack.c.h.b16 %v3094
    %v4339 = vunpack.c.l.b16 %v3095
    %v4340 = vunpack.c.h.b16 %v3095
    %v4341 = vunpack.c.l.b16 %v3096
    %v4342 = vunpack.c.h.b16 %v3096
    %v4343 = vunpack.c.l.b16 %v3097
    %v4344 = vunpack.c.h.b16 %v3097
    %v4345 = vunpack.c.l.b16 %v3098
    %v4346 = vunpack.c.h.b16 %v3098
    %v4347 = vunpack.c.l.b16 %v3099
    %v4348 = vunpack.c.h.b16 %v3099
    %v4349 = vunpack.c.l.b16 %v3100
    %v4350 = vunpack.c.h.b16 %v3100
    %v4351 = vunpack.c.l.b16 %v3101
    %v4352 = vunpack.c.h.b16 %v3101
    %v4353 = vunpack.c.l.b16 %v3102
    %v4354 = vunpack.c.h.b16 %v3102
    %v4355 = vunpack.c.l.b16 %v3103
    %v4356 = vunpack.c.h.b16 %v3103
    %v4357 = vunpack.c.l.b16 %v3104
    %v4358 = vunpack.c.h.b16 %v3104
    %v4359 = vunpack.c.l.b16 %v3105
    %v4360 = vunpack.c.h.b16 %v3105
    %v4361 = vunpack.c.l.b16 %v3106
    %v4362 = vunpack.c.h.b16 %v3106
    %v4363 = vunpack.c.l.b16 %v3107
    %v4364 = vunpack.c.h.b16 %v3107
    %v4365 = vunpack.c.l.b16 %v3108
    %v4366 = vunpack.c.h.b16 %v3108
    %v4367 = vunpack.c.l.b16 %v3109
    %v4368 = vunpack.c.h.b16 %v3109
    %v4369 = vunpack.c.l.b16 %v3110
    %v4370 = vunpack.c.h.b16 %v3110
    %v4371 = vunpack.c.l.b16 %v3111
    %v4372 = vunpack.c.h.b16 %v3111
    %v4373 = vunpack.c.l.b16 %v3112
    %v4374 = vunpack.c.h.b16 %v3112
    %v4375 = vunpack.c.l.b16 %v3113
    %v4376 = vunpack.c.h.b16 %v3113
    %v4377 = vunpack.c.l.b16 %v3114
    %v4378 = vunpack.c.h.b16 %v3114
    %v4379 = vunpack.c.l.b16 %v3115
    %v4380 = vunpack.c.h.b16 %v3115
    %v4381 = vunpack.c.l.b16 %v3116
    %v4382 = vunpack.c.h.b16 %v3116
    %v4383 = vunpack.c.l.b16 %v3117
    %v4384 = vunpack.c.h.b16 %v3117
    %v4385 = vunpack.c.l.b16 %v3118
    %v4386 = vunpack.c.h.b16 %v3118
    %v4387 = vunpack.c.l.b16 %v3119
    %v4388 = vunpack.c.h.b16 %v3119
    %v4389 = vunpack.c.l.b16 %v3120
    %v4390 = vunpack.c.h.b16 %v3120
    %v4391 = vunpack.c.l.b16 %v3121
    %v4392 = vunpack.c.h.b16 %v3121
    %v4393 = vunpack.c.l.b16 %v3122
    %v4394 = vunpack.c.h.b16 %v3122
    %v4395 = vunpack.c.l.b16 %v3123
    %v4396 = vunpack.c.h.b16 %v3123
    %v4397 = vunpack.c.l.b16 %v3124
    %v4398 = vunpack.c.h.b16 %v3124
    %v4399 = vunpack.c.l.b16 %v3125
    %v4400 = vunpack.c.h.b16 %v3125
    %v4401 = vunpack.c.l.b16 %v3126
    %v4402 = vunpack.c.h.b16 %v3126
    %v4403 = vunpack.c.l.b16 %v3127
    %v4404 = vunpack.c.h.b16 %v3127
    %v4405 = vunpack.c.l.b16 %v3128
    %v4406 = vunpack.c.h.b16 %v3128
    %v4407 = vunpack.c.l.b16 %v3129
    %v4408 = vunpack.c.h.b16 %v3129
    %v4409 = vunpack.c.l.b16 %v3130
    %v4410 = vunpack.c.h.b16 %v3130
    %v4411 = vunpack.c.l.b16 %v3131
    %v4412 = vunpack.c.h.b16 %v3131
    %v4413 = vunpack.c.l.b16 %v3132
    %v4414 = vunpack.c.h.b16 %v3132
    %v4415 = vunpack.c.l.b16 %v3133
    %v4416 = vunpack.c.h.b16 %v3133
    %v4417 = vunpack.c.l.b16 %v3134
    %v4418 = vunpack.c.h.b16 %v3134
    %v4419 = vunpack.c.l.b16 %v3135
    %v4420 = vunpack.c.h.b16 %v3135
    %v4421 = vunpack.c.l.b16 %v3136
    %v4422 = vunpack.c.h.b16 %v3136
    %v4423 = vunpack.c.l.b16 %v3137
    %v4424 = vunpack.c.h.b16 %v3137
    %v4425 = vunpack.c.l.b16 %v3138
    %v4426 = vunpack.c.h.b16 %v3138
    %v4427 = vunpack.c.l.b16 %v3139
    %v4428 = vunpack.c.h.b16 %v3139
    %v4429 = vunpack.c.l.b16 %v3140
    %v4430 = vunpack.c.h.b16 %v3140
    %v4431 = vunpack.c.l.b16 %v3141
    %v4432 = vunpack.c.h.b16 %v3141
    %v4433 = vunpack.c.l.b16 %v3142
    %v4434 = vunpack.c.h.b16 %v3142
    %v4435 = vunpack.c.l.b16 %v3143
    %v4436 = vunpack.c.h.b16 %v3143
    %v4437 = vunpack.c.l.b16 %v3144
    %v4438 = vunpack.c.h.b16 %v3144
    %v4439 = vunpack.c.l.b16 %v3145
    %v4440 = vunpack.c.h.b16 %v3145
    %v4441 = vunpack.c.l.b16 %v3146
    %v4442 = vunpack.c.h.b16 %v3146
    %v4443 = vunpack.c.l.b16 %v3147
    %v4444 = vunpack.c.h.b16 %v3147
    %v4445 = vunpack.c.l.b16 %v3148
    %v4446 = vunpack.c.h.b16 %v3148
    %v4447 = vunpack.c.l.b16 %v3149
    %v4448 = vunpack.c.h.b16 %v3149
    %v4449 = vunpack.c.l.b16 %v3150
    %v4450 = vunpack.c.h.b16 %v3150
    %v4451 = vunpack.c.l.b16 %v3151
    %v4452 = vunpack.c.h.b16 %v3151
    %v4453 = vunpack.c.l.b16 %v3152
    %v4454 = vunpack.c.h.b16 %v3152
    %v4455 = vunpack.c.l.b16 %v3153
    %v4456 = vunpack.c.h.b16 %v3153
    %v4457 = vunpack.c.l.b16 %v3154
    %v4458 = vunpack.c.h.b16 %v3154
    %v4459 = vunpack.c.l.b16 %v3155
    %v4460 = vunpack.c.h.b16 %v3155
    %v4461 = vunpack.c.l.b16 %v3156
    %v4462 = vunpack.c.h.b16 %v3156
    %v4463 = vunpack.c.l.b16 %v3157
    %v4464 = vunpack.c.h.b16 %v3157
    %v4465 = vunpack.c.l.b16 %v3158
    %v4466 = vunpack.c.h.b16 %v3158
    %v4467 = vunpack.c.l.b16 %v3159
    %v4468 = vunpack.c.h.b16 %v3159
    %v4469 = vunpack.c.l.b16 %v3160
    %v4470 = vunpack.c.h.b16 %v3160
    %v4471 = vunpack.c.l.b16 %v3161
    %v4472 = vunpack.c.h.b16 %v3161
    %v4473 = vunpack.c.l.b16 %v3162
    %v4474 = vunpack.c.h.b16 %v3162
    %v4475 = vunpack.c.l.b16 %v3163
    %v4476 = vunpack.c.h.b16 %v3163
    %v4477 = vunpack.c.l.b16 %v3164
    %v4478 = vunpack.c.h.b16 %v3164
    %v4479 = vunpack.c.l.b16 %v3165
    %v4480 = vunpack.c.h.b16 %v3165
    %v4481 = vunpack.c.l.b16 %v3166
    %v4482 = vunpack.c.h.b16 %v3166
    %v4483 = vunpack.c.l.b16 %v3167
    %v4484 = vunpack.c.h.b16 %v3167
    %v4485 = vunpack.c.l.b16 %v3168
    %v4486 = vunpack.c.h.b16 %v3168
    %v4487 = vunpack.c.l.b16 %v3169
    %v4488 = vunpack.c.h.b16 %v3169
    %v4489 = vunpack.c.l.b16 %v3170
    %v4490 = vunpack.c.h.b16 %v3170
    %v4491 = vunpack.c.l.b16 %v3171
    %v4492 = vunpack.c.h.b16 %v3171
    %v4493 = vunpack.c.l.b16 %v3172
    %v4494 = vunpack.c.h.b16 %v3172
    %v4495 = vunpack.c.l.b16 %v3173
    %v4496 = vunpack.c.h.b16 %v3173
    %v4497 = vunpack.c.l.b16 %v3174
    %v4498 = vunpack.c.h.b16 %v3174
    %v4499 = vunpack.c.l.b16 %v3175
    %v4500 = vunpack.c.h.b16 %v3175
    %v4501 = vunpack.c.l.b16 %v3176
    %v4502 = vunpack.c.h.b16 %v3176
    %v4503 = vunpack.c.l.b16 %v3177
    %v4504 = vunpack.c.h.b16 %v3177
    %v4505 = vunpack.c.l.b16 %v3178
    %v4506 = vunpack.c.h.b16 %v3178
    %v4507 = vunpack.c.l.b16 %v3179
    %v4508 = vunpack.c.h.b16 %v3179
    %v4509 = vunpack.c.l.b16 %v3180
    %v4510 = vunpack.c.h.b16 %v3180
    %v4511 = vunpack.c.l.b16 %v3181
    %v4512 = vunpack.c.h.b16 %v3181
    %v4513 = vunpack.c.l.b16 %v3182
    %v4514 = vunpack.c.h.b16 %v3182
    %v4515 = vunpack.c.l.b16 %v3183
    %v4516 = vunpack.c.h.b16 %v3183
    %v4517 = vunpack.c.l.b16 %v3184
    %v4518 = vunpack.c.h.b16 %v3184
    %v4519 = vunpack.c.l.b16 %v3185
    %v4520 = vunpack.c.h.b16 %v3185
    %v4521 = vunpack.c.l.b16 %v3186
    %v4522 = vunpack.c.h.b16 %v3186
    %v4523 = vunpack.c.l.b16 %v3187
    %v4524 = vunpack.c.h.b16 %v3187
    %v4525 = vunpack.c.l.b16 %v3188
    %v4526 = vunpack.c.h.b16 %v3188
    %v4527 = vunpack.c.l.b16 %v3189
    %v4528 = vunpack.c.h.b16 %v3189
    %v4529 = vunpack.c.l.b16 %v3190
    %v4530 = vunpack.c.h.b16 %v3190
    %v4531 = vunpack.c.l.b16 %v3191
    %v4532 = vunpack.c.h.b16 %v3191
    %v4533 = vunpack.c.l.b16 %v3192
    %v4534 = vunpack.c.h.b16 %v3192
    %v4535 = vunpack.c.l.b16 %v3193
    %v4536 = vunpack.c.h.b16 %v3193
    %v4537 = vunpack.c.l.b16 %v3194
    %v4538 = vunpack.c.h.b16 %v3194
    %v4539 = vunpack.c.l.b16 %v3195
    %v4540 = vunpack.c.h.b16 %v3195
    %v4541 = vunpack.c.l.b16 %v3196
    %v4542 = vunpack.c.h.b16 %v3196
    %v4543 = vunpack.c.l.b16 %v3197
    %v4544 = vunpack.c.h.b16 %v3197
    %v4545 = vunpack.c.l.b16 %v3198
    %v4546 = vunpack.c.h.b16 %v3198
    %v4547 = vunpack.c.l.b16 %v3199
    %v4548 = vunpack.c.h.b16 %v3199
    %v4549 = vunpack.c.l.b16 %v3200
    %v4550 = vunpack.c.h.b16 %v3200
    %v4551 = vunpack.c.l.b16 %v3201
    %v4552 = vunpack.c.h.b16 %v3201
    %v4553 = vunpack.c.l.b16 %v3202
    %v4554 = vunpack.c.h.b16 %v3202
    %v4555 = vunpack.c.l.b16 %v3203
    %v4556 = vunpack.c.h.b16 %v3203
    %v4557 = vunpack.c.l.b16 %v3204
    %v4558 = vunpack.c.h.b16 %v3204
    %v4559 = vunpack.c.l.b16 %v3205
    %v4560 = vunpack.c.h.b16 %v3205
    %v4561 = vunpack.c.l.b16 %v3206
    %v4562 = vunpack.c.h.b16 %v3206
    %v4563 = vunpack.c.l.b16 %v3207
    %v4564 = vunpack.c.h.b16 %v3207
    %v4565 = vunpack.c.l.b16 %v3208
    %v4566 = vunpack.c.h.b16 %v3208
    %v4567 = vunpack.c.l.b16 %v3209
    %v4568 = vunpack.c.h.b16 %v3209
    %v4569 = vunpack.c.l.b16 %v3210
    %v4570 = vunpack.c.h.b16 %v3210
    %v4571 = vunpack.c.l.b16 %v3211
    %v4572 = vunpack.c.h.b16 %v3211
    %v4573 = vunpack.c.l.b16 %v3212
    %v4574 = vunpack.c.h.b16 %v3212
    %v4575 = vunpack.c.l.b16 %v3213
    %v4576 = vunpack.c.h.b16 %v3213
    %v4577 = vunpack.c.l.b16 %v3214
    %v4578 = vunpack.c.h.b16 %v3214
    %v4579 = vunpack.c.l.b16 %v3215
    %v4580 = vunpack.c.h.b16 %v3215
    %v4581 = vunpack.c.l.b16 %v3216
    %v4582 = vunpack.c.h.b16 %v3216
    %v4583 = vunpack.c.l.b16 %v3217
    %v4584 = vunpack.c.h.b16 %v3217
    %v4585 = vunpack.c.l.b16 %v3218
    %v4586 = vunpack.c.h.b16 %v3218
    %v4587 = vunpack.c.l.b16 %v3219
    %v4588 = vunpack.c.h.b16 %v3219
    %v4589 = vunpack.c.l.b16 %v3220
    %v4590 = vunpack.c.h.b16 %v3220
    %v4591 = vunpack.c.l.b16 %v3221
    %v4592 = vunpack.c.h.b16 %v3221
    %v4593 = vunpack.c.l.b16 %v3222
    %v4594 = vunpack.c.h.b16 %v3222
    %v4595 = vunpack.c.l.b16 %v3223
    %v4596 = vunpack.c.h.b16 %v3223
    %v4597 = vunpack.c.l.b16 %v3224
    %v4598 = vunpack.c.h.b16 %v3224
    %v4599 = vunpack.c.l.b16 %v3225
    %v4600 = vunpack.c.h.b16 %v3225
    %v4601 = vunpack.c.l.b16 %v3226
    %v4602 = vunpack.c.h.b16 %v3226
    %v4603 = vunpack.c.l.b16 %v3227
    %v4604 = vunpack.c.h.b16 %v3227
    %v4605 = vunpack.c.l.b16 %v3228
    %v4606 = vunpack.c.h.b16 %v3228
    %v4607 = vunpack.c.l.b16 %v3229
    %v4608 = vunpack.c.h.b16 %v3229
    %v4609 = vunpack.c.l.b16 %v3230
    %v4610 = vunpack.c.h.b16 %v3230
    %v4611 = vunpack.c.l.b16 %v3231
    %v4612 = vunpack.c.h.b16 %v3231
    %v4613 = vunpack.c.l.b16 %v3232
    %v4614 = vunpack.c.h.b16 %v3232
    %v4615 = vunpack.c.l.b16 %v3233
    %v4616 = vunpack.c.h.b16 %v3233
    %v4617 = vunpack.c.l.b16 %v3234
    %v4618 = vunpack.c.h.b16 %v3234
    %v4619 = vunpack.c.l.b16 %v3235
    %v4620 = vunpack.c.h.b16 %v3235
    %v4621 = vunpack.c.l.b16 %v3236
    %v4622 = vunpack.c.h.b16 %v3236
    %v4623 = vunpack.c.l.b16 %v3237
    %v4624 = vunpack.c.h.b16 %v3237
    %v4625 = vunpack.c.l.b16 %v3238
    %v4626 = vunpack.c.h.b16 %v3238
    %v4627 = vunpack.c.l.b16 %v3239
    %v4628 = vunpack.c.h.b16 %v3239
    %v4629 = vunpack.c.l.b16 %v3240
    %v4630 = vunpack.c.h.b16 %v3240
    %v4631 = vunpack.c.l.b16 %v3241
    %v4632 = vunpack.c.h.b16 %v3241
    %v4633 = vunpack.c.l.b16 %v3242
    %v4634 = vunpack.c.h.b16 %v3242
    %v4635 = vunpack.c.l.b16 %v3243
    %v4636 = vunpack.c.h.b16 %v3243
    %v4637 = vunpack.c.l.b16 %v3244
    %v4638 = vunpack.c.h.b16 %v3244
    %v4639 = vunpack.c.l.b16 %v3245
    %v4640 = vunpack.c.h.b16 %v3245
    %v4641 = vunpack.c.l.b16 %v3246
    %v4642 = vunpack.c.h.b16 %v3246
    %v4643 = vunpack.c.l.b16 %v3247
    %v4644 = vunpack.c.h.b16 %v3247
    %v4645 = vunpack.c.l.b16 %v3248
    %v4646 = vunpack.c.h.b16 %v3248
    %v4647 = vunpack.c.l.b16 %v3249
    %v4648 = vunpack.c.h.b16 %v3249
    %v4649 = vunpack.c.l.b16 %v3250
    %v4650 = vunpack.c.h.b16 %v3250
    %v4651 = vunpack.c.l.b16 %v3251
    %v4652 = vunpack.c.h.b16 %v3251
    %v4653 = vunpack.c.l.b16 %v3252
    %v4654 = vunpack.c.h.b16 %v3252
    %v4655 = vunpack.c.l.b16 %v3253
    %v4656 = vunpack.c.h.b16 %v3253
    %v4657 = vunpack.c.l.b16 %v3254
    %v4658 = vunpack.c.h.b16 %v3254
    %v4659 = vunpack.c.l.b16 %v3255
    %v4660 = vunpack.c.h.b16 %v3255
    %v4661 = vunpack.c.l.b16 %v3256
    %v4662 = vunpack.c.h.b16 %v3256
    %v4663 = vunpack.c.l.b16 %v3257
    %v4664 = vunpack.c.h.b16 %v3257
    %v4665 = vunpack.c.l.b16 %v3258
    %v4666 = vunpack.c.h.b16 %v3258
    %v4667 = vunpack.c.l.b16 %v3259
    %v4668 = vunpack.c.h.b16 %v3259
    %v4669 = vunpack.c.l.b16 %v3260
    %v4670 = vunpack.c.h.b16 %v3260
    %v4671 = vunpack.c.l.b16 %v3261
    %v4672 = vunpack.c.h.b16 %v3261
    %v4673 = vunpack.c.l.b16 %v3262
    %v4674 = vunpack.c.h.b16 %v3262
    %v4675 = vunpack.c.l.b16 %v3263
    %v4676 = vunpack.c.h.b16 %v3263
    %v4677 = vunpack.c.l.b16 %v3264
    %v4678 = vunpack.c.h.b16 %v3264
    %v4679 = vunpack.c.l.b16 %v3265
    %v4680 = vunpack.c.h.b16 %v3265
    %v4681 = vunpack.c.l.b16 %v3266
    %v4682 = vunpack.c.h.b16 %v3266
    %v4683 = vunpack.c.l.b16 %v3267
    %v4684 = vunpack.c.h.b16 %v3267
    %v4685 = vunpack.c.l.b16 %v3268
    %v4686 = vunpack.c.h.b16 %v3268
    %v4687 = vunpack.c.l.b16 %v3269
    %v4688 = vunpack.c.h.b16 %v3269
    %v4689 = vunpack.c.l.b16 %v3270
    %v4690 = vunpack.c.h.b16 %v3270
    %v4691 = vunpack.c.l.b16 %v3271
    %v4692 = vunpack.c.h.b16 %v3271
    %v4693 = vunpack.c.l.b16 %v3272
    %v4694 = vunpack.c.h.b16 %v3272
    %v4695 = vunpack.c.l.b16 %v3273
    %v4696 = vunpack.c.h.b16 %v3273
    %v4697 = vunpack.c.l.b16 %v3274
    %v4698 = vunpack.c.h.b16 %v3274
    %v4699 = vunpack.c.l.b16 %v3275
    %v4700 = vunpack.c.h.b16 %v3275
    %v4701 = vunpack.c.l.b16 %v3276
    %v4702 = vunpack.c.h.b16 %v3276
    %v4703 = vunpack.c.l.b16 %v3277
    %v4704 = vunpack.c.h.b16 %v3277
    %v4705 = vunpack.c.l.b16 %v3278
    %v4706 = vunpack.c.h.b16 %v3278
    %v4707 = vunpack.c.l.b16 %v3279
    %v4708 = vunpack.c.h.b16 %v3279
    %v4709 = vunpack.c.l.b16 %v3280
    %v4710 = vunpack.c.h.b16 %v3280
    %v4711 = vunpack.c.l.b16 %v3281
    %v4712 = vunpack.c.h.b16 %v3281
    %v4713 = vunpack.c.l.b16 %v3282
    %v4714 = vunpack.c.h.b16 %v3282
    %v4715 = vunpack.c.l.b16 %v3283
    %v4716 = vunpack.c.h.b16 %v3283
    %v4717 = vunpack.c.l.b16 %v3284
    %v4718 = vunpack.c.h.b16 %v3284
    %v4719 = vunpack.c.l.b16 %v3285
    %v4720 = vunpack.c.h.b16 %v3285
    %v4721 = vunpack.c.l.b16 %v3286
    %v4722 = vunpack.c.h.b16 %v3286
    %v4723 = vunpack.c.l.b16 %v3287
    %v4724 = vunpack.c.h.b16 %v3287
    %v4725 = vunpack.c.l.b16 %v3288
    %v4726 = vunpack.c.h.b16 %v3288
    %v4727 = vunpack.c.l.b16 %v3289
    %v4728 = vunpack.c.h.b16 %v3289
    %v4729 = vunpack.c.l.b16 %v3290
    %v4730 = vunpack.c.h.b16 %v3290
    %v4731 = vunpack.c.l.b16 %v3291
    %v4732 = vunpack.c.h.b16 %v3291
    %v4733 = vunpack.c.l.b16 %v3292
    %v4734 = vunpack.c.h.b16 %v3292
    %v4735 = vunpack.c.l.b16 %v3293
    %v4736 = vunpack.c.h.b16 %v3293
    %v4737 = vunpack.c.l.b16 %v3294
    %v4738 = vunpack.c.h.b16 %v3294
    %v4739 = vunpack.c.l.b16 %v3295
    %v4740 = vunpack.c.h.b16 %v3295
    %v4741 = vunpack.c.l.b16 %v3296
    %v4742 = vunpack.c.h.b16 %v3296
    %v4743 = vunpack.c.l.b16 %v3297
    %v4744 = vunpack.c.h.b16 %v3297
    %v4745 = vunpack.c.l.b16 %v3298
    %v4746 = vunpack.c.h.b16 %v3298
    %v4747 = vunpack.c.l.b16 %v3299
    %v4748 = vunpack.c.h.b16 %v3299
    %v4749 = vunpack.c.l.b16 %v3300
    %v4750 = vunpack.c.h.b16 %v3300
    %v4751 = vunpack.c.l.b16 %v3301
    %v4752 = vunpack.c.h.b16 %v3301
    %v4753 = vunpack.c.l.b16 %v3302
    %v4754 = vunpack.c.h.b16 %v3302
    %v4755 = vunpack.c.l.b16 %v3303
    %v4756 = vunpack.c.h.b16 %v3303
    %v4757 = vunpack.c.l.b16 %v3304
    %v4758 = vunpack.c.h.b16 %v3304
    %v4759 = vunpack.c.l.b16 %v3305
    %v4760 = vunpack.c.h.b16 %v3305
    %v4761 = vunpack.c.l.b16 %v3306
    %v4762 = vunpack.c.h.b16 %v3306
    %v4763 = vunpack.c.l.b16 %v3307
    %v4764 = vunpack.c.h.b16 %v3307
    %v4765 = vunpack.c.l.b16 %v3308
    %v4766 = vunpack.c.h.b16 %v3308
    %v4767 = vunpack.c.l.b16 %v3309
    %v4768 = vunpack.c.h.b16 %v3309
    %v4769 = vunpack.c.l.b16 %v3310
    %v4770 = vunpack.c.h.b16 %v3310
    %v4771 = vunpack.c.l.b16 %v3311
    %v4772 = vunpack.c.h.b16 %v3311
    %v4773 = vunpack.c.l.b16 %v3312
    %v4774 = vunpack.c.h.b16 %v3312
    %v4775 = vunpack.c.l.b16 %v3313
    %v4776 = vunpack.c.h.b16 %v3313
    %v4777 = vunpack.c.l.b16 %v3314
    %v4778 = vunpack.c.h.b16 %v3314
    %v4779 = vunpack.c.l.b16 %v3315
    %v4780 = vunpack.c.h.b16 %v3315
    %v4781 = vunpack.c.l.b16 %v3316
    %v4782 = vunpack.c.h.b16 %v3316
    %v4783 = vunpack.c.l.b16 %v3317
    %v4784 = vunpack.c.h.b16 %v3317
    %v4785 = vunpack.c.l.b16 %v3318
    %v4786 = vunpack.c.h.b16 %v3318
    %v4787 = vunpack.c.l.b16 %v3319
    %v4788 = vunpack.c.h.b16 %v3319
    %v4789 = vunpack.c.l.b16 %v3320
    %v4790 = vunpack.c.h.b16 %v3320
    %v4791 = vunpack.c.l.b16 %v3321
    %v4792 = vunpack.c.h.b16 %v3321
    %v4793 = vunpack.c.l.b16 %v3322
    %v4794 = vunpack.c.h.b16 %v3322
    %v4795 = vunpack.c.l.b16 %v3323
    %v4796 = vunpack.c.h.b16 %v3323
    %v4797 = vunpack.c.l.b16 %v3324
    %v4798 = vunpack.c.h.b16 %v3324
    %v4799 = vunpack.c.l.b16 %v3325
    %v4800 = vunpack.c.h.b16 %v3325
    %v4801 = vunpack.c.l.b16 %v3326
    %v4802 = vunpack.c.h.b16 %v3326
    %v4803 = vunpack.c.l.b16 %v3327
    %v4804 = vunpack.c.h.b16 %v3327
    %v4805 = vunpack.c.l.b16 %v3328
    %v4806 = vunpack.c.h.b16 %v3328
    %v4807 = vunpack.c.l.b16 %v3329
    %v4808 = vunpack.c.h.b16 %v3329
    %v4809 = vunpack.c.l.b16 %v3330
    %v4810 = vunpack.c.h.b16 %v3330
    %v4811 = vunpack.c.l.b16 %v3331
    %v4812 = vunpack.c.h.b16 %v3331
    %v4813 = vunpack.c.l.b16 %v3332
    %v4814 = vunpack.c.h.b16 %v3332
    %v4815 = vunpack.c.l.b16 %v3333
    %v4816 = vunpack.c.h.b16 %v3333
    %v4817 = vunpack.c.l.b16 %v3334
    %v4818 = vunpack.c.h.b16 %v3334
    %v4819 = vunpack.c.l.b16 %v3335
    %v4820 = vunpack.c.h.b16 %v3335
    %v4821 = vunpack.c.l.b16 %v3336
    %v4822 = vunpack.c.h.b16 %v3336
    %v4823 = vunpack.c.l.b16 %v3337
    %v4824 = vunpack.c.h.b16 %v3337
    %v4825 = vunpack.c.l.b16 %v3338
    %v4826 = vunpack.c.h.b16 %v3338
    %v4827 = vunpack.c.l.b16 %v3339
    %v4828 = vunpack.c.h.b16 %v3339
    %v4829 = vunpack.c.l.b16 %v3340
    %v4830 = vunpack.c.h.b16 %v3340
    %v4831 = vunpack.c.l.b16 %v3341
    %v4832 = vunpack.c.h.b16 %v3341
    %v4833 = vunpack.c.l.b16 %v3342
    %v4834 = vunpack.c.h.b16 %v3342
    %v4835 = vunpack.c.l.b16 %v3343
    %v4836 = vunpack.c.h.b16 %v3343
    %v4837 = vunpack.c.l.b16 %v3344
    %v4838 = vunpack.c.h.b16 %v3344
    %v4839 = vunpack.c.l.b16 %v3345
    %v4840 = vunpack.c.h.b16 %v3345
    %v4841 = vunpack.c.l.b16 %v3346
    %v4842 = vunpack.c.h.b16 %v3346
    %v4843 = vunpack.c.l.b16 %v3347
    %v4844 = vunpack.c.h.b16 %v3347
    %v4845 = vunpack.c.l.b16 %v3348
    %v4846 = vunpack.c.h.b16 %v3348
    %v4847 = vunpack.c.l.b16 %v3349
    %v4848 = vunpack.c.h.b16 %v3349
    %v4849 = vunpack.c.l.b16 %v3350
    %v4850 = vunpack.c.h.b16 %v3350
    %v4851 = vunpack.c.l.b16 %v3351
    %v4852 = vunpack.c.h.b16 %v3351
    %v4853 = vunpack.c.l.b16 %v3352
    %v4854 = vunpack.c.h.b16 %v3352
    %v4855 = vunpack.c.l.b16 %v3353
    %v4856 = vunpack.c.h.b16 %v3353
    %v4857 = vunpack.c.l.b16 %v3354
    %v4858 = vunpack.c.h.b16 %v3354
    %v4859 = vunpack.c.l.b16 %v3355
    %v4860 = vunpack.c.h.b16 %v3355
    %v4861 = vunpack.c.l.b16 %v3356
    %v4862 = vunpack.c.h.b16 %v3356
    %v4863 = vunpack.c.l.b16 %v3357
    %v4864 = vunpack.c.h.b16 %v3357
    %v4865 = vunpack.c.l.b16 %v3358
    %v4866 = vunpack.c.h.b16 %v3358
    %v4867 = vunpack.c.l.b16 %v3359
    %v4868 = vunpack.c.h.b16 %v3359
    %v4869 = vunpack.c.l.b16 %v3360
    %v4870 = vunpack.c.h.b16 %v3360
    %v4871 = vunpack.c.l.b16 %v3361
    %v4872 = vunpack.c.h.b16 %v3361
    %v4873 = vunpack.c.l.b16 %v3362
    %v4874 = vunpack.c.h.b16 %v3362
    %v4875 = vunpack.c.l.b16 %v3363
    %v4876 = vunpack.c.h.b16 %v3363
    %v4877 = vunpack.c.l.b16 %v3364
    %v4878 = vunpack.c.h.b16 %v3364
    %v4879 = vunpack.c.l.b16 %v3365
    %v4880 = vunpack.c.h.b16 %v3365
    %v4881 = vunpack.c.l.b16 %v3366
    %v4882 = vunpack.c.h.b16 %v3366
    %v4883 = vunpack.c.l.b16 %v3367
    %v4884 = vunpack.c.h.b16 %v3367
    %v4885 = vunpack.c.l.b16 %v3368
    %v4886 = vunpack.c.h.b16 %v3368
    %v4887 = vunpack.c.l.b16 %v3369
    %v4888 = vunpack.c.h.b16 %v3369
    %v4889 = vunpack.c.l.b16 %v3370
    %v4890 = vunpack.c.h.b16 %v3370
    %v4891 = vunpack.c.l.b16 %v3371
    %v4892 = vunpack.c.h.b16 %v3371
    %v4893 = vunpack.c.l.b16 %v3372
    %v4894 = vunpack.c.h.b16 %v3372
    %v4895 = vunpack.c.l.b16 %v3373
    %v4896 = vunpack.c.h.b16 %v3373
    %v4897 = vunpack.c.l.b16 %v3374
    %v4898 = vunpack.c.h.b16 %v3374
    %v4899 = vunpack.c.l.b16 %v3375
    %v4900 = vunpack.c.h.b16 %v3375
    %v4901 = vunpack.c.l.b16 %v3376
    %v4902 = vunpack.c.h.b16 %v3376
    %v4903 = vunpack.c.l.b16 %v3377
    %v4904 = vunpack.c.h.b16 %v3377
    %v4905 = vunpack.c.l.b16 %v3378
    %v4906 = vunpack.c.h.b16 %v3378
    %v4907 = vunpack.c.l.b16 %v3379
    %v4908 = vunpack.c.h.b16 %v3379
    %v4909 = vunpack.c.l.b16 %v3380
    %v4910 = vunpack.c.h.b16 %v3380
    %v4911 = vunpack.c.l.b16 %v3381
    %v4912 = vunpack.c.h.b16 %v3381
    %v4913 = vunpack.c.l.b16 %v3382
    %v4914 = vunpack.c.h.b16 %v3382
    %v4915 = vunpack.c.l.b16 %v3383
    %v4916 = vunpack.c.h.b16 %v3383
    %v4917 = vunpack.c.l.b16 %v3384
    %v4918 = vunpack.c.h.b16 %v3384
    %v4919 = vunpack.c.l.b16 %v3385
    %v4920 = vunpack.c.h.b16 %v3385
    %v4921 = vunpack.c.l.b16 %v3386
    %v4922 = vunpack.c.h.b16 %v3386
    %v4923 = vunpack.c.l.b16 %v3387
    %v4924 = vunpack.c.h.b16 %v3387
    %v4925 = vunpack.c.l.b16 %v3388
    %v4926 = vunpack.c.h.b16 %v3388
    %v4927 = vunpack.c.l.b16 %v3389
    %v4928 = vunpack.c.h.b16 %v3389
    %v4929 = vunpack.c.l.b16 %v3390
    %v4930 = vunpack.c.h.b16 %v3390
    %v4931 = vunpack.c.l.b16 %v3391
    %v4932 = vunpack.c.h.b16 %v3391
    %v4933 = vunpack.c.l.b16 %v3392
    %v4934 = vunpack.c.h.b16 %v3392
    %v4935 = vunpack.c.l.b16 %v3393
    %v4936 = vunpack.c.h.b16 %v3393
    %v4937 = vunpack.c.l.b16 %v3394
    %v4938 = vunpack.c.h.b16 %v3394
    %v4939 = vunpack.c.l.b16 %v3395
    %v4940 = vunpack.c.h.b16 %v3395
    %v4941 = vunpack.c.l.b16 %v3396
    %v4942 = vunpack.c.h.b16 %v3396
    %v4943 = vunpack.c.l.b16 %v3397
    %v4944 = vunpack.c.h.b16 %v3397
    %v4945 = vunpack.c.l.b16 %v3398
    %v4946 = vunpack.c.h.b16 %v3398
    %v4947 = vunpack.c.l.b16 %v3399
    %v4948 = vunpack.c.h.b16 %v3399
    %v4949 = vunpack.c.l.b16 %v3400
    %v4950 = vunpack.c.h.b16 %v3400
    %v4951 = vunpack.c.l.b16 %v3401
    %v4952 = vunpack.c.h.b16 %v3401
    %v4953 = vunpack.c.l.b16 %v3402
    %v4954 = vunpack.c.h.b16 %v3402
    %v4955 = vunpack.c.l.b16 %v3403
    %v4956 = vunpack.c.h.b16 %v3403
    %v4957 = vunpack.c.l.b16 %v3404
    %v4958 = vunpack.c.h.b16 %v3404
    %v4959 = vunpack.c.l.b16 %v3405
    %v4960 = vunpack.c.h.b16 %v3405
    %v4961 = vunpack.c.l.b16 %v3406
    %v4962 = vunpack.c.h.b16 %v3406
    %v4963 = vunpack.c.l.b16 %v3407
    %v4964 = vunpack.c.h.b16 %v3407
    %v4965 = vunpack.c.l.b16 %v3408
    %v4966 = vunpack.c.h.b16 %v3408
    %v4967 = vunpack.c.l.b16 %v3409
    %v4968 = vunpack.c.h.b16 %v3409
    %v4969 = vunpack.c.l.b16 %v3410
    %v4970 = vunpack.c.h.b16 %v3410
    %v4971 = vunpack.c.l.b16 %v3411
    %v4972 = vunpack.c.h.b16 %v3411
    %v4973 = vunpack.c.l.b16 %v3412
    %v4974 = vunpack.c.h.b16 %v3412
    %v4975 = vunpack.c.l.b16 %v3413
    %v4976 = vunpack.c.h.b16 %v3413
    %v4977 = vunpack.c.l.b16 %v3414
    %v4978 = vunpack.c.h.b16 %v3414
    %v4979 = vunpack.c.l.b16 %v3415
    %v4980 = vunpack.c.h.b16 %v3415
    %v4981 = vunpack.c.l.b16 %v3416
    %v4982 = vunpack.c.h.b16 %v3416
    %v4983 = vunpack.c.l.b16 %v3417
    %v4984 = vunpack.c.h.b16 %v3417
    %v4985 = vunpack.c.l.b16 %v3418
    %v4986 = vunpack.c.h.b16 %v3418
    %v4987 = vunpack.c.l.b16 %v3419
    %v4988 = vunpack.c.h.b16 %v3419
    %v4989 = vpack.c.b16 %v3973, %v3965
    %v4990 = vpack.c.b16 %v3974, %v3966
    %v4991 = vpack.c.b16 %v3975, %v3967
    %v4992 = vpack.c.b16 %v3976, %v3968
    %v4993 = vpack.c.b16 %v3977, %v3969
    %v4994 = vpack.c.b16 %v3978, %v3970
    %v4995 = vpack.c.b16 %v3979, %v3971
    %v4996 = vpack.c.b16 %v3980, %v3972
    %v4997 = vpack.c.b16 %v3989, %v3981
    %v4998 = vpack.c.b16 %v3990, %v3982
    %v4999 = vpack.c.b16 %v3991, %v3983
    %v5000 = vpack.c.b16 %v3992, %v3984
    %v5001 = vpack.c.b16 %v3993, %v3985
    %v5002 = vpack.c.b16 %v3994, %v3986
    %v5003 = vpack.c.b16 %v3995, %v3987
    %v5004 = vpack.c.b16 %v3996, %v3988
    %v5005 = vpack.c.b16 %v4005, %v3997
    %v5006 = vpack.c.b16 %v4006, %v3998
    %v5007 = vpack.c.b16 %v4007, %v3999
    %v5008 = vpack.c.b16 %v4008, %v4000
    %v5009 = vpack.c.b16 %v4009, %v4001
    %v5010 = vpack.c.b16 %v4010, %v4002
    %v5011 = vpack.c.b16 %v4011, %v4003
    %v5012 = vpack.c.b16 %v4012, %v4004
    %v5013 = vpack.c.b16 %v4021, %v4013
    %v5014 = vpack.c.b16 %v4022, %v4014
    %v5015 = vpack.c.b16 %v4023, %v4015
    %v5016 = vpack.c.b16 %v4024, %v4016
    %v5017 = vpack.c.b16 %v4025, %v4017
    %v5018 = vpack.c.b16 %v4026, %v4018
    %v5019 = vpack.c.b16 %v4027, %v4019
    %v5020 = vpack.c.b16 %v4028, %v4020
    %v5021 = vpack.c.b16 %v4037, %v4029
    %v5022 = vpack.c.b16 %v4038, %v4030
    %v5023 = vpack.c.b16 %v4039, %v4031
    %v5024 = vpack.c.b16 %v4040, %v4032
    %v5025 = vpack.c.b16 %v4041, %v4033
    %v5026 = vpack.c.b16 %v4042, %v4034
    %v5027 = vpack.c.b16 %v4043, %v4035
    %v5028 = vpack.c.b16 %v4044, %v4036
    %v5029 = vpack.c.b16 %v4053, %v4045
    %v5030 = vpack.c.b16 %v4054, %v4046
    %v5031 = vpack.c.b16 %v4055, %v4047
    %v5032 = vpack.c.b16 %v4056, %v4048
    %v5033 = vpack.c.b16 %v4057, %v4049
    %v5034 = vpack.c.b16 %v4058, %v4050
    %v5035 = vpack.c.b16 %v4059, %v4051
    %v5036 = vpack.c.b16 %v4060, %v4052
    %v5037 = vpack.c.b16 %v4069, %v4061
    %v5038 = vpack.c.b16 %v4070, %v4062
    %v5039 = vpack.c.b16 %v4071, %v4063
    %v5040 = vpack.c.b16 %v4072, %v4064
    %v5041 = vpack.c.b16 %v4073, %v4065
    %v5042 = vpack.c.b16 %v4074, %v4066
    %v5043 = vpack.c.b16 %v4075, %v4067
    %v5044 = vpack.c.b16 %v4076, %v4068
    %v5045 = vpack.c.b16 %v4085, %v4077
    %v5046 = vpack.c.b16 %v4086, %v4078
    %v5047 = vpack.c.b16 %v4087, %v4079
    %v5048 = vpack.c.b16 %v4088, %v4080
    %v5049 = vpack.c.b16 %v4089, %v4081
    %v5050 = vpack.c.b16 %v4090, %v4082
    %v5051 = vpack.c.b16 %v4091, %v4083
    %v5052 = vpack.c.b16 %v4092, %v4084
    %v5053 = vpack.c.b16 %v4101, %v4093
    %v5054 = vpack.c.b16 %v4102, %v4094
    %v5055 = vpack.c.b16 %v4103, %v4095
    %v5056 = vpack.c.b16 %v4104, %v4096
    %v5057 = vpack.c.b16 %v4105, %v4097
    %v5058 = vpack.c.b16 %v4106, %v4098
    %v5059 = vpack.c.b16 %v4107, %v4099
    %v5060 = vpack.c.b16 %v4108, %v4100
    %v5061 = vpack.c.b16 %v4117, %v4109
    %v5062 = vpack.c.b16 %v4118, %v4110
    %v5063 = vpack.c.b16 %v4119, %v4111
    %v5064 = vpack.c.b16 %v4120, %v4112
    %v5065 = vpack.c.b16 %v4121, %v4113
    %v5066 = vpack.c.b16 %v4122, %v4114
    %v5067 = vpack.c.b16 %v4123, %v4115
    %v5068 = vpack.c.b16 %v4124, %v4116
    %v5069 = vpack.c.b16 %v4133, %v4125
    %v5070 = vpack.c.b16 %v4134, %v4126
    %v5071 = vpack.c.b16 %v4135, %v4127
    %v5072 = vpack.c.b16 %v4136, %v4128
    %v5073 = vpack.c.b16 %v4137, %v4129
    %v5074 = vpack.c.b16 %v4138, %v4130
    %v5075 = vpack.c.b16 %v4139, %v4131
    %v5076 = vpack.c.b16 %v4140, %v4132
    %v5077 = vpack.c.b16 %v4149, %v4141
    %v5078 = vpack.c.b16 %v4150, %v4142
    %v5079 = vpack.c.b16 %v4151, %v4143
    %v5080 = vpack.c.b16 %v4152, %v4144
    %v5081 = vpack.c.b16 %v4153, %v4145
    %v5082 = vpack.c.b16 %v4154, %v4146
    %v5083 = vpack.c.b16 %v4155, %v4147
    %v5084 = vpack.c.b16 %v4156, %v4148
    %v5085 = vpack.c.b16 %v4165, %v4157
    %v5086 = vpack.c.b16 %v4166, %v4158
    %v5087 = vpack.c.b16 %v4167, %v4159
    %v5088 = vpack.c.b16 %v4168, %v4160
    %v5089 = vpack.c.b16 %v4169, %v4161
    %v5090 = vpack.c.b16 %v4170, %v4162
    %v5091 = vpack.c.b16 %v4171, %v4163
    %v5092 = vpack.c.b16 %v4172, %v4164
    %v5093 = vpack.c.b16 %v4181, %v4173
    %v5094 = vpack.c.b16 %v4182, %v4174
    %v5095 = vpack.c.b16 %v4183, %v4175
    %v5096 = vpack.c.b16 %v4184, %v4176
    %v5097 = vpack.c.b16 %v4185, %v4177
    %v5098 = vpack.c.b16 %v4186, %v4178
    %v5099 = vpack.c.b16 %v4187, %v4179
    %v5100 = vpack.c.b16 %v4188, %v4180
    %v5101 = vpack.c.b16 %v4197, %v4189
    %v5102 = vpack.c.b16 %v4198, %v4190
    %v5103 = vpack.c.b16 %v4199, %v4191
    %v5104 = vpack.c.b16 %v4200, %v4192
    %v5105 = vpack.c.b16 %v4201, %v4193
    %v5106 = vpack.c.b16 %v4202, %v4194
    %v5107 = vpack.c.b16 %v4203, %v4195
    %v5108 = vpack.c.b16 %v4204, %v4196
    %v5109 = vpack.c.b16 %v4213, %v4205
    %v5110 = vpack.c.b16 %v4214, %v4206
    %v5111 = vpack.c.b16 %v4215, %v4207
    %v5112 = vpack.c.b16 %v4216, %v4208
    %v5113 = vpack.c.b16 %v4217, %v4209
    %v5114 = vpack.c.b16 %v4218, %v4210
    %v5115 = vpack.c.b16 %v4219, %v4211
    %v5116 = vpack.c.b16 %v4220, %v4212
    %v5117 = vpack.c.b16 %v4229, %v4221
    %v5118 = vpack.c.b16 %v4230, %v4222
    %v5119 = vpack.c.b16 %v4231, %v4223
    %v5120 = vpack.c.b16 %v4232, %v4224
    %v5121 = vpack.c.b16 %v4233, %v4225
    %v5122 = vpack.c.b16 %v4234, %v4226
    %v5123 = vpack.c.b16 %v4235, %v4227
    %v5124 = vpack.c.b16 %v4236, %v4228
    %v5125 = vpack.c.b16 %v4245, %v4237
    %v5126 = vpack.c.b16 %v4246, %v4238
    %v5127 = vpack.c.b16 %v4247, %v4239
    %v5128 = vpack.c.b16 %v4248, %v4240
    %v5129 = vpack.c.b16 %v4249, %v4241
    %v5130 = vpack.c.b16 %v4250, %v4242
    %v5131 = vpack.c.b16 %v4251, %v4243
    %v5132 = vpack.c.b16 %v4252, %v4244
    %v5133 = vpack.c.b16 %v4261, %v4253
    %v5134 = vpack.c.b16 %v4262, %v4254
    %v5135 = vpack.c.b16 %v4263, %v4255
    %v5136 = vpack.c.b16 %v4264, %v4256
    %v5137 = vpack.c.b16 %v4265, %v4257
    %v5138 = vpack.c.b16 %v4266, %v4258
    %v5139 = vpack.c.b16 %v4267, %v4259
    %v5140 = vpack.c.b16 %v4268, %v4260
    %v5141 = vpack.c.b16 %v4277, %v4269
    %v5142 = vpack.c.b16 %v4278, %v4270
    %v5143 = vpack.c.b16 %v4279, %v4271
    %v5144 = vpack.c.b16 %v4280, %v4272
    %v5145 = vpack.c.b16 %v4281, %v4273
    %v5146 = vpack.c.b16 %v4282, %v4274
    %v5147 = vpack.c.b16 %v4283, %v4275
    %v5148 = vpack.c.b16 %v4284, %v4276
    %v5149 = vpack.c.b16 %v4293, %v4285
    %v5150 = vpack.c.b16 %v4294, %v4286
    %v5151 = vpack.c.b16 %v4295, %v4287
    %v5152 = vpack.c.b16 %v4296, %v4288
    %v5153 = vpack.c.b16 %v4297, %v4289
    %v5154 = vpack.c.b16 %v4298, %v4290
    %v5155 = vpack.c.b16 %v4299, %v4291
    %v5156 = vpack.c.b16 %v4300, %v4292
    %v5157 = vpack.c.b16 %v4309, %v4301
    %v5158 = vpack.c.b16 %v4310, %v4302
    %v5159 = vpack.c.b16 %v4311, %v4303
    %v5160 = vpack.c.b16 %v4312, %v4304
    %v5161 = vpack.c.b16 %v4313, %v4305
    %v5162 = vpack.c.b16 %v4314, %v4306
    %v5163 = vpack.c.b16 %v4315, %v4307
    %v5164 = vpack.c.b16 %v4316, %v4308
    %v5165 = vpack.c.b16 %v4325, %v4317
    %v5166 = vpack.c.b16 %v4326, %v4318
    %v5167 = vpack.c.b16 %v4327, %v4319
    %v5168 = vpack.c.b16 %v4328, %v4320
    %v5169 = vpack.c.b16 %v4329, %v4321
    %v5170 = vpack.c.b16 %v4330, %v4322
    %v5171 = vpack.c.b16 %v4331, %v4323
    %v5172 = vpack.c.b16 %v4332, %v4324
    %v5173 = vpack.c.b16 %v4341, %v4333
    %v5174 = vpack.c.b16 %v4342, %v4334
    %v5175 = vpack.c.b16 %v4343, %v4335
    %v5176 = vpack.c.b16 %v4344, %v4336
    %v5177 = vpack.c.b16 %v4345, %v4337
    %v5178 = vpack.c.b16 %v4346, %v4338
    %v5179 = vpack.c.b16 %v4347, %v4339
    %v5180 = vpack.c.b16 %v4348, %v4340
    %v5181 = vpack.c.b16 %v4357, %v4349
    %v5182 = vpack.c.b16 %v4358, %v4350
    %v5183 = vpack.c.b16 %v4359, %v4351
    %v5184 = vpack.c.b16 %v4360, %v4352
    %v5185 = vpack.c.b16 %v4361, %v4353
    %v5186 = vpack.c.b16 %v4362, %v4354
    %v5187 = vpack.c.b16 %v4363, %v4355
    %v5188 = vpack.c.b16 %v4364, %v4356
    %v5189 = vpack.c.b16 %v4373, %v4365
    %v5190 = vpack.c.b16 %v4374, %v4366
    %v5191 = vpack.c.b16 %v4375, %v4367
    %v5192 = vpack.c.b16 %v4376, %v4368
    %v5193 = vpack.c.b16 %v4377, %v4369
    %v5194 = vpack.c.b16 %v4378, %v4370
    %v5195 = vpack.c.b16 %v4379, %v4371
    %v5196 = vpack.c.b16 %v4380, %v4372
    %v5197 = vpack.c.b16 %v4389, %v4381
    %v5198 = vpack.c.b16 %v4390, %v4382
    %v5199 = vpack.c.b16 %v4391, %v4383
    %v5200 = vpack.c.b16 %v4392, %v4384
    %v5201 = vpack.c.b16 %v4393, %v4385
    %v5202 = vpack.c.b16 %v4394, %v4386
    %v5203 = vpack.c.b16 %v4395, %v4387
    %v5204 = vpack.c.b16 %v4396, %v4388
    %v5205 = vpack.c.b16 %v4405, %v4397
    %v5206 = vpack.c.b16 %v4406, %v4398
    %v5207 = vpack.c.b16 %v4407, %v4399
    %v5208 = vpack.c.b16 %v4408, %v4400
    %v5209 = vpack.c.b16 %v4409, %v4401
    %v5210 = vpack.c.b16 %v4410, %v4402
    %v5211 = vpack.c.b16 %v4411, %v4403
    %v5212 = vpack.c.b16 %v4412, %v4404
    %v5213 = vpack.c.b16 %v4421, %v4413
    %v5214 = vpack.c.b16 %v4422, %v4414
    %v5215 = vpack.c.b16 %v4423, %v4415
    %v5216 = vpack.c.b16 %v4424, %v4416
    %v5217 = vpack.c.b16 %v4425, %v4417
    %v5218 = vpack.c.b16 %v4426, %v4418
    %v5219 = vpack.c.b16 %v4427, %v4419
    %v5220 = vpack.c.b16 %v4428, %v4420
    %v5221 = vpack.c.b16 %v4437, %v4429
    %v5222 = vpack.c.b16 %v4438, %v4430
    %v5223 = vpack.c.b16 %v4439, %v4431
    %v5224 = vpack.c.b16 %v4440, %v4432
    %v5225 = vpack.c.b16 %v4441, %v4433
    %v5226 = vpack.c.b16 %v4442, %v4434
    %v5227 = vpack.c.b16 %v4443, %v4435
    %v5228 = vpack.c.b16 %v4444, %v4436
    %v5229 = vpack.c.b16 %v4453, %v4445
    %v5230 = vpack.c.b16 %v4454, %v4446
    %v5231 = vpack.c.b16 %v4455, %v4447
    %v5232 = vpack.c.b16 %v4456, %v4448
    %v5233 = vpack.c.b16 %v4457, %v4449
    %v5234 = vpack.c.b16 %v4458, %v4450
    %v5235 = vpack.c.b16 %v4459, %v4451
    %v5236 = vpack.c.b16 %v4460, %v4452
    %v5237 = vpack.c.b16 %v4469, %v4461
    %v5238 = vpack.c.b16 %v4470, %v4462
    %v5239 = vpack.c.b16 %v4471, %v4463
    %v5240 = vpack.c.b16 %v4472, %v4464
    %v5241 = vpack.c.b16 %v4473, %v4465
    %v5242 = vpack.c.b16 %v4474, %v4466
    %v5243 = vpack.c.b16 %v4475, %v4467
    %v5244 = vpack.c.b16 %v4476, %v4468
    %v5245 = vpack.c.b16 %v4485, %v4477
    %v5246 = vpack.c.b16 %v4486, %v4478
    %v5247 = vpack.c.b16 %v4487, %v4479
    %v5248 = vpack.c.b16 %v4488, %v4480
    %v5249 = vpack.c.b16 %v4489, %v4481
    %v5250 = vpack.c.b16 %v4490, %v4482
    %v5251 = vpack.c.b16 %v4491, %v4483
    %v5252 = vpack.c.b16 %v4492, %v4484
    %v5253 = vpack.c.b16 %v4501, %v4493
    %v5254 = vpack.c.b16 %v4502, %v4494
    %v5255 = vpack.c.b16 %v4503, %v4495
    %v5256 = vpack.c.b16 %v4504, %v4496
    %v5257 = vpack.c.b16 %v4505, %v4497
    %v5258 = vpack.c.b16 %v4506, %v4498
    %v5259 = vpack.c.b16 %v4507, %v4499
    %v5260 = vpack.c.b16 %v4508, %v4500
    %v5261 = vpack.c.b16 %v4517, %v4509
    %v5262 = vpack.c.b16 %v4518, %v4510
    %v5263 = vpack.c.b16 %v4519, %v4511
    %v5264 = vpack.c.b16 %v4520, %v4512
    %v5265 = vpack.c.b16 %v4521, %v4513
    %v5266 = vpack.c.b16 %v4522, %v4514
    %v5267 = vpack.c.b16 %v4523, %v4515
    %v5268 = vpack.c.b16 %v4524, %v4516
    %v5269 = vpack.c.b16 %v4533, %v4525
    %v5270 = vpack.c.b16 %v4534, %v4526
    %v5271 = vpack.c.b16 %v4535, %v4527
    %v5272 = vpack.c.b16 %v4536, %v4528
    %v5273 = vpack.c.b16 %v4537, %v4529
    %v5274 = vpack.c.b16 %v4538, %v4530
    %v5275 = vpack.c.b16 %v4539, %v4531
    %v5276 = vpack.c.b16 %v4540, %v4532
    %v5277 = vpack.c.b16 %v4549, %v4541
    %v5278 = vpack.c.b16 %v4550, %v4542
    %v5279 = vpack.c.b16 %v4551, %v4543
    %v5280 = vpack.c.b16 %v4552, %v4544
    %v5281 = vpack.c.b16 %v4553, %v4545
    %v5282 = vpack.c.b16 %v4554, %v4546
    %v5283 = vpack.c.b16 %v4555, %v4547
    %v5284 = vpack.c.b16 %v4556, %v4548
    %v5285 = vpack.c.b16 %v4565, %v4557
    %v5286 = vpack.c.b16 %v4566, %v4558
    %v5287 = vpack.c.b16 %v4567, %v4559
    %v5288 = vpack.c.b16 %v4568, %v4560
    %v5289 = vpack.c.b16 %v4569, %v4561
    %v5290 = vpack.c.b16 %v4570, %v4562
    %v5291 = vpack.c.b16 %v4571, %v4563
    %v5292 = vpack.c.b16 %v4572, %v4564
    %v5293 = vpack.c.b16 %v4581, %v4573
    %v5294 = vpack.c.b16 %v4582, %v4574
    %v5295 = vpack.c.b16 %v4583, %v4575
    %v5296 = vpack.c.b16 %v4584, %v4576
    %v5297 = vpack.c.b16 %v4585, %v4577
    %v5298 = vpack.c.b16 %v4586, %v4578
    %v5299 = vpack.c.b16 %v4587, %v4579
    %v5300 = vpack.c.b16 %v4588, %v4580
    %v5301 = vpack.c.b16 %v4597, %v4589
    %v5302 = vpack.c.b16 %v4598, %v4590
    %v5303 = vpack.c.b16 %v4599, %v4591
    %v5304 = vpack.c.b16 %v4600, %v4592
    %v5305 = vpack.c.b16 %v4601, %v4593
    %v5306 = vpack.c.b16 %v4602, %v4594
    %v5307 = vpack.c.b16 %v4603, %v4595
    %v5308 = vpack.c.b16 %v4604, %v4596
    %v5309 = vpack.c.b16 %v4613, %v4605
    %v5310 = vpack.c.b16 %v4614, %v4606
    %v5311 = vpack.c.b16 %v4615, %v4607
    %v5312 = vpack.c.b16 %v4616, %v4608
    %v5313 = vpack.c.b16 %v4617, %v4609
    %v5314 = vpack.c.b16 %v4618, %v4610
    %v5315 = vpack.c.b16 %v4619, %v4611
    %v5316 = vpack.c.b16 %v4620, %v4612
    %v5317 = vpack.c.b16 %v4629, %v4621
    %v5318 = vpack.c.b16 %v4630, %v4622
    %v5319 = vpack.c.b16 %v4631, %v4623
    %v5320 = vpack.c.b16 %v4632, %v4624
    %v5321 = vpack.c.b16 %v4633, %v4625
    %v5322 = vpack.c.b16 %v4634, %v4626
    %v5323 = vpack.c.b16 %v4635, %v4627
    %v5324 = vpack.c.b16 %v4636, %v4628
    %v5325 = vpack.c.b16 %v4645, %v4637
    %v5326 = vpack.c.b16 %v4646, %v4638
    %v5327 = vpack.c.b16 %v4647, %v4639
    %v5328 = vpack.c.b16 %v4648, %v4640
    %v5329 = vpack.c.b16 %v4649, %v4641
    %v5330 = vpack.c.b16 %v4650, %v4642
    %v5331 = vpack.c.b16 %v4651, %v4643
    %v5332 = vpack.c.b16 %v4652, %v4644
    %v5333 = vpack.c.b16 %v4661, %v4653
    %v5334 = vpack.c.b16 %v4662, %v4654
    %v5335 = vpack.c.b16 %v4663, %v4655
    %v5336 = vpack.c.b16 %v4664, %v4656
    %v5337 = vpack.c.b16 %v4665, %v4657
    %v5338 = vpack.c.b16 %v4666, %v4658
    %v5339 = vpack.c.b16 %v4667, %v4659
    %v5340 = vpack.c.b16 %v4668, %v4660
    %v5341 = vpack.c.b16 %v4677, %v4669
    %v5342 = vpack.c.b16 %v4678, %v4670
    %v5343 = vpack.c.b16 %v4679, %v4671
    %v5344 = vpack.c.b16 %v4680, %v4672
    %v5345 = vpack.c.b16 %v4681, %v4673
    %v5346 = vpack.c.b16 %v4682, %v4674
    %v5347 = vpack.c.b16 %v4683, %v4675
    %v5348 = vpack.c.b16 %v4684, %v4676
    %v5349 = vpack.c.b16 %v4693, %v4685
    %v5350 = vpack.c.b16 %v4694, %v4686
    %v5351 = vpack.c.b16 %v4695, %v4687
    %v5352 = vpack.c.b16 %v4696, %v4688
    %v5353 = vpack.c.b16 %v4697, %v4689
    %v5354 = vpack.c.b16 %v4698, %v4690
    %v5355 = vpack.c.b16 %v4699, %v4691
    %v5356 = vpack.c.b16 %v4700, %v4692
    %v5357 = vpack.c.b16 %v4709, %v4701
    %v5358 = vpack.c.b16 %v4710, %v4702
    %v5359 = vpack.c.b16 %v4711, %v4703
    %v5360 = vpack.c.b16 %v4712, %v4704
    %v5361 = vpack.c.b16 %v4713, %v4705
    %v5362 = vpack.c.b16 %v4714, %v4706
    %v5363 = vpack.c.b16 %v4715, %v4707
    %v5364 = vpack.c.b16 %v4716, %v4708
    %v5365 = vpack.c.b16 %v4725, %v4717
    %v5366 = vpack.c.b16 %v4726, %v4718
    %v5367 = vpack.c.b16 %v4727, %v4719
    %v5368 = vpack.c.b16 %v4728, %v4720
    %v5369 = vpack.c.b16 %v4729, %v4721
    %v5370 = vpack.c.b16 %v4730, %v4722
    %v5371 = vpack.c.b16 %v4731, %v4723
    %v5372 = vpack.c.b16 %v4732, %v4724
    %v5373 = vpack.c.b16 %v4741, %v4733
    %v5374 = vpack.c.b16 %v4742, %v4734
    %v5375 = vpack.c.b16 %v4743, %v4735
    %v5376 = vpack.c.b16 %v4744, %v4736
    %v5377 = vpack.c.b16 %v4745, %v4737
    %v5378 = vpack.c.b16 %v4746, %v4738
    %v5379 = vpack.c.b16 %v4747, %v4739
    %v5380 = vpack.c.b16 %v4748, %v4740
    %v5381 = vpack.c.b16 %v4757, %v4749
    %v5382 = vpack.c.b16 %v4758, %v4750
    %v5383 = vpack.c.b16 %v4759, %v4751
    %v5384 = vpack.c.b16 %v4760, %v4752
    %v5385 = vpack.c.b16 %v4761, %v4753
    %v5386 = vpack.c.b16 %v4762, %v4754
    %v5387 = vpack.c.b16 %v4763, %v4755
    %v5388 = vpack.c.b16 %v4764, %v4756
    %v5389 = vpack.c.b16 %v4773, %v4765
    %v5390 = vpack.c.b16 %v4774, %v4766
    %v5391 = vpack.c.b16 %v4775, %v4767
    %v5392 = vpack.c.b16 %v4776, %v4768
    %v5393 = vpack.c.b16 %v4777, %v4769
    %v5394 = vpack.c.b16 %v4778, %v4770
    %v5395 = vpack.c.b16 %v4779, %v4771
    %v5396 = vpack.c.b16 %v4780, %v4772
    %v5397 = vpack.c.b16 %v4789, %v4781
    %v5398 = vpack.c.b16 %v4790, %v4782
    %v5399 = vpack.c.b16 %v4791, %v4783
    %v5400 = vpack.c.b16 %v4792, %v4784
    %v5401 = vpack.c.b16 %v4793, %v4785
    %v5402 = vpack.c.b16 %v4794, %v4786
    %v5403 = vpack.c.b16 %v4795, %v4787
    %v5404 = vpack.c.b16 %v4796, %v4788
    %v5405 = vpack.c.b16 %v4805, %v4797
    %v5406 = vpack.c.b16 %v4806, %v4798
    %v5407 = vpack.c.b16 %v4807, %v4799
    %v5408 = vpack.c.b16 %v4808, %v4800
    %v5409 = vpack.c.b16 %v4809, %v4801
    %v5410 = vpack.c.b16 %v4810, %v4802
    %v5411 = vpack.c.b16 %v4811, %v4803
    %v5412 = vpack.c.b16 %v4812, %v4804
    %v5413 = vpack.c.b16 %v4821, %v4813
    %v5414 = vpack.c.b16 %v4822, %v4814
    %v5415 = vpack.c.b16 %v4823, %v4815
    %v5416 = vpack.c.b16 %v4824, %v4816
    %v5417 = vpack.c.b16 %v4825, %v4817
    %v5418 = vpack.c.b16 %v4826, %v4818
    %v5419 = vpack.c.b16 %v4827, %v4819
    %v5420 = vpack.c.b16 %v4828, %v4820
    %v5421 = vpack.c.b16 %v4837, %v4829
    %v5422 = vpack.c.b16 %v4838, %v4830
    %v5423 = vpack.c.b16 %v4839, %v4831
    %v5424 = vpack.c.b16 %v4840, %v4832
    %v5425 = vpack.c.b16 %v4841, %v4833
    %v5426 = vpack.c.b16 %v4842, %v4834
    %v5427 = vpack.c.b16 %v4843, %v4835
    %v5428 = vpack.c.b16 %v4844, %v4836
    %v5429 = vpack.c.b16 %v4853, %v4845
    %v5430 = vpack.c.b16 %v4854, %v4846
    %v5431 = vpack.c.b16 %v4855, %v4847
    %v5432 = vpack.c.b16 %v4856, %v4848
    %v5433 = vpack.c.b16 %v4857, %v4849
    %v5434 = vpack.c.b16 %v4858, %v4850
    %v5435 = vpack.c.b16 %v4859, %v4851
    %v5436 = vpack.c.b16 %v4860, %v4852
    %v5437 = vpack.c.b16 %v4869, %v4861
    %v5438 = vpack.c.b16 %v4870, %v4862
    %v5439 = vpack.c.b16 %v4871, %v4863
    %v5440 = vpack.c.b16 %v4872, %v4864
    %v5441 = vpack.c.b16 %v4873, %v4865
    %v5442 = vpack.c.b16 %v4874, %v4866
    %v5443 = vpack.c.b16 %v4875, %v4867
    %v5444 = vpack.c.b16 %v4876, %v4868
    %v5445 = vpack.c.b16 %v4885, %v4877
    %v5446 = vpack.c.b16 %v4886, %v4878
    %v5447 = vpack.c.b16 %v4887, %v4879
    %v5448 = vpack.c.b16 %v4888, %v4880
    %v5449 = vpack.c.b16 %v4889, %v4881
    %v5450 = vpack.c.b16 %v4890, %v4882
    %v5451 = vpack.c.b16 %v4891, %v4883
    %v5452 = vpack.c.b16 %v4892, %v4884
    %v5453 = vpack.c.b16 %v4901, %v4893
    %v5454 = vpack.c.b16 %v4902, %v4894
    %v5455 = vpack.c.b16 %v4903, %v4895
    %v5456 = vpack.c.b16 %v4904, %v4896
    %v5457 = vpack.c.b16 %v4905, %v4897
    %v5458 = vpack.c.b16 %v4906, %v4898
    %v5459 = vpack.c.b16 %v4907, %v4899
    %v5460 = vpack.c.b16 %v4908, %v4900
    %v5461 = vpack.c.b16 %v4917, %v4909
    %v5462 = vpack.c.b16 %v4918, %v4910
    %v5463 = vpack.c.b16 %v4919, %v4911
    %v5464 = vpack.c.b16 %v4920, %v4912
    %v5465 = vpack.c.b16 %v4921, %v4913
    %v5466 = vpack.c.b16 %v4922, %v4914
    %v5467 = vpack.c.b16 %v4923, %v4915
    %v5468 = vpack.c.b16 %v4924, %v4916
    %v5469 = vpack.c.b16 %v4933, %v4925
    %v5470 = vpack.c.b16 %v4934, %v4926
    %v5471 = vpack.c.b16 %v4935, %v4927
    %v5472 = vpack.c.b16 %v4936, %v4928
    %v5473 = vpack.c.b16 %v4937, %v4929
    %v5474 = vpack.c.b16 %v4938, %v4930
    %v5475 = vpack.c.b16 %v4939, %v4931
    %v5476 = vpack.c.b16 %v4940, %v4932
    %v5477 = vpack.c.b16 %v4949, %v4941
    %v5478 = vpack.c.b16 %v4950, %v4942
    %v5479 = vpack.c.b16 %v4951, %v4943
    %v5480 = vpack.c.b16 %v4952, %v4944
    %v5481 = vpack.c.b16 %v4953, %v4945
    %v5482 = vpack.c.b16 %v4954, %v4946
    %v5483 = vpack.c.b16 %v4955, %v4947
    %v5484 = vpack.c.b16 %v4956, %v4948
    %v5485 = vpack.c.b16 %v4965, %v4957
    %v5486 = vpack.c.b16 %v4966, %v4958
    %v5487 = vpack.c.b16 %v4967, %v4959
    %v5488 = vpack.c.b16 %v4968, %v4960
    %v5489 = vpack.c.b16 %v4969, %v4961
    %v5490 = vpack.c.b16 %v4970, %v4962
    %v5491 = vpack.c.b16 %v4971, %v4963
    %v5492 = vpack.c.b16 %v4972, %v4964
    %v5493 = vpack.c.b16 %v4981, %v4973
    %v5494 = vpack.c.b16 %v4982, %v4974
    %v5495 = vpack.c.b16 %v4983, %v4975
    %v5496 = vpack.c.b16 %v4984, %v4976
    %v5497 = vpack.c.b16 %v4985, %v4977
    %v5498 = vpack.c.b16 %v4986, %v4978
    %v5499 = vpack.c.b16 %v4987, %v4979
    %v5500 = vpack.c.b16 %v4988, %v4980
    %6013 = vmatprep.subr.bf16.mxu0 %v4990
    %6014 = vmatpush1.bf16.msra.mxu0 %v4989
    %6015 = vmatprep.subr.bf16.mxu0 %v4998
    %6016 = vmatpush1.bf16.msra.mxu0 %v4997
    %6017 = vmatprep.subr.bf16.mxu0 %v5006
    %6018 = vmatpush1.bf16.msra.mxu0 %v5005
    %6019 = vmatprep.subr.bf16.mxu0 %v5014
    %6020 = vmatpush1.bf16.msra.mxu0 %v5013
    %6021 = vmatprep.subr.bf16.mxu0 %v5022
    %6022 = vmatpush1.bf16.msra.mxu0 %v5021
    %6023 = vmatprep.subr.bf16.mxu0 %v5030
    %6024 = vmatpush1.bf16.msra.mxu0 %v5029
    %6025 = vmatprep.subr.bf16.mxu0 %v5038
    %6026 = vmatpush1.bf16.msra.mxu0 %v5037
    %6027 = vmatprep.subr.bf16.mxu0 %v5046
    %6028 = vmatpush1.bf16.msra.mxu0 %v5045
    %6029 = vmatprep.subr.bf16.mxu0 %v5054
    %6030 = vmatpush1.bf16.msra.mxu0 %v5053
    %6031 = vmatprep.subr.bf16.mxu0 %v5062
    %6032 = vmatpush1.bf16.msra.mxu0 %v5061
    %6033 = vmatprep.subr.bf16.mxu0 %v5070
    %6034 = vmatpush1.bf16.msra.mxu0 %v5069
    %6035 = vmatprep.subr.bf16.mxu0 %v5078
    %6036 = vmatpush1.bf16.msra.mxu0 %v5077
    %6037 = vmatprep.subr.bf16.mxu0 %v5086
    %6038 = vmatpush1.bf16.msra.mxu0 %v5085
    %6039 = vmatprep.subr.bf16.mxu0 %v5094
    %6040 = vmatpush1.bf16.msra.mxu0 %v5093
    %6041 = vmatprep.subr.bf16.mxu0 %v5102
    %6042 = vmatpush1.bf16.msra.mxu0 %v5101
    %6043 = vmatprep.subr.bf16.mxu0 %v5110
    %6044 = vmatpush1.bf16.msra.mxu0 %v5109
    %6045 = vmatprep.mubr.bf16.mxu0 %v3438
    %6046 = vmatmul.mubr.bf16.gmra.mrb[0].mxu0 %v3437
    %v6047 = vpop.f32.mrb[0].mxu0
    %v6048 = vadd.f32 0.0, %v6047
    %v6049 = vpop.f32.mrb[0].mxu0
    %v6050 = vadd.f32 0.0, %v6049
    %v6051 = vpop.f32.mrb[0].mxu0
    %v6052 = vpop.f32.mrb[0].mxu0
    %6053 = vdwg.mxu0
    %6054 = vmatprep.subr.bf16.mxu0 %v5118
    %6055 = vmatpush1.bf16.msra.mxu0 %v5117
    %6056 = vmatprep.subr.bf16.mxu0 %v5126
    %6057 = vmatpush1.bf16.msra.mxu0 %v5125
    %6058 = vmatprep.subr.bf16.mxu0 %v5134
    %6059 = vmatpush1.bf16.msra.mxu0 %v5133
    %6060 = vmatprep.subr.bf16.mxu0 %v5142
    %6061 = vmatpush1.bf16.msra.mxu0 %v5141
    %6062 = vmatprep.subr.bf16.mxu0 %v5150
    %6063 = vmatpush1.bf16.msra.mxu0 %v5149
    %6064 = vmatprep.subr.bf16.mxu0 %v5158
    %6065 = vmatpush1.bf16.msra.mxu0 %v5157
    %6066 = vmatprep.subr.bf16.mxu0 %v5166
    %6067 = vmatpush1.bf16.msra.mxu0 %v5165
    %6068 = vmatprep.subr.bf16.mxu0 %v5174
    %6069 = vmatpush1.bf16.msra.mxu0 %v5173
    %6070 = vmatprep.subr.bf16.mxu0 %v5182
    %6071 = vmatpush1.bf16.msra.mxu0 %v5181
    %6072 = vmatprep.subr.bf16.mxu0 %v5190
    %6073 = vmatpush1.bf16.msra.mxu0 %v5189
    %6074 = vmatprep.subr.bf16.mxu0 %v5198
    %6075 = vmatpush1.bf16.msra.mxu0 %v5197
    %6076 = vmatprep.subr.bf16.mxu0 %v5206
    %6077 = vmatpush1.bf16.msra.mxu0 %v5205
    %6078 = vmatprep.subr.bf16.mxu0 %v5214
    %6079 = vmatpush1.bf16.msra.mxu0 %v5213
    %6080 = vmatprep.subr.bf16.mxu0 %v5222
    %6081 = vmatpush1.bf16.msra.mxu0 %v5221
    %6082 = vmatprep.subr.bf16.mxu0 %v5230
    %6083 = vmatpush1.bf16.msra.mxu0 %v5229
    %6084 = vmatprep.subr.bf16.mxu0 %v5238
    %6085 = vmatpush1.bf16.msra.mxu0 %v5237
    %6086 = vmatprep.mubr.bf16.mxu0 %v3440
    %6087 = vmatmul.mubr.bf16.gmra.mrb[0].mxu0 %v3439
    %v6088 = vpop.f32.mrb[0].mxu0
    %v6089 = vadd.f32 %v6048, %v6088
    %v6090 = vpop.f32.mrb[0].mxu0
    %v6091 = vadd.f32 %v6050, %v6090
    %v6092 = vpop.f32.mrb[0].mxu0
    %v6093 = vpop.f32.mrb[0].mxu0
    %6094 = vdwg.mxu0
    %6095 = vmatprep.subr.bf16.mxu0 %v5246
    %6096 = vmatpush1.bf16.msra.mxu0 %v5245
    %6097 = vmatprep.subr.bf16.mxu0 %v5254
    %6098 = vmatpush1.bf16.msra.mxu0 %v5253
    %6099 = vmatprep.subr.bf16.mxu0 %v5262
    %6100 = vmatpush1.bf16.msra.mxu0 %v5261
    %6101 = vmatprep.subr.bf16.mxu0 %v5270
    %6102 = vmatpush1.bf16.msra.mxu0 %v5269
    %6103 = vmatprep.subr.bf16.mxu0 %v5278
    %6104 = vmatpush1.bf16.msra.mxu0 %v5277
    %6105 = vmatprep.subr.bf16.mxu0 %v5286
    %6106 = vmatpush1.bf16.msra.mxu0 %v5285
    %6107 = vmatprep.subr.bf16.mxu0 %v5294
    %6108 = vmatpush1.bf16.msra.mxu0 %v5293
    %6109 = vmatprep.subr.bf16.mxu0 %v5302
    %6110 = vmatpush1.bf16.msra.mxu0 %v5301
    %6111 = vmatprep.subr.bf16.mxu0 %v5310
    %6112 = vmatpush1.bf16.msra.mxu0 %v5309
    %6113 = vmatprep.subr.bf16.mxu0 %v5318
    %6114 = vmatpush1.bf16.msra.mxu0 %v5317
    %6115 = vmatprep.subr.bf16.mxu0 %v5326
    %6116 = vmatpush1.bf16.msra.mxu0 %v5325
    %6117 = vmatprep.subr.bf16.mxu0 %v5334
    %6118 = vmatpush1.bf16.msra.mxu0 %v5333
    %6119 = vmatprep.subr.bf16.mxu0 %v5342
    %6120 = vmatpush1.bf16.msra.mxu0 %v5341
    %6121 = vmatprep.subr.bf16.mxu0 %v5350
    %6122 = vmatpush1.bf16.msra.mxu0 %v5349
    %6123 = vmatprep.subr.bf16.mxu0 %v5358
    %6124 = vmatpush1.bf16.msra.mxu0 %v5357
    %6125 = vmatprep.subr.bf16.mxu0 %v5366
    %6126 = vmatpush1.bf16.msra.mxu0 %v5365
    %6127 = vmatprep.mubr.bf16.mxu0 %v3442
    %6128 = vmatmul.mubr.bf16.gmra.mrb[0].mxu0 %v3441
    %v6129 = vpop.f32.mrb[0].mxu0
    %v6130 = vadd.f32 %v6089, %v6129
    %v6131 = vpop.f32.mrb[0].mxu0
    %v6132 = vadd.f32 %v6091, %v6131
    %v6133 = vpop.f32.mrb[0].mxu0
    %v6134 = vpop.f32.mrb[0].mxu0
    %6135 = vdwg.mxu0
    %6136 = vmatprep.subr.bf16.mxu0 %v5374
    %6137 = vmatpush1.bf16.msra.mxu0 %v5373
    %6138 = vmatprep.subr.bf16.mxu0 %v5382
    %6139 = vmatpush1.bf16.msra.mxu0 %v5381
    %6140 = vmatprep.subr.bf16.mxu0 %v5390
    %6141 = vmatpush1.bf16.msra.mxu0 %v5389
    %6142 = vmatprep.subr.bf16.mxu0 %v5398
    %6143 = vmatpush1.bf16.msra.mxu0 %v5397
    %6144 = vmatprep.subr.bf16.mxu0 %v5406
    %6145 = vmatpush1.bf16.msra.mxu0 %v5405
    %6146 = vmatprep.subr.bf16.mxu0 %v5414
    %6147 = vmatpush1.bf16.msra.mxu0 %v5413
    %6148 = vmatprep.subr.bf16.mxu0 %v5422
    %6149 = vmatpush1.bf16.msra.mxu0 %v5421
    %6150 = vmatprep.subr.bf16.mxu0 %v5430
    %6151 = vmatpush1.bf16.msra.mxu0 %v5429
    %6152 = vmatprep.subr.bf16.mxu0 %v5438
    %6153 = vmatpush1.bf16.msra.mxu0 %v5437
    %6154 = vmatprep.subr.bf16.mxu0 %v5446
    %6155 = vmatpush1.bf16.msra.mxu0 %v5445
    %6156 = vmatprep.subr.bf16.mxu0 %v5454
    %6157 = vmatpush1.bf16.msra.mxu0 %v5453
    %6158 = vmatprep.subr.bf16.mxu0 %v5462
    %6159 = vmatpush1.bf16.msra.mxu0 %v5461
    %6160 = vmatprep.subr.bf16.mxu0 %v5470
    %6161 = vmatpush1.bf16.msra.mxu0 %v5469
    %6162 = vmatprep.subr.bf16.mxu0 %v5478
    %6163 = vmatpush1.bf16.msra.mxu0 %v5477
    %6164 = vmatprep.subr.bf16.mxu0 %v5486
    %6165 = vmatpush1.bf16.msra.mxu0 %v5485
    %6166 = vmatprep.subr.bf16.mxu0 %v5494
    %6167 = vmatpush1.bf16.msra.mxu0 %v5493
    %6168 = vmatprep.mubr.bf16.mxu0 %v3444
    %6169 = vmatmul.mubr.bf16.gmra.mrb[0].mxu0 %v3443
    %v6170 = vpop.f32.mrb[0].mxu0
    %v6171 = vadd.f32 %v6130, %v6170
    %v6172 = vpop.f32.mrb[0].mxu0
    %v6173 = vadd.f32 %v6132, %v6172
    %v6174 = vpop.f32.mrb[0].mxu0
    %v6175 = vpop.f32.mrb[0].mxu0
    %6176 = vdwg.mxu0
    %6177 = vmatprep.subr.bf16.mxu0 %v4992
    %6178 = vmatpush1.bf16.msra.mxu0 %v4991
    %6179 = vmatprep.subr.bf16.mxu0 %v5000
    %6180 = vmatpush1.bf16.msra.mxu0 %v4999
    %6181 = vmatprep.subr.bf16.mxu0 %v5008
    %6182 = vmatpush1.bf16.msra.mxu0 %v5007
    %6183 = vmatprep.subr.bf16.mxu0 %v5016
    %6184 = vmatpush1.bf16.msra.mxu0 %v5015
    %6185 = vmatprep.subr.bf16.mxu0 %v5024
    %6186 = vmatpush1.bf16.msra.mxu0 %v5023
    %6187 = vmatprep.subr.bf16.mxu0 %v5032
    %6188 = vmatpush1.bf16.msra.mxu0 %v5031
    %6189 = vmatprep.subr.bf16.mxu0 %v5040
    %6190 = vmatpush1.bf16.msra.mxu0 %v5039
    %6191 = vmatprep.subr.bf16.mxu0 %v5048
    %6192 = vmatpush1.bf16.msra.mxu0 %v5047
    %6193 = vmatprep.subr.bf16.mxu0 %v5056
    %6194 = vmatpush1.bf16.msra.mxu0 %v5055
    %6195 = vmatprep.subr.bf16.mxu0 %v5064
    %6196 = vmatpush1.bf16.msra.mxu0 %v5063
    %6197 = vmatprep.subr.bf16.mxu0 %v5072
    %6198 = vmatpush1.bf16.msra.mxu0 %v5071
    %6199 = vmatprep.subr.bf16.mxu0 %v5080
    %6200 = vmatpush1.bf16.msra.mxu0 %v5079
    %6201 = vmatprep.subr.bf16.mxu0 %v5088
    %6202 = vmatpush1.bf16.msra.mxu0 %v5087
    %6203 = vmatprep.subr.bf16.mxu0 %v5096
    %6204 = vmatpush1.bf16.msra.mxu0 %v5095
    %6205 = vmatprep.subr.bf16.mxu0 %v5104
    %6206 = vmatpush1.bf16.msra.mxu0 %v5103
    %6207 = vmatprep.subr.bf16.mxu0 %v5112
    %6208 = vmatpush1.bf16.msra.mxu0 %v5111
    %6209 = vmatprep.mubr.bf16.mxu0 %v3438
    %6210 = vmatmul.mubr.bf16.gmra.mrb[0].mxu0 %v3437
    %v6211 = vpop.f32.mrb[0].mxu0
    %v6212 = vadd.f32 0.0, %v6211
    %v6213 = vpop.f32.mrb[0].mxu0
    %v6214 = vadd.f32 0.0, %v6213
    %v6215 = vpop.f32.mrb[0].mxu0
    %v6216 = vpop.f32.mrb[0].mxu0
    %6217 = vdwg.mxu0
    %6218 = vmatprep.subr.bf16.mxu0 %v5120
    %6219 = vmatpush1.bf16.msra.mxu0 %v5119
    %6220 = vmatprep.subr.bf16.mxu0 %v5128
    %6221 = vmatpush1.bf16.msra.mxu0 %v5127
    %6222 = vmatprep.subr.bf16.mxu0 %v5136
    %6223 = vmatpush1.bf16.msra.mxu0 %v5135
    %6224 = vmatprep.subr.bf16.mxu0 %v5144
    %6225 = vmatpush1.bf16.msra.mxu0 %v5143
    %6226 = vmatprep.subr.bf16.mxu0 %v5152
    %6227 = vmatpush1.bf16.msra.mxu0 %v5151
    %6228 = vmatprep.subr.bf16.mxu0 %v5160
    %6229 = vmatpush1.bf16.msra.mxu0 %v5159
    %6230 = vmatprep.subr.bf16.mxu0 %v5168
    %6231 = vmatpush1.bf16.msra.mxu0 %v5167
    %6232 = vmatprep.subr.bf16.mxu0 %v5176
    %6233 = vmatpush1.bf16.msra.mxu0 %v5175
    %6234 = vmatprep.subr.bf16.mxu0 %v5184
    %6235 = vmatpush1.bf16.msra.mxu0 %v5183
    %6236 = vmatprep.subr.bf16.mxu0 %v5192
    %6237 = vmatpush1.bf16.msra.mxu0 %v5191
    %6238 = vmatprep.subr.bf16.mxu0 %v5200
    %6239 = vmatpush1.bf16.msra.mxu0 %v5199
    %6240 = vmatprep.subr.bf16.mxu0 %v5208
    %6241 = vmatpush1.bf16.msra.mxu0 %v5207
    %6242 = vmatprep.subr.bf16.mxu0 %v5216
    %6243 = vmatpush1.bf16.msra.mxu0 %v5215
    %6244 = vmatprep.subr.bf16.mxu0 %v5224
    %6245 = vmatpush1.bf16.msra.mxu0 %v5223
    %6246 = vmatprep.subr.bf16.mxu0 %v5232
    %6247 = vmatpush1.bf16.msra.mxu0 %v5231
    %6248 = vmatprep.subr.bf16.mxu0 %v5240
    %6249 = vmatpush1.bf16.msra.mxu0 %v5239
    %6250 = vmatprep.mubr.bf16.mxu0 %v3440
    %6251 = vmatmul.mubr.bf16.gmra.mrb[0].mxu0 %v3439
    %v6252 = vpop.f32.mrb[0].mxu0
    %v6253 = vadd.f32 %v6212, %v6252
    %v6254 = vpop.f32.mrb[0].mxu0
    %v6255 = vadd.f32 %v6214, %v6254
    %v6256 = vpop.f32.mrb[0].mxu0
    %v6257 = vpop.f32.mrb[0].mxu0
    %6258 = vdwg.mxu0
    %6259 = vmatprep.subr.bf16.mxu0 %v5248
    %6260 = vmatpush1.bf16.msra.mxu0 %v5247
    %6261 = vmatprep.subr.bf16.mxu0 %v5256
    %6262 = vmatpush1.bf16.msra.mxu0 %v5255
    %6263 = vmatprep.subr.bf16.mxu0 %v5264
    %6264 = vmatpush1.bf16.msra.mxu0 %v5263
    %6265 = vmatprep.subr.bf16.mxu0 %v5272
    %6266 = vmatpush1.bf16.msra.mxu0 %v5271
    %6267 = vmatprep.subr.bf16.mxu0 %v5280
    %6268 = vmatpush1.bf16.msra.mxu0 %v5279
    %6269 = vmatprep.subr.bf16.mxu0 %v5288
    %6270 = vmatpush1.bf16.msra.mxu0 %v5287
    %6271 = vmatprep.subr.bf16.mxu0 %v5296
    %6272 = vmatpush1.bf16.msra.mxu0 %v5295
    %6273 = vmatprep.subr.bf16.mxu0 %v5304
    %6274 = vmatpush1.bf16.msra.mxu0 %v5303
    %6275 = vmatprep.subr.bf16.mxu0 %v5312
    %6276 = vmatpush1.bf16.msra.mxu0 %v5311
    %6277 = vmatprep.subr.bf16.mxu0 %v5320
    %6278 = vmatpush1.bf16.msra.mxu0 %v5319
    %6279 = vmatprep.subr.bf16.mxu0 %v5328
    %6280 = vmatpush1.bf16.msra.mxu0 %v5327
    %6281 = vmatprep.subr.bf16.mxu0 %v5336
    %6282 = vmatpush1.bf16.msra.mxu0 %v5335
    %6283 = vmatprep.subr.bf16.mxu0 %v5344
    %6284 = vmatpush1.bf16.msra.mxu0 %v5343
    %6285 = vmatprep.subr.bf16.mxu0 %v5352
    %6286 = vmatpush1.bf16.msra.mxu0 %v5351
    %6287 = vmatprep.subr.bf16.mxu0 %v5360
    %6288 = vmatpush1.bf16.msra.mxu0 %v5359
    %6289 = vmatprep.subr.bf16.mxu0 %v5368
    %6290 = vmatpush1.bf16.msra.mxu0 %v5367
    %6291 = vmatprep.mubr.bf16.mxu0 %v3442
    %6292 = vmatmul.mubr.bf16.gmra.mrb[0].mxu0 %v3441
    %v6293 = vpop.f32.mrb[0].mxu0
    %v6294 = vadd.f32 %v6253, %v6293
    %v6295 = vpop.f32.mrb[0].mxu0
    %v6296 = vadd.f32 %v6255, %v6295
    %v6297 = vpop.f32.mrb[0].mxu0
    %v6298 = vpop.f32.mrb[0].mxu0
    %6299 = vdwg.mxu0
    %6300 = vmatprep.subr.bf16.mxu0 %v5376
    %6301 = vmatpush1.bf16.msra.mxu0 %v5375
    %6302 = vmatprep.subr.bf16.mxu0 %v5384
    %6303 = vmatpush1.bf16.msra.mxu0 %v5383
    %6304 = vmatprep.subr.bf16.mxu0 %v5392
    %6305 = vmatpush1.bf16.msra.mxu0 %v5391
    %6306 = vmatprep.subr.bf16.mxu0 %v5400
    %6307 = vmatpush1.bf16.msra.mxu0 %v5399
    %6308 = vmatprep.subr.bf16.mxu0 %v5408
    %6309 = vmatpush1.bf16.msra.mxu0 %v5407
    %6310 = vmatprep.subr.bf16.mxu0 %v5416
    %6311 = vmatpush1.bf16.msra.mxu0 %v5415
    %6312 = vmatprep.subr.bf16.mxu0 %v5424
    %6313 = vmatpush1.bf16.msra.mxu0 %v5423
    %6314 = vmatprep.subr.bf16.mxu0 %v5432
    %6315 = vmatpush1.bf16.msra.mxu0 %v5431
    %6316 = vmatprep.subr.bf16.mxu0 %v5440
    %6317 = vmatpush1.bf16.msra.mxu0 %v5439
    %6318 = vmatprep.subr.bf16.mxu0 %v5448
    %6319 = vmatpush1.bf16.msra.mxu0 %v5447
    %6320 = vmatprep.subr.bf16.mxu0 %v5456
    %6321 = vmatpush1.bf16.msra.mxu0 %v5455
    %6322 = vmatprep.subr.bf16.mxu0 %v5464
    %6323 = vmatpush1.bf16.msra.mxu0 %v5463
    %6324 = vmatprep.subr.bf16.mxu0 %v5472
    %6325 = vmatpush1.bf16.msra.mxu0 %v5471
    %6326 = vmatprep.subr.bf16.mxu0 %v5480
    %6327 = vmatpush1.bf16.msra.mxu0 %v5479
    %6328 = vmatprep.subr.bf16.mxu0 %v5488
    %6329 = vmatpush1.bf16.msra.mxu0 %v5487
    %6330 = vmatprep.subr.bf16.mxu0 %v5496
    %6331 = vmatpush1.bf16.msra.mxu0 %v5495
    %6332 = vmatprep.mubr.bf16.mxu0 %v3444
    %6333 = vmatmul.mubr.bf16.gmra.mrb[0].mxu0 %v3443
    %v6334 = vpop.f32.mrb[0].mxu0
    %v6335 = vadd.f32 %v6294, %v6334
    %v6336 = vpop.f32.mrb[0].mxu0
    %v6337 = vadd.f32 %v6296, %v6336
    %v6338 = vpop.f32.mrb[0].mxu0
    %v6339 = vpop.f32.mrb[0].mxu0
    %6340 = vdwg.mxu0
    %6341 = vmatprep.subr.bf16.mxu0 %v4994
    %6342 = vmatpush1.bf16.msra.mxu0 %v4993
    %6343 = vmatprep.subr.bf16.mxu0 %v5002
    %6344 = vmatpush1.bf16.msra.mxu0 %v5001
    %6345 = vmatprep.subr.bf16.mxu0 %v5010
    %6346 = vmatpush1.bf16.msra.mxu0 %v5009
    %6347 = vmatprep.subr.bf16.mxu0 %v5018
    %6348 = vmatpush1.bf16.msra.mxu0 %v5017
    %6349 = vmatprep.subr.bf16.mxu0 %v5026
    %6350 = vmatpush1.bf16.msra.mxu0 %v5025
    %6351 = vmatprep.subr.bf16.mxu0 %v5034
    %6352 = vmatpush1.bf16.msra.mxu0 %v5033
    %6353 = vmatprep.subr.bf16.mxu0 %v5042
    %6354 = vmatpush1.bf16.msra.mxu0 %v5041
    %6355 = vmatprep.subr.bf16.mxu0 %v5050
    %6356 = vmatpush1.bf16.msra.mxu0 %v5049
    %6357 = vmatprep.subr.bf16.mxu0 %v5058
    %6358 = vmatpush1.bf16.msra.mxu0 %v5057
    %6359 = vmatprep.subr.bf16.mxu0 %v5066
    %6360 = vmatpush1.bf16.msra.mxu0 %v5065
    %6361 = vmatprep.subr.bf16.mxu0 %v5074
    %6362 = vmatpush1.bf16.msra.mxu0 %v5073
    %6363 = vmatprep.subr.bf16.mxu0 %v5082
    %6364 = vmatpush1.bf16.msra.mxu0 %v5081
    %6365 = vmatprep.subr.bf16.mxu0 %v5090
    %6366 = vmatpush1.bf16.msra.mxu0 %v5089
    %6367 = vmatprep.subr.bf16.mxu0 %v5098
    %6368 = vmatpush1.bf16.msra.mxu0 %v5097
    %6369 = vmatprep.subr.bf16.mxu0 %v5106
    %6370 = vmatpush1.bf16.msra.mxu0 %v5105
    %6371 = vmatprep.subr.bf16.mxu0 %v5114
    %6372 = vmatpush1.bf16.msra.mxu0 %v5113
    %6373 = vmatprep.mubr.bf16.mxu0 %v3438
    %6374 = vmatmul.mubr.bf16.gmra.mrb[0].mxu0 %v3437
    %v6375 = vpop.f32.mrb[0].mxu0
    %v6376 = vadd.f32 0.0, %v6375
    %v6377 = vpop.f32.mrb[0].mxu0
    %v6378 = vadd.f32 0.0, %v6377
    %v6379 = vpop.f32.mrb[0].mxu0
    %v6380 = vpop.f32.mrb[0].mxu0
    %6381 = vdwg.mxu0
    %6382 = vmatprep.subr.bf16.mxu0 %v5122
    %6383 = vmatpush1.bf16.msra.mxu0 %v5121
    %6384 = vmatprep.subr.bf16.mxu0 %v5130
    %6385 = vmatpush1.bf16.msra.mxu0 %v5129
    %6386 = vmatprep.subr.bf16.mxu0 %v5138
    %6387 = vmatpush1.bf16.msra.mxu0 %v5137
    %6388 = vmatprep.subr.bf16.mxu0 %v5146
    %6389 = vmatpush1.bf16.msra.mxu0 %v5145
    %6390 = vmatprep.subr.bf16.mxu0 %v5154
    %6391 = vmatpush1.bf16.msra.mxu0 %v5153
    %6392 = vmatprep.subr.bf16.mxu0 %v5162
    %6393 = vmatpush1.bf16.msra.mxu0 %v5161
    %6394 = vmatprep.subr.bf16.mxu0 %v5170
    %6395 = vmatpush1.bf16.msra.mxu0 %v5169
    %6396 = vmatprep.subr.bf16.mxu0 %v5178
    %6397 = vmatpush1.bf16.msra.mxu0 %v5177
    %6398 = vmatprep.subr.bf16.mxu0 %v5186
    %6399 = vmatpush1.bf16.msra.mxu0 %v5185
    %6400 = vmatprep.subr.bf16.mxu0 %v5194
    %6401 = vmatpush1.bf16.msra.mxu0 %v5193
    %6402 = vmatprep.subr.bf16.mxu0 %v5202
    %6403 = vmatpush1.bf16.msra.mxu0 %v5201
    %6404 = vmatprep.subr.bf16.mxu0 %v5210
    %6405 = vmatpush1.bf16.msra.mxu0 %v5209
    %6406 = vmatprep.subr.bf16.mxu0 %v5218
    %6407 = vmatpush1.bf16.msra.mxu0 %v5217
    %6408 = vmatprep.subr.bf16.mxu0 %v5226
    %6409 = vmatpush1.bf16.msra.mxu0 %v5225
    %6410 = vmatprep.subr.bf16.mxu0 %v5234
    %6411 = vmatpush1.bf16.msra.mxu0 %v5233
    %6412 = vmatprep.subr.bf16.mxu0 %v5242
    %6413 = vmatpush1.bf16.msra.mxu0 %v5241
    %6414 = vmatprep.mubr.bf16.mxu0 %v3440
    %6415 = vmatmul.mubr.bf16.gmra.mrb[0].mxu0 %v3439
    %v6416 = vpop.f32.mrb[0].mxu0
    %v6417 = vadd.f32 %v6376, %v6416
    %v6418 = vpop.f32.mrb[0].mxu0
    %v6419 = vadd.f32 %v6378, %v6418
    %v6420 = vpop.f32.mrb[0].mxu0
    %v6421 = vpop.f32.mrb[0].mxu0
    %6422 = vdwg.mxu0
    %6423 = vmatprep.subr.bf16.mxu0 %v5250
    %6424 = vmatpush1.bf16.msra.mxu0 %v5249
    %6425 = vmatprep.subr.bf16.mxu0 %v5258
    %6426 = vmatpush1.bf16.msra.mxu0 %v5257
    %6427 = vmatprep.subr.bf16.mxu0 %v5266
    %6428 = vmatpush1.bf16.msra.mxu0 %v5265
    %6429 = vmatprep.subr.bf16.mxu0 %v5274
    %6430 = vmatpush1.bf16.msra.mxu0 %v5273
    %6431 = vmatprep.subr.bf16.mxu0 %v5282
    %6432 = vmatpush1.bf16.msra.mxu0 %v5281
    %6433 = vmatprep.subr.bf16.mxu0 %v5290
    %6434 = vmatpush1.bf16.msra.mxu0 %v5289
    %6435 = vmatprep.subr.bf16.mxu0 %v5298
    %6436 = vmatpush1.bf16.msra.mxu0 %v5297
    %6437 = vmatprep.subr.bf16.mxu0 %v5306
    %6438 = vmatpush1.bf16.msra.mxu0 %v5305
    %6439 = vmatprep.subr.bf16.mxu0 %v5314
    %6440 = vmatpush1.bf16.msra.mxu0 %v5313
    %6441 = vmatprep.subr.bf16.mxu0 %v5322
    %6442 = vmatpush1.bf16.msra.mxu0 %v5321
    %6443 = vmatprep.subr.bf16.mxu0 %v5330
    %6444 = vmatpush1.bf16.msra.mxu0 %v5329
    %6445 = vmatprep.subr.bf16.mxu0 %v5338
    %6446 = vmatpush1.bf16.msra.mxu0 %v5337
    %6447 = vmatprep.subr.bf16.mxu0 %v5346
    %6448 = vmatpush1.bf16.msra.mxu0 %v5345
    %6449 = vmatprep.subr.bf16.mxu0 %v5354
    %6450 = vmatpush1.bf16.msra.mxu0 %v5353
    %6451 = vmatprep.subr.bf16.mxu0 %v5362
    %6452 = vmatpush1.bf16.msra.mxu0 %v5361
    %6453 = vmatprep.subr.bf16.mxu0 %v5370
    %6454 = vmatpush1.bf16.msra.mxu0 %v5369
    %6455 = vmatprep.mubr.bf16.mxu0 %v3442
    %6456 = vmatmul.mubr.bf16.gmra.mrb[0].mxu0 %v3441
    %v6457 = vpop.f32.mrb[0].mxu0
    %v6458 = vadd.f32 %v6417, %v6457
    %v6459 = vpop.f32.mrb[0].mxu0
    %v6460 = vadd.f32 %v6419, %v6459
    %v6461 = vpop.f32.mrb[0].mxu0
    %v6462 = vpop.f32.mrb[0].mxu0
    %6463 = vdwg.mxu0
    %6464 = vmatprep.subr.bf16.mxu0 %v5378
    %6465 = vmatpush1.bf16.msra.mxu0 %v5377
    %6466 = vmatprep.subr.bf16.mxu0 %v5386
    %6467 = vmatpush1.bf16.msra.mxu0 %v5385
    %6468 = vmatprep.subr.bf16.mxu0 %v5394
    %6469 = vmatpush1.bf16.msra.mxu0 %v5393
    %6470 = vmatprep.subr.bf16.mxu0 %v5402
    %6471 = vmatpush1.bf16.msra.mxu0 %v5401
    %6472 = vmatprep.subr.bf16.mxu0 %v5410
    %6473 = vmatpush1.bf16.msra.mxu0 %v5409
    %6474 = vmatprep.subr.bf16.mxu0 %v5418
    %6475 = vmatpush1.bf16.msra.mxu0 %v5417
    %6476 = vmatprep.subr.bf16.mxu0 %v5426
    %6477 = vmatpush1.bf16.msra.mxu0 %v5425
    %6478 = vmatprep.subr.bf16.mxu0 %v5434
    %6479 = vmatpush1.bf16.msra.mxu0 %v5433
    %6480 = vmatprep.subr.bf16.mxu0 %v5442
    %6481 = vmatpush1.bf16.msra.mxu0 %v5441
    %6482 = vmatprep.subr.bf16.mxu0 %v5450
    %6483 = vmatpush1.bf16.msra.mxu0 %v5449
    %6484 = vmatprep.subr.bf16.mxu0 %v5458
    %6485 = vmatpush1.bf16.msra.mxu0 %v5457
    %6486 = vmatprep.subr.bf16.mxu0 %v5466
    %6487 = vmatpush1.bf16.msra.mxu0 %v5465
    %6488 = vmatprep.subr.bf16.mxu0 %v5474
    %6489 = vmatpush1.bf16.msra.mxu0 %v5473
    %6490 = vmatprep.subr.bf16.mxu0 %v5482
    %6491 = vmatpush1.bf16.msra.mxu0 %v5481
    %6492 = vmatprep.subr.bf16.mxu0 %v5490
    %6493 = vmatpush1.bf16.msra.mxu0 %v5489
    %6494 = vmatprep.subr.bf16.mxu0 %v5498
    %6495 = vmatpush1.bf16.msra.mxu0 %v5497
    %6496 = vmatprep.mubr.bf16.mxu0 %v3444
    %6497 = vmatmul.mubr.bf16.gmra.mrb[0].mxu0 %v3443
    %v6498 = vpop.f32.mrb[0].mxu0
    %v6499 = vadd.f32 %v6458, %v6498
    %v6500 = vpop.f32.mrb[0].mxu0
    %v6501 = vadd.f32 %v6460, %v6500
    %v6502 = vpop.f32.mrb[0].mxu0
    %v6503 = vpop.f32.mrb[0].mxu0
    %6504 = vdwg.mxu0
    %6505 = vmatprep.subr.bf16.mxu0 %v4996
    %6506 = vmatpush1.bf16.msra.mxu0 %v4995
    %6507 = vmatprep.subr.bf16.mxu0 %v5004
    %6508 = vmatpush1.bf16.msra.mxu0 %v5003
    %6509 = vmatprep.subr.bf16.mxu0 %v5012
    %6510 = vmatpush1.bf16.msra.mxu0 %v5011
    %6511 = vmatprep.subr.bf16.mxu0 %v5020
    %6512 = vmatpush1.bf16.msra.mxu0 %v5019
    %6513 = vmatprep.subr.bf16.mxu0 %v5028
    %6514 = vmatpush1.bf16.msra.mxu0 %v5027
    %6515 = vmatprep.subr.bf16.mxu0 %v5036
    %6516 = vmatpush1.bf16.msra.mxu0 %v5035
    %6517 = vmatprep.subr.bf16.mxu0 %v5044
    %6518 = vmatpush1.bf16.msra.mxu0 %v5043
    %6519 = vmatprep.subr.bf16.mxu0 %v5052
    %6520 = vmatpush1.bf16.msra.mxu0 %v5051
    %6521 = vmatprep.subr.bf16.mxu0 %v5060
    %6522 = vmatpush1.bf16.msra.mxu0 %v5059
    %6523 = vmatprep.subr.bf16.mxu0 %v5068
    %6524 = vmatpush1.bf16.msra.mxu0 %v5067
    %6525 = vmatprep.subr.bf16.mxu0 %v5076
    %6526 = vmatpush1.bf16.msra.mxu0 %v5075
    %6527 = vmatprep.subr.bf16.mxu0 %v5084
    %6528 = vmatpush1.bf16.msra.mxu0 %v5083
    %6529 = vmatprep.subr.bf16.mxu0 %v5092
    %6530 = vmatpush1.bf16.msra.mxu0 %v5091
    %6531 = vmatprep.subr.bf16.mxu0 %v5100
    %6532 = vmatpush1.bf16.msra.mxu0 %v5099
    %6533 = vmatprep.subr.bf16.mxu0 %v5108
    %6534 = vmatpush1.bf16.msra.mxu0 %v5107
    %6535 = vmatprep.subr.bf16.mxu0 %v5116
    %6536 = vmatpush1.bf16.msra.mxu0 %v5115
    %6537 = vmatprep.mubr.bf16.mxu0 %v3438
    %6538 = vmatmul.mubr.bf16.gmra.mrb[0].mxu0 %v3437
    %v6539 = vpop.f32.mrb[0].mxu0
    %v6540 = vadd.f32 0.0, %v6539
    %v6541 = vpop.f32.mrb[0].mxu0
    %v6542 = vadd.f32 0.0, %v6541
    %v6543 = vpop.f32.mrb[0].mxu0
    %v6544 = vpop.f32.mrb[0].mxu0
    %6545 = vdwg.mxu0
    %6546 = vmatprep.subr.bf16.mxu0 %v5124
    %6547 = vmatpush1.bf16.msra.mxu0 %v5123
    %6548 = vmatprep.subr.bf16.mxu0 %v5132
    %6549 = vmatpush1.bf16.msra.mxu0 %v5131
    %6550 = vmatprep.subr.bf16.mxu0 %v5140
    %6551 = vmatpush1.bf16.msra.mxu0 %v5139
    %6552 = vmatprep.subr.bf16.mxu0 %v5148
    %6553 = vmatpush1.bf16.msra.mxu0 %v5147
    %6554 = vmatprep.subr.bf16.mxu0 %v5156
    %6555 = vmatpush1.bf16.msra.mxu0 %v5155
    %6556 = vmatprep.subr.bf16.mxu0 %v5164
    %6557 = vmatpush1.bf16.msra.mxu0 %v5163
    %6558 = vmatprep.subr.bf16.mxu0 %v5172
    %6559 = vmatpush1.bf16.msra.mxu0 %v5171
    %6560 = vmatprep.subr.bf16.mxu0 %v5180
    %6561 = vmatpush1.bf16.msra.mxu0 %v5179
    %6562 = vmatprep.subr.bf16.mxu0 %v5188
    %6563 = vmatpush1.bf16.msra.mxu0 %v5187
    %6564 = vmatprep.subr.bf16.mxu0 %v5196
    %6565 = vmatpush1.bf16.msra.mxu0 %v5195
    %6566 = vmatprep.subr.bf16.mxu0 %v5204
    %6567 = vmatpush1.bf16.msra.mxu0 %v5203
    %6568 = vmatprep.subr.bf16.mxu0 %v5212
    %6569 = vmatpush1.bf16.msra.mxu0 %v5211
    %6570 = vmatprep.subr.bf16.mxu0 %v5220
    %6571 = vmatpush1.bf16.msra.mxu0 %v5219
    %6572 = vmatprep.subr.bf16.mxu0 %v5228
    %6573 = vmatpush1.bf16.msra.mxu0 %v5227
    %6574 = vmatprep.subr.bf16.mxu0 %v5236
    %6575 = vmatpush1.bf16.msra.mxu0 %v5235
    %6576 = vmatprep.subr.bf16.mxu0 %v5244
    %6577 = vmatpush1.bf16.msra.mxu0 %v5243
    %6578 = vmatprep.mubr.bf16.mxu0 %v3440
    %6579 = vmatmul.mubr.bf16.gmra.mrb[0].mxu0 %v3439
    %v6580 = vpop.f32.mrb[0].mxu0
    %v6581 = vadd.f32 %v6540, %v6580
    %v6582 = vpop.f32.mrb[0].mxu0
    %v6583 = vadd.f32 %v6542, %v6582
    %v6584 = vpop.f32.mrb[0].mxu0
    %v6585 = vpop.f32.mrb[0].mxu0
    %6586 = vdwg.mxu0
    %6587 = vmatprep.subr.bf16.mxu0 %v5252
    %6588 = vmatpush1.bf16.msra.mxu0 %v5251
    %6589 = vmatprep.subr.bf16.mxu0 %v5260
    %6590 = vmatpush1.bf16.msra.mxu0 %v5259
    %6591 = vmatprep.subr.bf16.mxu0 %v5268
    %6592 = vmatpush1.bf16.msra.mxu0 %v5267
    %6593 = vmatprep.subr.bf16.mxu0 %v5276
    %6594 = vmatpush1.bf16.msra.mxu0 %v5275
    %6595 = vmatprep.subr.bf16.mxu0 %v5284
    %6596 = vmatpush1.bf16.msra.mxu0 %v5283
    %6597 = vmatprep.subr.bf16.mxu0 %v5292
    %6598 = vmatpush1.bf16.msra.mxu0 %v5291
    %6599 = vmatprep.subr.bf16.mxu0 %v5300
    %6600 = vmatpush1.bf16.msra.mxu0 %v5299
    %6601 = vmatprep.subr.bf16.mxu0 %v5308
    %6602 = vmatpush1.bf16.msra.mxu0 %v5307
    %6603 = vmatprep.subr.bf16.mxu0 %v5316
    %6604 = vmatpush1.bf16.msra.mxu0 %v5315
    %6605 = vmatprep.subr.bf16.mxu0 %v5324
    %6606 = vmatpush1.bf16.msra.mxu0 %v5323
    %6607 = vmatprep.subr.bf16.mxu0 %v5332
    %6608 = vmatpush1.bf16.msra.mxu0 %v5331
    %6609 = vmatprep.subr.bf16.mxu0 %v5340
    %6610 = vmatpush1.bf16.msra.mxu0 %v5339
    %6611 = vmatprep.subr.bf16.mxu0 %v5348
    %6612 = vmatpush1.bf16.msra.mxu0 %v5347
    %6613 = vmatprep.subr.bf16.mxu0 %v5356
    %6614 = vmatpush1.bf16.msra.mxu0 %v5355
    %6615 = vmatprep.subr.bf16.mxu0 %v5364
    %6616 = vmatpush1.bf16.msra.mxu0 %v5363
    %6617 = vmatprep.subr.bf16.mxu0 %v5372
    %6618 = vmatpush1.bf16.msra.mxu0 %v5371
    %6619 = vmatprep.mubr.bf16.mxu0 %v3442
    %6620 = vmatmul.mubr.bf16.gmra.mrb[0].mxu0 %v3441
    %v6621 = vpop.f32.mrb[0].mxu0
    %v6622 = vadd.f32 %v6581, %v6621
    %v6623 = vpop.f32.mrb[0].mxu0
    %v6624 = vadd.f32 %v6583, %v6623
    %v6625 = vpop.f32.mrb[0].mxu0
    %v6626 = vpop.f32.mrb[0].mxu0
    %6627 = vdwg.mxu0
    %6628 = vmatprep.subr.bf16.mxu0 %v5380
    %6629 = vmatpush1.bf16.msra.mxu0 %v5379
    %6630 = vmatprep.subr.bf16.mxu0 %v5388
    %6631 = vmatpush1.bf16.msra.mxu0 %v5387
    %6632 = vmatprep.subr.bf16.mxu0 %v5396
    %6633 = vmatpush1.bf16.msra.mxu0 %v5395
    %6634 = vmatprep.subr.bf16.mxu0 %v5404
    %6635 = vmatpush1.bf16.msra.mxu0 %v5403
    %6636 = vmatprep.subr.bf16.mxu0 %v5412
    %6637 = vmatpush1.bf16.msra.mxu0 %v5411
    %6638 = vmatprep.subr.bf16.mxu0 %v5420
    %6639 = vmatpush1.bf16.msra.mxu0 %v5419
    %6640 = vmatprep.subr.bf16.mxu0 %v5428
    %6641 = vmatpush1.bf16.msra.mxu0 %v5427
    %6642 = vmatprep.subr.bf16.mxu0 %v5436
    %6643 = vmatpush1.bf16.msra.mxu0 %v5435
    %6644 = vmatprep.subr.bf16.mxu0 %v5444
    %6645 = vmatpush1.bf16.msra.mxu0 %v5443
    %6646 = vmatprep.subr.bf16.mxu0 %v5452
    %6647 = vmatpush1.bf16.msra.mxu0 %v5451
    %6648 = vmatprep.subr.bf16.mxu0 %v5460
    %6649 = vmatpush1.bf16.msra.mxu0 %v5459
    %6650 = vmatprep.subr.bf16.mxu0 %v5468
    %6651 = vmatpush1.bf16.msra.mxu0 %v5467
    %6652 = vmatprep.subr.bf16.mxu0 %v5476
    %6653 = vmatpush1.bf16.msra.mxu0 %v5475
    %6654 = vmatprep.subr.bf16.mxu0 %v5484
    %6655 = vmatpush1.bf16.msra.mxu0 %v5483
    %6656 = vmatprep.subr.bf16.mxu0 %v5492
    %6657 = vmatpush1.bf16.msra.mxu0 %v5491
    %6658 = vmatprep.subr.bf16.mxu0 %v5500
    %6659 = vmatpush1.bf16.msra.mxu0 %v5499
    %6660 = vmatprep.mubr.bf16.mxu0 %v3444
    %6661 = vmatmul.mubr.bf16.gmra.mrb[0].mxu0 %v3443
    %v6662 = vpop.f32.mrb[0].mxu0
    %v6663 = vadd.f32 %v6622, %v6662
    %v6664 = vpop.f32.mrb[0].mxu0
    %v6665 = vadd.f32 %v6624, %v6664
    %v6666 = vpop.f32.mrb[0].mxu0
    %v6667 = vpop.f32.mrb[0].mxu0
    %6668 = vdwg.mxu0
    %v6669 = vmax.f32 %v6171, %v6335
    %v6670 = vmax.f32 %v6173, %v6337
    %v6671 = vmax.f32 %v6499, %v6663
    %v6672 = vmax.f32 %v6501, %v6665
    %v6673 = vmax.f32 %v6669, %v6671
    %v6674 = vmax.f32 %v6670, %v6672
    %v6676 = vlaneseq
    %v6677 = vshrl.u32 %v6676, 7
    %v6678 = vsub.s32 0, %v6677
    %v6679 = vrot.slane %v3420, %v6678
    %v6680 = vlaneseq
    %v6681 = vshrl.u32 %v6680, 7
    %v6682 = vsub.s32 1, %v6681
    %v6683 = vrot.slane %v3420, %v6682
    %v6686 = vadd.f32 %v6673, %v6679
    %v6687 = vadd.f32 %v6674, %v6683
    %v6688 = vmax.f32 %v6686, 0.0
    %v6689 = vmax.f32 %v6687, 0.0
    %v6690 = vpack.c.bf16 %v6688, %v6688
    %v6691 = vpack.c.bf16 %v6689, %v6689
    %v6694 = vunpack.c.l.b16 %v6690
    %v6695 = vunpack.c.l.b16 %v6691
    %v6696 = vpack.c.b16 %v6695, %v6694
    %6698 = vst [vmem:[#allocation3] sm:$0xff] %v6696
    %v6699 = vld [vmem:[#allocation2 + $0x10] sm:$0xff]
    %v6700 = vld [vmem:[#allocation2 + $0x18] sm:$0xff]
    %v6701 = vld [vmem:[#allocation2 + $0x20] sm:$0xff]
    %v6702 = vld [vmem:[#allocation2 + $0x28] sm:$0xff]
    %v6707 = vunpack.c.l.b16 %v6699
    %v6708 = vunpack.c.h.b16 %v6699
    %v6709 = vunpack.c.l.b16 %v6700
    %v6710 = vunpack.c.h.b16 %v6700
    %v6711 = vunpack.c.l.b16 %v6701
    %v6712 = vunpack.c.h.b16 %v6701
    %v6713 = vunpack.c.l.b16 %v6702
    %v6714 = vunpack.c.h.b16 %v6702
    %v6715 = vpack.c.b16 %v6707, %v6707
    %v6716 = vpack.c.b16 %v6708, %v6708
    %v6717 = vpack.c.b16 %v6709, %v6709
    %v6718 = vpack.c.b16 %v6710, %v6710
    %v6719 = vpack.c.b16 %v6711, %v6711
    %v6720 = vpack.c.b16 %v6712, %v6712
    %v6721 = vpack.c.b16 %v6713, %v6713
    %v6722 = vpack.c.b16 %v6714, %v6714
    %6731 = vmatprep.subr.bf16.mxu0 %v4990
    %6732 = vmatpush1.bf16.msra.mxu0 %v4989
    %6733 = vmatprep.subr.bf16.mxu0 %v4998
    %6734 = vmatpush1.bf16.msra.mxu0 %v4997
    %6735 = vmatprep.subr.bf16.mxu0 %v5006
    %6736 = vmatpush1.bf16.msra.mxu0 %v5005
    %6737 = vmatprep.subr.bf16.mxu0 %v5014
    %6738 = vmatpush1.bf16.msra.mxu0 %v5013
    %6739 = vmatprep.subr.bf16.mxu0 %v5022
    %6740 = vmatpush1.bf16.msra.mxu0 %v5021
    %6741 = vmatprep.subr.bf16.mxu0 %v5030
    %6742 = vmatpush1.bf16.msra.mxu0 %v5029
    %6743 = vmatprep.subr.bf16.mxu0 %v5038
    %6744 = vmatpush1.bf16.msra.mxu0 %v5037
    %6745 = vmatprep.subr.bf16.mxu0 %v5046
    %6746 = vmatpush1.bf16.msra.mxu0 %v5045
    %6747 = vmatprep.subr.bf16.mxu0 %v5054
    %6748 = vmatpush1.bf16.msra.mxu0 %v5053
    %6749 = vmatprep.subr.bf16.mxu0 %v5062
    %6750 = vmatpush1.bf16.msra.mxu0 %v5061
    %6751 = vmatprep.subr.bf16.mxu0 %v5070
    %6752 = vmatpush1.bf16.msra.mxu0 %v5069
    %6753 = vmatprep.subr.bf16.mxu0 %v5078
    %6754 = vmatpush1.bf16.msra.mxu0 %v5077
    %6755 = vmatprep.subr.bf16.mxu0 %v5086
    %6756 = vmatpush1.bf16.msra.mxu0 %v5085
    %6757 = vmatprep.subr.bf16.mxu0 %v5094
    %6758 = vmatpush1.bf16.msra.mxu0 %v5093
    %6759 = vmatprep.subr.bf16.mxu0 %v5102
    %6760 = vmatpush1.bf16.msra.mxu0 %v5101
    %6761 = vmatprep.subr.bf16.mxu0 %v5110
    %6762 = vmatpush1.bf16.msra.mxu0 %v5109
    %6763 = vmatprep.mubr.bf16.mxu0 %v6716
    %6764 = vmatmul.mubr.bf16.gmra.mrb[0].mxu0 %v6715
    %v6765 = vpop.f32.mrb[0].mxu0
    %v6766 = vadd.f32 0.0, %v6765
    %v6767 = vpop.f32.mrb[0].mxu0
    %v6768 = vadd.f32 0.0, %v6767
    %v6769 = vpop.f32.mrb[0].mxu0
    %v6770 = vpop.f32.mrb[0].mxu0
    %6771 = vdwg.mxu0
    %6772 = vmatprep.subr.bf16.mxu0 %v5118
    %6773 = vmatpush1.bf16.msra.mxu0 %v5117
    %6774 = vmatprep.subr.bf16.mxu0 %v5126
    %6775 = vmatpush1.bf16.msra.mxu0 %v5125
    %6776 = vmatprep.subr.bf16.mxu0 %v5134
    %6777 = vmatpush1.bf16.msra.mxu0 %v5133
    %6778 = vmatprep.subr.bf16.mxu0 %v5142
    %6779 = vmatpush1.bf16.msra.mxu0 %v5141
    %6780 = vmatprep.subr.bf16.mxu0 %v5150
    %6781 = vmatpush1.bf16.msra.mxu0 %v5149
    %6782 = vmatprep.subr.bf16.mxu0 %v5158
    %6783 = vmatpush1.bf16.msra.mxu0 %v5157
    %6784 = vmatprep.subr.bf16.mxu0 %v5166
    %6785 = vmatpush1.bf16.msra.mxu0 %v5165
    %6786 = vmatprep.subr.bf16.mxu0 %v5174
    %6787 = vmatpush1.bf16.msra.mxu0 %v5173
    %6788 = vmatprep.subr.bf16.mxu0 %v5182
    %6789 = vmatpush1.bf16.msra.mxu0 %v5181
    %6790 = vmatprep.subr.bf16.mxu0 %v5190
    %6791 = vmatpush1.bf16.msra.mxu0 %v5189
    %6792 = vmatprep.subr.bf16.mxu0 %v5198
    %6793 = vmatpush1.bf16.msra.mxu0 %v5197
    %6794 = vmatprep.subr.bf16.mxu0 %v5206
    %6795 = vmatpush1.bf16.msra.mxu0 %v5205
    %6796 = vmatprep.subr.bf16.mxu0 %v5214
    %6797 = vmatpush1.bf16.msra.mxu0 %v5213
    %6798 = vmatprep.subr.bf16.mxu0 %v5222
    %6799 = vmatpush1.bf16.msra.mxu0 %v5221
    %6800 = vmatprep.subr.bf16.mxu0 %v5230
    %6801 = vmatpush1.bf16.msra.mxu0 %v5229
    %6802 = vmatprep.subr.bf16.mxu0 %v5238
    %6803 = vmatpush1.bf16.msra.mxu0 %v5237
    %6804 = vmatprep.mubr.bf16.mxu0 %v6718
    %6805 = vmatmul.mubr.bf16.gmra.mrb[0].mxu0 %v6717
    %v6806 = vpop.f32.mrb[0].mxu0
    %v6807 = vadd.f32 %v6766, %v6806
    %v6808 = vpop.f32.mrb[0].mxu0
    %v6809 = vadd.f32 %v6768, %v6808
    %v6810 = vpop.f32.mrb[0].mxu0
    %v6811 = vpop.f32.mrb[0].mxu0
    %6812 = vdwg.mxu0
    %6813 = vmatprep.subr.bf16.mxu0 %v5246
    %6814 = vmatpush1.bf16.msra.mxu0 %v5245
    %6815 = vmatprep.subr.bf16.mxu0 %v5254
    %6816 = vmatpush1.bf16.msra.mxu0 %v5253
    %6817 = vmatprep.subr.bf16.mxu0 %v5262
    %6818 = vmatpush1.bf16.msra.mxu0 %v5261
    %6819 = vmatprep.subr.bf16.mxu0 %v5270
    %6820 = vmatpush1.bf16.msra.mxu0 %v5269
    %6821 = vmatprep.subr.bf16.mxu0 %v5278
    %6822 = vmatpush1.bf16.msra.mxu0 %v5277
    %6823 = vmatprep.subr.bf16.mxu0 %v5286
    %6824 = vmatpush1.bf16.msra.mxu0 %v5285
    %6825 = vmatprep.subr.bf16.mxu0 %v5294
    %6826 = vmatpush1.bf16.msra.mxu0 %v5293
    %6827 = vmatprep.subr.bf16.mxu0 %v5302
    %6828 = vmatpush1.bf16.msra.mxu0 %v5301
    %6829 = vmatprep.subr.bf16.mxu0 %v5310
    %6830 = vmatpush1.bf16.msra.mxu0 %v5309
    %6831 = vmatprep.subr.bf16.mxu0 %v5318
    %6832 = vmatpush1.bf16.msra.mxu0 %v5317
    %6833 = vmatprep.subr.bf16.mxu0 %v5326
    %6834 = vmatpush1.bf16.msra.mxu0 %v5325
    %6835 = vmatprep.subr.bf16.mxu0 %v5334
    %6836 = vmatpush1.bf16.msra.mxu0 %v5333
    %6837 = vmatprep.subr.bf16.mxu0 %v5342
    %6838 = vmatpush1.bf16.msra.mxu0 %v5341
    %6839 = vmatprep.subr.bf16.mxu0 %v5350
    %6840 = vmatpush1.bf16.msra.mxu0 %v5349
    %6841 = vmatprep.subr.bf16.mxu0 %v5358
    %6842 = vmatpush1.bf16.msra.mxu0 %v5357
    %6843 = vmatprep.subr.bf16.mxu0 %v5366
    %6844 = vmatpush1.bf16.msra.mxu0 %v5365
    %6845 = vmatprep.mubr.bf16.mxu0 %v6720
    %6846 = vmatmul.mubr.bf16.gmra.mrb[0].mxu0 %v6719
    %v6847 = vpop.f32.mrb[0].mxu0
    %v6848 = vadd.f32 %v6807, %v6847
    %v6849 = vpop.f32.mrb[0].mxu0
    %v6850 = vadd.f32 %v6809, %v6849
    %v6851 = vpop.f32.mrb[0].mxu0
    %v6852 = vpop.f32.mrb[0].mxu0
    %6853 = vdwg.mxu0
    %6854 = vmatprep.subr.bf16.mxu0 %v5374
    %6855 = vmatpush1.bf16.msra.mxu0 %v5373
    %6856 = vmatprep.subr.bf16.mxu0 %v5382
    %6857 = vmatpush1.bf16.msra.mxu0 %v5381
    %6858 = vmatprep.subr.bf16.mxu0 %v5390
    %6859 = vmatpush1.bf16.msra.mxu0 %v5389
    %6860 = vmatprep.subr.bf16.mxu0 %v5398
    %6861 = vmatpush1.bf16.msra.mxu0 %v5397
    %6862 = vmatprep.subr.bf16.mxu0 %v5406
    %6863 = vmatpush1.bf16.msra.mxu0 %v5405
    %6864 = vmatprep.subr.bf16.mxu0 %v5414
    %6865 = vmatpush1.bf16.msra.mxu0 %v5413
    %6866 = vmatprep.subr.bf16.mxu0 %v5422
    %6867 = vmatpush1.bf16.msra.mxu0 %v5421
    %6868 = vmatprep.subr.bf16.mxu0 %v5430
    %6869 = vmatpush1.bf16.msra.mxu0 %v5429
    %6870 = vmatprep.subr.bf16.mxu0 %v5438
    %6871 = vmatpush1.bf16.msra.mxu0 %v5437
    %6872 = vmatprep.subr.bf16.mxu0 %v5446
    %6873 = vmatpush1.bf16.msra.mxu0 %v5445
    %6874 = vmatprep.subr.bf16.mxu0 %v5454
    %6875 = vmatpush1.bf16.msra.mxu0 %v5453
    %6876 = vmatprep.subr.bf16.mxu0 %v5462
    %6877 = vmatpush1.bf16.msra.mxu0 %v5461
    %6878 = vmatprep.subr.bf16.mxu0 %v5470
    %6879 = vmatpush1.bf16.msra.mxu0 %v5469
    %6880 = vmatprep.subr.bf16.mxu0 %v5478
    %6881 = vmatpush1.bf16.msra.mxu0 %v5477
    %6882 = vmatprep.subr.bf16.mxu0 %v5486
    %6883 = vmatpush1.bf16.msra.mxu0 %v5485
    %6884 = vmatprep.subr.bf16.mxu0 %v5494
    %6885 = vmatpush1.bf16.msra.mxu0 %v5493
    %6886 = vmatprep.mubr.bf16.mxu0 %v6722
    %6887 = vmatmul.mubr.bf16.gmra.mrb[0].mxu0 %v6721
    %v6888 = vpop.f32.mrb[0].mxu0
    %v6889 = vadd.f32 %v6848, %v6888
    %v6890 = vpop.f32.mrb[0].mxu0
    %v6891 = vadd.f32 %v6850, %v6890
    %v6892 = vpop.f32.mrb[0].mxu0
    %v6893 = vpop.f32.mrb[0].mxu0
    %6894 = vdwg.mxu0
    %6895 = vmatprep.subr.bf16.mxu0 %v4992
    %6896 = vmatpush1.bf16.msra.mxu0 %v4991
    %6897 = vmatprep.subr.bf16.mxu0 %v5000
    %6898 = vmatpush1.bf16.msra.mxu0 %v4999
    %6899 = vmatprep.subr.bf16.mxu0 %v5008
    %6900 = vmatpush1.bf16.msra.mxu0 %v5007
    %6901 = vmatprep.subr.bf16.mxu0 %v5016
    %6902 = vmatpush1.bf16.msra.mxu0 %v5015
    %6903 = vmatprep.subr.bf16.mxu0 %v5024
    %6904 = vmatpush1.bf16.msra.mxu0 %v5023
    %6905 = vmatprep.subr.bf16.mxu0 %v5032
    %6906 = vmatpush1.bf16.msra.mxu0 %v5031
    %6907 = vmatprep.subr.bf16.mxu0 %v5040
    %6908 = vmatpush1.bf16.msra.mxu0 %v5039
    %6909 = vmatprep.subr.bf16.mxu0 %v5048
    %6910 = vmatpush1.bf16.msra.mxu0 %v5047
    %6911 = vmatprep.subr.bf16.mxu0 %v5056
    %6912 = vmatpush1.bf16.msra.mxu0 %v5055
    %6913 = vmatprep.subr.bf16.mxu0 %v5064
    %6914 = vmatpush1.bf16.msra.mxu0 %v5063
    %6915 = vmatprep.subr.bf16.mxu0 %v5072
    %6916 = vmatpush1.bf16.msra.mxu0 %v5071
    %6917 = vmatprep.subr.bf16.mxu0 %v5080
    %6918 = vmatpush1.bf16.msra.mxu0 %v5079
    %6919 = vmatprep.subr.bf16.mxu0 %v5088
    %6920 = vmatpush1.bf16.msra.mxu0 %v5087
    %6921 = vmatprep.subr.bf16.mxu0 %v5096
    %6922 = vmatpush1.bf16.msra.mxu0 %v5095
    %6923 = vmatprep.subr.bf16.mxu0 %v5104
    %6924 = vmatpush1.bf16.msra.mxu0 %v5103
    %6925 = vmatprep.subr.bf16.mxu0 %v5112
    %6926 = vmatpush1.bf16.msra.mxu0 %v5111
    %6927 = vmatprep.mubr.bf16.mxu0 %v6716
    %6928 = vmatmul.mubr.bf16.gmra.mrb[0].mxu0 %v6715
    %v6929 = vpop.f32.mrb[0].mxu0
    %v6930 = vadd.f32 0.0, %v6929
    %v6931 = vpop.f32.mrb[0].mxu0
    %v6932 = vadd.f32 0.0, %v6931
    %v6933 = vpop.f32.mrb[0].mxu0
    %v6934 = vpop.f32.mrb[0].mxu0
    %6935 = vdwg.mxu0
    %6936 = vmatprep.subr.bf16.mxu0 %v5120
    %6937 = vmatpush1.bf16.msra.mxu0 %v5119
    %6938 = vmatprep.subr.bf16.mxu0 %v5128
    %6939 = vmatpush1.bf16.msra.mxu0 %v5127
    %6940 = vmatprep.subr.bf16.mxu0 %v5136
    %6941 = vmatpush1.bf16.msra.mxu0 %v5135
    %6942 = vmatprep.subr.bf16.mxu0 %v5144
    %6943 = vmatpush1.bf16.msra.mxu0 %v5143
    %6944 = vmatprep.subr.bf16.mxu0 %v5152
    %6945 = vmatpush1.bf16.msra.mxu0 %v5151
    %6946 = vmatprep.subr.bf16.mxu0 %v5160
    %6947 = vmatpush1.bf16.msra.mxu0 %v5159
    %6948 = vmatprep.subr.bf16.mxu0 %v5168
    %6949 = vmatpush1.bf16.msra.mxu0 %v5167
    %6950 = vmatprep.subr.bf16.mxu0 %v5176
    %6951 = vmatpush1.bf16.msra.mxu0 %v5175
    %6952 = vmatprep.subr.bf16.mxu0 %v5184
    %6953 = vmatpush1.bf16.msra.mxu0 %v5183
    %6954 = vmatprep.subr.bf16.mxu0 %v5192
    %6955 = vmatpush1.bf16.msra.mxu0 %v5191
    %6956 = vmatprep.subr.bf16.mxu0 %v5200
    %6957 = vmatpush1.bf16.msra.mxu0 %v5199
    %6958 = vmatprep.subr.bf16.mxu0 %v5208
    %6959 = vmatpush1.bf16.msra.mxu0 %v5207
    %6960 = vmatprep.subr.bf16.mxu0 %v5216
    %6961 = vmatpush1.bf16.msra.mxu0 %v5215
    %6962 = vmatprep.subr.bf16.mxu0 %v5224
    %6963 = vmatpush1.bf16.msra.mxu0 %v5223
    %6964 = vmatprep.subr.bf16.mxu0 %v5232
    %6965 = vmatpush1.bf16.msra.mxu0 %v5231
    %6966 = vmatprep.subr.bf16.mxu0 %v5240
    %6967 = vmatpush1.bf16.msra.mxu0 %v5239
    %6968 = vmatprep.mubr.bf16.mxu0 %v6718
    %6969 = vmatmul.mubr.bf16.gmra.mrb[0].mxu0 %v6717
    %v6970 = vpop.f32.mrb[0].mxu0
    %v6971 = vadd.f32 %v6930, %v6970
    %v6972 = vpop.f32.mrb[0].mxu0
    %v6973 = vadd.f32 %v6932, %v6972
    %v6974 = vpop.f32.mrb[0].mxu0
    %v6975 = vpop.f32.mrb[0].mxu0
    %6976 = vdwg.mxu0
    %6977 = vmatprep.subr.bf16.mxu0 %v5248
    %6978 = vmatpush1.bf16.msra.mxu0 %v5247
    %6979 = vmatprep.subr.bf16.mxu0 %v5256
    %6980 = vmatpush1.bf16.msra.mxu0 %v5255
    %6981 = vmatprep.subr.bf16.mxu0 %v5264
    %6982 = vmatpush1.bf16.msra.mxu0 %v5263
    %6983 = vmatprep.subr.bf16.mxu0 %v5272
    %6984 = vmatpush1.bf16.msra.mxu0 %v5271
    %6985 = vmatprep.subr.bf16.mxu0 %v5280
    %6986 = vmatpush1.bf16.msra.mxu0 %v5279
    %6987 = vmatprep.subr.bf16.mxu0 %v5288
    %6988 = vmatpush1.bf16.msra.mxu0 %v5287
    %6989 = vmatprep.subr.bf16.mxu0 %v5296
    %6990 = vmatpush1.bf16.msra.mxu0 %v5295
    %6991 = vmatprep.subr.bf16.mxu0 %v5304
    %6992 = vmatpush1.bf16.msra.mxu0 %v5303
    %6993 = vmatprep.subr.bf16.mxu0 %v5312
    %6994 = vmatpush1.bf16.msra.mxu0 %v5311
    %6995 = vmatprep.subr.bf16.mxu0 %v5320
    %6996 = vmatpush1.bf16.msra.mxu0 %v5319
    %6997 = vmatprep.subr.bf16.mxu0 %v5328
    %6998 = vmatpush1.bf16.msra.mxu0 %v5327
    %6999 = vmatprep.subr.bf16.mxu0 %v5336
    %7000 = vmatpush1.bf16.msra.mxu0 %v5335
    %7001 = vmatprep.subr.bf16.mxu0 %v5344
    %7002 = vmatpush1.bf16.msra.mxu0 %v5343
    %7003 = vmatprep.subr.bf16.mxu0 %v5352
    %7004 = vmatpush1.bf16.msra.mxu0 %v5351
    %7005 = vmatprep.subr.bf16.mxu0 %v5360
    %7006 = vmatpush1.bf16.msra.mxu0 %v5359
    %7007 = vmatprep.subr.bf16.mxu0 %v5368
    %7008 = vmatpush1.bf16.msra.mxu0 %v5367
    %7009 = vmatprep.mubr.bf16.mxu0 %v6720
    %7010 = vmatmul.mubr.bf16.gmra.mrb[0].mxu0 %v6719
    %v7011 = vpop.f32.mrb[0].mxu0
    %v7012 = vadd.f32 %v6971, %v7011
    %v7013 = vpop.f32.mrb[0].mxu0
    %v7014 = vadd.f32 %v6973, %v7013
    %v7015 = vpop.f32.mrb[0].mxu0
    %v7016 = vpop.f32.mrb[0].mxu0
    %7017 = vdwg.mxu0
    %7018 = vmatprep.subr.bf16.mxu0 %v5376
    %7019 = vmatpush1.bf16.msra.mxu0 %v5375
    %7020 = vmatprep.subr.bf16.mxu0 %v5384
    %7021 = vmatpush1.bf16.msra.mxu0 %v5383
    %7022 = vmatprep.subr.bf16.mxu0 %v5392
    %7023 = vmatpush1.bf16.msra.mxu0 %v5391
    %7024 = vmatprep.subr.bf16.mxu0 %v5400
    %7025 = vmatpush1.bf16.msra.mxu0 %v5399
    %7026 = vmatprep.subr.bf16.mxu0 %v5408
    %7027 = vmatpush1.bf16.msra.mxu0 %v5407
    %7028 = vmatprep.subr.bf16.mxu0 %v5416
    %7029 = vmatpush1.bf16.msra.mxu0 %v5415
    %7030 = vmatprep.subr.bf16.mxu0 %v5424
    %7031 = vmatpush1.bf16.msra.mxu0 %v5423
    %7032 = vmatprep.subr.bf16.mxu0 %v5432
    %7033 = vmatpush1.bf16.msra.mxu0 %v5431
    %7034 = vmatprep.subr.bf16.mxu0 %v5440
    %7035 = vmatpush1.bf16.msra.mxu0 %v5439
    %7036 = vmatprep.subr.bf16.mxu0 %v5448
    %7037 = vmatpush1.bf16.msra.mxu0 %v5447
    %7038 = vmatprep.subr.bf16.mxu0 %v5456
    %7039 = vmatpush1.bf16.msra.mxu0 %v5455
    %7040 = vmatprep.subr.bf16.mxu0 %v5464
    %7041 = vmatpush1.bf16.msra.mxu0 %v5463
    %7042 = vmatprep.subr.bf16.mxu0 %v5472
    %7043 = vmatpush1.bf16.msra.mxu0 %v5471
    %7044 = vmatprep.subr.bf16.mxu0 %v5480
    %7045 = vmatpush1.bf16.msra.mxu0 %v5479
    %7046 = vmatprep.subr.bf16.mxu0 %v5488
    %7047 = vmatpush1.bf16.msra.mxu0 %v5487
    %7048 = vmatprep.subr.bf16.mxu0 %v5496
    %7049 = vmatpush1.bf16.msra.mxu0 %v5495
    %7050 = vmatprep.mubr.bf16.mxu0 %v6722
    %7051 = vmatmul.mubr.bf16.gmra.mrb[0].mxu0 %v6721
    %v7052 = vpop.f32.mrb[0].mxu0
    %v7053 = vadd.f32 %v7012, %v7052
    %v7054 = vpop.f32.mrb[0].mxu0
    %v7055 = vadd.f32 %v7014, %v7054
    %v7056 = vpop.f32.mrb[0].mxu0
    %v7057 = vpop.f32.mrb[0].mxu0
    %7058 = vdwg.mxu0
    %7059 = vmatprep.subr.bf16.mxu0 %v4994
    %7060 = vmatpush1.bf16.msra.mxu0 %v4993
    %7061 = vmatprep.subr.bf16.mxu0 %v5002
    %7062 = vmatpush1.bf16.msra.mxu0 %v5001
    %7063 = vmatprep.subr.bf16.mxu0 %v5010
    %7064 = vmatpush1.bf16.msra.mxu0 %v5009
    %7065 = vmatprep.subr.bf16.mxu0 %v5018
    %7066 = vmatpush1.bf16.msra.mxu0 %v5017
    %7067 = vmatprep.subr.bf16.mxu0 %v5026
    %7068 = vmatpush1.bf16.msra.mxu0 %v5025
    %7069 = vmatprep.subr.bf16.mxu0 %v5034
    %7070 = vmatpush1.bf16.msra.mxu0 %v5033
    %7071 = vmatprep.subr.bf16.mxu0 %v5042
    %7072 = vmatpush1.bf16.msra.mxu0 %v5041
    %7073 = vmatprep.subr.bf16.mxu0 %v5050
    %7074 = vmatpush1.bf16.msra.mxu0 %v5049
    %7075 = vmatprep.subr.bf16.mxu0 %v5058
    %7076 = vmatpush1.bf16.msra.mxu0 %v5057
    %7077 = vmatprep.subr.bf16.mxu0 %v5066
    %7078 = vmatpush1.bf16.msra.mxu0 %v5065
    %7079 = vmatprep.subr.bf16.mxu0 %v5074
    %7080 = vmatpush1.bf16.msra.mxu0 %v5073
    %7081 = vmatprep.subr.bf16.mxu0 %v5082
    %7082 = vmatpush1.bf16.msra.mxu0 %v5081
    %7083 = vmatprep.subr.bf16.mxu0 %v5090
    %7084 = vmatpush1.bf16.msra.mxu0 %v5089
    %7085 = vmatprep.subr.bf16.mxu0 %v5098
    %7086 = vmatpush1.bf16.msra.mxu0 %v5097
    %7087 = vmatprep.subr.bf16.mxu0 %v5106
    %7088 = vmatpush1.bf16.msra.mxu0 %v5105
    %7089 = vmatprep.subr.bf16.mxu0 %v5114
    %7090 = vmatpush1.bf16.msra.mxu0 %v5113
    %7091 = vmatprep.mubr.bf16.mxu0 %v6716
    %7092 = vmatmul.mubr.bf16.gmra.mrb[0].mxu0 %v6715
    %v7093 = vpop.f32.mrb[0].mxu0
    %v7094 = vadd.f32 0.0, %v7093
    %v7095 = vpop.f32.mrb[0].mxu0
    %v7096 = vadd.f32 0.0, %v7095
    %v7097 = vpop.f32.mrb[0].mxu0
    %v7098 = vpop.f32.mrb[0].mxu0
    %7099 = vdwg.mxu0
    %7100 = vmatprep.subr.bf16.mxu0 %v5122
    %7101 = vmatpush1.bf16.msra.mxu0 %v5121
    %7102 = vmatprep.subr.bf16.mxu0 %v5130
    %7103 = vmatpush1.bf16.msra.mxu0 %v5129
    %7104 = vmatprep.subr.bf16.mxu0 %v5138
    %7105 = vmatpush1.bf16.msra.mxu0 %v5137
    %7106 = vmatprep.subr.bf16.mxu0 %v5146
    %7107 = vmatpush1.bf16.msra.mxu0 %v5145
    %7108 = vmatprep.subr.bf16.mxu0 %v5154
    %7109 = vmatpush1.bf16.msra.mxu0 %v5153
    %7110 = vmatprep.subr.bf16.mxu0 %v5162
    %7111 = vmatpush1.bf16.msra.mxu0 %v5161
    %7112 = vmatprep.subr.bf16.mxu0 %v5170
    %7113 = vmatpush1.bf16.msra.mxu0 %v5169
    %7114 = vmatprep.subr.bf16.mxu0 %v5178
    %7115 = vmatpush1.bf16.msra.mxu0 %v5177
    %7116 = vmatprep.subr.bf16.mxu0 %v5186
    %7117 = vmatpush1.bf16.msra.mxu0 %v5185
    %7118 = vmatprep.subr.bf16.mxu0 %v5194
    %7119 = vmatpush1.bf16.msra.mxu0 %v5193
    %7120 = vmatprep.subr.bf16.mxu0 %v5202
    %7121 = vmatpush1.bf16.msra.mxu0 %v5201
    %7122 = vmatprep.subr.bf16.mxu0 %v5210
    %7123 = vmatpush1.bf16.msra.mxu0 %v5209
    %7124 = vmatprep.subr.bf16.mxu0 %v5218
    %7125 = vmatpush1.bf16.msra.mxu0 %v5217
    %7126 = vmatprep.subr.bf16.mxu0 %v5226
    %7127 = vmatpush1.bf16.msra.mxu0 %v5225
    %7128 = vmatprep.subr.bf16.mxu0 %v5234
    %7129 = vmatpush1.bf16.msra.mxu0 %v5233
    %7130 = vmatprep.subr.bf16.mxu0 %v5242
    %7131 = vmatpush1.bf16.msra.mxu0 %v5241
    %7132 = vmatprep.mubr.bf16.mxu0 %v6718
    %7133 = vmatmul.mubr.bf16.gmra.mrb[0].mxu0 %v6717
    %v7134 = vpop.f32.mrb[0].mxu0
    %v7135 = vadd.f32 %v7094, %v7134
    %v7136 = vpop.f32.mrb[0].mxu0
    %v7137 = vadd.f32 %v7096, %v7136
    %v7138 = vpop.f32.mrb[0].mxu0
    %v7139 = vpop.f32.mrb[0].mxu0
    %7140 = vdwg.mxu0
    %7141 = vmatprep.subr.bf16.mxu0 %v5250
    %7142 = vmatpush1.bf16.msra.mxu0 %v5249
    %7143 = vmatprep.subr.bf16.mxu0 %v5258
    %7144 = vmatpush1.bf16.msra.mxu0 %v5257
    %7145 = vmatprep.subr.bf16.mxu0 %v5266
    %7146 = vmatpush1.bf16.msra.mxu0 %v5265
    %7147 = vmatprep.subr.bf16.mxu0 %v5274
    %7148 = vmatpush1.bf16.msra.mxu0 %v5273
    %7149 = vmatprep.subr.bf16.mxu0 %v5282
    %7150 = vmatpush1.bf16.msra.mxu0 %v5281
    %7151 = vmatprep.subr.bf16.mxu0 %v5290
    %7152 = vmatpush1.bf16.msra.mxu0 %v5289
    %7153 = vmatprep.subr.bf16.mxu0 %v5298
    %7154 = vmatpush1.bf16.msra.mxu0 %v5297
    %7155 = vmatprep.subr.bf16.mxu0 %v5306
    %7156 = vmatpush1.bf16.msra.mxu0 %v5305
    %7157 = vmatprep.subr.bf16.mxu0 %v5314
    %7158 = vmatpush1.bf16.msra.mxu0 %v5313
    %7159 = vmatprep.subr.bf16.mxu0 %v5322
    %7160 = vmatpush1.bf16.msra.mxu0 %v5321
    %7161 = vmatprep.subr.bf16.mxu0 %v5330
    %7162 = vmatpush1.bf16.msra.mxu0 %v5329
    %7163 = vmatprep.subr.bf16.mxu0 %v5338
    %7164 = vmatpush1.bf16.msra.mxu0 %v5337
    %7165 = vmatprep.subr.bf16.mxu0 %v5346
    %7166 = vmatpush1.bf16.msra.mxu0 %v5345
    %7167 = vmatprep.subr.bf16.mxu0 %v5354
    %7168 = vmatpush1.bf16.msra.mxu0 %v5353
    %7169 = vmatprep.subr.bf16.mxu0 %v5362
    %7170 = vmatpush1.bf16.msra.mxu0 %v5361
    %7171 = vmatprep.subr.bf16.mxu0 %v5370
    %7172 = vmatpush1.bf16.msra.mxu0 %v5369
    %7173 = vmatprep.mubr.bf16.mxu0 %v6720
    %7174 = vmatmul.mubr.bf16.gmra.mrb[0].mxu0 %v6719
    %v7175 = vpop.f32.mrb[0].mxu0
    %v7176 = vadd.f32 %v7135, %v7175
    %v7177 = vpop.f32.mrb[0].mxu0
    %v7178 = vadd.f32 %v7137, %v7177
    %v7179 = vpop.f32.mrb[0].mxu0
    %v7180 = vpop.f32.mrb[0].mxu0
    %7181 = vdwg.mxu0
    %7182 = vmatprep.subr.bf16.mxu0 %v5378
    %7183 = vmatpush1.bf16.msra.mxu0 %v5377
    %7184 = vmatprep.subr.bf16.mxu0 %v5386
    %7185 = vmatpush1.bf16.msra.mxu0 %v5385
    %7186 = vmatprep.subr.bf16.mxu0 %v5394
    %7187 = vmatpush1.bf16.msra.mxu0 %v5393
    %7188 = vmatprep.subr.bf16.mxu0 %v5402
    %7189 = vmatpush1.bf16.msra.mxu0 %v5401
    %7190 = vmatprep.subr.bf16.mxu0 %v5410
    %7191 = vmatpush1.bf16.msra.mxu0 %v5409
    %7192 = vmatprep.subr.bf16.mxu0 %v5418
    %7193 = vmatpush1.bf16.msra.mxu0 %v5417
    %7194 = vmatprep.subr.bf16.mxu0 %v5426
    %7195 = vmatpush1.bf16.msra.mxu0 %v5425
    %7196 = vmatprep.subr.bf16.mxu0 %v5434
    %7197 = vmatpush1.bf16.msra.mxu0 %v5433
    %7198 = vmatprep.subr.bf16.mxu0 %v5442
    %7199 = vmatpush1.bf16.msra.mxu0 %v5441
    %7200 = vmatprep.subr.bf16.mxu0 %v5450
    %7201 = vmatpush1.bf16.msra.mxu0 %v5449
    %7202 = vmatprep.subr.bf16.mxu0 %v5458
    %7203 = vmatpush1.bf16.msra.mxu0 %v5457
    %7204 = vmatprep.subr.bf16.mxu0 %v5466
    %7205 = vmatpush1.bf16.msra.mxu0 %v5465
    %7206 = vmatprep.subr.bf16.mxu0 %v5474
    %7207 = vmatpush1.bf16.msra.mxu0 %v5473
    %7208 = vmatprep.subr.bf16.mxu0 %v5482
    %7209 = vmatpush1.bf16.msra.mxu0 %v5481
    %7210 = vmatprep.subr.bf16.mxu0 %v5490
    %7211 = vmatpush1.bf16.msra.mxu0 %v5489
    %7212 = vmatprep.subr.bf16.mxu0 %v5498
    %7213 = vmatpush1.bf16.msra.mxu0 %v5497
    %7214 = vmatprep.mubr.bf16.mxu0 %v6722
    %7215 = vmatmul.mubr.bf16.gmra.mrb[0].mxu0 %v6721
    %v7216 = vpop.f32.mrb[0].mxu0
    %v7217 = vadd.f32 %v7176, %v7216
    %v7218 = vpop.f32.mrb[0].mxu0
    %v7219 = vadd.f32 %v7178, %v7218
    %v7220 = vpop.f32.mrb[0].mxu0
    %v7221 = vpop.f32.mrb[0].mxu0
    %7222 = vdwg.mxu0
    %7223 = vmatprep.subr.bf16.mxu0 %v4996
    %7224 = vmatpush1.bf16.msra.mxu0 %v4995
    %7225 = vmatprep.subr.bf16.mxu0 %v5004
    %7226 = vmatpush1.bf16.msra.mxu0 %v5003
    %7227 = vmatprep.subr.bf16.mxu0 %v5012
    %7228 = vmatpush1.bf16.msra.mxu0 %v5011
    %7229 = vmatprep.subr.bf16.mxu0 %v5020
    %7230 = vmatpush1.bf16.msra.mxu0 %v5019
    %7231 = vmatprep.subr.bf16.mxu0 %v5028
    %7232 = vmatpush1.bf16.msra.mxu0 %v5027
    %7233 = vmatprep.subr.bf16.mxu0 %v5036
    %7234 = vmatpush1.bf16.msra.mxu0 %v5035
    %7235 = vmatprep.subr.bf16.mxu0 %v5044
    %7236 = vmatpush1.bf16.msra.mxu0 %v5043
    %7237 = vmatprep.subr.bf16.mxu0 %v5052
    %7238 = vmatpush1.bf16.msra.mxu0 %v5051
    %7239 = vmatprep.subr.bf16.mxu0 %v5060
    %7240 = vmatpush1.bf16.msra.mxu0 %v5059
    %7241 = vmatprep.subr.bf16.mxu0 %v5068
    %7242 = vmatpush1.bf16.msra.mxu0 %v5067
    %7243 = vmatprep.subr.bf16.mxu0 %v5076
    %7244 = vmatpush1.bf16.msra.mxu0 %v5075
    %7245 = vmatprep.subr.bf16.mxu0 %v5084
    %7246 = vmatpush1.bf16.msra.mxu0 %v5083
    %7247 = vmatprep.subr.bf16.mxu0 %v5092
    %7248 = vmatpush1.bf16.msra.mxu0 %v5091
    %7249 = vmatprep.subr.bf16.mxu0 %v5100
    %7250 = vmatpush1.bf16.msra.mxu0 %v5099
    %7251 = vmatprep.subr.bf16.mxu0 %v5108
    %7252 = vmatpush1.bf16.msra.mxu0 %v5107
    %7253 = vmatprep.subr.bf16.mxu0 %v5116
    %7254 = vmatpush1.bf16.msra.mxu0 %v5115
    %7255 = vmatprep.mubr.bf16.mxu0 %v6716
    %7256 = vmatmul.mubr.bf16.gmra.mrb[0].mxu0 %v6715
    %v7257 = vpop.f32.mrb[0].mxu0
    %v7258 = vadd.f32 0.0, %v7257
    %v7259 = vpop.f32.mrb[0].mxu0
    %v7260 = vadd.f32 0.0, %v7259
    %v7261 = vpop.f32.mrb[0].mxu0
    %v7262 = vpop.f32.mrb[0].mxu0
    %7263 = vdwg.mxu0
    %7264 = vmatprep.subr.bf16.mxu0 %v5124
    %7265 = vmatpush1.bf16.msra.mxu0 %v5123
    %7266 = vmatprep.subr.bf16.mxu0 %v5132
    %7267 = vmatpush1.bf16.msra.mxu0 %v5131
    %7268 = vmatprep.subr.bf16.mxu0 %v5140
    %7269 = vmatpush1.bf16.msra.mxu0 %v5139
    %7270 = vmatprep.subr.bf16.mxu0 %v5148
    %7271 = vmatpush1.bf16.msra.mxu0 %v5147
    %7272 = vmatprep.subr.bf16.mxu0 %v5156
    %7273 = vmatpush1.bf16.msra.mxu0 %v5155
    %7274 = vmatprep.subr.bf16.mxu0 %v5164
    %7275 = vmatpush1.bf16.msra.mxu0 %v5163
    %7276 = vmatprep.subr.bf16.mxu0 %v5172
    %7277 = vmatpush1.bf16.msra.mxu0 %v5171
    %7278 = vmatprep.subr.bf16.mxu0 %v5180
    %7279 = vmatpush1.bf16.msra.mxu0 %v5179
    %7280 = vmatprep.subr.bf16.mxu0 %v5188
    %7281 = vmatpush1.bf16.msra.mxu0 %v5187
    %7282 = vmatprep.subr.bf16.mxu0 %v5196
    %7283 = vmatpush1.bf16.msra.mxu0 %v5195
    %7284 = vmatprep.subr.bf16.mxu0 %v5204
    %7285 = vmatpush1.bf16.msra.mxu0 %v5203
    %7286 = vmatprep.subr.bf16.mxu0 %v5212
    %7287 = vmatpush1.bf16.msra.mxu0 %v5211
    %7288 = vmatprep.subr.bf16.mxu0 %v5220
    %7289 = vmatpush1.bf16.msra.mxu0 %v5219
    %7290 = vmatprep.subr.bf16.mxu0 %v5228
    %7291 = vmatpush1.bf16.msra.mxu0 %v5227
    %7292 = vmatprep.subr.bf16.mxu0 %v5236
    %7293 = vmatpush1.bf16.msra.mxu0 %v5235
    %7294 = vmatprep.subr.bf16.mxu0 %v5244
    %7295 = vmatpush1.bf16.msra.mxu0 %v5243
    %7296 = vmatprep.mubr.bf16.mxu0 %v6718
    %7297 = vmatmul.mubr.bf16.gmra.mrb[0].mxu0 %v6717
    %v7298 = vpop.f32.mrb[0].mxu0
    %v7299 = vadd.f32 %v7258, %v7298
    %v7300 = vpop.f32.mrb[0].mxu0
    %v7301 = vadd.f32 %v7260, %v7300
    %v7302 = vpop.f32.mrb[0].mxu0
    %v7303 = vpop.f32.mrb[0].mxu0
    %7304 = vdwg.mxu0
    %7305 = vmatprep.subr.bf16.mxu0 %v5252
    %7306 = vmatpush1.bf16.msra.mxu0 %v5251
    %7307 = vmatprep.subr.bf16.mxu0 %v5260
    %7308 = vmatpush1.bf16.msra.mxu0 %v5259
    %7309 = vmatprep.subr.bf16.mxu0 %v5268
    %7310 = vmatpush1.bf16.msra.mxu0 %v5267
    %7311 = vmatprep.subr.bf16.mxu0 %v5276
    %7312 = vmatpush1.bf16.msra.mxu0 %v5275
    %7313 = vmatprep.subr.bf16.mxu0 %v5284
    %7314 = vmatpush1.bf16.msra.mxu0 %v5283
    %7315 = vmatprep.subr.bf16.mxu0 %v5292
    %7316 = vmatpush1.bf16.msra.mxu0 %v5291
    %7317 = vmatprep.subr.bf16.mxu0 %v5300
    %7318 = vmatpush1.bf16.msra.mxu0 %v5299
    %7319 = vmatprep.subr.bf16.mxu0 %v5308
    %7320 = vmatpush1.bf16.msra.mxu0 %v5307
    %7321 = vmatprep.subr.bf16.mxu0 %v5316
    %7322 = vmatpush1.bf16.msra.mxu0 %v5315
    %7323 = vmatprep.subr.bf16.mxu0 %v5324
    %7324 = vmatpush1.bf16.msra.mxu0 %v5323
    %7325 = vmatprep.subr.bf16.mxu0 %v5332
    %7326 = vmatpush1.bf16.msra.mxu0 %v5331
    %7327 = vmatprep.subr.bf16.mxu0 %v5340
    %7328 = vmatpush1.bf16.msra.mxu0 %v5339
    %7329 = vmatprep.subr.bf16.mxu0 %v5348
    %7330 = vmatpush1.bf16.msra.mxu0 %v5347
    %7331 = vmatprep.subr.bf16.mxu0 %v5356
    %7332 = vmatpush1.bf16.msra.mxu0 %v5355
    %7333 = vmatprep.subr.bf16.mxu0 %v5364
    %7334 = vmatpush1.bf16.msra.mxu0 %v5363
    %7335 = vmatprep.subr.bf16.mxu0 %v5372
    %7336 = vmatpush1.bf16.msra.mxu0 %v5371
    %7337 = vmatprep.mubr.bf16.mxu0 %v6720
    %7338 = vmatmul.mubr.bf16.gmra.mrb[0].mxu0 %v6719
    %v7339 = vpop.f32.mrb[0].mxu0
    %v7340 = vadd.f32 %v7299, %v7339
    %v7341 = vpop.f32.mrb[0].mxu0
    %v7342 = vadd.f32 %v7301, %v7341
    %v7343 = vpop.f32.mrb[0].mxu0
    %v7344 = vpop.f32.mrb[0].mxu0
    %7345 = vdwg.mxu0
    %7346 = vmatprep.subr.bf16.mxu0 %v5380
    %7347 = vmatpush1.bf16.msra.mxu0 %v5379
    %7348 = vmatprep.subr.bf16.mxu0 %v5388
    %7349 = vmatpush1.bf16.msra.mxu0 %v5387
    %7350 = vmatprep.subr.bf16.mxu0 %v5396
    %7351 = vmatpush1.bf16.msra.mxu0 %v5395
    %7352 = vmatprep.subr.bf16.mxu0 %v5404
    %7353 = vmatpush1.bf16.msra.mxu0 %v5403
    %7354 = vmatprep.subr.bf16.mxu0 %v5412
    %7355 = vmatpush1.bf16.msra.mxu0 %v5411
    %7356 = vmatprep.subr.bf16.mxu0 %v5420
    %7357 = vmatpush1.bf16.msra.mxu0 %v5419
    %7358 = vmatprep.subr.bf16.mxu0 %v5428
    %7359 = vmatpush1.bf16.msra.mxu0 %v5427
    %7360 = vmatprep.subr.bf16.mxu0 %v5436
    %7361 = vmatpush1.bf16.msra.mxu0 %v5435
    %7362 = vmatprep.subr.bf16.mxu0 %v5444
    %7363 = vmatpush1.bf16.msra.mxu0 %v5443
    %7364 = vmatprep.subr.bf16.mxu0 %v5452
    %7365 = vmatpush1.bf16.msra.mxu0 %v5451
    %7366 = vmatprep.subr.bf16.mxu0 %v5460
    %7367 = vmatpush1.bf16.msra.mxu0 %v5459
    %7368 = vmatprep.subr.bf16.mxu0 %v5468
    %7369 = vmatpush1.bf16.msra.mxu0 %v5467
    %7370 = vmatprep.subr.bf16.mxu0 %v5476
    %7371 = vmatpush1.bf16.msra.mxu0 %v5475
    %7372 = vmatprep.subr.bf16.mxu0 %v5484
    %7373 = vmatpush1.bf16.msra.mxu0 %v5483
    %7374 = vmatprep.subr.bf16.mxu0 %v5492
    %7375 = vmatpush1.bf16.msra.mxu0 %v5491
    %7376 = vmatprep.subr.bf16.mxu0 %v5500
    %7377 = vmatpush1.bf16.msra.mxu0 %v5499
    %7378 = vmatprep.mubr.bf16.mxu0 %v6722
    %7379 = vmatmul.mubr.bf16.gmra.mrb[0].mxu0 %v6721
    %v7380 = vpop.f32.mrb[0].mxu0
    %v7381 = vadd.f32 %v7340, %v7380
    %v7382 = vpop.f32.mrb[0].mxu0
    %v7383 = vadd.f32 %v7342, %v7382
    %v7384 = vpop.f32.mrb[0].mxu0
    %v7385 = vpop.f32.mrb[0].mxu0
    %7386 = vdwg.mxu0
    %v7387 = vmax.f32 %v6889, %v7053
    %v7388 = vmax.f32 %v6891, %v7055
    %v7389 = vmax.f32 %v7217, %v7381
    %v7390 = vmax.f32 %v7219, %v7383
    %v7391 = vmax.f32 %v7387, %v7389
    %v7392 = vmax.f32 %v7388, %v7390
    %v7393 = vadd.f32 %v7391, %v6679
    %v7394 = vadd.f32 %v7392, %v6683
    %v7395 = vmax.f32 %v7393, 0.0
    %v7396 = vmax.f32 %v7394, 0.0
    %v7397 = vpack.c.bf16 %v7395, %v7395
    %v7398 = vpack.c.bf16 %v7396, %v7396
    %v7401 = vunpack.c.l.b16 %v7397
    %v7402 = vunpack.c.l.b16 %v7398
    %v7403 = vpack.c.b16 %v7402, %v7401
    %7405 = vst [vmem:[#allocation3 + $0x8] sm:$0xff] %v7403
    %v7406 = vld [vmem:[#allocation2 + $0x20] sm:$0xff]
    %v7407 = vld [vmem:[#allocation2 + $0x28] sm:$0xff]
    %v7408 = vld [vmem:[#allocation2 + $0x30] sm:$0xff]
    %v7409 = vld [vmem:[#allocation2 + $0x38] sm:$0xff]
    %v7414 = vunpack.c.l.b16 %v7406
    %v7415 = vunpack.c.h.b16 %v7406
    %v7416 = vunpack.c.l.b16 %v7407
    %v7417 = vunpack.c.h.b16 %v7407
    %v7418 = vunpack.c.l.b16 %v7408
    %v7419 = vunpack.c.h.b16 %v7408
    %v7420 = vunpack.c.l.b16 %v7409
    %v7421 = vunpack.c.h.b16 %v7409
    %v7422 = vpack.c.b16 %v7414, %v7414
    %v7423 = vpack.c.b16 %v7415, %v7415
    %v7424 = vpack.c.b16 %v7416, %v7416
    %v7425 = vpack.c.b16 %v7417, %v7417
    %v7426 = vpack.c.b16 %v7418, %v7418
    %v7427 = vpack.c.b16 %v7419, %v7419
    %v7428 = vpack.c.b16 %v7420, %v7420
    %v7429 = vpack.c.b16 %v7421, %v7421
    %7438 = vmatprep.subr.bf16.mxu0 %v4990
    %7439 = vmatpush1.bf16.msra.mxu0 %v4989
    %7440 = vmatprep.subr.bf16.mxu0 %v4998
    %7441 = vmatpush1.bf16.msra.mxu0 %v4997
    %7442 = vmatprep.subr.bf16.mxu0 %v5006
    %7443 = vmatpush1.bf16.msra.mxu0 %v5005
    %7444 = vmatprep.subr.bf16.mxu0 %v5014
    %7445 = vmatpush1.bf16.msra.mxu0 %v5013
    %7446 = vmatprep.subr.bf16.mxu0 %v5022
    %7447 = vmatpush1.bf16.msra.mxu0 %v5021
    %7448 = vmatprep.subr.bf16.mxu0 %v5030
    %7449 = vmatpush1.bf16.msra.mxu0 %v5029
    %7450 = vmatprep.subr.bf16.mxu0 %v5038
    %7451 = vmatpush1.bf16.msra.mxu0 %v5037
    %7452 = vmatprep.subr.bf16.mxu0 %v5046
    %7453 = vmatpush1.bf16.msra.mxu0 %v5045
    %7454 = vmatprep.subr.bf16.mxu0 %v5054
    %7455 = vmatpush1.bf16.msra.mxu0 %v5053
    %7456 = vmatprep.subr.bf16.mxu0 %v5062
    %7457 = vmatpush1.bf16.msra.mxu0 %v5061
    %7458 = vmatprep.subr.bf16.mxu0 %v5070
    %7459 = vmatpush1.bf16.msra.mxu0 %v5069
    %7460 = vmatprep.subr.bf16.mxu0 %v5078
    %7461 = vmatpush1.bf16.msra.mxu0 %v5077
    %7462 = vmatprep.subr.bf16.mxu0 %v5086
    %7463 = vmatpush1.bf16.msra.mxu0 %v5085
    %7464 = vmatprep.subr.bf16.mxu0 %v5094
    %7465 = vmatpush1.bf16.msra.mxu0 %v5093
    %7466 = vmatprep.subr.bf16.mxu0 %v5102
    %7467 = vmatpush1.bf16.msra.mxu0 %v5101
    %7468 = vmatprep.subr.bf16.mxu0 %v5110
    %7469 = vmatpush1.bf16.msra.mxu0 %v5109
    %7470 = vmatprep.mubr.bf16.mxu0 %v7423
    %7471 = vmatmul.mubr.bf16.gmra.mrb[0].mxu0 %v7422
    %v7472 = vpop.f32.mrb[0].mxu0
    %v7473 = vadd.f32 0.0, %v7472
    %v7474 = vpop.f32.mrb[0].mxu0
    %v7475 = vadd.f32 0.0, %v7474
    %v7476 = vpop.f32.mrb[0].mxu0
    %v7477 = vpop.f32.mrb[0].mxu0
    %7478 = vdwg.mxu0
    %7479 = vmatprep.subr.bf16.mxu0 %v5118
    %7480 = vmatpush1.bf16.msra.mxu0 %v5117
    %7481 = vmatprep.subr.bf16.mxu0 %v5126
    %7482 = vmatpush1.bf16.msra.mxu0 %v5125
    %7483 = vmatprep.subr.bf16.mxu0 %v5134
    %7484 = vmatpush1.bf16.msra.mxu0 %v5133
    %7485 = vmatprep.subr.bf16.mxu0 %v5142
    %7486 = vmatpush1.bf16.msra.mxu0 %v5141
    %7487 = vmatprep.subr.bf16.mxu0 %v5150
    %7488 = vmatpush1.bf16.msra.mxu0 %v5149
    %7489 = vmatprep.subr.bf16.mxu0 %v5158
    %7490 = vmatpush1.bf16.msra.mxu0 %v5157
    %7491 = vmatprep.subr.bf16.mxu0 %v5166
    %7492 = vmatpush1.bf16.msra.mxu0 %v5165
    %7493 = vmatprep.subr.bf16.mxu0 %v5174
    %7494 = vmatpush1.bf16.msra.mxu0 %v5173
    %7495 = vmatprep.subr.bf16.mxu0 %v5182
    %7496 = vmatpush1.bf16.msra.mxu0 %v5181
    %7497 = vmatprep.subr.bf16.mxu0 %v5190
    %7498 = vmatpush1.bf16.msra.mxu0 %v5189
    %7499 = vmatprep.subr.bf16.mxu0 %v5198
    %7500 = vmatpush1.bf16.msra.mxu0 %v5197
    %7501 = vmatprep.subr.bf16.mxu0 %v5206
    %7502 = vmatpush1.bf16.msra.mxu0 %v5205
    %7503 = vmatprep.subr.bf16.mxu0 %v5214
    %7504 = vmatpush1.bf16.msra.mxu0 %v5213
    %7505 = vmatprep.subr.bf16.mxu0 %v5222
    %7506 = vmatpush1.bf16.msra.mxu0 %v5221
    %7507 = vmatprep.subr.bf16.mxu0 %v5230
    %7508 = vmatpush1.bf16.msra.mxu0 %v5229
    %7509 = vmatprep.subr.bf16.mxu0 %v5238
    %7510 = vmatpush1.bf16.msra.mxu0 %v5237
    %7511 = vmatprep.mubr.bf16.mxu0 %v7425
    %7512 = vmatmul.mubr.bf16.gmra.mrb[0].mxu0 %v7424
    %v7513 = vpop.f32.mrb[0].mxu0
    %v7514 = vadd.f32 %v7473, %v7513
    %v7515 = vpop.f32.mrb[0].mxu0
    %v7516 = vadd.f32 %v7475, %v7515
    %v7517 = vpop.f32.mrb[0].mxu0
    %v7518 = vpop.f32.mrb[0].mxu0
    %7519 = vdwg.mxu0
    %7520 = vmatprep.subr.bf16.mxu0 %v5246
    %7521 = vmatpush1.bf16.msra.mxu0 %v5245
    %7522 = vmatprep.subr.bf16.mxu0 %v5254
    %7523 = vmatpush1.bf16.msra.mxu0 %v5253
    %7524 = vmatprep.subr.bf16.mxu0 %v5262
    %7525 = vmatpush1.bf16.msra.mxu0 %v5261
    %7526 = vmatprep.subr.bf16.mxu0 %v5270
    %7527 = vmatpush1.bf16.msra.mxu0 %v5269
    %7528 = vmatprep.subr.bf16.mxu0 %v5278
    %7529 = vmatpush1.bf16.msra.mxu0 %v5277
    %7530 = vmatprep.subr.bf16.mxu0 %v5286
    %7531 = vmatpush1.bf16.msra.mxu0 %v5285
    %7532 = vmatprep.subr.bf16.mxu0 %v5294
    %7533 = vmatpush1.bf16.msra.mxu0 %v5293
    %7534 = vmatprep.subr.bf16.mxu0 %v5302
    %7535 = vmatpush1.bf16.msra.mxu0 %v5301
    %7536 = vmatprep.subr.bf16.mxu0 %v5310
    %7537 = vmatpush1.bf16.msra.mxu0 %v5309
    %7538 = vmatprep.subr.bf16.mxu0 %v5318
    %7539 = vmatpush1.bf16.msra.mxu0 %v5317
    %7540 = vmatprep.subr.bf16.mxu0 %v5326
    %7541 = vmatpush1.bf16.msra.mxu0 %v5325
    %7542 = vmatprep.subr.bf16.mxu0 %v5334
    %7543 = vmatpush1.bf16.msra.mxu0 %v5333
    %7544 = vmatprep.subr.bf16.mxu0 %v5342
    %7545 = vmatpush1.bf16.msra.mxu0 %v5341
    %7546 = vmatprep.subr.bf16.mxu0 %v5350
    %7547 = vmatpush1.bf16.msra.mxu0 %v5349
    %7548 = vmatprep.subr.bf16.mxu0 %v5358
    %7549 = vmatpush1.bf16.msra.mxu0 %v5357
    %7550 = vmatprep.subr.bf16.mxu0 %v5366
    %7551 = vmatpush1.bf16.msra.mxu0 %v5365
    %7552 = vmatprep.mubr.bf16.mxu0 %v7427
    %7553 = vmatmul.mubr.bf16.gmra.mrb[0].mxu0 %v7426
    %v7554 = vpop.f32.mrb[0].mxu0
    %v7555 = vadd.f32 %v7514, %v7554
    %v7556 = vpop.f32.mrb[0].mxu0
    %v7557 = vadd.f32 %v7516, %v7556
    %v7558 = vpop.f32.mrb[0].mxu0
    %v7559 = vpop.f32.mrb[0].mxu0
    %7560 = vdwg.mxu0
    %7561 = vmatprep.subr.bf16.mxu0 %v5374
    %7562 = vmatpush1.bf16.msra.mxu0 %v5373
    %7563 = vmatprep.subr.bf16.mxu0 %v5382
    %7564 = vmatpush1.bf16.msra.mxu0 %v5381
    %7565 = vmatprep.subr.bf16.mxu0 %v5390
    %7566 = vmatpush1.bf16.msra.mxu0 %v5389
    %7567 = vmatprep.subr.bf16.mxu0 %v5398
    %7568 = vmatpush1.bf16.msra.mxu0 %v5397
    %7569 = vmatprep.subr.bf16.mxu0 %v5406
    %7570 = vmatpush1.bf16.msra.mxu0 %v5405
    %7571 = vmatprep.subr.bf16.mxu0 %v5414
    %7572 = vmatpush1.bf16.msra.mxu0 %v5413
    %7573 = vmatprep.subr.bf16.mxu0 %v5422
    %7574 = vmatpush1.bf16.msra.mxu0 %v5421
    %7575 = vmatprep.subr.bf16.mxu0 %v5430
    %7576 = vmatpush1.bf16.msra.mxu0 %v5429
    %7577 = vmatprep.subr.bf16.mxu0 %v5438
    %7578 = vmatpush1.bf16.msra.mxu0 %v5437
    %7579 = vmatprep.subr.bf16.mxu0 %v5446
    %7580 = vmatpush1.bf16.msra.mxu0 %v5445
    %7581 = vmatprep.subr.bf16.mxu0 %v5454
    %7582 = vmatpush1.bf16.msra.mxu0 %v5453
    %7583 = vmatprep.subr.bf16.mxu0 %v5462
    %7584 = vmatpush1.bf16.msra.mxu0 %v5461
    %7585 = vmatprep.subr.bf16.mxu0 %v5470
    %7586 = vmatpush1.bf16.msra.mxu0 %v5469
    %7587 = vmatprep.subr.bf16.mxu0 %v5478
    %7588 = vmatpush1.bf16.msra.mxu0 %v5477
    %7589 = vmatprep.subr.bf16.mxu0 %v5486
    %7590 = vmatpush1.bf16.msra.mxu0 %v5485
    %7591 = vmatprep.subr.bf16.mxu0 %v5494
    %7592 = vmatpush1.bf16.msra.mxu0 %v5493
    %7593 = vmatprep.mubr.bf16.mxu0 %v7429
    %7594 = vmatmul.mubr.bf16.gmra.mrb[0].mxu0 %v7428
    %v7595 = vpop.f32.mrb[0].mxu0
    %v7596 = vadd.f32 %v7555, %v7595
    %v7597 = vpop.f32.mrb[0].mxu0
    %v7598 = vadd.f32 %v7557, %v7597
    %v7599 = vpop.f32.mrb[0].mxu0
    %v7600 = vpop.f32.mrb[0].mxu0
    %7601 = vdwg.mxu0
    %7602 = vmatprep.subr.bf16.mxu0 %v4992
    %7603 = vmatpush1.bf16.msra.mxu0 %v4991
    %7604 = vmatprep.subr.bf16.mxu0 %v5000
    %7605 = vmatpush1.bf16.msra.mxu0 %v4999
    %7606 = vmatprep.subr.bf16.mxu0 %v5008
    %7607 = vmatpush1.bf16.msra.mxu0 %v5007
    %7608 = vmatprep.subr.bf16.mxu0 %v5016
    %7609 = vmatpush1.bf16.msra.mxu0 %v5015
    %7610 = vmatprep.subr.bf16.mxu0 %v5024
    %7611 = vmatpush1.bf16.msra.mxu0 %v5023
    %7612 = vmatprep.subr.bf16.mxu0 %v5032
    %7613 = vmatpush1.bf16.msra.mxu0 %v5031
    %7614 = vmatprep.subr.bf16.mxu0 %v5040
    %7615 = vmatpush1.bf16.msra.mxu0 %v5039
    %7616 = vmatprep.subr.bf16.mxu0 %v5048
    %7617 = vmatpush1.bf16.msra.mxu0 %v5047
    %7618 = vmatprep.subr.bf16.mxu0 %v5056
    %7619 = vmatpush1.bf16.msra.mxu0 %v5055
    %7620 = vmatprep.subr.bf16.mxu0 %v5064
    %7621 = vmatpush1.bf16.msra.mxu0 %v5063
    %7622 = vmatprep.subr.bf16.mxu0 %v5072
    %7623 = vmatpush1.bf16.msra.mxu0 %v5071
    %7624 = vmatprep.subr.bf16.mxu0 %v5080
    %7625 = vmatpush1.bf16.msra.mxu0 %v5079
    %7626 = vmatprep.subr.bf16.mxu0 %v5088
    %7627 = vmatpush1.bf16.msra.mxu0 %v5087
    %7628 = vmatprep.subr.bf16.mxu0 %v5096
    %7629 = vmatpush1.bf16.msra.mxu0 %v5095
    %7630 = vmatprep.subr.bf16.mxu0 %v5104
    %7631 = vmatpush1.bf16.msra.mxu0 %v5103
    %7632 = vmatprep.subr.bf16.mxu0 %v5112
    %7633 = vmatpush1.bf16.msra.mxu0 %v5111
    %7634 = vmatprep.mubr.bf16.mxu0 %v7423
    %7635 = vmatmul.mubr.bf16.gmra.mrb[0].mxu0 %v7422
    %v7636 = vpop.f32.mrb[0].mxu0
    %v7637 = vadd.f32 0.0, %v7636
    %v7638 = vpop.f32.mrb[0].mxu0
    %v7639 = vadd.f32 0.0, %v7638
    %v7640 = vpop.f32.mrb[0].mxu0
    %v7641 = vpop.f32.mrb[0].mxu0
    %7642 = vdwg.mxu0
    %7643 = vmatprep.subr.bf16.mxu0 %v5120
    %7644 = vmatpush1.bf16.msra.mxu0 %v5119
    %7645 = vmatprep.subr.bf16.mxu0 %v5128
    %7646 = vmatpush1.bf16.msra.mxu0 %v5127
    %7647 = vmatprep.subr.bf16.mxu0 %v5136
    %7648 = vmatpush1.bf16.msra.mxu0 %v5135
    %7649 = vmatprep.subr.bf16.mxu0 %v5144
    %7650 = vmatpush1.bf16.msra.mxu0 %v5143
    %7651 = vmatprep.subr.bf16.mxu0 %v5152
    %7652 = vmatpush1.bf16.msra.mxu0 %v5151
    %7653 = vmatprep.subr.bf16.mxu0 %v5160
    %7654 = vmatpush1.bf16.msra.mxu0 %v5159
    %7655 = vmatprep.subr.bf16.mxu0 %v5168
    %7656 = vmatpush1.bf16.msra.mxu0 %v5167
    %7657 = vmatprep.subr.bf16.mxu0 %v5176
    %7658 = vmatpush1.bf16.msra.mxu0 %v5175
    %7659 = vmatprep.subr.bf16.mxu0 %v5184
    %7660 = vmatpush1.bf16.msra.mxu0 %v5183
    %7661 = vmatprep.subr.bf16.mxu0 %v5192
    %7662 = vmatpush1.bf16.msra.mxu0 %v5191
    %7663 = vmatprep.subr.bf16.mxu0 %v5200
    %7664 = vmatpush1.bf16.msra.mxu0 %v5199
    %7665 = vmatprep.subr.bf16.mxu0 %v5208
    %7666 = vmatpush1.bf16.msra.mxu0 %v5207
    %7667 = vmatprep.subr.bf16.mxu0 %v5216
    %7668 = vmatpush1.bf16.msra.mxu0 %v5215
    %7669 = vmatprep.subr.bf16.mxu0 %v5224
    %7670 = vmatpush1.bf16.msra.mxu0 %v5223
    %7671 = vmatprep.subr.bf16.mxu0 %v5232
    %7672 = vmatpush1.bf16.msra.mxu0 %v5231
    %7673 = vmatprep.subr.bf16.mxu0 %v5240
    %7674 = vmatpush1.bf16.msra.mxu0 %v5239
    %7675 = vmatprep.mubr.bf16.mxu0 %v7425
    %7676 = vmatmul.mubr.bf16.gmra.mrb[0].mxu0 %v7424
    %v7677 = vpop.f32.mrb[0].mxu0
    %v7678 = vadd.f32 %v7637, %v7677
    %v7679 = vpop.f32.mrb[0].mxu0
    %v7680 = vadd.f32 %v7639, %v7679
    %v7681 = vpop.f32.mrb[0].mxu0
    %v7682 = vpop.f32.mrb[0].mxu0
    %7683 = vdwg.mxu0
    %7684 = vmatprep.subr.bf16.mxu0 %v5248
    %7685 = vmatpush1.bf16.msra.mxu0 %v5247
    %7686 = vmatprep.subr.bf16.mxu0 %v5256
    %7687 = vmatpush1.bf16.msra.mxu0 %v5255
    %7688 = vmatprep.subr.bf16.mxu0 %v5264
    %7689 = vmatpush1.bf16.msra.mxu0 %v5263
    %7690 = vmatprep.subr.bf16.mxu0 %v5272
    %7691 = vmatpush1.bf16.msra.mxu0 %v5271
    %7692 = vmatprep.subr.bf16.mxu0 %v5280
    %7693 = vmatpush1.bf16.msra.mxu0 %v5279
    %7694 = vmatprep.subr.bf16.mxu0 %v5288
    %7695 = vmatpush1.bf16.msra.mxu0 %v5287
    %7696 = vmatprep.subr.bf16.mxu0 %v5296
    %7697 = vmatpush1.bf16.msra.mxu0 %v5295
    %7698 = vmatprep.subr.bf16.mxu0 %v5304
    %7699 = vmatpush1.bf16.msra.mxu0 %v5303
    %7700 = vmatprep.subr.bf16.mxu0 %v5312
    %7701 = vmatpush1.bf16.msra.mxu0 %v5311
    %7702 = vmatprep.subr.bf16.mxu0 %v5320
    %7703 = vmatpush1.bf16.msra.mxu0 %v5319
    %7704 = vmatprep.subr.bf16.mxu0 %v5328
    %7705 = vmatpush1.bf16.msra.mxu0 %v5327
    %7706 = vmatprep.subr.bf16.mxu0 %v5336
    %7707 = vmatpush1.bf16.msra.mxu0 %v5335
    %7708 = vmatprep.subr.bf16.mxu0 %v5344
    %7709 = vmatpush1.bf16.msra.mxu0 %v5343
    %7710 = vmatprep.subr.bf16.mxu0 %v5352
    %7711 = vmatpush1.bf16.msra.mxu0 %v5351
    %7712 = vmatprep.subr.bf16.mxu0 %v5360
    %7713 = vmatpush1.bf16.msra.mxu0 %v5359
    %7714 = vmatprep.subr.bf16.mxu0 %v5368
    %7715 = vmatpush1.bf16.msra.mxu0 %v5367
    %7716 = vmatprep.mubr.bf16.mxu0 %v7427
    %7717 = vmatmul.mubr.bf16.gmra.mrb[0].mxu0 %v7426
    %v7718 = vpop.f32.mrb[0].mxu0
    %v7719 = vadd.f32 %v7678, %v7718
    %v7720 = vpop.f32.mrb[0].mxu0
    %v7721 = vadd.f32 %v7680, %v7720
    %v7722 = vpop.f32.mrb[0].mxu0
    %v7723 = vpop.f32.mrb[0].mxu0
    %7724 = vdwg.mxu0
    %7725 = vmatprep.subr.bf16.mxu0 %v5376
    %7726 = vmatpush1.bf16.msra.mxu0 %v5375
    %7727 = vmatprep.subr.bf16.mxu0 %v5384
    %7728 = vmatpush1.bf16.msra.mxu0 %v5383
    %7729 = vmatprep.subr.bf16.mxu0 %v5392
    %7730 = vmatpush1.bf16.msra.mxu0 %v5391
    %7731 = vmatprep.subr.bf16.mxu0 %v5400
    %7732 = vmatpush1.bf16.msra.mxu0 %v5399
    %7733 = vmatprep.subr.bf16.mxu0 %v5408
    %7734 = vmatpush1.bf16.msra.mxu0 %v5407
    %7735 = vmatprep.subr.bf16.mxu0 %v5416
    %7736 = vmatpush1.bf16.msra.mxu0 %v5415
    %7737 = vmatprep.subr.bf16.mxu0 %v5424
    %7738 = vmatpush1.bf16.msra.mxu0 %v5423
    %7739 = vmatprep.subr.bf16.mxu0 %v5432
    %7740 = vmatpush1.bf16.msra.mxu0 %v5431
    %7741 = vmatprep.subr.bf16.mxu0 %v5440
    %7742 = vmatpush1.bf16.msra.mxu0 %v5439
    %7743 = vmatprep.subr.bf16.mxu0 %v5448
    %7744 = vmatpush1.bf16.msra.mxu0 %v5447
    %7745 = vmatprep.subr.bf16.mxu0 %v5456
    %7746 = vmatpush1.bf16.msra.mxu0 %v5455
    %7747 = vmatprep.subr.bf16.mxu0 %v5464
    %7748 = vmatpush1.bf16.msra.mxu0 %v5463
    %7749 = vmatprep.subr.bf16.mxu0 %v5472
    %7750 = vmatpush1.bf16.msra.mxu0 %v5471
    %7751 = vmatprep.subr.bf16.mxu0 %v5480
    %7752 = vmatpush1.bf16.msra.mxu0 %v5479
    %7753 = vmatprep.subr.bf16.mxu0 %v5488
    %7754 = vmatpush1.bf16.msra.mxu0 %v5487
    %7755 = vmatprep.subr.bf16.mxu0 %v5496
    %7756 = vmatpush1.bf16.msra.mxu0 %v5495
    %7757 = vmatprep.mubr.bf16.mxu0 %v7429
    %7758 = vmatmul.mubr.bf16.gmra.mrb[0].mxu0 %v7428
    %v7759 = vpop.f32.mrb[0].mxu0
    %v7760 = vadd.f32 %v7719, %v7759
    %v7761 = vpop.f32.mrb[0].mxu0
    %v7762 = vadd.f32 %v7721, %v7761
    %v7763 = vpop.f32.mrb[0].mxu0
    %v7764 = vpop.f32.mrb[0].mxu0
    %7765 = vdwg.mxu0
    %7766 = vmatprep.subr.bf16.mxu0 %v4994
    %7767 = vmatpush1.bf16.msra.mxu0 %v4993
    %7768 = vmatprep.subr.bf16.mxu0 %v5002
    %7769 = vmatpush1.bf16.msra.mxu0 %v5001
    %7770 = vmatprep.subr.bf16.mxu0 %v5010
    %7771 = vmatpush1.bf16.msra.mxu0 %v5009
    %7772 = vmatprep.subr.bf16.mxu0 %v5018
    %7773 = vmatpush1.bf16.msra.mxu0 %v5017
    %7774 = vmatprep.subr.bf16.mxu0 %v5026
    %7775 = vmatpush1.bf16.msra.mxu0 %v5025
    %7776 = vmatprep.subr.bf16.mxu0 %v5034
    %7777 = vmatpush1.bf16.msra.mxu0 %v5033
    %7778 = vmatprep.subr.bf16.mxu0 %v5042
    %7779 = vmatpush1.bf16.msra.mxu0 %v5041
    %7780 = vmatprep.subr.bf16.mxu0 %v5050
    %7781 = vmatpush1.bf16.msra.mxu0 %v5049
    %7782 = vmatprep.subr.bf16.mxu0 %v5058
    %7783 = vmatpush1.bf16.msra.mxu0 %v5057
    %7784 = vmatprep.subr.bf16.mxu0 %v5066
    %7785 = vmatpush1.bf16.msra.mxu0 %v5065
    %7786 = vmatprep.subr.bf16.mxu0 %v5074
    %7787 = vmatpush1.bf16.msra.mxu0 %v5073
    %7788 = vmatprep.subr.bf16.mxu0 %v5082
    %7789 = vmatpush1.bf16.msra.mxu0 %v5081
    %7790 = vmatprep.subr.bf16.mxu0 %v5090
    %7791 = vmatpush1.bf16.msra.mxu0 %v5089
    %7792 = vmatprep.subr.bf16.mxu0 %v5098
    %7793 = vmatpush1.bf16.msra.mxu0 %v5097
    %7794 = vmatprep.subr.bf16.mxu0 %v5106
    %7795 = vmatpush1.bf16.msra.mxu0 %v5105
    %7796 = vmatprep.subr.bf16.mxu0 %v5114
    %7797 = vmatpush1.bf16.msra.mxu0 %v5113
    %7798 = vmatprep.mubr.bf16.mxu0 %v7423
    %7799 = vmatmul.mubr.bf16.gmra.mrb[0].mxu0 %v7422
    %v7800 = vpop.f32.mrb[0].mxu0
    %v7801 = vadd.f32 0.0, %v7800
    %v7802 = vpop.f32.mrb[0].mxu0
    %v7803 = vadd.f32 0.0, %v7802
    %v7804 = vpop.f32.mrb[0].mxu0
    %v7805 = vpop.f32.mrb[0].mxu0
    %7806 = vdwg.mxu0
    %7807 = vmatprep.subr.bf16.mxu0 %v5122
    %7808 = vmatpush1.bf16.msra.mxu0 %v5121
    %7809 = vmatprep.subr.bf16.mxu0 %v5130
    %7810 = vmatpush1.bf16.msra.mxu0 %v5129
    %7811 = vmatprep.subr.bf16.mxu0 %v5138
    %7812 = vmatpush1.bf16.msra.mxu0 %v5137
    %7813 = vmatprep.subr.bf16.mxu0 %v5146
    %7814 = vmatpush1.bf16.msra.mxu0 %v5145
    %7815 = vmatprep.subr.bf16.mxu0 %v5154
    %7816 = vmatpush1.bf16.msra.mxu0 %v5153
    %7817 = vmatprep.subr.bf16.mxu0 %v5162
    %7818 = vmatpush1.bf16.msra.mxu0 %v5161
    %7819 = vmatprep.subr.bf16.mxu0 %v5170
    %7820 = vmatpush1.bf16.msra.mxu0 %v5169
    %7821 = vmatprep.subr.bf16.mxu0 %v5178
    %7822 = vmatpush1.bf16.msra.mxu0 %v5177
    %7823 = vmatprep.subr.bf16.mxu0 %v5186
    %7824 = vmatpush1.bf16.msra.mxu0 %v5185
    %7825 = vmatprep.subr.bf16.mxu0 %v5194
    %7826 = vmatpush1.bf16.msra.mxu0 %v5193
    %7827 = vmatprep.subr.bf16.mxu0 %v5202
    %7828 = vmatpush1.bf16.msra.mxu0 %v5201
    %7829 = vmatprep.subr.bf16.mxu0 %v5210
    %7830 = vmatpush1.bf16.msra.mxu0 %v5209
    %7831 = vmatprep.subr.bf16.mxu0 %v5218
    %7832 = vmatpush1.bf16.msra.mxu0 %v5217
    %7833 = vmatprep.subr.bf16.mxu0 %v5226
    %7834 = vmatpush1.bf16.msra.mxu0 %v5225
    %7835 = vmatprep.subr.bf16.mxu0 %v5234
    %7836 = vmatpush1.bf16.msra.mxu0 %v5233
    %7837 = vmatprep.subr.bf16.mxu0 %v5242
    %7838 = vmatpush1.bf16.msra.mxu0 %v5241
    %7839 = vmatprep.mubr.bf16.mxu0 %v7425
    %7840 = vmatmul.mubr.bf16.gmra.mrb[0].mxu0 %v7424
    %v7841 = vpop.f32.mrb[0].mxu0
    %v7842 = vadd.f32 %v7801, %v7841
    %v7843 = vpop.f32.mrb[0].mxu0
    %v7844 = vadd.f32 %v7803, %v7843
    %v7845 = vpop.f32.mrb[0].mxu0
    %v7846 = vpop.f32.mrb[0].mxu0
    %7847 = vdwg.mxu0
    %7848 = vmatprep.subr.bf16.mxu0 %v5250
    %7849 = vmatpush1.bf16.msra.mxu0 %v5249
    %7850 = vmatprep.subr.bf16.mxu0 %v5258
    %7851 = vmatpush1.bf16.msra.mxu0 %v5257
    %7852 = vmatprep.subr.bf16.mxu0 %v5266
    %7853 = vmatpush1.bf16.msra.mxu0 %v5265
    %7854 = vmatprep.subr.bf16.mxu0 %v5274
    %7855 = vmatpush1.bf16.msra.mxu0 %v5273
    %7856 = vmatprep.subr.bf16.mxu0 %v5282
    %7857 = vmatpush1.bf16.msra.mxu0 %v5281
    %7858 = vmatprep.subr.bf16.mxu0 %v5290
    %7859 = vmatpush1.bf16.msra.mxu0 %v5289
    %7860 = vmatprep.subr.bf16.mxu0 %v5298
    %7861 = vmatpush1.bf16.msra.mxu0 %v5297
    %7862 = vmatprep.subr.bf16.mxu0 %v5306
    %7863 = vmatpush1.bf16.msra.mxu0 %v5305
    %7864 = vmatprep.subr.bf16.mxu0 %v5314
    %7865 = vmatpush1.bf16.msra.mxu0 %v5313
    %7866 = vmatprep.subr.bf16.mxu0 %v5322
    %7867 = vmatpush1.bf16.msra.mxu0 %v5321
    %7868 = vmatprep.subr.bf16.mxu0 %v5330
    %7869 = vmatpush1.bf16.msra.mxu0 %v5329
    %7870 = vmatprep.subr.bf16.mxu0 %v5338
    %7871 = vmatpush1.bf16.msra.mxu0 %v5337
    %7872 = vmatprep.subr.bf16.mxu0 %v5346
    %7873 = vmatpush1.bf16.msra.mxu0 %v5345
    %7874 = vmatprep.subr.bf16.mxu0 %v5354
    %7875 = vmatpush1.bf16.msra.mxu0 %v5353
    %7876 = vmatprep.subr.bf16.mxu0 %v5362
    %7877 = vmatpush1.bf16.msra.mxu0 %v5361
    %7878 = vmatprep.subr.bf16.mxu0 %v5370
    %7879 = vmatpush1.bf16.msra.mxu0 %v5369
    %7880 = vmatprep.mubr.bf16.mxu0 %v7427
    %7881 = vmatmul.mubr.bf16.gmra.mrb[0].mxu0 %v7426
    %v7882 = vpop.f32.mrb[0].mxu0
    %v7883 = vadd.f32 %v7842, %v7882
    %v7884 = vpop.f32.mrb[0].mxu0
    %v7885 = vadd.f32 %v7844, %v7884
    %v7886 = vpop.f32.mrb[0].mxu0
    %v7887 = vpop.f32.mrb[0].mxu0
    %7888 = vdwg.mxu0
    %7889 = vmatprep.subr.bf16.mxu0 %v5378
    %7890 = vmatpush1.bf16.msra.mxu0 %v5377
    %7891 = vmatprep.subr.bf16.mxu0 %v5386
    %7892 = vmatpush1.bf16.msra.mxu0 %v5385
    %7893 = vmatprep.subr.bf16.mxu0 %v5394
    %7894 = vmatpush1.bf16.msra.mxu0 %v5393
    %7895 = vmatprep.subr.bf16.mxu0 %v5402
    %7896 = vmatpush1.bf16.msra.mxu0 %v5401
    %7897 = vmatprep.subr.bf16.mxu0 %v5410
    %7898 = vmatpush1.bf16.msra.mxu0 %v5409
    %7899 = vmatprep.subr.bf16.mxu0 %v5418
    %7900 = vmatpush1.bf16.msra.mxu0 %v5417
    %7901 = vmatprep.subr.bf16.mxu0 %v5426
    %7902 = vmatpush1.bf16.msra.mxu0 %v5425
    %7903 = vmatprep.subr.bf16.mxu0 %v5434
    %7904 = vmatpush1.bf16.msra.mxu0 %v5433
    %7905 = vmatprep.subr.bf16.mxu0 %v5442
    %7906 = vmatpush1.bf16.msra.mxu0 %v5441
    %7907 = vmatprep.subr.bf16.mxu0 %v5450
    %7908 = vmatpush1.bf16.msra.mxu0 %v5449
    %7909 = vmatprep.subr.bf16.mxu0 %v5458
    %7910 = vmatpush1.bf16.msra.mxu0 %v5457
    %7911 = vmatprep.subr.bf16.mxu0 %v5466
    %7912 = vmatpush1.bf16.msra.mxu0 %v5465
    %7913 = vmatprep.subr.bf16.mxu0 %v5474
    %7914 = vmatpush1.bf16.msra.mxu0 %v5473
    %7915 = vmatprep.subr.bf16.mxu0 %v5482
    %7916 = vmatpush1.bf16.msra.mxu0 %v5481
    %7917 = vmatprep.subr.bf16.mxu0 %v5490
    %7918 = vmatpush1.bf16.msra.mxu0 %v5489
    %7919 = vmatprep.subr.bf16.mxu0 %v5498
    %7920 = vmatpush1.bf16.msra.mxu0 %v5497
    %7921 = vmatprep.mubr.bf16.mxu0 %v7429
    %7922 = vmatmul.mubr.bf16.gmra.mrb[0].mxu0 %v7428
    %v7923 = vpop.f32.mrb[0].mxu0
    %v7924 = vadd.f32 %v7883, %v7923
    %v7925 = vpop.f32.mrb[0].mxu0
    %v7926 = vadd.f32 %v7885, %v7925
    %v7927 = vpop.f32.mrb[0].mxu0
    %v7928 = vpop.f32.mrb[0].mxu0
    %7929 = vdwg.mxu0
    %7930 = vmatprep.subr.bf16.mxu0 %v4996
    %7931 = vmatpush1.bf16.msra.mxu0 %v4995
    %7932 = vmatprep.subr.bf16.mxu0 %v5004
    %7933 = vmatpush1.bf16.msra.mxu0 %v5003
    %7934 = vmatprep.subr.bf16.mxu0 %v5012
    %7935 = vmatpush1.bf16.msra.mxu0 %v5011
    %7936 = vmatprep.subr.bf16.mxu0 %v5020
    %7937 = vmatpush1.bf16.msra.mxu0 %v5019
    %7938 = vmatprep.subr.bf16.mxu0 %v5028
    %7939 = vmatpush1.bf16.msra.mxu0 %v5027
    %7940 = vmatprep.subr.bf16.mxu0 %v5036
    %7941 = vmatpush1.bf16.msra.mxu0 %v5035
    %7942 = vmatprep.subr.bf16.mxu0 %v5044
    %7943 = vmatpush1.bf16.msra.mxu0 %v5043
    %7944 = vmatprep.subr.bf16.mxu0 %v5052
    %7945 = vmatpush1.bf16.msra.mxu0 %v5051
    %7946 = vmatprep.subr.bf16.mxu0 %v5060
    %7947 = vmatpush1.bf16.msra.mxu0 %v5059
    %7948 = vmatprep.subr.bf16.mxu0 %v5068
    %7949 = vmatpush1.bf16.msra.mxu0 %v5067
    %7950 = vmatprep.subr.bf16.mxu0 %v5076
    %7951 = vmatpush1.bf16.msra.mxu0 %v5075
    %7952 = vmatprep.subr.bf16.mxu0 %v5084
    %7953 = vmatpush1.bf16.msra.mxu0 %v5083
    %7954 = vmatprep.subr.bf16.mxu0 %v5092
    %7955 = vmatpush1.bf16.msra.mxu0 %v5091
    %7956 = vmatprep.subr.bf16.mxu0 %v5100
    %7957 = vmatpush1.bf16.msra.mxu0 %v5099
    %7958 = vmatprep.subr.bf16.mxu0 %v5108
    %7959 = vmatpush1.bf16.msra.mxu0 %v5107
    %7960 = vmatprep.subr.bf16.mxu0 %v5116
    %7961 = vmatpush1.bf16.msra.mxu0 %v5115
    %7962 = vmatprep.mubr.bf16.mxu0 %v7423
    %7963 = vmatmul.mubr.bf16.gmra.mrb[0].mxu0 %v7422
    %v7964 = vpop.f32.mrb[0].mxu0
    %v7965 = vadd.f32 0.0, %v7964
    %v7966 = vpop.f32.mrb[0].mxu0
    %v7967 = vadd.f32 0.0, %v7966
    %v7968 = vpop.f32.mrb[0].mxu0
    %v7969 = vpop.f32.mrb[0].mxu0
    %7970 = vdwg.mxu0
    %7971 = vmatprep.subr.bf16.mxu0 %v5124
    %7972 = vmatpush1.bf16.msra.mxu0 %v5123
    %7973 = vmatprep.subr.bf16.mxu0 %v5132
    %7974 = vmatpush1.bf16.msra.mxu0 %v5131
    %7975 = vmatprep.subr.bf16.mxu0 %v5140
    %7976 = vmatpush1.bf16.msra.mxu0 %v5139
    %7977 = vmatprep.subr.bf16.mxu0 %v5148
    %7978 = vmatpush1.bf16.msra.mxu0 %v5147
    %7979 = vmatprep.subr.bf16.mxu0 %v5156
    %7980 = vmatpush1.bf16.msra.mxu0 %v5155
    %7981 = vmatprep.subr.bf16.mxu0 %v5164
    %7982 = vmatpush1.bf16.msra.mxu0 %v5163
    %7983 = vmatprep.subr.bf16.mxu0 %v5172
    %7984 = vmatpush1.bf16.msra.mxu0 %v5171
    %7985 = vmatprep.subr.bf16.mxu0 %v5180
    %7986 = vmatpush1.bf16.msra.mxu0 %v5179
    %7987 = vmatprep.subr.bf16.mxu0 %v5188
    %7988 = vmatpush1.bf16.msra.mxu0 %v5187
    %7989 = vmatprep.subr.bf16.mxu0 %v5196
    %7990 = vmatpush1.bf16.msra.mxu0 %v5195
    %7991 = vmatprep.subr.bf16.mxu0 %v5204
    %7992 = vmatpush1.bf16.msra.mxu0 %v5203
    %7993 = vmatprep.subr.bf16.mxu0 %v5212
    %7994 = vmatpush1.bf16.msra.mxu0 %v5211
    %7995 = vmatprep.subr.bf16.mxu0 %v5220
    %7996 = vmatpush1.bf16.msra.mxu0 %v5219
    %7997 = vmatprep.subr.bf16.mxu0 %v5228
    %7998 = vmatpush1.bf16.msra.mxu0 %v5227
    %7999 = vmatprep.subr.bf16.mxu0 %v5236
    %8000 = vmatpush1.bf16.msra.mxu0 %v5235
    %8001 = vmatprep.subr.bf16.mxu0 %v5244
    %8002 = vmatpush1.bf16.msra.mxu0 %v5243
    %8003 = vmatprep.mubr.bf16.mxu0 %v7425
    %8004 = vmatmul.mubr.bf16.gmra.mrb[0].mxu0 %v7424
    %v8005 = vpop.f32.mrb[0].mxu0
    %v8006 = vadd.f32 %v7965, %v8005
    %v8007 = vpop.f32.mrb[0].mxu0
    %v8008 = vadd.f32 %v7967, %v8007
    %v8009 = vpop.f32.mrb[0].mxu0
    %v8010 = vpop.f32.mrb[0].mxu0
    %8011 = vdwg.mxu0
    %8012 = vmatprep.subr.bf16.mxu0 %v5252
    %8013 = vmatpush1.bf16.msra.mxu0 %v5251
    %8014 = vmatprep.subr.bf16.mxu0 %v5260
    %8015 = vmatpush1.bf16.msra.mxu0 %v5259
    %8016 = vmatprep.subr.bf16.mxu0 %v5268
    %8017 = vmatpush1.bf16.msra.mxu0 %v5267
    %8018 = vmatprep.subr.bf16.mxu0 %v5276
    %8019 = vmatpush1.bf16.msra.mxu0 %v5275
    %8020 = vmatprep.subr.bf16.mxu0 %v5284
    %8021 = vmatpush1.bf16.msra.mxu0 %v5283
    %8022 = vmatprep.subr.bf16.mxu0 %v5292
    %8023 = vmatpush1.bf16.msra.mxu0 %v5291
    %8024 = vmatprep.subr.bf16.mxu0 %v5300
    %8025 = vmatpush1.bf16.msra.mxu0 %v5299
    %8026 = vmatprep.subr.bf16.mxu0 %v5308
    %8027 = vmatpush1.bf16.msra.mxu0 %v5307
    %8028 = vmatprep.subr.bf16.mxu0 %v5316
    %8029 = vmatpush1.bf16.msra.mxu0 %v5315
    %8030 = vmatprep.subr.bf16.mxu0 %v5324
    %8031 = vmatpush1.bf16.msra.mxu0 %v5323
    %8032 = vmatprep.subr.bf16.mxu0 %v5332
    %8033 = vmatpush1.bf16.msra.mxu0 %v5331
    %8034 = vmatprep.subr.bf16.mxu0 %v5340
    %8035 = vmatpush1.bf16.msra.mxu0 %v5339
    %8036 = vmatprep.subr.bf16.mxu0 %v5348
    %8037 = vmatpush1.bf16.msra.mxu0 %v5347
    %8038 = vmatprep.subr.bf16.mxu0 %v5356
    %8039 = vmatpush1.bf16.msra.mxu0 %v5355
    %8040 = vmatprep.subr.bf16.mxu0 %v5364
    %8041 = vmatpush1.bf16.msra.mxu0 %v5363
    %8042 = vmatprep.subr.bf16.mxu0 %v5372
    %8043 = vmatpush1.bf16.msra.mxu0 %v5371
    %8044 = vmatprep.mubr.bf16.mxu0 %v7427
    %8045 = vmatmul.mubr.bf16.gmra.mrb[0].mxu0 %v7426
    %v8046 = vpop.f32.mrb[0].mxu0
    %v8047 = vadd.f32 %v8006, %v8046
    %v8048 = vpop.f32.mrb[0].mxu0
    %v8049 = vadd.f32 %v8008, %v8048
    %v8050 = vpop.f32.mrb[0].mxu0
    %v8051 = vpop.f32.mrb[0].mxu0
    %8052 = vdwg.mxu0
    %8053 = vmatprep.subr.bf16.mxu0 %v5380
    %8054 = vmatpush1.bf16.msra.mxu0 %v5379
    %8055 = vmatprep.subr.bf16.mxu0 %v5388
    %8056 = vmatpush1.bf16.msra.mxu0 %v5387
    %8057 = vmatprep.subr.bf16.mxu0 %v5396
    %8058 = vmatpush1.bf16.msra.mxu0 %v5395
    %8059 = vmatprep.subr.bf16.mxu0 %v5404
    %8060 = vmatpush1.bf16.msra.mxu0 %v5403
    %8061 = vmatprep.subr.bf16.mxu0 %v5412
    %8062 = vmatpush1.bf16.msra.mxu0 %v5411
    %8063 = vmatprep.subr.bf16.mxu0 %v5420
    %8064 = vmatpush1.bf16.msra.mxu0 %v5419
    %8065 = vmatprep.subr.bf16.mxu0 %v5428
    %8066 = vmatpush1.bf16.msra.mxu0 %v5427
    %8067 = vmatprep.subr.bf16.mxu0 %v5436
    %8068 = vmatpush1.bf16.msra.mxu0 %v5435
    %8069 = vmatprep.subr.bf16.mxu0 %v5444
    %8070 = vmatpush1.bf16.msra.mxu0 %v5443
    %8071 = vmatprep.subr.bf16.mxu0 %v5452
    %8072 = vmatpush1.bf16.msra.mxu0 %v5451
    %8073 = vmatprep.subr.bf16.mxu0 %v5460
    %8074 = vmatpush1.bf16.msra.mxu0 %v5459
    %8075 = vmatprep.subr.bf16.mxu0 %v5468
    %8076 = vmatpush1.bf16.msra.mxu0 %v5467
    %8077 = vmatprep.subr.bf16.mxu0 %v5476
    %8078 = vmatpush1.bf16.msra.mxu0 %v5475
    %8079 = vmatprep.subr.bf16.mxu0 %v5484
    %8080 = vmatpush1.bf16.msra.mxu0 %v5483
    %8081 = vmatprep.subr.bf16.mxu0 %v5492
    %8082 = vmatpush1.bf16.msra.mxu0 %v5491
    %8083 = vmatprep.subr.bf16.mxu0 %v5500
    %8084 = vmatpush1.bf16.msra.mxu0 %v5499
    %8085 = vmatprep.mubr.bf16.mxu0 %v7429
    %8086 = vmatmul.mubr.bf16.gmra.mrb[0].mxu0 %v7428
    %v8087 = vpop.f32.mrb[0].mxu0
    %v8088 = vadd.f32 %v8047, %v8087
    %v8089 = vpop.f32.mrb[0].mxu0
    %v8090 = vadd.f32 %v8049, %v8089
    %v8091 = vpop.f32.mrb[0].mxu0
    %v8092 = vpop.f32.mrb[0].mxu0
    %8093 = vdwg.mxu0
    %v8094 = vmax.f32 %v7596, %v7760
    %v8095 = vmax.f32 %v7598, %v7762
    %v8096 = vmax.f32 %v7924, %v8088
    %v8097 = vmax.f32 %v7926, %v8090
    %v8098 = vmax.f32 %v8094, %v8096
    %v8099 = vmax.f32 %v8095, %v8097
    %v8100 = vadd.f32 %v8098, %v6679
    %v8101 = vadd.f32 %v8099, %v6683
    %v8102 = vmax.f32 %v8100, 0.0
    %v8103 = vmax.f32 %v8101, 0.0
    %v8104 = vpack.c.bf16 %v8102, %v8102
    %v8105 = vpack.c.bf16 %v8103, %v8103
    %v8108 = vunpack.c.l.b16 %v8104
    %v8109 = vunpack.c.l.b16 %v8105
    %v8110 = vpack.c.b16 %v8109, %v8108
    %8112 = vst [vmem:[#allocation3 + $0x10] sm:$0xff] %v8110
    %v8113 = vld [vmem:[#allocation2 + $0x30] sm:$0xff]
    %v8114 = vld [vmem:[#allocation2 + $0x38] sm:$0xff]
    %v8115 = vld [vmem:[#allocation2 + $0x40] sm:$0xff]
    %v8116 = vld [vmem:[#allocation2 + $0x48] sm:$0xff]
    %v8121 = vunpack.c.l.b16 %v8113
    %v8122 = vunpack.c.h.b16 %v8113
    %v8123 = vunpack.c.l.b16 %v8114
    %v8124 = vunpack.c.h.b16 %v8114
    %v8125 = vunpack.c.l.b16 %v8115
    %v8126 = vunpack.c.h.b16 %v8115
    %v8127 = vunpack.c.l.b16 %v8116
    %v8128 = vunpack.c.h.b16 %v8116
    %v8129 = vpack.c.b16 %v8121, %v8121
    %v8130 = vpack.c.b16 %v8122, %v8122
    %v8131 = vpack.c.b16 %v8123, %v8123
    %v8132 = vpack.c.b16 %v8124, %v8124
    %v8133 = vpack.c.b16 %v8125, %v8125
    %v8134 = vpack.c.b16 %v8126, %v8126
    %v8135 = vpack.c.b16 %v8127, %v8127
    %v8136 = vpack.c.b16 %v8128, %v8128
    %8145 = vmatprep.subr.bf16.mxu0 %v4990
    %8146 = vmatpush1.bf16.msra.mxu0 %v4989
    %8147 = vmatprep.subr.bf16.mxu0 %v4998
    %8148 = vmatpush1.bf16.msra.mxu0 %v4997
    %8149 = vmatprep.subr.bf16.mxu0 %v5006
    %8150 = vmatpush1.bf16.msra.mxu0 %v5005
    %8151 = vmatprep.subr.bf16.mxu0 %v5014
    %8152 = vmatpush1.bf16.msra.mxu0 %v5013
    %8153 = vmatprep.subr.bf16.mxu0 %v5022
    %8154 = vmatpush1.bf16.msra.mxu0 %v5021
    %8155 = vmatprep.subr.bf16.mxu0 %v5030
    %8156 = vmatpush1.bf16.msra.mxu0 %v5029
    %8157 = vmatprep.subr.bf16.mxu0 %v5038
    %8158 = vmatpush1.bf16.msra.mxu0 %v5037
    %8159 = vmatprep.subr.bf16.mxu0 %v5046
    %8160 = vmatpush1.bf16.msra.mxu0 %v5045
    %8161 = vmatprep.subr.bf16.mxu0 %v5054
    %8162 = vmatpush1.bf16.msra.mxu0 %v5053
    %8163 = vmatprep.subr.bf16.mxu0 %v5062
    %8164 = vmatpush1.bf16.msra.mxu0 %v5061
    %8165 = vmatprep.subr.bf16.mxu0 %v5070
    %8166 = vmatpush1.bf16.msra.mxu0 %v5069
    %8167 = vmatprep.subr.bf16.mxu0 %v5078
    %8168 = vmatpush1.bf16.msra.mxu0 %v5077
    %8169 = vmatprep.subr.bf16.mxu0 %v5086
    %8170 = vmatpush1.bf16.msra.mxu0 %v5085
    %8171 = vmatprep.subr.bf16.mxu0 %v5094
    %8172 = vmatpush1.bf16.msra.mxu0 %v5093
    %8173 = vmatprep.subr.bf16.mxu0 %v5102
    %8174 = vmatpush1.bf16.msra.mxu0 %v5101
    %8175 = vmatprep.subr.bf16.mxu0 %v5110
    %8176 = vmatpush1.bf16.msra.mxu0 %v5109
    %8177 = vmatprep.mubr.bf16.mxu0 %v8130
    %8178 = vmatmul.mubr.bf16.gmra.mrb[0].mxu0 %v8129
    %v8179 = vpop.f32.mrb[0].mxu0
    %v8180 = vadd.f32 0.0, %v8179
    %v8181 = vpop.f32.mrb[0].mxu0
    %v8182 = vadd.f32 0.0, %v8181
    %v8183 = vpop.f32.mrb[0].mxu0
    %v8184 = vpop.f32.mrb[0].mxu0
    %8185 = vdwg.mxu0
    %8186 = vmatprep.subr.bf16.mxu0 %v5118
    %8187 = vmatpush1.bf16.msra.mxu0 %v5117
    %8188 = vmatprep.subr.bf16.mxu0 %v5126
    %8189 = vmatpush1.bf16.msra.mxu0 %v5125
    %8190 = vmatprep.subr.bf16.mxu0 %v5134
    %8191 = vmatpush1.bf16.msra.mxu0 %v5133
    %8192 = vmatprep.subr.bf16.mxu0 %v5142
    %8193 = vmatpush1.bf16.msra.mxu0 %v5141
    %8194 = vmatprep.subr.bf16.mxu0 %v5150
    %8195 = vmatpush1.bf16.msra.mxu0 %v5149
    %8196 = vmatprep.subr.bf16.mxu0 %v5158
    %8197 = vmatpush1.bf16.msra.mxu0 %v5157
    %8198 = vmatprep.subr.bf16.mxu0 %v5166
    %8199 = vmatpush1.bf16.msra.mxu0 %v5165
    %8200 = vmatprep.subr.bf16.mxu0 %v5174
    %8201 = vmatpush1.bf16.msra.mxu0 %v5173
    %8202 = vmatprep.subr.bf16.mxu0 %v5182
    %8203 = vmatpush1.bf16.msra.mxu0 %v5181
    %8204 = vmatprep.subr.bf16.mxu0 %v5190
    %8205 = vmatpush1.bf16.msra.mxu0 %v5189
    %8206 = vmatprep.subr.bf16.mxu0 %v5198
    %8207 = vmatpush1.bf16.msra.mxu0 %v5197
    %8208 = vmatprep.subr.bf16.mxu0 %v5206
    %8209 = vmatpush1.bf16.msra.mxu0 %v5205
    %8210 = vmatprep.subr.bf16.mxu0 %v5214
    %8211 = vmatpush1.bf16.msra.mxu0 %v5213
    %8212 = vmatprep.subr.bf16.mxu0 %v5222
    %8213 = vmatpush1.bf16.msra.mxu0 %v5221
    %8214 = vmatprep.subr.bf16.mxu0 %v5230
    %8215 = vmatpush1.bf16.msra.mxu0 %v5229
    %8216 = vmatprep.subr.bf16.mxu0 %v5238
    %8217 = vmatpush1.bf16.msra.mxu0 %v5237
    %8218 = vmatprep.mubr.bf16.mxu0 %v8132
    %8219 = vmatmul.mubr.bf16.gmra.mrb[0].mxu0 %v8131
    %v8220 = vpop.f32.mrb[0].mxu0
    %v8221 = vadd.f32 %v8180, %v8220
    %v8222 = vpop.f32.mrb[0].mxu0
    %v8223 = vadd.f32 %v8182, %v8222
    %v8224 = vpop.f32.mrb[0].mxu0
    %v8225 = vpop.f32.mrb[0].mxu0
    %8226 = vdwg.mxu0
    %8227 = vmatprep.subr.bf16.mxu0 %v5246
    %8228 = vmatpush1.bf16.msra.mxu0 %v5245
    %8229 = vmatprep.subr.bf16.mxu0 %v5254
    %8230 = vmatpush1.bf16.msra.mxu0 %v5253
    %8231 = vmatprep.subr.bf16.mxu0 %v5262
    %8232 = vmatpush1.bf16.msra.mxu0 %v5261
    %8233 = vmatprep.subr.bf16.mxu0 %v5270
    %8234 = vmatpush1.bf16.msra.mxu0 %v5269
    %8235 = vmatprep.subr.bf16.mxu0 %v5278
    %8236 = vmatpush1.bf16.msra.mxu0 %v5277
    %8237 = vmatprep.subr.bf16.mxu0 %v5286
    %8238 = vmatpush1.bf16.msra.mxu0 %v5285
    %8239 = vmatprep.subr.bf16.mxu0 %v5294
    %8240 = vmatpush1.bf16.msra.mxu0 %v5293
    %8241 = vmatprep.subr.bf16.mxu0 %v5302
    %8242 = vmatpush1.bf16.msra.mxu0 %v5301
    %8243 = vmatprep.subr.bf16.mxu0 %v5310
    %8244 = vmatpush1.bf16.msra.mxu0 %v5309
    %8245 = vmatprep.subr.bf16.mxu0 %v5318
    %8246 = vmatpush1.bf16.msra.mxu0 %v5317
    %8247 = vmatprep.subr.bf16.mxu0 %v5326
    %8248 = vmatpush1.bf16.msra.mxu0 %v5325
    %8249 = vmatprep.subr.bf16.mxu0 %v5334
    %8250 = vmatpush1.bf16.msra.mxu0 %v5333
    %8251 = vmatprep.subr.bf16.mxu0 %v5342
    %8252 = vmatpush1.bf16.msra.mxu0 %v5341
    %8253 = vmatprep.subr.bf16.mxu0 %v5350
    %8254 = vmatpush1.bf16.msra.mxu0 %v5349
    %8255 = vmatprep.subr.bf16.mxu0 %v5358
    %8256 = vmatpush1.bf16.msra.mxu0 %v5357
    %8257 = vmatprep.subr.bf16.mxu0 %v5366
    %8258 = vmatpush1.bf16.msra.mxu0 %v5365
    %8259 = vmatprep.mubr.bf16.mxu0 %v8134
    %8260 = vmatmul.mubr.bf16.gmra.mrb[0].mxu0 %v8133
    %v8261 = vpop.f32.mrb[0].mxu0
    %v8262 = vadd.f32 %v8221, %v8261
    %v8263 = vpop.f32.mrb[0].mxu0
    %v8264 = vadd.f32 %v8223, %v8263
    %v8265 = vpop.f32.mrb[0].mxu0
    %v8266 = vpop.f32.mrb[0].mxu0
    %8267 = vdwg.mxu0
    %8268 = vmatprep.subr.bf16.mxu0 %v5374
    %8269 = vmatpush1.bf16.msra.mxu0 %v5373
    %8270 = vmatprep.subr.bf16.mxu0 %v5382
    %8271 = vmatpush1.bf16.msra.mxu0 %v5381
    %8272 = vmatprep.subr.bf16.mxu0 %v5390
    %8273 = vmatpush1.bf16.msra.mxu0 %v5389
    %8274 = vmatprep.subr.bf16.mxu0 %v5398
    %8275 = vmatpush1.bf16.msra.mxu0 %v5397
    %8276 = vmatprep.subr.bf16.mxu0 %v5406
    %8277 = vmatpush1.bf16.msra.mxu0 %v5405
    %8278 = vmatprep.subr.bf16.mxu0 %v5414
    %8279 = vmatpush1.bf16.msra.mxu0 %v5413
    %8280 = vmatprep.subr.bf16.mxu0 %v5422
    %8281 = vmatpush1.bf16.msra.mxu0 %v5421
    %8282 = vmatprep.subr.bf16.mxu0 %v5430
    %8283 = vmatpush1.bf16.msra.mxu0 %v5429
    %8284 = vmatprep.subr.bf16.mxu0 %v5438
    %8285 = vmatpush1.bf16.msra.mxu0 %v5437
    %8286 = vmatprep.subr.bf16.mxu0 %v5446
    %8287 = vmatpush1.bf16.msra.mxu0 %v5445
    %8288 = vmatprep.subr.bf16.mxu0 %v5454
    %8289 = vmatpush1.bf16.msra.mxu0 %v5453
    %8290 = vmatprep.subr.bf16.mxu0 %v5462
    %8291 = vmatpush1.bf16.msra.mxu0 %v5461
    %8292 = vmatprep.subr.bf16.mxu0 %v5470
    %8293 = vmatpush1.bf16.msra.mxu0 %v5469
    %8294 = vmatprep.subr.bf16.mxu0 %v5478
    %8295 = vmatpush1.bf16.msra.mxu0 %v5477
    %8296 = vmatprep.subr.bf16.mxu0 %v5486
    %8297 = vmatpush1.bf16.msra.mxu0 %v5485
    %8298 = vmatprep.subr.bf16.mxu0 %v5494
    %8299 = vmatpush1.bf16.msra.mxu0 %v5493
    %8300 = vmatprep.mubr.bf16.mxu0 %v8136
    %8301 = vmatmul.mubr.bf16.gmra.mrb[0].mxu0 %v8135
    %v8302 = vpop.f32.mrb[0].mxu0
    %v8303 = vadd.f32 %v8262, %v8302
    %v8304 = vpop.f32.mrb[0].mxu0
    %v8305 = vadd.f32 %v8264, %v8304
    %v8306 = vpop.f32.mrb[0].mxu0
    %v8307 = vpop.f32.mrb[0].mxu0
    %8308 = vdwg.mxu0
    %8309 = vmatprep.subr.bf16.mxu0 %v4992
    %8310 = vmatpush1.bf16.msra.mxu0 %v4991
    %8311 = vmatprep.subr.bf16.mxu0 %v5000
    %8312 = vmatpush1.bf16.msra.mxu0 %v4999
    %8313 = vmatprep.subr.bf16.mxu0 %v5008
    %8314 = vmatpush1.bf16.msra.mxu0 %v5007
    %8315 = vmatprep.subr.bf16.mxu0 %v5016
    %8316 = vmatpush1.bf16.msra.mxu0 %v5015
    %8317 = vmatprep.subr.bf16.mxu0 %v5024
    %8318 = vmatpush1.bf16.msra.mxu0 %v5023
    %8319 = vmatprep.subr.bf16.mxu0 %v5032
    %8320 = vmatpush1.bf16.msra.mxu0 %v5031
    %8321 = vmatprep.subr.bf16.mxu0 %v5040
    %8322 = vmatpush1.bf16.msra.mxu0 %v5039
    %8323 = vmatprep.subr.bf16.mxu0 %v5048
    %8324 = vmatpush1.bf16.msra.mxu0 %v5047
    %8325 = vmatprep.subr.bf16.mxu0 %v5056
    %8326 = vmatpush1.bf16.msra.mxu0 %v5055
    %8327 = vmatprep.subr.bf16.mxu0 %v5064
    %8328 = vmatpush1.bf16.msra.mxu0 %v5063
    %8329 = vmatprep.subr.bf16.mxu0 %v5072
    %8330 = vmatpush1.bf16.msra.mxu0 %v5071
    %8331 = vmatprep.subr.bf16.mxu0 %v5080
    %8332 = vmatpush1.bf16.msra.mxu0 %v5079
    %8333 = vmatprep.subr.bf16.mxu0 %v5088
    %8334 = vmatpush1.bf16.msra.mxu0 %v5087
    %8335 = vmatprep.subr.bf16.mxu0 %v5096
    %8336 = vmatpush1.bf16.msra.mxu0 %v5095
    %8337 = vmatprep.subr.bf16.mxu0 %v5104
    %8338 = vmatpush1.bf16.msra.mxu0 %v5103
    %8339 = vmatprep.subr.bf16.mxu0 %v5112
    %8340 = vmatpush1.bf16.msra.mxu0 %v5111
    %8341 = vmatprep.mubr.bf16.mxu0 %v8130
    %8342 = vmatmul.mubr.bf16.gmra.mrb[0].mxu0 %v8129
    %v8343 = vpop.f32.mrb[0].mxu0
    %v8344 = vadd.f32 0.0, %v8343
    %v8345 = vpop.f32.mrb[0].mxu0
    %v8346 = vadd.f32 0.0, %v8345
    %v8347 = vpop.f32.mrb[0].mxu0
    %v8348 = vpop.f32.mrb[0].mxu0
    %8349 = vdwg.mxu0
    %8350 = vmatprep.subr.bf16.mxu0 %v5120
    %8351 = vmatpush1.bf16.msra.mxu0 %v5119
    %8352 = vmatprep.subr.bf16.mxu0 %v5128
    %8353 = vmatpush1.bf16.msra.mxu0 %v5127
    %8354 = vmatprep.subr.bf16.mxu0 %v5136
    %8355 = vmatpush1.bf16.msra.mxu0 %v5135
    %8356 = vmatprep.subr.bf16.mxu0 %v5144
    %8357 = vmatpush1.bf16.msra.mxu0 %v5143
    %8358 = vmatprep.subr.bf16.mxu0 %v5152
    %8359 = vmatpush1.bf16.msra.mxu0 %v5151
    %8360 = vmatprep.subr.bf16.mxu0 %v5160
    %8361 = vmatpush1.bf16.msra.mxu0 %v5159
    %8362 = vmatprep.subr.bf16.mxu0 %v5168
    %8363 = vmatpush1.bf16.msra.mxu0 %v5167
    %8364 = vmatprep.subr.bf16.mxu0 %v5176
    %8365 = vmatpush1.bf16.msra.mxu0 %v5175
    %8366 = vmatprep.subr.bf16.mxu0 %v5184
    %8367 = vmatpush1.bf16.msra.mxu0 %v5183
    %8368 = vmatprep.subr.bf16.mxu0 %v5192
    %8369 = vmatpush1.bf16.msra.mxu0 %v5191
    %8370 = vmatprep.subr.bf16.mxu0 %v5200
    %8371 = vmatpush1.bf16.msra.mxu0 %v5199
    %8372 = vmatprep.subr.bf16.mxu0 %v5208
    %8373 = vmatpush1.bf16.msra.mxu0 %v5207
    %8374 = vmatprep.subr.bf16.mxu0 %v5216
    %8375 = vmatpush1.bf16.msra.mxu0 %v5215
    %8376 = vmatprep.subr.bf16.mxu0 %v5224
    %8377 = vmatpush1.bf16.msra.mxu0 %v5223
    %8378 = vmatprep.subr.bf16.mxu0 %v5232
    %8379 = vmatpush1.bf16.msra.mxu0 %v5231
    %8380 = vmatprep.subr.bf16.mxu0 %v5240
    %8381 = vmatpush1.bf16.msra.mxu0 %v5239
    %8382 = vmatprep.mubr.bf16.mxu0 %v8132
    %8383 = vmatmul.mubr.bf16.gmra.mrb[0].mxu0 %v8131
    %v8384 = vpop.f32.mrb[0].mxu0
    %v8385 = vadd.f32 %v8344, %v8384
    %v8386 = vpop.f32.mrb[0].mxu0
    %v8387 = vadd.f32 %v8346, %v8386
    %v8388 = vpop.f32.mrb[0].mxu0
    %v8389 = vpop.f32.mrb[0].mxu0
    %8390 = vdwg.mxu0
    %8391 = vmatprep.subr.bf16.mxu0 %v5248
    %8392 = vmatpush1.bf16.msra.mxu0 %v5247
    %8393 = vmatprep.subr.bf16.mxu0 %v5256
    %8394 = vmatpush1.bf16.msra.mxu0 %v5255
    %8395 = vmatprep.subr.bf16.mxu0 %v5264
    %8396 = vmatpush1.bf16.msra.mxu0 %v5263
    %8397 = vmatprep.subr.bf16.mxu0 %v5272
    %8398 = vmatpush1.bf16.msra.mxu0 %v5271
    %8399 = vmatprep.subr.bf16.mxu0 %v5280
    %8400 = vmatpush1.bf16.msra.mxu0 %v5279
    %8401 = vmatprep.subr.bf16.mxu0 %v5288
    %8402 = vmatpush1.bf16.msra.mxu0 %v5287
    %8403 = vmatprep.subr.bf16.mxu0 %v5296
    %8404 = vmatpush1.bf16.msra.mxu0 %v5295
    %8405 = vmatprep.subr.bf16.mxu0 %v5304
    %8406 = vmatpush1.bf16.msra.mxu0 %v5303
    %8407 = vmatprep.subr.bf16.mxu0 %v5312
    %8408 = vmatpush1.bf16.msra.mxu0 %v5311
    %8409 = vmatprep.subr.bf16.mxu0 %v5320
    %8410 = vmatpush1.bf16.msra.mxu0 %v5319
    %8411 = vmatprep.subr.bf16.mxu0 %v5328
    %8412 = vmatpush1.bf16.msra.mxu0 %v5327
    %8413 = vmatprep.subr.bf16.mxu0 %v5336
    %8414 = vmatpush1.bf16.msra.mxu0 %v5335
    %8415 = vmatprep.subr.bf16.mxu0 %v5344
    %8416 = vmatpush1.bf16.msra.mxu0 %v5343
    %8417 = vmatprep.subr.bf16.mxu0 %v5352
    %8418 = vmatpush1.bf16.msra.mxu0 %v5351
    %8419 = vmatprep.subr.bf16.mxu0 %v5360
    %8420 = vmatpush1.bf16.msra.mxu0 %v5359
    %8421 = vmatprep.subr.bf16.mxu0 %v5368
    %8422 = vmatpush1.bf16.msra.mxu0 %v5367
    %8423 = vmatprep.mubr.bf16.mxu0 %v8134
    %8424 = vmatmul.mubr.bf16.gmra.mrb[0].mxu0 %v8133
    %v8425 = vpop.f32.mrb[0].mxu0
    %v8426 = vadd.f32 %v8385, %v8425
    %v8427 = vpop.f32.mrb[0].mxu0
    %v8428 = vadd.f32 %v8387, %v8427
    %v8429 = vpop.f32.mrb[0].mxu0
    %v8430 = vpop.f32.mrb[0].mxu0
    %8431 = vdwg.mxu0
    %8432 = vmatprep.subr.bf16.mxu0 %v5376
    %8433 = vmatpush1.bf16.msra.mxu0 %v5375
    %8434 = vmatprep.subr.bf16.mxu0 %v5384
    %8435 = vmatpush1.bf16.msra.mxu0 %v5383
    %8436 = vmatprep.subr.bf16.mxu0 %v5392
    %8437 = vmatpush1.bf16.msra.mxu0 %v5391
    %8438 = vmatprep.subr.bf16.mxu0 %v5400
    %8439 = vmatpush1.bf16.msra.mxu0 %v5399
    %8440 = vmatprep.subr.bf16.mxu0 %v5408
    %8441 = vmatpush1.bf16.msra.mxu0 %v5407
    %8442 = vmatprep.subr.bf16.mxu0 %v5416
    %8443 = vmatpush1.bf16.msra.mxu0 %v5415
    %8444 = vmatprep.subr.bf16.mxu0 %v5424
    %8445 = vmatpush1.bf16.msra.mxu0 %v5423
    %8446 = vmatprep.subr.bf16.mxu0 %v5432
    %8447 = vmatpush1.bf16.msra.mxu0 %v5431
    %8448 = vmatprep.subr.bf16.mxu0 %v5440
    %8449 = vmatpush1.bf16.msra.mxu0 %v5439
    %8450 = vmatprep.subr.bf16.mxu0 %v5448
    %8451 = vmatpush1.bf16.msra.mxu0 %v5447
    %8452 = vmatprep.subr.bf16.mxu0 %v5456
    %8453 = vmatpush1.bf16.msra.mxu0 %v5455
    %8454 = vmatprep.subr.bf16.mxu0 %v5464
    %8455 = vmatpush1.bf16.msra.mxu0 %v5463
    %8456 = vmatprep.subr.bf16.mxu0 %v5472
    %8457 = vmatpush1.bf16.msra.mxu0 %v5471
    %8458 = vmatprep.subr.bf16.mxu0 %v5480
    %8459 = vmatpush1.bf16.msra.mxu0 %v5479
    %8460 = vmatprep.subr.bf16.mxu0 %v5488
    %8461 = vmatpush1.bf16.msra.mxu0 %v5487
    %8462 = vmatprep.subr.bf16.mxu0 %v5496
    %8463 = vmatpush1.bf16.msra.mxu0 %v5495
    %8464 = vmatprep.mubr.bf16.mxu0 %v8136
    %8465 = vmatmul.mubr.bf16.gmra.mrb[0].mxu0 %v8135
    %v8466 = vpop.f32.mrb[0].mxu0
    %v8467 = vadd.f32 %v8426, %v8466
    %v8468 = vpop.f32.mrb[0].mxu0
    %v8469 = vadd.f32 %v8428, %v8468
    %v8470 = vpop.f32.mrb[0].mxu0
    %v8471 = vpop.f32.mrb[0].mxu0
    %8472 = vdwg.mxu0
    %8473 = vmatprep.subr.bf16.mxu0 %v4994
    %8474 = vmatpush1.bf16.msra.mxu0 %v4993
    %8475 = vmatprep.subr.bf16.mxu0 %v5002
    %8476 = vmatpush1.bf16.msra.mxu0 %v5001
    %8477 = vmatprep.subr.bf16.mxu0 %v5010
    %8478 = vmatpush1.bf16.msra.mxu0 %v5009
    %8479 = vmatprep.subr.bf16.mxu0 %v5018
    %8480 = vmatpush1.bf16.msra.mxu0 %v5017
    %8481 = vmatprep.subr.bf16.mxu0 %v5026
    %8482 = vmatpush1.bf16.msra.mxu0 %v5025
    %8483 = vmatprep.subr.bf16.mxu0 %v5034
    %8484 = vmatpush1.bf16.msra.mxu0 %v5033
    %8485 = vmatprep.subr.bf16.mxu0 %v5042
    %8486 = vmatpush1.bf16.msra.mxu0 %v5041
    %8487 = vmatprep.subr.bf16.mxu0 %v5050
    %8488 = vmatpush1.bf16.msra.mxu0 %v5049
    %8489 = vmatprep.subr.bf16.mxu0 %v5058
    %8490 = vmatpush1.bf16.msra.mxu0 %v5057
    %8491 = vmatprep.subr.bf16.mxu0 %v5066
    %8492 = vmatpush1.bf16.msra.mxu0 %v5065
    %8493 = vmatprep.subr.bf16.mxu0 %v5074
    %8494 = vmatpush1.bf16.msra.mxu0 %v5073
    %8495 = vmatprep.subr.bf16.mxu0 %v5082
    %8496 = vmatpush1.bf16.msra.mxu0 %v5081
    %8497 = vmatprep.subr.bf16.mxu0 %v5090
    %8498 = vmatpush1.bf16.msra.mxu0 %v5089
    %8499 = vmatprep.subr.bf16.mxu0 %v5098
    %8500 = vmatpush1.bf16.msra.mxu0 %v5097
    %8501 = vmatprep.subr.bf16.mxu0 %v5106
    %8502 = vmatpush1.bf16.msra.mxu0 %v5105
    %8503 = vmatprep.subr.bf16.mxu0 %v5114
    %8504 = vmatpush1.bf16.msra.mxu0 %v5113
    %8505 = vmatprep.mubr.bf16.mxu0 %v8130
    %8506 = vmatmul.mubr.bf16.gmra.mrb[0].mxu0 %v8129
    %v8507 = vpop.f32.mrb[0].mxu0
    %v8508 = vadd.f32 0.0, %v8507
    %v8509 = vpop.f32.mrb[0].mxu0
    %v8510 = vadd.f32 0.0, %v8509
    %v8511 = vpop.f32.mrb[0].mxu0
    %v8512 = vpop.f32.mrb[0].mxu0
    %8513 = vdwg.mxu0
    %8514 = vmatprep.subr.bf16.mxu0 %v5122
    %8515 = vmatpush1.bf16.msra.mxu0 %v5121
    %8516 = vmatprep.subr.bf16.mxu0 %v5130
    %8517 = vmatpush1.bf16.msra.mxu0 %v5129
    %8518 = vmatprep.subr.bf16.mxu0 %v5138
    %8519 = vmatpush1.bf16.msra.mxu0 %v5137
    %8520 = vmatprep.subr.bf16.mxu0 %v5146
    %8521 = vmatpush1.bf16.msra.mxu0 %v5145
    %8522 = vmatprep.subr.bf16.mxu0 %v5154
    %8523 = vmatpush1.bf16.msra.mxu0 %v5153
    %8524 = vmatprep.subr.bf16.mxu0 %v5162
    %8525 = vmatpush1.bf16.msra.mxu0 %v5161
    %8526 = vmatprep.subr.bf16.mxu0 %v5170
    %8527 = vmatpush1.bf16.msra.mxu0 %v5169
    %8528 = vmatprep.subr.bf16.mxu0 %v5178
    %8529 = vmatpush1.bf16.msra.mxu0 %v5177
    %8530 = vmatprep.subr.bf16.mxu0 %v5186
    %8531 = vmatpush1.bf16.msra.mxu0 %v5185
    %8532 = vmatprep.subr.bf16.mxu0 %v5194
    %8533 = vmatpush1.bf16.msra.mxu0 %v5193
    %8534 = vmatprep.subr.bf16.mxu0 %v5202
    %8535 = vmatpush1.bf16.msra.mxu0 %v5201
    %8536 = vmatprep.subr.bf16.mxu0 %v5210
    %8537 = vmatpush1.bf16.msra.mxu0 %v5209
    %8538 = vmatprep.subr.bf16.mxu0 %v5218
    %8539 = vmatpush1.bf16.msra.mxu0 %v5217
    %8540 = vmatprep.subr.bf16.mxu0 %v5226
    %8541 = vmatpush1.bf16.msra.mxu0 %v5225
    %8542 = vmatprep.subr.bf16.mxu0 %v5234
    %8543 = vmatpush1.bf16.msra.mxu0 %v5233
    %8544 = vmatprep.subr.bf16.mxu0 %v5242
    %8545 = vmatpush1.bf16.msra.mxu0 %v5241
    %8546 = vmatprep.mubr.bf16.mxu0 %v8132
    %8547 = vmatmul.mubr.bf16.gmra.mrb[0].mxu0 %v8131
    %v8548 = vpop.f32.mrb[0].mxu0
    %v8549 = vadd.f32 %v8508, %v8548
    %v8550 = vpop.f32.mrb[0].mxu0
    %v8551 = vadd.f32 %v8510, %v8550
    %v8552 = vpop.f32.mrb[0].mxu0
    %v8553 = vpop.f32.mrb[0].mxu0
    %8554 = vdwg.mxu0
    %8555 = vmatprep.subr.bf16.mxu0 %v5250
    %8556 = vmatpush1.bf16.msra.mxu0 %v5249
    %8557 = vmatprep.subr.bf16.mxu0 %v5258
    %8558 = vmatpush1.bf16.msra.mxu0 %v5257
    %8559 = vmatprep.subr.bf16.mxu0 %v5266
    %8560 = vmatpush1.bf16.msra.mxu0 %v5265
    %8561 = vmatprep.subr.bf16.mxu0 %v5274
    %8562 = vmatpush1.bf16.msra.mxu0 %v5273
    %8563 = vmatprep.subr.bf16.mxu0 %v5282
    %8564 = vmatpush1.bf16.msra.mxu0 %v5281
    %8565 = vmatprep.subr.bf16.mxu0 %v5290
    %8566 = vmatpush1.bf16.msra.mxu0 %v5289
    %8567 = vmatprep.subr.bf16.mxu0 %v5298
    %8568 = vmatpush1.bf16.msra.mxu0 %v5297
    %8569 = vmatprep.subr.bf16.mxu0 %v5306
    %8570 = vmatpush1.bf16.msra.mxu0 %v5305
    %8571 = vmatprep.subr.bf16.mxu0 %v5314
    %8572 = vmatpush1.bf16.msra.mxu0 %v5313
    %8573 = vmatprep.subr.bf16.mxu0 %v5322
    %8574 = vmatpush1.bf16.msra.mxu0 %v5321
    %8575 = vmatprep.subr.bf16.mxu0 %v5330
    %8576 = vmatpush1.bf16.msra.mxu0 %v5329
    %8577 = vmatprep.subr.bf16.mxu0 %v5338
    %8578 = vmatpush1.bf16.msra.mxu0 %v5337
    %8579 = vmatprep.subr.bf16.mxu0 %v5346
    %8580 = vmatpush1.bf16.msra.mxu0 %v5345
    %8581 = vmatprep.subr.bf16.mxu0 %v5354
    %8582 = vmatpush1.bf16.msra.mxu0 %v5353
    %8583 = vmatprep.subr.bf16.mxu0 %v5362
    %8584 = vmatpush1.bf16.msra.mxu0 %v5361
    %8585 = vmatprep.subr.bf16.mxu0 %v5370
    %8586 = vmatpush1.bf16.msra.mxu0 %v5369
    %8587 = vmatprep.mubr.bf16.mxu0 %v8134
    %8588 = vmatmul.mubr.bf16.gmra.mrb[0].mxu0 %v8133
    %v8589 = vpop.f32.mrb[0].mxu0
    %v8590 = vadd.f32 %v8549, %v8589
    %v8591 = vpop.f32.mrb[0].mxu0
    %v8592 = vadd.f32 %v8551, %v8591
    %v8593 = vpop.f32.mrb[0].mxu0
    %v8594 = vpop.f32.mrb[0].mxu0
    %8595 = vdwg.mxu0
    %8596 = vmatprep.subr.bf16.mxu0 %v5378
    %8597 = vmatpush1.bf16.msra.mxu0 %v5377
    %8598 = vmatprep.subr.bf16.mxu0 %v5386
    %8599 = vmatpush1.bf16.msra.mxu0 %v5385
    %8600 = vmatprep.subr.bf16.mxu0 %v5394
    %8601 = vmatpush1.bf16.msra.mxu0 %v5393
    %8602 = vmatprep.subr.bf16.mxu0 %v5402
    %8603 = vmatpush1.bf16.msra.mxu0 %v5401
    %8604 = vmatprep.subr.bf16.mxu0 %v5410
    %8605 = vmatpush1.bf16.msra.mxu0 %v5409
    %8606 = vmatprep.subr.bf16.mxu0 %v5418
    %8607 = vmatpush1.bf16.msra.mxu0 %v5417
    %8608 = vmatprep.subr.bf16.mxu0 %v5426
    %8609 = vmatpush1.bf16.msra.mxu0 %v5425
    %8610 = vmatprep.subr.bf16.mxu0 %v5434
    %8611 = vmatpush1.bf16.msra.mxu0 %v5433
    %8612 = vmatprep.subr.bf16.mxu0 %v5442
    %8613 = vmatpush1.bf16.msra.mxu0 %v5441
    %8614 = vmatprep.subr.bf16.mxu0 %v5450
    %8615 = vmatpush1.bf16.msra.mxu0 %v5449
    %8616 = vmatprep.subr.bf16.mxu0 %v5458
    %8617 = vmatpush1.bf16.msra.mxu0 %v5457
    %8618 = vmatprep.subr.bf16.mxu0 %v5466
    %8619 = vmatpush1.bf16.msra.mxu0 %v5465
    %8620 = vmatprep.subr.bf16.mxu0 %v5474
    %8621 = vmatpush1.bf16.msra.mxu0 %v5473
    %8622 = vmatprep.subr.bf16.mxu0 %v5482
    %8623 = vmatpush1.bf16.msra.mxu0 %v5481
    %8624 = vmatprep.subr.bf16.mxu0 %v5490
    %8625 = vmatpush1.bf16.msra.mxu0 %v5489
    %8626 = vmatprep.subr.bf16.mxu0 %v5498
    %8627 = vmatpush1.bf16.msra.mxu0 %v5497
    %8628 = vmatprep.mubr.bf16.mxu0 %v8136
    %8629 = vmatmul.mubr.bf16.gmra.mrb[0].mxu0 %v8135
    %v8630 = vpop.f32.mrb[0].mxu0
    %v8631 = vadd.f32 %v8590, %v8630
    %v8632 = vpop.f32.mrb[0].mxu0
    %v8633 = vadd.f32 %v8592, %v8632
    %v8634 = vpop.f32.mrb[0].mxu0
    %v8635 = vpop.f32.mrb[0].mxu0
    %8636 = vdwg.mxu0
    %8637 = vmatprep.subr.bf16.mxu0 %v4996
    %8638 = vmatpush1.bf16.msra.mxu0 %v4995
    %8639 = vmatprep.subr.bf16.mxu0 %v5004
    %8640 = vmatpush1.bf16.msra.mxu0 %v5003
    %8641 = vmatprep.subr.bf16.mxu0 %v5012
    %8642 = vmatpush1.bf16.msra.mxu0 %v5011
    %8643 = vmatprep.subr.bf16.mxu0 %v5020
    %8644 = vmatpush1.bf16.msra.mxu0 %v5019
    %8645 = vmatprep.subr.bf16.mxu0 %v5028
    %8646 = vmatpush1.bf16.msra.mxu0 %v5027
    %8647 = vmatprep.subr.bf16.mxu0 %v5036
    %8648 = vmatpush1.bf16.msra.mxu0 %v5035
    %8649 = vmatprep.subr.bf16.mxu0 %v5044
    %8650 = vmatpush1.bf16.msra.mxu0 %v5043
    %8651 = vmatprep.subr.bf16.mxu0 %v5052
    %8652 = vmatpush1.bf16.msra.mxu0 %v5051
    %8653 = vmatprep.subr.bf16.mxu0 %v5060
    %8654 = vmatpush1.bf16.msra.mxu0 %v5059
    %8655 = vmatprep.subr.bf16.mxu0 %v5068
    %8656 = vmatpush1.bf16.msra.mxu0 %v5067
    %8657 = vmatprep.subr.bf16.mxu0 %v5076
    %8658 = vmatpush1.bf16.msra.mxu0 %v5075
    %8659 = vmatprep.subr.bf16.mxu0 %v5084
    %8660 = vmatpush1.bf16.msra.mxu0 %v5083
    %8661 = vmatprep.subr.bf16.mxu0 %v5092
    %8662 = vmatpush1.bf16.msra.mxu0 %v5091
    %8663 = vmatprep.subr.bf16.mxu0 %v5100
    %8664 = vmatpush1.bf16.msra.mxu0 %v5099
    %8665 = vmatprep.subr.bf16.mxu0 %v5108
    %8666 = vmatpush1.bf16.msra.mxu0 %v5107
    %8667 = vmatprep.subr.bf16.mxu0 %v5116
    %8668 = vmatpush1.bf16.msra.mxu0 %v5115
    %8669 = vmatprep.mubr.bf16.mxu0 %v8130
    %8670 = vmatmul.mubr.bf16.gmra.mrb[0].mxu0 %v8129
    %v8671 = vpop.f32.mrb[0].mxu0
    %v8672 = vadd.f32 0.0, %v8671
    %v8673 = vpop.f32.mrb[0].mxu0
    %v8674 = vadd.f32 0.0, %v8673
    %v8675 = vpop.f32.mrb[0].mxu0
    %v8676 = vpop.f32.mrb[0].mxu0
    %8677 = vdwg.mxu0
    %8678 = vmatprep.subr.bf16.mxu0 %v5124
    %8679 = vmatpush1.bf16.msra.mxu0 %v5123
    %8680 = vmatprep.subr.bf16.mxu0 %v5132
    %8681 = vmatpush1.bf16.msra.mxu0 %v5131
    %8682 = vmatprep.subr.bf16.mxu0 %v5140
    %8683 = vmatpush1.bf16.msra.mxu0 %v5139
    %8684 = vmatprep.subr.bf16.mxu0 %v5148
    %8685 = vmatpush1.bf16.msra.mxu0 %v5147
    %8686 = vmatprep.subr.bf16.mxu0 %v5156
    %8687 = vmatpush1.bf16.msra.mxu0 %v5155
    %8688 = vmatprep.subr.bf16.mxu0 %v5164
    %8689 = vmatpush1.bf16.msra.mxu0 %v5163
    %8690 = vmatprep.subr.bf16.mxu0 %v5172
    %8691 = vmatpush1.bf16.msra.mxu0 %v5171
    %8692 = vmatprep.subr.bf16.mxu0 %v5180
    %8693 = vmatpush1.bf16.msra.mxu0 %v5179
    %8694 = vmatprep.subr.bf16.mxu0 %v5188
    %8695 = vmatpush1.bf16.msra.mxu0 %v5187
    %8696 = vmatprep.subr.bf16.mxu0 %v5196
    %8697 = vmatpush1.bf16.msra.mxu0 %v5195
    %8698 = vmatprep.subr.bf16.mxu0 %v5204
    %8699 = vmatpush1.bf16.msra.mxu0 %v5203
    %8700 = vmatprep.subr.bf16.mxu0 %v5212
    %8701 = vmatpush1.bf16.msra.mxu0 %v5211
    %8702 = vmatprep.subr.bf16.mxu0 %v5220
    %8703 = vmatpush1.bf16.msra.mxu0 %v5219
    %8704 = vmatprep.subr.bf16.mxu0 %v5228
    %8705 = vmatpush1.bf16.msra.mxu0 %v5227
    %8706 = vmatprep.subr.bf16.mxu0 %v5236
    %8707 = vmatpush1.bf16.msra.mxu0 %v5235
    %8708 = vmatprep.subr.bf16.mxu0 %v5244
    %8709 = vmatpush1.bf16.msra.mxu0 %v5243
    %8710 = vmatprep.mubr.bf16.mxu0 %v8132
    %8711 = vmatmul.mubr.bf16.gmra.mrb[0].mxu0 %v8131
    %v8712 = vpop.f32.mrb[0].mxu0
    %v8713 = vadd.f32 %v8672, %v8712
    %v8714 = vpop.f32.mrb[0].mxu0
    %v8715 = vadd.f32 %v8674, %v8714
    %v8716 = vpop.f32.mrb[0].mxu0
    %v8717 = vpop.f32.mrb[0].mxu0
    %8718 = vdwg.mxu0
    %8719 = vmatprep.subr.bf16.mxu0 %v5252
    %8720 = vmatpush1.bf16.msra.mxu0 %v5251
    %8721 = vmatprep.subr.bf16.mxu0 %v5260
    %8722 = vmatpush1.bf16.msra.mxu0 %v5259
    %8723 = vmatprep.subr.bf16.mxu0 %v5268
    %8724 = vmatpush1.bf16.msra.mxu0 %v5267
    %8725 = vmatprep.subr.bf16.mxu0 %v5276
    %8726 = vmatpush1.bf16.msra.mxu0 %v5275
    %8727 = vmatprep.subr.bf16.mxu0 %v5284
    %8728 = vmatpush1.bf16.msra.mxu0 %v5283
    %8729 = vmatprep.subr.bf16.mxu0 %v5292
    %8730 = vmatpush1.bf16.msra.mxu0 %v5291
    %8731 = vmatprep.subr.bf16.mxu0 %v5300
    %8732 = vmatpush1.bf16.msra.mxu0 %v5299
    %8733 = vmatprep.subr.bf16.mxu0 %v5308
    %8734 = vmatpush1.bf16.msra.mxu0 %v5307
    %8735 = vmatprep.subr.bf16.mxu0 %v5316
    %8736 = vmatpush1.bf16.msra.mxu0 %v5315
    %8737 = vmatprep.subr.bf16.mxu0 %v5324
    %8738 = vmatpush1.bf16.msra.mxu0 %v5323
    %8739 = vmatprep.subr.bf16.mxu0 %v5332
    %8740 = vmatpush1.bf16.msra.mxu0 %v5331
    %8741 = vmatprep.subr.bf16.mxu0 %v5340
    %8742 = vmatpush1.bf16.msra.mxu0 %v5339
    %8743 = vmatprep.subr.bf16.mxu0 %v5348
    %8744 = vmatpush1.bf16.msra.mxu0 %v5347
    %8745 = vmatprep.subr.bf16.mxu0 %v5356
    %8746 = vmatpush1.bf16.msra.mxu0 %v5355
    %8747 = vmatprep.subr.bf16.mxu0 %v5364
    %8748 = vmatpush1.bf16.msra.mxu0 %v5363
    %8749 = vmatprep.subr.bf16.mxu0 %v5372
    %8750 = vmatpush1.bf16.msra.mxu0 %v5371
    %8751 = vmatprep.mubr.bf16.mxu0 %v8134
    %8752 = vmatmul.mubr.bf16.gmra.mrb[0].mxu0 %v8133
    %v8753 = vpop.f32.mrb[0].mxu0
    %v8754 = vadd.f32 %v8713, %v8753
    %v8755 = vpop.f32.mrb[0].mxu0
    %v8756 = vadd.f32 %v8715, %v8755
    %v8757 = vpop.f32.mrb[0].mxu0
    %v8758 = vpop.f32.mrb[0].mxu0
    %8759 = vdwg.mxu0
    %8760 = vmatprep.subr.bf16.mxu0 %v5380
    %8761 = vmatpush1.bf16.msra.mxu0 %v5379
    %8762 = vmatprep.subr.bf16.mxu0 %v5388
    %8763 = vmatpush1.bf16.msra.mxu0 %v5387
    %8764 = vmatprep.subr.bf16.mxu0 %v5396
    %8765 = vmatpush1.bf16.msra.mxu0 %v5395
    %8766 = vmatprep.subr.bf16.mxu0 %v5404
    %8767 = vmatpush1.bf16.msra.mxu0 %v5403
    %8768 = vmatprep.subr.bf16.mxu0 %v5412
    %8769 = vmatpush1.bf16.msra.mxu0 %v5411
    %8770 = vmatprep.subr.bf16.mxu0 %v5420
    %8771 = vmatpush1.bf16.msra.mxu0 %v5419
    %8772 = vmatprep.subr.bf16.mxu0 %v5428
    %8773 = vmatpush1.bf16.msra.mxu0 %v5427
    %8774 = vmatprep.subr.bf16.mxu0 %v5436
    %8775 = vmatpush1.bf16.msra.mxu0 %v5435
    %8776 = vmatprep.subr.bf16.mxu0 %v5444
    %8777 = vmatpush1.bf16.msra.mxu0 %v5443
    %8778 = vmatprep.subr.bf16.mxu0 %v5452
    %8779 = vmatpush1.bf16.msra.mxu0 %v5451
    %8780 = vmatprep.subr.bf16.mxu0 %v5460
    %8781 = vmatpush1.bf16.msra.mxu0 %v5459
    %8782 = vmatprep.subr.bf16.mxu0 %v5468
    %8783 = vmatpush1.bf16.msra.mxu0 %v5467
    %8784 = vmatprep.subr.bf16.mxu0 %v5476
    %8785 = vmatpush1.bf16.msra.mxu0 %v5475
    %8786 = vmatprep.subr.bf16.mxu0 %v5484
    %8787 = vmatpush1.bf16.msra.mxu0 %v5483
    %8788 = vmatprep.subr.bf16.mxu0 %v5492
    %8789 = vmatpush1.bf16.msra.mxu0 %v5491
    %8790 = vmatprep.subr.bf16.mxu0 %v5500
    %8791 = vmatpush1.bf16.msra.mxu0 %v5499
    %8792 = vmatprep.mubr.bf16.mxu0 %v8136
    %8793 = vmatmul.mubr.bf16.gmra.mrb[0].mxu0 %v8135
    %v8794 = vpop.f32.mrb[0].mxu0
    %v8795 = vadd.f32 %v8754, %v8794
    %v8796 = vpop.f32.mrb[0].mxu0
    %v8797 = vadd.f32 %v8756, %v8796
    %v8798 = vpop.f32.mrb[0].mxu0
    %v8799 = vpop.f32.mrb[0].mxu0
    %8800 = vdwg.mxu0
    %v8801 = vmax.f32 %v8303, %v8467
    %v8802 = vmax.f32 %v8305, %v8469
    %v8803 = vmax.f32 %v8631, %v8795
    %v8804 = vmax.f32 %v8633, %v8797
    %v8805 = vmax.f32 %v8801, %v8803
    %v8806 = vmax.f32 %v8802, %v8804
    %v8807 = vadd.f32 %v8805, %v6679
    %v8808 = vadd.f32 %v8806, %v6683
    %v8809 = vmax.f32 %v8807, 0.0
    %v8810 = vmax.f32 %v8808, 0.0
    %v8811 = vpack.c.bf16 %v8809, %v8809
    %v8812 = vpack.c.bf16 %v8810, %v8810
    %v8815 = vunpack.c.l.b16 %v8811
    %v8816 = vunpack.c.l.b16 %v8812
    %v8817 = vpack.c.b16 %v8816, %v8815
    %8819 = vst [vmem:[#allocation3 + $0x18] sm:$0xff] %v8817
    %v8820 = vld [vmem:[#allocation2 + $0x40] sm:$0xff]
    %v8821 = vld [vmem:[#allocation2 + $0x48] sm:$0xff]
    %v8822 = vld [vmem:[#allocation2 + $0x50] sm:$0xff]
    %v8823 = vld [vmem:[#allocation2 + $0x58] sm:$0xff]
    %v8828 = vunpack.c.l.b16 %v8820
    %v8829 = vunpack.c.h.b16 %v8820
    %v8830 = vunpack.c.l.b16 %v8821
    %v8831 = vunpack.c.h.b16 %v8821
    %v8832 = vunpack.c.l.b16 %v8822
    %v8833 = vunpack.c.h.b16 %v8822
    %v8834 = vunpack.c.l.b16 %v8823
    %v8835 = vunpack.c.h.b16 %v8823
    %v8836 = vpack.c.b16 %v8828, %v8828
    %v8837 = vpack.c.b16 %v8829, %v8829
    %v8838 = vpack.c.b16 %v8830, %v8830
    %v8839 = vpack.c.b16 %v8831, %v8831
    %v8840 = vpack.c.b16 %v8832, %v8832
    %v8841 = vpack.c.b16 %v8833, %v8833
    %v8842 = vpack.c.b16 %v8834, %v8834
    %v8843 = vpack.c.b16 %v8835, %v8835
    %8852 = vmatprep.subr.bf16.mxu0 %v4990
    %8853 = vmatpush1.bf16.msra.mxu0 %v4989
    %8854 = vmatprep.subr.bf16.mxu0 %v4998
    %8855 = vmatpush1.bf16.msra.mxu0 %v4997
    %8856 = vmatprep.subr.bf16.mxu0 %v5006
    %8857 = vmatpush1.bf16.msra.mxu0 %v5005
    %8858 = vmatprep.subr.bf16.mxu0 %v5014
    %8859 = vmatpush1.bf16.msra.mxu0 %v5013
    %8860 = vmatprep.subr.bf16.mxu0 %v5022
    %8861 = vmatpush1.bf16.msra.mxu0 %v5021
    %8862 = vmatprep.subr.bf16.mxu0 %v5030
    %8863 = vmatpush1.bf16.msra.mxu0 %v5029
    %8864 = vmatprep.subr.bf16.mxu0 %v5038
    %8865 = vmatpush1.bf16.msra.mxu0 %v5037
    %8866 = vmatprep.subr.bf16.mxu0 %v5046
    %8867 = vmatpush1.bf16.msra.mxu0 %v5045
    %8868 = vmatprep.subr.bf16.mxu0 %v5054
    %8869 = vmatpush1.bf16.msra.mxu0 %v5053
    %8870 = vmatprep.subr.bf16.mxu0 %v5062
    %8871 = vmatpush1.bf16.msra.mxu0 %v5061
    %8872 = vmatprep.subr.bf16.mxu0 %v5070
    %8873 = vmatpush1.bf16.msra.mxu0 %v5069
    %8874 = vmatprep.subr.bf16.mxu0 %v5078
    %8875 = vmatpush1.bf16.msra.mxu0 %v5077
    %8876 = vmatprep.subr.bf16.mxu0 %v5086
    %8877 = vmatpush1.bf16.msra.mxu0 %v5085
    %8878 = vmatprep.subr.bf16.mxu0 %v5094
    %8879 = vmatpush1.bf16.msra.mxu0 %v5093
    %8880 = vmatprep.subr.bf16.mxu0 %v5102
    %8881 = vmatpush1.bf16.msra.mxu0 %v5101
    %8882 = vmatprep.subr.bf16.mxu0 %v5110
    %8883 = vmatpush1.bf16.msra.mxu0 %v5109
    %8884 = vmatprep.mubr.bf16.mxu0 %v8837
    %8885 = vmatmul.mubr.bf16.gmra.mrb[0].mxu0 %v8836
    %v8886 = vpop.f32.mrb[0].mxu0
    %v8887 = vadd.f32 0.0, %v8886
    %v8888 = vpop.f32.mrb[0].mxu0
    %v8889 = vadd.f32 0.0, %v8888
    %v8890 = vpop.f32.mrb[0].mxu0
    %v8891 = vpop.f32.mrb[0].mxu0
    %8892 = vdwg.mxu0
    %8893 = vmatprep.subr.bf16.mxu0 %v5118
    %8894 = vmatpush1.bf16.msra.mxu0 %v5117
    %8895 = vmatprep.subr.bf16.mxu0 %v5126
    %8896 = vmatpush1.bf16.msra.mxu0 %v5125
    %8897 = vmatprep.subr.bf16.mxu0 %v5134
    %8898 = vmatpush1.bf16.msra.mxu0 %v5133
    %8899 = vmatprep.subr.bf16.mxu0 %v5142
    %8900 = vmatpush1.bf16.msra.mxu0 %v5141
    %8901 = vmatprep.subr.bf16.mxu0 %v5150
    %8902 = vmatpush1.bf16.msra.mxu0 %v5149
    %8903 = vmatprep.subr.bf16.mxu0 %v5158
    %8904 = vmatpush1.bf16.msra.mxu0 %v5157
    %8905 = vmatprep.subr.bf16.mxu0 %v5166
    %8906 = vmatpush1.bf16.msra.mxu0 %v5165
    %8907 = vmatprep.subr.bf16.mxu0 %v5174
    %8908 = vmatpush1.bf16.msra.mxu0 %v5173
    %8909 = vmatprep.subr.bf16.mxu0 %v5182
    %8910 = vmatpush1.bf16.msra.mxu0 %v5181
    %8911 = vmatprep.subr.bf16.mxu0 %v5190
    %8912 = vmatpush1.bf16.msra.mxu0 %v5189
    %8913 = vmatprep.subr.bf16.mxu0 %v5198
    %8914 = vmatpush1.bf16.msra.mxu0 %v5197
    %8915 = vmatprep.subr.bf16.mxu0 %v5206
    %8916 = vmatpush1.bf16.msra.mxu0 %v5205
    %8917 = vmatprep.subr.bf16.mxu0 %v5214
    %8918 = vmatpush1.bf16.msra.mxu0 %v5213
    %8919 = vmatprep.subr.bf16.mxu0 %v5222
    %8920 = vmatpush1.bf16.msra.mxu0 %v5221
    %8921 = vmatprep.subr.bf16.mxu0 %v5230
    %8922 = vmatpush1.bf16.msra.mxu0 %v5229
    %8923 = vmatprep.subr.bf16.mxu0 %v5238
    %8924 = vmatpush1.bf16.msra.mxu0 %v5237
    %8925 = vmatprep.mubr.bf16.mxu0 %v8839
    %8926 = vmatmul.mubr.bf16.gmra.mrb[0].mxu0 %v8838
    %v8927 = vpop.f32.mrb[0].mxu0
    %v8928 = vadd.f32 %v8887, %v8927
    %v8929 = vpop.f32.mrb[0].mxu0
    %v8930 = vadd.f32 %v8889, %v8929
    %v8931 = vpop.f32.mrb[0].mxu0
    %v8932 = vpop.f32.mrb[0].mxu0
    %8933 = vdwg.mxu0
    %8934 = vmatprep.subr.bf16.mxu0 %v5246
    %8935 = vmatpush1.bf16.msra.mxu0 %v5245
    %8936 = vmatprep.subr.bf16.mxu0 %v5254
    %8937 = vmatpush1.bf16.msra.mxu0 %v5253
    %8938 = vmatprep.subr.bf16.mxu0 %v5262
    %8939 = vmatpush1.bf16.msra.mxu0 %v5261
    %8940 = vmatprep.subr.bf16.mxu0 %v5270
    %8941 = vmatpush1.bf16.msra.mxu0 %v5269
    %8942 = vmatprep.subr.bf16.mxu0 %v5278
    %8943 = vmatpush1.bf16.msra.mxu0 %v5277
    %8944 = vmatprep.subr.bf16.mxu0 %v5286
    %8945 = vmatpush1.bf16.msra.mxu0 %v5285
    %8946 = vmatprep.subr.bf16.mxu0 %v5294
    %8947 = vmatpush1.bf16.msra.mxu0 %v5293
    %8948 = vmatprep.subr.bf16.mxu0 %v5302
    %8949 = vmatpush1.bf16.msra.mxu0 %v5301
    %8950 = vmatprep.subr.bf16.mxu0 %v5310
    %8951 = vmatpush1.bf16.msra.mxu0 %v5309
    %8952 = vmatprep.subr.bf16.mxu0 %v5318
    %8953 = vmatpush1.bf16.msra.mxu0 %v5317
    %8954 = vmatprep.subr.bf16.mxu0 %v5326
    %8955 = vmatpush1.bf16.msra.mxu0 %v5325
    %8956 = vmatprep.subr.bf16.mxu0 %v5334
    %8957 = vmatpush1.bf16.msra.mxu0 %v5333
    %8958 = vmatprep.subr.bf16.mxu0 %v5342
    %8959 = vmatpush1.bf16.msra.mxu0 %v5341
    %8960 = vmatprep.subr.bf16.mxu0 %v5350
    %8961 = vmatpush1.bf16.msra.mxu0 %v5349
    %8962 = vmatprep.subr.bf16.mxu0 %v5358
    %8963 = vmatpush1.bf16.msra.mxu0 %v5357
    %8964 = vmatprep.subr.bf16.mxu0 %v5366
    %8965 = vmatpush1.bf16.msra.mxu0 %v5365
    %8966 = vmatprep.mubr.bf16.mxu0 %v8841
    %8967 = vmatmul.mubr.bf16.gmra.mrb[0].mxu0 %v8840
    %v8968 = vpop.f32.mrb[0].mxu0
    %v8969 = vadd.f32 %v8928, %v8968
    %v8970 = vpop.f32.mrb[0].mxu0
    %v8971 = vadd.f32 %v8930, %v8970
    %v8972 = vpop.f32.mrb[0].mxu0
    %v8973 = vpop.f32.mrb[0].mxu0
    %8974 = vdwg.mxu0
    %8975 = vmatprep.subr.bf16.mxu0 %v5374
    %8976 = vmatpush1.bf16.msra.mxu0 %v5373
    %8977 = vmatprep.subr.bf16.mxu0 %v5382
    %8978 = vmatpush1.bf16.msra.mxu0 %v5381
    %8979 = vmatprep.subr.bf16.mxu0 %v5390
    %8980 = vmatpush1.bf16.msra.mxu0 %v5389
    %8981 = vmatprep.subr.bf16.mxu0 %v5398
    %8982 = vmatpush1.bf16.msra.mxu0 %v5397
    %8983 = vmatprep.subr.bf16.mxu0 %v5406
    %8984 = vmatpush1.bf16.msra.mxu0 %v5405
    %8985 = vmatprep.subr.bf16.mxu0 %v5414
    %8986 = vmatpush1.bf16.msra.mxu0 %v5413
    %8987 = vmatprep.subr.bf16.mxu0 %v5422
    %8988 = vmatpush1.bf16.msra.mxu0 %v5421
    %8989 = vmatprep.subr.bf16.mxu0 %v5430
    %8990 = vmatpush1.bf16.msra.mxu0 %v5429
    %8991 = vmatprep.subr.bf16.mxu0 %v5438
    %8992 = vmatpush1.bf16.msra.mxu0 %v5437
    %8993 = vmatprep.subr.bf16.mxu0 %v5446
    %8994 = vmatpush1.bf16.msra.mxu0 %v5445
    %8995 = vmatprep.subr.bf16.mxu0 %v5454
    %8996 = vmatpush1.bf16.msra.mxu0 %v5453
    %8997 = vmatprep.subr.bf16.mxu0 %v5462
    %8998 = vmatpush1.bf16.msra.mxu0 %v5461
    %8999 = vmatprep.subr.bf16.mxu0 %v5470
    %9000 = vmatpush1.bf16.msra.mxu0 %v5469
    %9001 = vmatprep.subr.bf16.mxu0 %v5478
    %9002 = vmatpush1.bf16.msra.mxu0 %v5477
    %9003 = vmatprep.subr.bf16.mxu0 %v5486
    %9004 = vmatpush1.bf16.msra.mxu0 %v5485
    %9005 = vmatprep.subr.bf16.mxu0 %v5494
    %9006 = vmatpush1.bf16.msra.mxu0 %v5493
    %9007 = vmatprep.mubr.bf16.mxu0 %v8843
    %9008 = vmatmul.mubr.bf16.gmra.mrb[0].mxu0 %v8842
    %v9009 = vpop.f32.mrb[0].mxu0
    %v9010 = vadd.f32 %v8969, %v9009
    %v9011 = vpop.f32.mrb[0].mxu0
    %v9012 = vadd.f32 %v8971, %v9011
    %v9013 = vpop.f32.mrb[0].mxu0
    %v9014 = vpop.f32.mrb[0].mxu0
    %9015 = vdwg.mxu0
    %9016 = vmatprep.subr.bf16.mxu0 %v4992
    %9017 = vmatpush1.bf16.msra.mxu0 %v4991
    %9018 = vmatprep.subr.bf16.mxu0 %v5000
    %9019 = vmatpush1.bf16.msra.mxu0 %v4999
    %9020 = vmatprep.subr.bf16.mxu0 %v5008
    %9021 = vmatpush1.bf16.msra.mxu0 %v5007
    %9022 = vmatprep.subr.bf16.mxu0 %v5016
    %9023 = vmatpush1.bf16.msra.mxu0 %v5015
    %9024 = vmatprep.subr.bf16.mxu0 %v5024
    %9025 = vmatpush1.bf16.msra.mxu0 %v5023
    %9026 = vmatprep.subr.bf16.mxu0 %v5032
    %9027 = vmatpush1.bf16.msra.mxu0 %v5031
    %9028 = vmatprep.subr.bf16.mxu0 %v5040
    %9029 = vmatpush1.bf16.msra.mxu0 %v5039
    %9030 = vmatprep.subr.bf16.mxu0 %v5048
    %9031 = vmatpush1.bf16.msra.mxu0 %v5047
    %9032 = vmatprep.subr.bf16.mxu0 %v5056
    %9033 = vmatpush1.bf16.msra.mxu0 %v5055
    %9034 = vmatprep.subr.bf16.mxu0 %v5064
    %9035 = vmatpush1.bf16.msra.mxu0 %v5063
    %9036 = vmatprep.subr.bf16.mxu0 %v5072
    %9037 = vmatpush1.bf16.msra.mxu0 %v5071
    %9038 = vmatprep.subr.bf16.mxu0 %v5080
    %9039 = vmatpush1.bf16.msra.mxu0 %v5079
    %9040 = vmatprep.subr.bf16.mxu0 %v5088
    %9041 = vmatpush1.bf16.msra.mxu0 %v5087
    %9042 = vmatprep.subr.bf16.mxu0 %v5096
    %9043 = vmatpush1.bf16.msra.mxu0 %v5095
    %9044 = vmatprep.subr.bf16.mxu0 %v5104
    %9045 = vmatpush1.bf16.msra.mxu0 %v5103
    %9046 = vmatprep.subr.bf16.mxu0 %v5112
    %9047 = vmatpush1.bf16.msra.mxu0 %v5111
    %9048 = vmatprep.mubr.bf16.mxu0 %v8837
    %9049 = vmatmul.mubr.bf16.gmra.mrb[0].mxu0 %v8836
    %v9050 = vpop.f32.mrb[0].mxu0
    %v9051 = vadd.f32 0.0, %v9050
    %v9052 = vpop.f32.mrb[0].mxu0
    %v9053 = vadd.f32 0.0, %v9052
    %v9054 = vpop.f32.mrb[0].mxu0
    %v9055 = vpop.f32.mrb[0].mxu0
    %9056 = vdwg.mxu0
    %9057 = vmatprep.subr.bf16.mxu0 %v5120
    %9058 = vmatpush1.bf16.msra.mxu0 %v5119
    %9059 = vmatprep.subr.bf16.mxu0 %v5128
    %9060 = vmatpush1.bf16.msra.mxu0 %v5127
    %9061 = vmatprep.subr.bf16.mxu0 %v5136
    %9062 = vmatpush1.bf16.msra.mxu0 %v5135
    %9063 = vmatprep.subr.bf16.mxu0 %v5144
    %9064 = vmatpush1.bf16.msra.mxu0 %v5143
    %9065 = vmatprep.subr.bf16.mxu0 %v5152
    %9066 = vmatpush1.bf16.msra.mxu0 %v5151
    %9067 = vmatprep.subr.bf16.mxu0 %v5160
    %9068 = vmatpush1.bf16.msra.mxu0 %v5159
    %9069 = vmatprep.subr.bf16.mxu0 %v5168
    %9070 = vmatpush1.bf16.msra.mxu0 %v5167
    %9071 = vmatprep.subr.bf16.mxu0 %v5176
    %9072 = vmatpush1.bf16.msra.mxu0 %v5175
    %9073 = vmatprep.subr.bf16.mxu0 %v5184
    %9074 = vmatpush1.bf16.msra.mxu0 %v5183
    %9075 = vmatprep.subr.bf16.mxu0 %v5192
    %9076 = vmatpush1.bf16.msra.mxu0 %v5191
    %9077 = vmatprep.subr.bf16.mxu0 %v5200
    %9078 = vmatpush1.bf16.msra.mxu0 %v5199
    %9079 = vmatprep.subr.bf16.mxu0 %v5208
    %9080 = vmatpush1.bf16.msra.mxu0 %v5207
    %9081 = vmatprep.subr.bf16.mxu0 %v5216
    %9082 = vmatpush1.bf16.msra.mxu0 %v5215
    %9083 = vmatprep.subr.bf16.mxu0 %v5224
    %9084 = vmatpush1.bf16.msra.mxu0 %v5223
    %9085 = vmatprep.subr.bf16.mxu0 %v5232
    %9086 = vmatpush1.bf16.msra.mxu0 %v5231
    %9087 = vmatprep.subr.bf16.mxu0 %v5240
    %9088 = vmatpush1.bf16.msra.mxu0 %v5239
    %9089 = vmatprep.mubr.bf16.mxu0 %v8839
    %9090 = vmatmul.mubr.bf16.gmra.mrb[0].mxu0 %v8838
    %v9091 = vpop.f32.mrb[0].mxu0
    %v9092 = vadd.f32 %v9051, %v9091
    %v9093 = vpop.f32.mrb[0].mxu0
    %v9094 = vadd.f32 %v9053, %v9093
    %v9095 = vpop.f32.mrb[0].mxu0
    %v9096 = vpop.f32.mrb[0].mxu0
    %9097 = vdwg.mxu0
    %9098 = vmatprep.subr.bf16.mxu0 %v5248
    %9099 = vmatpush1.bf16.msra.mxu0 %v5247
    %9100 = vmatprep.subr.bf16.mxu0 %v5256
    %9101 = vmatpush1.bf16.msra.mxu0 %v5255
    %9102 = vmatprep.subr.bf16.mxu0 %v5264
    %9103 = vmatpush1.bf16.msra.mxu0 %v5263
    %9104 = vmatprep.subr.bf16.mxu0 %v5272
    %9105 = vmatpush1.bf16.msra.mxu0 %v5271
    %9106 = vmatprep.subr.bf16.mxu0 %v5280
    %9107 = vmatpush1.bf16.msra.mxu0 %v5279
    %9108 = vmatprep.subr.bf16.mxu0 %v5288
    %9109 = vmatpush1.bf16.msra.mxu0 %v5287
    %9110 = vmatprep.subr.bf16.mxu0 %v5296
    %9111 = vmatpush1.bf16.msra.mxu0 %v5295
    %9112 = vmatprep.subr.bf16.mxu0 %v5304
    %9113 = vmatpush1.bf16.msra.mxu0 %v5303
    %9114 = vmatprep.subr.bf16.mxu0 %v5312
    %9115 = vmatpush1.bf16.msra.mxu0 %v5311
    %9116 = vmatprep.subr.bf16.mxu0 %v5320
    %9117 = vmatpush1.bf16.msra.mxu0 %v5319
    %9118 = vmatprep.subr.bf16.mxu0 %v5328
    %9119 = vmatpush1.bf16.msra.mxu0 %v5327
    %9120 = vmatprep.subr.bf16.mxu0 %v5336
    %9121 = vmatpush1.bf16.msra.mxu0 %v5335
    %9122 = vmatprep.subr.bf16.mxu0 %v5344
    %9123 = vmatpush1.bf16.msra.mxu0 %v5343
    %9124 = vmatprep.subr.bf16.mxu0 %v5352
    %9125 = vmatpush1.bf16.msra.mxu0 %v5351
    %9126 = vmatprep.subr.bf16.mxu0 %v5360
    %9127 = vmatpush1.bf16.msra.mxu0 %v5359
    %9128 = vmatprep.subr.bf16.mxu0 %v5368
    %9129 = vmatpush1.bf16.msra.mxu0 %v5367
    %9130 = vmatprep.mubr.bf16.mxu0 %v8841
    %9131 = vmatmul.mubr.bf16.gmra.mrb[0].mxu0 %v8840
    %v9132 = vpop.f32.mrb[0].mxu0
    %v9133 = vadd.f32 %v9092, %v9132
    %v9134 = vpop.f32.mrb[0].mxu0
    %v9135 = vadd.f32 %v9094, %v9134
    %v9136 = vpop.f32.mrb[0].mxu0
    %v9137 = vpop.f32.mrb[0].mxu0
    %9138 = vdwg.mxu0
    %9139 = vmatprep.subr.bf16.mxu0 %v5376
    %9140 = vmatpush1.bf16.msra.mxu0 %v5375
    %9141 = vmatprep.subr.bf16.mxu0 %v5384
    %9142 = vmatpush1.bf16.msra.mxu0 %v5383
    %9143 = vmatprep.subr.bf16.mxu0 %v5392
    %9144 = vmatpush1.bf16.msra.mxu0 %v5391
    %9145 = vmatprep.subr.bf16.mxu0 %v5400
    %9146 = vmatpush1.bf16.msra.mxu0 %v5399
    %9147 = vmatprep.subr.bf16.mxu0 %v5408
    %9148 = vmatpush1.bf16.msra.mxu0 %v5407
    %9149 = vmatprep.subr.bf16.mxu0 %v5416
    %9150 = vmatpush1.bf16.msra.mxu0 %v5415
    %9151 = vmatprep.subr.bf16.mxu0 %v5424
    %9152 = vmatpush1.bf16.msra.mxu0 %v5423
    %9153 = vmatprep.subr.bf16.mxu0 %v5432
    %9154 = vmatpush1.bf16.msra.mxu0 %v5431
    %9155 = vmatprep.subr.bf16.mxu0 %v5440
    %9156 = vmatpush1.bf16.msra.mxu0 %v5439
    %9157 = vmatprep.subr.bf16.mxu0 %v5448
    %9158 = vmatpush1.bf16.msra.mxu0 %v5447
    %9159 = vmatprep.subr.bf16.mxu0 %v5456
    %9160 = vmatpush1.bf16.msra.mxu0 %v5455
    %9161 = vmatprep.subr.bf16.mxu0 %v5464
    %9162 = vmatpush1.bf16.msra.mxu0 %v5463
    %9163 = vmatprep.subr.bf16.mxu0 %v5472
    %9164 = vmatpush1.bf16.msra.mxu0 %v5471
    %9165 = vmatprep.subr.bf16.mxu0 %v5480
    %9166 = vmatpush1.bf16.msra.mxu0 %v5479
    %9167 = vmatprep.subr.bf16.mxu0 %v5488
    %9168 = vmatpush1.bf16.msra.mxu0 %v5487
    %9169 = vmatprep.subr.bf16.mxu0 %v5496
    %9170 = vmatpush1.bf16.msra.mxu0 %v5495
    %9171 = vmatprep.mubr.bf16.mxu0 %v8843
    %9172 = vmatmul.mubr.bf16.gmra.mrb[0].mxu0 %v8842
    %v9173 = vpop.f32.mrb[0].mxu0
    %v9174 = vadd.f32 %v9133, %v9173
    %v9175 = vpop.f32.mrb[0].mxu0
    %v9176 = vadd.f32 %v9135, %v9175
    %v9177 = vpop.f32.mrb[0].mxu0
    %v9178 = vpop.f32.mrb[0].mxu0
    %9179 = vdwg.mxu0
    %9180 = vmatprep.subr.bf16.mxu0 %v4994
    %9181 = vmatpush1.bf16.msra.mxu0 %v4993
    %9182 = vmatprep.subr.bf16.mxu0 %v5002
    %9183 = vmatpush1.bf16.msra.mxu0 %v5001
    %9184 = vmatprep.subr.bf16.mxu0 %v5010
    %9185 = vmatpush1.bf16.msra.mxu0 %v5009
    %9186 = vmatprep.subr.bf16.mxu0 %v5018
    %9187 = vmatpush1.bf16.msra.mxu0 %v5017
    %9188 = vmatprep.subr.bf16.mxu0 %v5026
    %9189 = vmatpush1.bf16.msra.mxu0 %v5025
    %9190 = vmatprep.subr.bf16.mxu0 %v5034
    %9191 = vmatpush1.bf16.msra.mxu0 %v5033
    %9192 = vmatprep.subr.bf16.mxu0 %v5042
    %9193 = vmatpush1.bf16.msra.mxu0 %v5041
    %9194 = vmatprep.subr.bf16.mxu0 %v5050
    %9195 = vmatpush1.bf16.msra.mxu0 %v5049
    %9196 = vmatprep.subr.bf16.mxu0 %v5058
    %9197 = vmatpush1.bf16.msra.mxu0 %v5057
    %9198 = vmatprep.subr.bf16.mxu0 %v5066
    %9199 = vmatpush1.bf16.msra.mxu0 %v5065
    %9200 = vmatprep.subr.bf16.mxu0 %v5074
    %9201 = vmatpush1.bf16.msra.mxu0 %v5073
    %9202 = vmatprep.subr.bf16.mxu0 %v5082
    %9203 = vmatpush1.bf16.msra.mxu0 %v5081
    %9204 = vmatprep.subr.bf16.mxu0 %v5090
    %9205 = vmatpush1.bf16.msra.mxu0 %v5089
    %9206 = vmatprep.subr.bf16.mxu0 %v5098
    %9207 = vmatpush1.bf16.msra.mxu0 %v5097
    %9208 = vmatprep.subr.bf16.mxu0 %v5106
    %9209 = vmatpush1.bf16.msra.mxu0 %v5105
    %9210 = vmatprep.subr.bf16.mxu0 %v5114
    %9211 = vmatpush1.bf16.msra.mxu0 %v5113
    %9212 = vmatprep.mubr.bf16.mxu0 %v8837
    %9213 = vmatmul.mubr.bf16.gmra.mrb[0].mxu0 %v8836
    %v9214 = vpop.f32.mrb[0].mxu0
    %v9215 = vadd.f32 0.0, %v9214
    %v9216 = vpop.f32.mrb[0].mxu0
    %v9217 = vadd.f32 0.0, %v9216
    %v9218 = vpop.f32.mrb[0].mxu0
    %v9219 = vpop.f32.mrb[0].mxu0
    %9220 = vdwg.mxu0
    %9221 = vmatprep.subr.bf16.mxu0 %v5122
    %9222 = vmatpush1.bf16.msra.mxu0 %v5121
    %9223 = vmatprep.subr.bf16.mxu0 %v5130
    %9224 = vmatpush1.bf16.msra.mxu0 %v5129
    %9225 = vmatprep.subr.bf16.mxu0 %v5138
    %9226 = vmatpush1.bf16.msra.mxu0 %v5137
    %9227 = vmatprep.subr.bf16.mxu0 %v5146
    %9228 = vmatpush1.bf16.msra.mxu0 %v5145
    %9229 = vmatprep.subr.bf16.mxu0 %v5154
    %9230 = vmatpush1.bf16.msra.mxu0 %v5153
    %9231 = vmatprep.subr.bf16.mxu0 %v5162
    %9232 = vmatpush1.bf16.msra.mxu0 %v5161
    %9233 = vmatprep.subr.bf16.mxu0 %v5170
    %9234 = vmatpush1.bf16.msra.mxu0 %v5169
    %9235 = vmatprep.subr.bf16.mxu0 %v5178
    %9236 = vmatpush1.bf16.msra.mxu0 %v5177
    %9237 = vmatprep.subr.bf16.mxu0 %v5186
    %9238 = vmatpush1.bf16.msra.mxu0 %v5185
    %9239 = vmatprep.subr.bf16.mxu0 %v5194
    %9240 = vmatpush1.bf16.msra.mxu0 %v5193
    %9241 = vmatprep.subr.bf16.mxu0 %v5202
    %9242 = vmatpush1.bf16.msra.mxu0 %v5201
    %9243 = vmatprep.subr.bf16.mxu0 %v5210
    %9244 = vmatpush1.bf16.msra.mxu0 %v5209
    %9245 = vmatprep.subr.bf16.mxu0 %v5218
    %9246 = vmatpush1.bf16.msra.mxu0 %v5217
    %9247 = vmatprep.subr.bf16.mxu0 %v5226
    %9248 = vmatpush1.bf16.msra.mxu0 %v5225
    %9249 = vmatprep.subr.bf16.mxu0 %v5234
    %9250 = vmatpush1.bf16.msra.mxu0 %v5233
    %9251 = vmatprep.subr.bf16.mxu0 %v5242
    %9252 = vmatpush1.bf16.msra.mxu0 %v5241
    %9253 = vmatprep.mubr.bf16.mxu0 %v8839
    %9254 = vmatmul.mubr.bf16.gmra.mrb[0].mxu0 %v8838
    %v9255 = vpop.f32.mrb[0].mxu0
    %v9256 = vadd.f32 %v9215, %v9255
    %v9257 = vpop.f32.mrb[0].mxu0
    %v9258 = vadd.f32 %v9217, %v9257
    %v9259 = vpop.f32.mrb[0].mxu0
    %v9260 = vpop.f32.mrb[0].mxu0
    %9261 = vdwg.mxu0
    %9262 = vmatprep.subr.bf16.mxu0 %v5250
    %9263 = vmatpush1.bf16.msra.mxu0 %v5249
    %9264 = vmatprep.subr.bf16.mxu0 %v5258
    %9265 = vmatpush1.bf16.msra.mxu0 %v5257
    %9266 = vmatprep.subr.bf16.mxu0 %v5266
    %9267 = vmatpush1.bf16.msra.mxu0 %v5265
    %9268 = vmatprep.subr.bf16.mxu0 %v5274
    %9269 = vmatpush1.bf16.msra.mxu0 %v5273
    %9270 = vmatprep.subr.bf16.mxu0 %v5282
    %9271 = vmatpush1.bf16.msra.mxu0 %v5281
    %9272 = vmatprep.subr.bf16.mxu0 %v5290
    %9273 = vmatpush1.bf16.msra.mxu0 %v5289
    %9274 = vmatprep.subr.bf16.mxu0 %v5298
    %9275 = vmatpush1.bf16.msra.mxu0 %v5297
    %9276 = vmatprep.subr.bf16.mxu0 %v5306
    %9277 = vmatpush1.bf16.msra.mxu0 %v5305
    %9278 = vmatprep.subr.bf16.mxu0 %v5314
    %9279 = vmatpush1.bf16.msra.mxu0 %v5313
    %9280 = vmatprep.subr.bf16.mxu0 %v5322
    %9281 = vmatpush1.bf16.msra.mxu0 %v5321
    %9282 = vmatprep.subr.bf16.mxu0 %v5330
    %9283 = vmatpush1.bf16.msra.mxu0 %v5329
    %9284 = vmatprep.subr.bf16.mxu0 %v5338
    %9285 = vmatpush1.bf16.msra.mxu0 %v5337
    %9286 = vmatprep.subr.bf16.mxu0 %v5346
    %9287 = vmatpush1.bf16.msra.mxu0 %v5345
    %9288 = vmatprep.subr.bf16.mxu0 %v5354
    %9289 = vmatpush1.bf16.msra.mxu0 %v5353
    %9290 = vmatprep.subr.bf16.mxu0 %v5362
    %9291 = vmatpush1.bf16.msra.mxu0 %v5361
    %9292 = vmatprep.subr.bf16.mxu0 %v5370
    %9293 = vmatpush1.bf16.msra.mxu0 %v5369
    %9294 = vmatprep.mubr.bf16.mxu0 %v8841
    %9295 = vmatmul.mubr.bf16.gmra.mrb[0].mxu0 %v8840
    %v9296 = vpop.f32.mrb[0].mxu0
    %v9297 = vadd.f32 %v9256, %v9296
    %v9298 = vpop.f32.mrb[0].mxu0
    %v9299 = vadd.f32 %v9258, %v9298
    %v9300 = vpop.f32.mrb[0].mxu0
    %v9301 = vpop.f32.mrb[0].mxu0
    %9302 = vdwg.mxu0
    %9303 = vmatprep.subr.bf16.mxu0 %v5378
    %9304 = vmatpush1.bf16.msra.mxu0 %v5377
    %9305 = vmatprep.subr.bf16.mxu0 %v5386
    %9306 = vmatpush1.bf16.msra.mxu0 %v5385
    %9307 = vmatprep.subr.bf16.mxu0 %v5394
    %9308 = vmatpush1.bf16.msra.mxu0 %v5393
    %9309 = vmatprep.subr.bf16.mxu0 %v5402
    %9310 = vmatpush1.bf16.msra.mxu0 %v5401
    %9311 = vmatprep.subr.bf16.mxu0 %v5410
    %9312 = vmatpush1.bf16.msra.mxu0 %v5409
    %9313 = vmatprep.subr.bf16.mxu0 %v5418
    %9314 = vmatpush1.bf16.msra.mxu0 %v5417
    %9315 = vmatprep.subr.bf16.mxu0 %v5426
    %9316 = vmatpush1.bf16.msra.mxu0 %v5425
    %9317 = vmatprep.subr.bf16.mxu0 %v5434
    %9318 = vmatpush1.bf16.msra.mxu0 %v5433
    %9319 = vmatprep.subr.bf16.mxu0 %v5442
    %9320 = vmatpush1.bf16.msra.mxu0 %v5441
    %9321 = vmatprep.subr.bf16.mxu0 %v5450
    %9322 = vmatpush1.bf16.msra.mxu0 %v5449
    %9323 = vmatprep.subr.bf16.mxu0 %v5458
    %9324 = vmatpush1.bf16.msra.mxu0 %v5457
    %9325 = vmatprep.subr.bf16.mxu0 %v5466
    %9326 = vmatpush1.bf16.msra.mxu0 %v5465
    %9327 = vmatprep.subr.bf16.mxu0 %v5474
    %9328 = vmatpush1.bf16.msra.mxu0 %v5473
    %9329 = vmatprep.subr.bf16.mxu0 %v5482
    %9330 = vmatpush1.bf16.msra.mxu0 %v5481
    %9331 = vmatprep.subr.bf16.mxu0 %v5490
    %9332 = vmatpush1.bf16.msra.mxu0 %v5489
    %9333 = vmatprep.subr.bf16.mxu0 %v5498
    %9334 = vmatpush1.bf16.msra.mxu0 %v5497
    %9335 = vmatprep.mubr.bf16.mxu0 %v8843
    %9336 = vmatmul.mubr.bf16.gmra.mrb[0].mxu0 %v8842
    %v9337 = vpop.f32.mrb[0].mxu0
    %v9338 = vadd.f32 %v9297, %v9337
    %v9339 = vpop.f32.mrb[0].mxu0
    %v9340 = vadd.f32 %v9299, %v9339
    %v9341 = vpop.f32.mrb[0].mxu0
    %v9342 = vpop.f32.mrb[0].mxu0
    %9343 = vdwg.mxu0
    %9344 = vmatprep.subr.bf16.mxu0 %v4996
    %9345 = vmatpush1.bf16.msra.mxu0 %v4995
    %9346 = vmatprep.subr.bf16.mxu0 %v5004
    %9347 = vmatpush1.bf16.msra.mxu0 %v5003
    %9348 = vmatprep.subr.bf16.mxu0 %v5012
    %9349 = vmatpush1.bf16.msra.mxu0 %v5011
    %9350 = vmatprep.subr.bf16.mxu0 %v5020
    %9351 = vmatpush1.bf16.msra.mxu0 %v5019
    %9352 = vmatprep.subr.bf16.mxu0 %v5028
    %9353 = vmatpush1.bf16.msra.mxu0 %v5027
    %9354 = vmatprep.subr.bf16.mxu0 %v5036
    %9355 = vmatpush1.bf16.msra.mxu0 %v5035
    %9356 = vmatprep.subr.bf16.mxu0 %v5044
    %9357 = vmatpush1.bf16.msra.mxu0 %v5043
    %9358 = vmatprep.subr.bf16.mxu0 %v5052
    %9359 = vmatpush1.bf16.msra.mxu0 %v5051
    %9360 = vmatprep.subr.bf16.mxu0 %v5060
    %9361 = vmatpush1.bf16.msra.mxu0 %v5059
    %9362 = vmatprep.subr.bf16.mxu0 %v5068
    %9363 = vmatpush1.bf16.msra.mxu0 %v5067
    %9364 = vmatprep.subr.bf16.mxu0 %v5076
    %9365 = vmatpush1.bf16.msra.mxu0 %v5075
    %9366 = vmatprep.subr.bf16.mxu0 %v5084
    %9367 = vmatpush1.bf16.msra.mxu0 %v5083
    %9368 = vmatprep.subr.bf16.mxu0 %v5092
    %9369 = vmatpush1.bf16.msra.mxu0 %v5091
    %9370 = vmatprep.subr.bf16.mxu0 %v5100
    %9371 = vmatpush1.bf16.msra.mxu0 %v5099
    %9372 = vmatprep.subr.bf16.mxu0 %v5108
    %9373 = vmatpush1.bf16.msra.mxu0 %v5107
    %9374 = vmatprep.subr.bf16.mxu0 %v5116
    %9375 = vmatpush1.bf16.msra.mxu0 %v5115
    %9376 = vmatprep.mubr.bf16.mxu0 %v8837
    %9377 = vmatmul.mubr.bf16.gmra.mrb[0].mxu0 %v8836
    %v9378 = vpop.f32.mrb[0].mxu0
    %v9379 = vadd.f32 0.0, %v9378
    %v9380 = vpop.f32.mrb[0].mxu0
    %v9381 = vadd.f32 0.0, %v9380
    %v9382 = vpop.f32.mrb[0].mxu0
    %v9383 = vpop.f32.mrb[0].mxu0
    %9384 = vdwg.mxu0
    %9385 = vmatprep.subr.bf16.mxu0 %v5124
    %9386 = vmatpush1.bf16.msra.mxu0 %v5123
    %9387 = vmatprep.subr.bf16.mxu0 %v5132
    %9388 = vmatpush1.bf16.msra.mxu0 %v5131
    %9389 = vmatprep.subr.bf16.mxu0 %v5140
    %9390 = vmatpush1.bf16.msra.mxu0 %v5139
    %9391 = vmatprep.subr.bf16.mxu0 %v5148
    %9392 = vmatpush1.bf16.msra.mxu0 %v5147
    %9393 = vmatprep.subr.bf16.mxu0 %v5156
    %9394 = vmatpush1.bf16.msra.mxu0 %v5155
    %9395 = vmatprep.subr.bf16.mxu0 %v5164
    %9396 = vmatpush1.bf16.msra.mxu0 %v5163
    %9397 = vmatprep.subr.bf16.mxu0 %v5172
    %9398 = vmatpush1.bf16.msra.mxu0 %v5171
    %9399 = vmatprep.subr.bf16.mxu0 %v5180
    %9400 = vmatpush1.bf16.msra.mxu0 %v5179
    %9401 = vmatprep.subr.bf16.mxu0 %v5188
    %9402 = vmatpush1.bf16.msra.mxu0 %v5187
    %9403 = vmatprep.subr.bf16.mxu0 %v5196
    %9404 = vmatpush1.bf16.msra.mxu0 %v5195
    %9405 = vmatprep.subr.bf16.mxu0 %v5204
    %9406 = vmatpush1.bf16.msra.mxu0 %v5203
    %9407 = vmatprep.subr.bf16.mxu0 %v5212
    %9408 = vmatpush1.bf16.msra.mxu0 %v5211
    %9409 = vmatprep.subr.bf16.mxu0 %v5220
    %9410 = vmatpush1.bf16.msra.mxu0 %v5219
    %9411 = vmatprep.subr.bf16.mxu0 %v5228
    %9412 = vmatpush1.bf16.msra.mxu0 %v5227
    %9413 = vmatprep.subr.bf16.mxu0 %v5236
    %9414 = vmatpush1.bf16.msra.mxu0 %v5235
    %9415 = vmatprep.subr.bf16.mxu0 %v5244
    %9416 = vmatpush1.bf16.msra.mxu0 %v5243
    %9417 = vmatprep.mubr.bf16.mxu0 %v8839
    %9418 = vmatmul.mubr.bf16.gmra.mrb[0].mxu0 %v8838
    %v9419 = vpop.f32.mrb[0].mxu0
    %v9420 = vadd.f32 %v9379, %v9419
    %v9421 = vpop.f32.mrb[0].mxu0
    %v9422 = vadd.f32 %v9381, %v9421
    %v9423 = vpop.f32.mrb[0].mxu0
    %v9424 = vpop.f32.mrb[0].mxu0
    %9425 = vdwg.mxu0
    %9426 = vmatprep.subr.bf16.mxu0 %v5252
    %9427 = vmatpush1.bf16.msra.mxu0 %v5251
    %9428 = vmatprep.subr.bf16.mxu0 %v5260
    %9429 = vmatpush1.bf16.msra.mxu0 %v5259
    %9430 = vmatprep.subr.bf16.mxu0 %v5268
    %9431 = vmatpush1.bf16.msra.mxu0 %v5267
    %9432 = vmatprep.subr.bf16.mxu0 %v5276
    %9433 = vmatpush1.bf16.msra.mxu0 %v5275
    %9434 = vmatprep.subr.bf16.mxu0 %v5284
    %9435 = vmatpush1.bf16.msra.mxu0 %v5283
    %9436 = vmatprep.subr.bf16.mxu0 %v5292
    %9437 = vmatpush1.bf16.msra.mxu0 %v5291
    %9438 = vmatprep.subr.bf16.mxu0 %v5300
    %9439 = vmatpush1.bf16.msra.mxu0 %v5299
    %9440 = vmatprep.subr.bf16.mxu0 %v5308
    %9441 = vmatpush1.bf16.msra.mxu0 %v5307
    %9442 = vmatprep.subr.bf16.mxu0 %v5316
    %9443 = vmatpush1.bf16.msra.mxu0 %v5315
    %9444 = vmatprep.subr.bf16.mxu0 %v5324
    %9445 = vmatpush1.bf16.msra.mxu0 %v5323
    %9446 = vmatprep.subr.bf16.mxu0 %v5332
    %9447 = vmatpush1.bf16.msra.mxu0 %v5331
    %9448 = vmatprep.subr.bf16.mxu0 %v5340
    %9449 = vmatpush1.bf16.msra.mxu0 %v5339
    %9450 = vmatprep.subr.bf16.mxu0 %v5348
    %9451 = vmatpush1.bf16.msra.mxu0 %v5347
    %9452 = vmatprep.subr.bf16.mxu0 %v5356
    %9453 = vmatpush1.bf16.msra.mxu0 %v5355
    %9454 = vmatprep.subr.bf16.mxu0 %v5364
    %9455 = vmatpush1.bf16.msra.mxu0 %v5363
    %9456 = vmatprep.subr.bf16.mxu0 %v5372
    %9457 = vmatpush1.bf16.msra.mxu0 %v5371
    %9458 = vmatprep.mubr.bf16.mxu0 %v8841
    %9459 = vmatmul.mubr.bf16.gmra.mrb[0].mxu0 %v8840
    %v9460 = vpop.f32.mrb[0].mxu0
    %v9461 = vadd.f32 %v9420, %v9460
    %v9462 = vpop.f32.mrb[0].mxu0
    %v9463 = vadd.f32 %v9422, %v9462
    %v9464 = vpop.f32.mrb[0].mxu0
    %v9465 = vpop.f32.mrb[0].mxu0
    %9466 = vdwg.mxu0
    %9467 = vmatprep.subr.bf16.mxu0 %v5380
    %9468 = vmatpush1.bf16.msra.mxu0 %v5379
    %9469 = vmatprep.subr.bf16.mxu0 %v5388
    %9470 = vmatpush1.bf16.msra.mxu0 %v5387
    %9471 = vmatprep.subr.bf16.mxu0 %v5396
    %9472 = vmatpush1.bf16.msra.mxu0 %v5395
    %9473 = vmatprep.subr.bf16.mxu0 %v5404
    %9474 = vmatpush1.bf16.msra.mxu0 %v5403
    %9475 = vmatprep.subr.bf16.mxu0 %v5412
    %9476 = vmatpush1.bf16.msra.mxu0 %v5411
    %9477 = vmatprep.subr.bf16.mxu0 %v5420
    %9478 = vmatpush1.bf16.msra.mxu0 %v5419
    %9479 = vmatprep.subr.bf16.mxu0 %v5428
    %9480 = vmatpush1.bf16.msra.mxu0 %v5427
    %9481 = vmatprep.subr.bf16.mxu0 %v5436
    %9482 = vmatpush1.bf16.msra.mxu0 %v5435
    %9483 = vmatprep.subr.bf16.mxu0 %v5444
    %9484 = vmatpush1.bf16.msra.mxu0 %v5443
    %9485 = vmatprep.subr.bf16.mxu0 %v5452
    %9486 = vmatpush1.bf16.msra.mxu0 %v5451
    %9487 = vmatprep.subr.bf16.mxu0 %v5460
    %9488 = vmatpush1.bf16.msra.mxu0 %v5459
    %9489 = vmatprep.subr.bf16.mxu0 %v5468
    %9490 = vmatpush1.bf16.msra.mxu0 %v5467
    %9491 = vmatprep.subr.bf16.mxu0 %v5476
    %9492 = vmatpush1.bf16.msra.mxu0 %v5475
    %9493 = vmatprep.subr.bf16.mxu0 %v5484
    %9494 = vmatpush1.bf16.msra.mxu0 %v5483
    %9495 = vmatprep.subr.bf16.mxu0 %v5492
    %9496 = vmatpush1.bf16.msra.mxu0 %v5491
    %9497 = vmatprep.subr.bf16.mxu0 %v5500
    %9498 = vmatpush1.bf16.msra.mxu0 %v5499
    %9499 = vmatprep.mubr.bf16.mxu0 %v8843
    %9500 = vmatmul.mubr.bf16.gmra.mrb[0].mxu0 %v8842
    %v9501 = vpop.f32.mrb[0].mxu0
    %v9502 = vadd.f32 %v9461, %v9501
    %v9503 = vpop.f32.mrb[0].mxu0
    %v9504 = vadd.f32 %v9463, %v9503
    %v9505 = vpop.f32.mrb[0].mxu0
    %v9506 = vpop.f32.mrb[0].mxu0
    %9507 = vdwg.mxu0
    %v9508 = vmax.f32 %v9010, %v9174
    %v9509 = vmax.f32 %v9012, %v9176
    %v9510 = vmax.f32 %v9338, %v9502
    %v9511 = vmax.f32 %v9340, %v9504
    %v9512 = vmax.f32 %v9508, %v9510
    %v9513 = vmax.f32 %v9509, %v9511
    %v9514 = vadd.f32 %v9512, %v6679
    %v9515 = vadd.f32 %v9513, %v6683
    %v9516 = vmax.f32 %v9514, 0.0
    %v9517 = vmax.f32 %v9515, 0.0
    %v9518 = vpack.c.bf16 %v9516, %v9516
    %v9519 = vpack.c.bf16 %v9517, %v9517
    %v9522 = vunpack.c.l.b16 %v9518
    %v9523 = vunpack.c.l.b16 %v9519
    %v9524 = vpack.c.b16 %v9523, %v9522
    %9526 = vst [vmem:[#allocation3 + $0x20] sm:$0xff] %v9524
    %v9527 = vld [vmem:[#allocation3] sm:$0xff]
    %v9528 = vld [vmem:[#allocation3 + $0x8] sm:$0xff]
    %v9529 = vld [vmem:[#allocation3 + $0x10] sm:$0xff]
    %v9530 = vld [vmem:[#allocation3 + $0x18] sm:$0xff]
    %v9531 = vld [vmem:[#allocation3 + $0x20] sm:$0xff]
    %v9532 = vld [vmem:[%s5] sm:$0xf]
    %v9533 = vld [vmem:[%s5 + $0x4] sm:$0xf]
    %v9534 = vld [vmem:[%s5 + $0x8] sm:$0xf]
    %v9535 = vld [vmem:[%s5 + $0xc] sm:$0xf]
    %v9536 = vld [vmem:[%s5 + $0x10] sm:$0xf]
    %v9537 = vld [vmem:[%s5 + $0x14] sm:$0xf]
    %v9538 = vld [vmem:[%s5 + $0x18] sm:$0xf]
    %v9539 = vld [vmem:[%s5 + $0x1c] sm:$0xf]
    %v9540 = vld [vmem:[%s5 + $0x20] sm:$0xf]
    %v9541 = vld [vmem:[%s5 + $0x24] sm:$0xf]
    %v9542 = vld [vmem:[%s5 + $0x28] sm:$0xf]
    %v9543 = vld [vmem:[%s5 + $0x2c] sm:$0xf]
    %v9544 = vld [vmem:[%s5 + $0x30] sm:$0xf]
    %v9545 = vld [vmem:[%s5 + $0x34] sm:$0xf]
    %v9546 = vld [vmem:[%s5 + $0x38] sm:$0xf]
    %v9547 = vld [vmem:[%s5 + $0x3c] sm:$0xf]
    %v9548 = vld [vmem:[%s5 + $0x40] sm:$0xf]
    %v9549 = vld [vmem:[%s5 + $0x44] sm:$0xf]
    %v9550 = vld [vmem:[%s5 + $0x48] sm:$0xf]
    %v9551 = vld [vmem:[%s5 + $0x4c] sm:$0xf]
    %v9552 = vld [vmem:[%s5 + $0x50] sm:$0xf]
    %v9553 = vld [vmem:[%s5 + $0x54] sm:$0xf]
    %v9554 = vld [vmem:[%s5 + $0x58] sm:$0xf]
    %v9555 = vld [vmem:[%s5 + $0x5c] sm:$0xf]
    %v9556 = vld [vmem:[%s5 + $0x60] sm:$0xf]
    %v9557 = vld [vmem:[%s5 + $0x64] sm:$0xf]
    %v9558 = vld [vmem:[%s5 + $0x68] sm:$0xf]
    %v9559 = vld [vmem:[%s5 + $0x6c] sm:$0xf]
    %v9560 = vld [vmem:[%s5 + $0x70] sm:$0xf]
    %v9561 = vld [vmem:[%s5 + $0x74] sm:$0xf]
    %v9562 = vld [vmem:[%s5 + $0x78] sm:$0xf]
    %v9563 = vld [vmem:[%s5 + $0x7c] sm:$0xf]
    %v9564 = vld [vmem:[%s5 + $0x80] sm:$0xf]
    %v9565 = vld [vmem:[%s5 + $0x84] sm:$0xf]
    %v9566 = vld [vmem:[%s5 + $0x88] sm:$0xf]
    %v9567 = vld [vmem:[%s5 + $0x8c] sm:$0xf]
    %v9568 = vld [vmem:[%s5 + $0x90] sm:$0xf]
    %v9569 = vld [vmem:[%s5 + $0x94] sm:$0xf]
    %v9570 = vld [vmem:[%s5 + $0x98] sm:$0xf]
    %v9571 = vld [vmem:[%s5 + $0x9c] sm:$0xf]
    %v9572 = vld [vmem:[%s5 + $0xa0] sm:$0xf]
    %v9573 = vld [vmem:[%s5 + $0xa4] sm:$0xf]
    %v9574 = vld [vmem:[%s5 + $0xa8] sm:$0xf]
    %v9575 = vld [vmem:[%s5 + $0xac] sm:$0xf]
    %v9576 = vld [vmem:[%s5 + $0xb0] sm:$0xf]
    %v9577 = vld [vmem:[%s5 + $0xb4] sm:$0xf]
    %v9578 = vld [vmem:[%s5 + $0xb8] sm:$0xf]
    %v9579 = vld [vmem:[%s5 + $0xbc] sm:$0xf]
    %v9580 = vld [vmem:[%s5 + $0xc0] sm:$0xf]
    %v9581 = vld [vmem:[%s5 + $0xc4] sm:$0xf]
    %v9582 = vld [vmem:[%s5 + $0xc8] sm:$0xf]
    %v9583 = vld [vmem:[%s5 + $0xcc] sm:$0xf]
    %v9584 = vld [vmem:[%s5 + $0xd0] sm:$0xf]
    %v9585 = vld [vmem:[%s5 + $0xd4] sm:$0xf]
    %v9586 = vld [vmem:[%s5 + $0xd8] sm:$0xf]
    %v9587 = vld [vmem:[%s5 + $0xdc] sm:$0xf]
    %v9588 = vld [vmem:[%s5 + $0xe0] sm:$0xf]
    %v9589 = vld [vmem:[%s5 + $0xe4] sm:$0xf]
    %v9590 = vld [vmem:[%s5 + $0xe8] sm:$0xf]
    %v9591 = vld [vmem:[%s5 + $0xec] sm:$0xf]
    %v9592 = vld [vmem:[%s5 + $0xf0] sm:$0xf]
    %v9593 = vld [vmem:[%s5 + $0xf4] sm:$0xf]
    %v9594 = vld [vmem:[%s5 + $0xf8] sm:$0xf]
    %v9595 = vld [vmem:[%s5 + $0xfc] sm:$0xf]
    %v9596 = vld [vmem:[%s5 + $0x100] sm:$0xf]
    %v9597 = vld [vmem:[%s5 + $0x104] sm:$0xf]
    %v9598 = vld [vmem:[%s5 + $0x108] sm:$0xf]
    %v9599 = vld [vmem:[%s5 + $0x10c] sm:$0xf]
    %v9600 = vld [vmem:[%s5 + $0x110] sm:$0xf]
    %v9601 = vld [vmem:[%s5 + $0x114] sm:$0xf]
    %v9602 = vld [vmem:[%s5 + $0x118] sm:$0xf]
    %v9603 = vld [vmem:[%s5 + $0x11c] sm:$0xf]
    %v9604 = vld [vmem:[%s5 + $0x120] sm:$0xf]
    %v9605 = vld [vmem:[%s5 + $0x124] sm:$0xf]
    %v9606 = vld [vmem:[%s5 + $0x128] sm:$0xf]
    %v9607 = vld [vmem:[%s5 + $0x12c] sm:$0xf]
    %v9608 = vld [vmem:[%s5 + $0x130] sm:$0xf]
    %v9609 = vld [vmem:[%s5 + $0x134] sm:$0xf]
    %v9610 = vld [vmem:[%s5 + $0x138] sm:$0xf]
    %v9611 = vld [vmem:[%s5 + $0x13c] sm:$0xf]
    %v9612 = vld [vmem:[%s5 + $0x140] sm:$0xf]
    %v9613 = vld [vmem:[%s5 + $0x144] sm:$0xf]
    %v9614 = vld [vmem:[%s5 + $0x148] sm:$0xf]
    %v9615 = vld [vmem:[%s5 + $0x14c] sm:$0xf]
    %v9616 = vld [vmem:[%s5 + $0x150] sm:$0xf]
    %v9617 = vld [vmem:[%s5 + $0x154] sm:$0xf]
    %v9618 = vld [vmem:[%s5 + $0x158] sm:$0xf]
    %v9619 = vld [vmem:[%s5 + $0x15c] sm:$0xf]
    %v9620 = vld [vmem:[%s5 + $0x160] sm:$0xf]
    %v9621 = vld [vmem:[%s5 + $0x164] sm:$0xf]
    %v9622 = vld [vmem:[%s5 + $0x168] sm:$0xf]
    %v9623 = vld [vmem:[%s5 + $0x16c] sm:$0xf]
    %v9624 = vld [vmem:[%s5 + $0x170] sm:$0xf]
    %v9625 = vld [vmem:[%s5 + $0x174] sm:$0xf]
    %v9626 = vld [vmem:[%s5 + $0x178] sm:$0xf]
    %v9627 = vld [vmem:[%s5 + $0x17c] sm:$0xf]
    %v9628 = vld [vmem:[%s5 + $0x180] sm:$0xf]
    %v9629 = vld [vmem:[%s5 + $0x184] sm:$0xf]
    %v9630 = vld [vmem:[%s5 + $0x188] sm:$0xf]
    %v9631 = vld [vmem:[%s5 + $0x18c] sm:$0xf]
    %v9632 = vld [vmem:[%s5 + $0x190] sm:$0xf]
    %v9633 = vld [vmem:[%s5 + $0x194] sm:$0xf]
    %v9634 = vld [vmem:[%s5 + $0x198] sm:$0xf]
    %v9635 = vld [vmem:[%s5 + $0x19c] sm:$0xf]
    %v9636 = vld [vmem:[%s5 + $0x1a0] sm:$0xf]
    %v9637 = vld [vmem:[%s5 + $0x1a4] sm:$0xf]
    %v9638 = vld [vmem:[%s5 + $0x1a8] sm:$0xf]
    %v9639 = vld [vmem:[%s5 + $0x1ac] sm:$0xf]
    %v9640 = vld [vmem:[%s5 + $0x1b0] sm:$0xf]
    %v9641 = vld [vmem:[%s5 + $0x1b4] sm:$0xf]
    %v9642 = vld [vmem:[%s5 + $0x1b8] sm:$0xf]
    %v9643 = vld [vmem:[%s5 + $0x1bc] sm:$0xf]
    %v9644 = vld [vmem:[%s5 + $0x1c0] sm:$0xf]
    %v9645 = vld [vmem:[%s5 + $0x1c4] sm:$0xf]
    %v9646 = vld [vmem:[%s5 + $0x1c8] sm:$0xf]
    %v9647 = vld [vmem:[%s5 + $0x1cc] sm:$0xf]
    %v9648 = vld [vmem:[%s5 + $0x1d0] sm:$0xf]
    %v9649 = vld [vmem:[%s5 + $0x1d4] sm:$0xf]
    %v9650 = vld [vmem:[%s5 + $0x1d8] sm:$0xf]
    %v9651 = vld [vmem:[%s5 + $0x1dc] sm:$0xf]
    %v9652 = vld [vmem:[%s5 + $0x1e0] sm:$0xf]
    %v9653 = vld [vmem:[%s5 + $0x1e4] sm:$0xf]
    %v9654 = vld [vmem:[%s5 + $0x1e8] sm:$0xf]
    %v9655 = vld [vmem:[%s5 + $0x1ec] sm:$0xf]
    %v9656 = vld [vmem:[%s5 + $0x1f0] sm:$0xf]
    %v9657 = vld [vmem:[%s5 + $0x1f4] sm:$0xf]
    %v9658 = vld [vmem:[%s5 + $0x1f8] sm:$0xf]
    %v9659 = vld [vmem:[%s5 + $0x1fc] sm:$0xf]
    %v9660 = vld [vmem:[%s5 + $0x200] sm:$0xf]
    %v9661 = vld [vmem:[%s5 + $0x204] sm:$0xf]
    %v9662 = vld [vmem:[%s5 + $0x208] sm:$0xf]
    %v9663 = vld [vmem:[%s5 + $0x20c] sm:$0xf]
    %v9664 = vld [vmem:[%s5 + $0x210] sm:$0xf]
    %v9665 = vld [vmem:[%s5 + $0x214] sm:$0xf]
    %v9666 = vld [vmem:[%s5 + $0x218] sm:$0xf]
    %v9667 = vld [vmem:[%s5 + $0x21c] sm:$0xf]
    %v9668 = vld [vmem:[%s5 + $0x220] sm:$0xf]
    %v9669 = vld [vmem:[%s5 + $0x224] sm:$0xf]
    %v9670 = vld [vmem:[%s5 + $0x228] sm:$0xf]
    %v9671 = vld [vmem:[%s5 + $0x22c] sm:$0xf]
    %v9672 = vld [vmem:[%s5 + $0x230] sm:$0xf]
    %v9673 = vld [vmem:[%s5 + $0x234] sm:$0xf]
    %v9674 = vld [vmem:[%s5 + $0x238] sm:$0xf]
    %v9675 = vld [vmem:[%s5 + $0x23c] sm:$0xf]
    %v9676 = vld [vmem:[%s5 + $0x240] sm:$0xf]
    %v9677 = vld [vmem:[%s5 + $0x244] sm:$0xf]
    %v9678 = vld [vmem:[%s5 + $0x248] sm:$0xf]
    %v9679 = vld [vmem:[%s5 + $0x24c] sm:$0xf]
    %v9680 = vld [vmem:[%s5 + $0x250] sm:$0xf]
    %v9681 = vld [vmem:[%s5 + $0x254] sm:$0xf]
    %v9682 = vld [vmem:[%s5 + $0x258] sm:$0xf]
    %v9683 = vld [vmem:[%s5 + $0x25c] sm:$0xf]
    %v9684 = vld [vmem:[%s5 + $0x260] sm:$0xf]
    %v9685 = vld [vmem:[%s5 + $0x264] sm:$0xf]
    %v9686 = vld [vmem:[%s5 + $0x268] sm:$0xf]
    %v9687 = vld [vmem:[%s5 + $0x26c] sm:$0xf]
    %v9688 = vld [vmem:[%s5 + $0x270] sm:$0xf]
    %v9689 = vld [vmem:[%s5 + $0x274] sm:$0xf]
    %v9690 = vld [vmem:[%s5 + $0x278] sm:$0xf]
    %v9691 = vld [vmem:[%s5 + $0x27c] sm:$0xf]
    %v9692 = vld [vmem:[#allocation11] sm:$0x1]
    %v9694 = vlaneseq
    %v9695 = vshrl.u32 %v9694, 7
    %v9696 = vsub.s32 0, %v9695
    %v9697 = vrot.slane %v9692, %v9696
    %v9704 = vunpack.c.l.b16 %v9527
    %v9705 = vunpack.c.h.b16 %v9527
    %v9706 = vunpack.c.l.b16 %v9528
    %v9707 = vunpack.c.h.b16 %v9528
    %v9708 = vunpack.c.l.b16 %v9529
    %v9709 = vunpack.c.h.b16 %v9529
    %v9710 = vunpack.c.l.b16 %v9530
    %v9711 = vunpack.c.h.b16 %v9530
    %v9712 = vunpack.c.l.b16 %v9531
    %v9713 = vunpack.c.h.b16 %v9531
    %v9714 = vpack.c.b16 %v9704, %v9704
    %v9715 = vpack.c.b16 %v9705, %v9705
    %v9716 = vpack.c.b16 %v9706, %v9706
    %v9717 = vpack.c.b16 %v9707, %v9707
    %v9718 = vpack.c.b16 %v9708, %v9708
    %v9719 = vpack.c.b16 %v9709, %v9709
    %v9720 = vpack.c.b16 %v9710, %v9710
    %v9721 = vpack.c.b16 %v9711, %v9711
    %v9722 = vpack.c.b16 %v9712, %v9712
    %v9723 = vpack.c.b16 %v9713, %v9713
    %v9894 = vunpack.c.l.b16 %v9532
    %v9895 = vunpack.c.l.b16 %v9533
    %v9896 = vunpack.c.l.b16 %v9534
    %v9897 = vunpack.c.l.b16 %v9535
    %v9898 = vunpack.c.l.b16 %v9536
    %v9899 = vunpack.c.l.b16 %v9537
    %v9900 = vunpack.c.l.b16 %v9538
    %v9901 = vunpack.c.l.b16 %v9539
    %v9902 = vunpack.c.l.b16 %v9540
    %v9903 = vunpack.c.l.b16 %v9541
    %v9904 = vunpack.c.l.b16 %v9542
    %v9905 = vunpack.c.l.b16 %v9543
    %v9906 = vunpack.c.l.b16 %v9544
    %v9907 = vunpack.c.l.b16 %v9545
    %v9908 = vunpack.c.l.b16 %v9546
    %v9909 = vunpack.c.l.b16 %v9547
    %v9910 = vunpack.c.l.b16 %v9548
    %v9911 = vunpack.c.l.b16 %v9549
    %v9912 = vunpack.c.l.b16 %v9550
    %v9913 = vunpack.c.l.b16 %v9551
    %v9914 = vunpack.c.l.b16 %v9552
    %v9915 = vunpack.c.l.b16 %v9553
    %v9916 = vunpack.c.l.b16 %v9554
    %v9917 = vunpack.c.l.b16 %v9555
    %v9918 = vunpack.c.l.b16 %v9556
    %v9919 = vunpack.c.l.b16 %v9557
    %v9920 = vunpack.c.l.b16 %v9558
    %v9921 = vunpack.c.l.b16 %v9559
    %v9922 = vunpack.c.l.b16 %v9560
    %v9923 = vunpack.c.l.b16 %v9561
    %v9924 = vunpack.c.l.b16 %v9562
    %v9925 = vunpack.c.l.b16 %v9563
    %v9926 = vunpack.c.l.b16 %v9564
    %v9927 = vunpack.c.l.b16 %v9565
    %v9928 = vunpack.c.l.b16 %v9566
    %v9929 = vunpack.c.l.b16 %v9567
    %v9930 = vunpack.c.l.b16 %v9568
    %v9931 = vunpack.c.l.b16 %v9569
    %v9932 = vunpack.c.l.b16 %v9570
    %v9933 = vunpack.c.l.b16 %v9571
    %v9934 = vunpack.c.l.b16 %v9572
    %v9935 = vunpack.c.l.b16 %v9573
    %v9936 = vunpack.c.l.b16 %v9574
    %v9937 = vunpack.c.l.b16 %v9575
    %v9938 = vunpack.c.l.b16 %v9576
    %v9939 = vunpack.c.l.b16 %v9577
    %v9940 = vunpack.c.l.b16 %v9578
    %v9941 = vunpack.c.l.b16 %v9579
    %v9942 = vunpack.c.l.b16 %v9580
    %v9943 = vunpack.c.l.b16 %v9581
    %v9944 = vunpack.c.l.b16 %v9582
    %v9945 = vunpack.c.l.b16 %v9583
    %v9946 = vunpack.c.l.b16 %v9584
    %v9947 = vunpack.c.l.b16 %v9585
    %v9948 = vunpack.c.l.b16 %v9586
    %v9949 = vunpack.c.l.b16 %v9587
    %v9950 = vunpack.c.l.b16 %v9588
    %v9951 = vunpack.c.l.b16 %v9589
    %v9952 = vunpack.c.l.b16 %v9590
    %v9953 = vunpack.c.l.b16 %v9591
    %v9954 = vunpack.c.l.b16 %v9592
    %v9955 = vunpack.c.l.b16 %v9593
    %v9956 = vunpack.c.l.b16 %v9594
    %v9957 = vunpack.c.l.b16 %v9595
    %v9958 = vunpack.c.l.b16 %v9596
    %v9959 = vunpack.c.l.b16 %v9597
    %v9960 = vunpack.c.l.b16 %v9598
    %v9961 = vunpack.c.l.b16 %v9599
    %v9962 = vunpack.c.l.b16 %v9600
    %v9963 = vunpack.c.l.b16 %v9601
    %v9964 = vunpack.c.l.b16 %v9602
    %v9965 = vunpack.c.l.b16 %v9603
    %v9966 = vunpack.c.l.b16 %v9604
    %v9967 = vunpack.c.l.b16 %v9605
    %v9968 = vunpack.c.l.b16 %v9606
    %v9969 = vunpack.c.l.b16 %v9607
    %v9970 = vunpack.c.l.b16 %v9608
    %v9971 = vunpack.c.l.b16 %v9609
    %v9972 = vunpack.c.l.b16 %v9610
    %v9973 = vunpack.c.l.b16 %v9611
    %v9974 = vunpack.c.l.b16 %v9612
    %v9975 = vunpack.c.l.b16 %v9613
    %v9976 = vunpack.c.l.b16 %v9614
    %v9977 = vunpack.c.l.b16 %v9615
    %v9978 = vunpack.c.l.b16 %v9616
    %v9979 = vunpack.c.l.b16 %v9617
    %v9980 = vunpack.c.l.b16 %v9618
    %v9981 = vunpack.c.l.b16 %v9619
    %v9982 = vunpack.c.l.b16 %v9620
    %v9983 = vunpack.c.l.b16 %v9621
    %v9984 = vunpack.c.l.b16 %v9622
    %v9985 = vunpack.c.l.b16 %v9623
    %v9986 = vunpack.c.l.b16 %v9624
    %v9987 = vunpack.c.l.b16 %v9625
    %v9988 = vunpack.c.l.b16 %v9626
    %v9989 = vunpack.c.l.b16 %v9627
    %v9990 = vunpack.c.l.b16 %v9628
    %v9991 = vunpack.c.l.b16 %v9629
    %v9992 = vunpack.c.l.b16 %v9630
    %v9993 = vunpack.c.l.b16 %v9631
    %v9994 = vunpack.c.l.b16 %v9632
    %v9995 = vunpack.c.l.b16 %v9633
    %v9996 = vunpack.c.l.b16 %v9634
    %v9997 = vunpack.c.l.b16 %v9635
    %v9998 = vunpack.c.l.b16 %v9636
    %v9999 = vunpack.c.l.b16 %v9637
    %v10000 = vunpack.c.l.b16 %v9638
    %v10001 = vunpack.c.l.b16 %v9639
    %v10002 = vunpack.c.l.b16 %v9640
    %v10003 = vunpack.c.l.b16 %v9641
    %v10004 = vunpack.c.l.b16 %v9642
    %v10005 = vunpack.c.l.b16 %v9643
    %v10006 = vunpack.c.l.b16 %v9644
    %v10007 = vunpack.c.l.b16 %v9645
    %v10008 = vunpack.c.l.b16 %v9646
    %v10009 = vunpack.c.l.b16 %v9647
    %v10010 = vunpack.c.l.b16 %v9648
    %v10011 = vunpack.c.l.b16 %v9649
    %v10012 = vunpack.c.l.b16 %v9650
    %v10013 = vunpack.c.l.b16 %v9651
    %v10014 = vunpack.c.l.b16 %v9652
    %v10015 = vunpack.c.l.b16 %v9653
    %v10016 = vunpack.c.l.b16 %v9654
    %v10017 = vunpack.c.l.b16 %v9655
    %v10018 = vunpack.c.l.b16 %v9656
    %v10019 = vunpack.c.l.b16 %v9657
    %v10020 = vunpack.c.l.b16 %v9658
    %v10021 = vunpack.c.l.b16 %v9659
    %v10022 = vunpack.c.l.b16 %v9660
    %v10023 = vunpack.c.l.b16 %v9661
    %v10024 = vunpack.c.l.b16 %v9662
    %v10025 = vunpack.c.l.b16 %v9663
    %v10026 = vunpack.c.l.b16 %v9664
    %v10027 = vunpack.c.l.b16 %v9665
    %v10028 = vunpack.c.l.b16 %v9666
    %v10029 = vunpack.c.l.b16 %v9667
    %v10030 = vunpack.c.l.b16 %v9668
    %v10031 = vunpack.c.l.b16 %v9669
    %v10032 = vunpack.c.l.b16 %v9670
    %v10033 = vunpack.c.l.b16 %v9671
    %v10034 = vunpack.c.l.b16 %v9672
    %v10035 = vunpack.c.l.b16 %v9673
    %v10036 = vunpack.c.l.b16 %v9674
    %v10037 = vunpack.c.l.b16 %v9675
    %v10038 = vunpack.c.l.b16 %v9676
    %v10039 = vunpack.c.l.b16 %v9677
    %v10040 = vunpack.c.l.b16 %v9678
    %v10041 = vunpack.c.l.b16 %v9679
    %v10042 = vunpack.c.l.b16 %v9680
    %v10043 = vunpack.c.l.b16 %v9681
    %v10044 = vunpack.c.l.b16 %v9682
    %v10045 = vunpack.c.l.b16 %v9683
    %v10046 = vunpack.c.l.b16 %v9684
    %v10047 = vunpack.c.l.b16 %v9685
    %v10048 = vunpack.c.l.b16 %v9686
    %v10049 = vunpack.c.l.b16 %v9687
    %v10050 = vunpack.c.l.b16 %v9688
    %v10051 = vunpack.c.l.b16 %v9689
    %v10052 = vunpack.c.l.b16 %v9690
    %v10053 = vunpack.c.l.b16 %v9691
    %v10054 = vpack.c.b16 %v9895, %v9894
    %v10055 = vpack.c.b16 %v9897, %v9896
    %v10056 = vpack.c.b16 %v9899, %v9898
    %v10057 = vpack.c.b16 %v9901, %v9900
    %v10058 = vpack.c.b16 %v9903, %v9902
    %v10059 = vpack.c.b16 %v9905, %v9904
    %v10060 = vpack.c.b16 %v9907, %v9906
    %v10061 = vpack.c.b16 %v9909, %v9908
    %v10062 = vpack.c.b16 %v9911, %v9910
    %v10063 = vpack.c.b16 %v9913, %v9912
    %v10064 = vpack.c.b16 %v9915, %v9914
    %v10065 = vpack.c.b16 %v9917, %v9916
    %v10066 = vpack.c.b16 %v9919, %v9918
    %v10067 = vpack.c.b16 %v9921, %v9920
    %v10068 = vpack.c.b16 %v9923, %v9922
    %v10069 = vpack.c.b16 %v9925, %v9924
    %v10070 = vpack.c.b16 %v9927, %v9926
    %v10071 = vpack.c.b16 %v9929, %v9928
    %v10072 = vpack.c.b16 %v9931, %v9930
    %v10073 = vpack.c.b16 %v9933, %v9932
    %v10074 = vpack.c.b16 %v9935, %v9934
    %v10075 = vpack.c.b16 %v9937, %v9936
    %v10076 = vpack.c.b16 %v9939, %v9938
    %v10077 = vpack.c.b16 %v9941, %v9940
    %v10078 = vpack.c.b16 %v9943, %v9942
    %v10079 = vpack.c.b16 %v9945, %v9944
    %v10080 = vpack.c.b16 %v9947, %v9946
    %v10081 = vpack.c.b16 %v9949, %v9948
    %v10082 = vpack.c.b16 %v9951, %v9950
    %v10083 = vpack.c.b16 %v9953, %v9952
    %v10084 = vpack.c.b16 %v9955, %v9954
    %v10085 = vpack.c.b16 %v9957, %v9956
    %v10086 = vpack.c.b16 %v9959, %v9958
    %v10087 = vpack.c.b16 %v9961, %v9960
    %v10088 = vpack.c.b16 %v9963, %v9962
    %v10089 = vpack.c.b16 %v9965, %v9964
    %v10090 = vpack.c.b16 %v9967, %v9966
    %v10091 = vpack.c.b16 %v9969, %v9968
    %v10092 = vpack.c.b16 %v9971, %v9970
    %v10093 = vpack.c.b16 %v9973, %v9972
    %v10094 = vpack.c.b16 %v9975, %v9974
    %v10095 = vpack.c.b16 %v9977, %v9976
    %v10096 = vpack.c.b16 %v9979, %v9978
    %v10097 = vpack.c.b16 %v9981, %v9980
    %v10098 = vpack.c.b16 %v9983, %v9982
    %v10099 = vpack.c.b16 %v9985, %v9984
    %v10100 = vpack.c.b16 %v9987, %v9986
    %v10101 = vpack.c.b16 %v9989, %v9988
    %v10102 = vpack.c.b16 %v9991, %v9990
    %v10103 = vpack.c.b16 %v9993, %v9992
    %v10104 = vpack.c.b16 %v9995, %v9994
    %v10105 = vpack.c.b16 %v9997, %v9996
    %v10106 = vpack.c.b16 %v9999, %v9998
    %v10107 = vpack.c.b16 %v10001, %v10000
    %v10108 = vpack.c.b16 %v10003, %v10002
    %v10109 = vpack.c.b16 %v10005, %v10004
    %v10110 = vpack.c.b16 %v10007, %v10006
    %v10111 = vpack.c.b16 %v10009, %v10008
    %v10112 = vpack.c.b16 %v10011, %v10010
    %v10113 = vpack.c.b16 %v10013, %v10012
    %v10114 = vpack.c.b16 %v10015, %v10014
    %v10115 = vpack.c.b16 %v10017, %v10016
    %v10116 = vpack.c.b16 %v10019, %v10018
    %v10117 = vpack.c.b16 %v10021, %v10020
    %v10118 = vpack.c.b16 %v10023, %v10022
    %v10119 = vpack.c.b16 %v10025, %v10024
    %v10120 = vpack.c.b16 %v10027, %v10026
    %v10121 = vpack.c.b16 %v10029, %v10028
    %v10122 = vpack.c.b16 %v10031, %v10030
    %v10123 = vpack.c.b16 %v10033, %v10032
    %v10124 = vpack.c.b16 %v10035, %v10034
    %v10125 = vpack.c.b16 %v10037, %v10036
    %v10126 = vpack.c.b16 %v10039, %v10038
    %v10127 = vpack.c.b16 %v10041, %v10040
    %v10128 = vpack.c.b16 %v10043, %v10042
    %v10129 = vpack.c.b16 %v10045, %v10044
    %v10130 = vpack.c.b16 %v10047, %v10046
    %v10131 = vpack.c.b16 %v10049, %v10048
    %v10132 = vpack.c.b16 %v10051, %v10050
    %v10133 = vpack.c.b16 %v10053, %v10052
    %10214 = vmatprep.subr.bf16.mxu0 0
    %10215 = vmatpush1.bf16.msra.mxu0 %v10054
    %10216 = vmatprep.subr.bf16.mxu0 0
    %10217 = vmatpush1.bf16.msra.mxu0 %v10055
    %10218 = vmatprep.subr.bf16.mxu0 0
    %10219 = vmatpush1.bf16.msra.mxu0 %v10056
    %10220 = vmatprep.subr.bf16.mxu0 0
    %10221 = vmatpush1.bf16.msra.mxu0 %v10057
    %10222 = vmatprep.subr.bf16.mxu0 0
    %10223 = vmatpush1.bf16.msra.mxu0 %v10058
    %10224 = vmatprep.subr.bf16.mxu0 0
    %10225 = vmatpush1.bf16.msra.mxu0 %v10059
    %10226 = vmatprep.subr.bf16.mxu0 0
    %10227 = vmatpush1.bf16.msra.mxu0 %v10060
    %10228 = vmatprep.subr.bf16.mxu0 0
    %10229 = vmatpush1.bf16.msra.mxu0 %v10061
    %10230 = vmatprep.subr.bf16.mxu0 0
    %10231 = vmatpush1.bf16.msra.mxu0 %v10062
    %10232 = vmatprep.subr.bf16.mxu0 0
    %10233 = vmatpush1.bf16.msra.mxu0 %v10063
    %10234 = vmatprep.subr.bf16.mxu0 0
    %10235 = vmatpush1.bf16.msra.mxu0 %v10064
    %10236 = vmatprep.subr.bf16.mxu0 0
    %10237 = vmatpush1.bf16.msra.mxu0 %v10065
    %10238 = vmatprep.subr.bf16.mxu0 0
    %10239 = vmatpush1.bf16.msra.mxu0 %v10066
    %10240 = vmatprep.subr.bf16.mxu0 0
    %10241 = vmatpush1.bf16.msra.mxu0 %v10067
    %10242 = vmatprep.subr.bf16.mxu0 0
    %10243 = vmatpush1.bf16.msra.mxu0 %v10068
    %10244 = vmatprep.subr.bf16.mxu0 0
    %10245 = vmatpush1.bf16.msra.mxu0 %v10069
    %10246 = vmatprep.mubr.bf16.mxu0 %v9715
    %10247 = vmatmul.mubr.bf16.gmra.mrb[0].mxu0 %v9714
    %v10248 = vpop.f32.mrb[0].mxu0
    %v10249 = vadd.f32 %v9697, %v10248
    %v10250 = vpop.f32.mrb[0].mxu0
    %v10251 = vpop.f32.mrb[0].mxu0
    %v10252 = vpop.f32.mrb[0].mxu0
    %10253 = vdwg.mxu0
    %10254 = vmatprep.subr.bf16.mxu0 0
    %10255 = vmatpush1.bf16.msra.mxu0 %v10070
    %10256 = vmatprep.subr.bf16.mxu0 0
    %10257 = vmatpush1.bf16.msra.mxu0 %v10071
    %10258 = vmatprep.subr.bf16.mxu0 0
    %10259 = vmatpush1.bf16.msra.mxu0 %v10072
    %10260 = vmatprep.subr.bf16.mxu0 0
    %10261 = vmatpush1.bf16.msra.mxu0 %v10073
    %10262 = vmatprep.subr.bf16.mxu0 0
    %10263 = vmatpush1.bf16.msra.mxu0 %v10074
    %10264 = vmatprep.subr.bf16.mxu0 0
    %10265 = vmatpush1.bf16.msra.mxu0 %v10075
    %10266 = vmatprep.subr.bf16.mxu0 0
    %10267 = vmatpush1.bf16.msra.mxu0 %v10076
    %10268 = vmatprep.subr.bf16.mxu0 0
    %10269 = vmatpush1.bf16.msra.mxu0 %v10077
    %10270 = vmatprep.subr.bf16.mxu0 0
    %10271 = vmatpush1.bf16.msra.mxu0 %v10078
    %10272 = vmatprep.subr.bf16.mxu0 0
    %10273 = vmatpush1.bf16.msra.mxu0 %v10079
    %10274 = vmatprep.subr.bf16.mxu0 0
    %10275 = vmatpush1.bf16.msra.mxu0 %v10080
    %10276 = vmatprep.subr.bf16.mxu0 0
    %10277 = vmatpush1.bf16.msra.mxu0 %v10081
    %10278 = vmatprep.subr.bf16.mxu0 0
    %10279 = vmatpush1.bf16.msra.mxu0 %v10082
    %10280 = vmatprep.subr.bf16.mxu0 0
    %10281 = vmatpush1.bf16.msra.mxu0 %v10083
    %10282 = vmatprep.subr.bf16.mxu0 0
    %10283 = vmatpush1.bf16.msra.mxu0 %v10084
    %10284 = vmatprep.subr.bf16.mxu0 0
    %10285 = vmatpush1.bf16.msra.mxu0 %v10085
    %10286 = vmatprep.mubr.bf16.mxu0 %v9717
    %10287 = vmatmul.mubr.bf16.gmra.mrb[0].mxu0 %v9716
    %v10288 = vpop.f32.mrb[0].mxu0
    %v10289 = vadd.f32 %v10249, %v10288
    %v10290 = vpop.f32.mrb[0].mxu0
    %v10291 = vpop.f32.mrb[0].mxu0
    %v10292 = vpop.f32.mrb[0].mxu0
    %10293 = vdwg.mxu0
    %10294 = vmatprep.subr.bf16.mxu0 0
    %10295 = vmatpush1.bf16.msra.mxu0 %v10086
    %10296 = vmatprep.subr.bf16.mxu0 0
    %10297 = vmatpush1.bf16.msra.mxu0 %v10087
    %10298 = vmatprep.subr.bf16.mxu0 0
    %10299 = vmatpush1.bf16.msra.mxu0 %v10088
    %10300 = vmatprep.subr.bf16.mxu0 0
    %10301 = vmatpush1.bf16.msra.mxu0 %v10089
    %10302 = vmatprep.subr.bf16.mxu0 0
    %10303 = vmatpush1.bf16.msra.mxu0 %v10090
    %10304 = vmatprep.subr.bf16.mxu0 0
    %10305 = vmatpush1.bf16.msra.mxu0 %v10091
    %10306 = vmatprep.subr.bf16.mxu0 0
    %10307 = vmatpush1.bf16.msra.mxu0 %v10092
    %10308 = vmatprep.subr.bf16.mxu0 0
    %10309 = vmatpush1.bf16.msra.mxu0 %v10093
    %10310 = vmatprep.subr.bf16.mxu0 0
    %10311 = vmatpush1.bf16.msra.mxu0 %v10094
    %10312 = vmatprep.subr.bf16.mxu0 0
    %10313 = vmatpush1.bf16.msra.mxu0 %v10095
    %10314 = vmatprep.subr.bf16.mxu0 0
    %10315 = vmatpush1.bf16.msra.mxu0 %v10096
    %10316 = vmatprep.subr.bf16.mxu0 0
    %10317 = vmatpush1.bf16.msra.mxu0 %v10097
    %10318 = vmatprep.subr.bf16.mxu0 0
    %10319 = vmatpush1.bf16.msra.mxu0 %v10098
    %10320 = vmatprep.subr.bf16.mxu0 0
    %10321 = vmatpush1.bf16.msra.mxu0 %v10099
    %10322 = vmatprep.subr.bf16.mxu0 0
    %10323 = vmatpush1.bf16.msra.mxu0 %v10100
    %10324 = vmatprep.subr.bf16.mxu0 0
    %10325 = vmatpush1.bf16.msra.mxu0 %v10101
    %10326 = vmatprep.mubr.bf16.mxu0 %v9719
    %10327 = vmatmul.mubr.bf16.gmra.mrb[0].mxu0 %v9718
    %v10328 = vpop.f32.mrb[0].mxu0
    %v10329 = vadd.f32 %v10289, %v10328
    %v10330 = vpop.f32.mrb[0].mxu0
    %v10331 = vpop.f32.mrb[0].mxu0
    %v10332 = vpop.f32.mrb[0].mxu0
    %10333 = vdwg.mxu0
    %10334 = vmatprep.subr.bf16.mxu0 0
    %10335 = vmatpush1.bf16.msra.mxu0 %v10102
    %10336 = vmatprep.subr.bf16.mxu0 0
    %10337 = vmatpush1.bf16.msra.mxu0 %v10103
    %10338 = vmatprep.subr.bf16.mxu0 0
    %10339 = vmatpush1.bf16.msra.mxu0 %v10104
    %10340 = vmatprep.subr.bf16.mxu0 0
    %10341 = vmatpush1.bf16.msra.mxu0 %v10105
    %10342 = vmatprep.subr.bf16.mxu0 0
    %10343 = vmatpush1.bf16.msra.mxu0 %v10106
    %10344 = vmatprep.subr.bf16.mxu0 0
    %10345 = vmatpush1.bf16.msra.mxu0 %v10107
    %10346 = vmatprep.subr.bf16.mxu0 0
    %10347 = vmatpush1.bf16.msra.mxu0 %v10108
    %10348 = vmatprep.subr.bf16.mxu0 0
    %10349 = vmatpush1.bf16.msra.mxu0 %v10109
    %10350 = vmatprep.subr.bf16.mxu0 0
    %10351 = vmatpush1.bf16.msra.mxu0 %v10110
    %10352 = vmatprep.subr.bf16.mxu0 0
    %10353 = vmatpush1.bf16.msra.mxu0 %v10111
    %10354 = vmatprep.subr.bf16.mxu0 0
    %10355 = vmatpush1.bf16.msra.mxu0 %v10112
    %10356 = vmatprep.subr.bf16.mxu0 0
    %10357 = vmatpush1.bf16.msra.mxu0 %v10113
    %10358 = vmatprep.subr.bf16.mxu0 0
    %10359 = vmatpush1.bf16.msra.mxu0 %v10114
    %10360 = vmatprep.subr.bf16.mxu0 0
    %10361 = vmatpush1.bf16.msra.mxu0 %v10115
    %10362 = vmatprep.subr.bf16.mxu0 0
    %10363 = vmatpush1.bf16.msra.mxu0 %v10116
    %10364 = vmatprep.subr.bf16.mxu0 0
    %10365 = vmatpush1.bf16.msra.mxu0 %v10117
    %10366 = vmatprep.mubr.bf16.mxu0 %v9721
    %10367 = vmatmul.mubr.bf16.gmra.mrb[0].mxu0 %v9720
    %v10368 = vpop.f32.mrb[0].mxu0
    %v10369 = vadd.f32 %v10329, %v10368
    %v10370 = vpop.f32.mrb[0].mxu0
    %v10371 = vpop.f32.mrb[0].mxu0
    %v10372 = vpop.f32.mrb[0].mxu0
    %10373 = vdwg.mxu0
    %10374 = vmatprep.subr.bf16.mxu0 0
    %10375 = vmatpush1.bf16.msra.mxu0 %v10118
    %10376 = vmatprep.subr.bf16.mxu0 0
    %10377 = vmatpush1.bf16.msra.mxu0 %v10119
    %10378 = vmatprep.subr.bf16.mxu0 0
    %10379 = vmatpush1.bf16.msra.mxu0 %v10120
    %10380 = vmatprep.subr.bf16.mxu0 0
    %10381 = vmatpush1.bf16.msra.mxu0 %v10121
    %10382 = vmatprep.subr.bf16.mxu0 0
    %10383 = vmatpush1.bf16.msra.mxu0 %v10122
    %10384 = vmatprep.subr.bf16.mxu0 0
    %10385 = vmatpush1.bf16.msra.mxu0 %v10123
    %10386 = vmatprep.subr.bf16.mxu0 0
    %10387 = vmatpush1.bf16.msra.mxu0 %v10124
    %10388 = vmatprep.subr.bf16.mxu0 0
    %10389 = vmatpush1.bf16.msra.mxu0 %v10125
    %10390 = vmatprep.subr.bf16.mxu0 0
    %10391 = vmatpush1.bf16.msra.mxu0 %v10126
    %10392 = vmatprep.subr.bf16.mxu0 0
    %10393 = vmatpush1.bf16.msra.mxu0 %v10127
    %10394 = vmatprep.subr.bf16.mxu0 0
    %10395 = vmatpush1.bf16.msra.mxu0 %v10128
    %10396 = vmatprep.subr.bf16.mxu0 0
    %10397 = vmatpush1.bf16.msra.mxu0 %v10129
    %10398 = vmatprep.subr.bf16.mxu0 0
    %10399 = vmatpush1.bf16.msra.mxu0 %v10130
    %10400 = vmatprep.subr.bf16.mxu0 0
    %10401 = vmatpush1.bf16.msra.mxu0 %v10131
    %10402 = vmatprep.subr.bf16.mxu0 0
    %10403 = vmatpush1.bf16.msra.mxu0 %v10132
    %10404 = vmatprep.subr.bf16.mxu0 0
    %10405 = vmatpush1.bf16.msra.mxu0 %v10133
    %10406 = vmatprep.mubr.bf16.mxu0 %v9723
    %10407 = vmatmul.mubr.bf16.gmra.mrb[0].mxu0 %v9722
    %v10408 = vpop.f32.mrb[0].mxu0
    %v10409 = vadd.f32 %v10369, %v10408
    %v10410 = vpop.f32.mrb[0].mxu0
    %v10411 = vpop.f32.mrb[0].mxu0
    %v10412 = vpop.f32.mrb[0].mxu0
    %10413 = vdwg.mxu0
    %v10414 = vmax.f32 %v10409, 0.0
    %v10415 = vpack.c.bf16 %v10414, %v10414
    %v10416 = vld [vmem:[#allocation12] sm:$0xf]
    %v10417 = vld [vmem:[#allocation12 + $0x4] sm:$0xf]
    %v10418 = vld [vmem:[#allocation12 + $0x8] sm:$0xf]
    %v10419 = vld [vmem:[#allocation12 + $0xc] sm:$0xf]
    %v10420 = vld [vmem:[#allocation14] sm:$0x1]
    %v10422 = vlaneseq
    %v10423 = vshrl.u32 %v10422, 7
    %v10424 = vsub.s32 0, %v10423
    %v10425 = vrot.slane %v10420, %v10424
    %v10431 = vunpack.c.l.b16 %v10416
    %v10432 = vunpack.c.l.b16 %v10417
    %v10433 = vunpack.c.l.b16 %v10418
    %v10434 = vunpack.c.l.b16 %v10419
    %v10435 = vpack.c.b16 %v10432, %v10431
    %v10436 = vpack.c.b16 %v10434, %v10433
    %vm10439 = vcmask 261120
    %v10441 = vsel %vm10439, %v10415, 0
    %10443 = vmatprep.subr.bf16.mxu0 0
    %10444 = vmatpush1.bf16.msra.mxu0 %v10435
    %10445 = vmatprep.subr.bf16.mxu0 0
    %10446 = vmatpush1.bf16.msra.mxu0 %v10436
    %10447 = vmatprep.subr.bf16.mxu0 0
    %10448 = vmatpush1.bf16.msra.mxu0 0
    %10449 = vmatprep.subr.bf16.mxu0 0
    %10450 = vmatpush1.bf16.msra.mxu0 0
    %10451 = vmatprep.subr.bf16.mxu0 0
    %10452 = vmatpush1.bf16.msra.mxu0 0
    %10453 = vmatprep.subr.bf16.mxu0 0
    %10454 = vmatpush1.bf16.msra.mxu0 0
    %10455 = vmatprep.subr.bf16.mxu0 0
    %10456 = vmatpush1.bf16.msra.mxu0 0
    %10457 = vmatprep.subr.bf16.mxu0 0
    %10458 = vmatpush1.bf16.msra.mxu0 0
    %10459 = vmatprep.subr.bf16.mxu0 0
    %10460 = vmatpush1.bf16.msra.mxu0 0
    %10461 = vmatprep.subr.bf16.mxu0 0
    %10462 = vmatpush1.bf16.msra.mxu0 0
    %10463 = vmatprep.subr.bf16.mxu0 0
    %10464 = vmatpush1.bf16.msra.mxu0 0
    %10465 = vmatprep.subr.bf16.mxu0 0
    %10466 = vmatpush1.bf16.msra.mxu0 0
    %10467 = vmatprep.subr.bf16.mxu0 0
    %10468 = vmatpush1.bf16.msra.mxu0 0
    %10469 = vmatprep.subr.bf16.mxu0 0
    %10470 = vmatpush1.bf16.msra.mxu0 0
    %10471 = vmatprep.subr.bf16.mxu0 0
    %10472 = vmatpush1.bf16.msra.mxu0 0
    %10473 = vmatprep.subr.bf16.mxu0 0
    %10474 = vmatpush1.bf16.msra.mxu0 0
    %10475 = vmatprep.mubr.bf16.mxu0 0
    %10476 = vmatmul.mubr.bf16.gmra.mrb[0].mxu0 %v10441
    %v10477 = vpop.f32.mrb[0].mxu0
    %v10478 = vadd.f32 %v10425, %v10477
    %v10479 = vpop.f32.mrb[0].mxu0
    %v10480 = vpop.f32.mrb[0].mxu0
    %v10481 = vpop.f32.mrb[0].mxu0
    %10482 = vdwg.mxu0
    %10483 = vst [vmem:[%s9] sm:$0xff] %v10478
    // Predicated region
    $region66: #{cnn_fused_forward.1} parent=1 // pred_check
      _
    $region67: #{cnn_fused_forward.1} parent=1 // pred_check_branch
      %10485 = sbr.rel (0) target = $region69
    $region68: #{cnn_fused_forward.1} parent=1 // pred_region
      _
    $region69: #{cnn_fused_forward.1} parent=1 // pred_fallthru
      _
    // Predicated region
    $region70: #{cnn_fused_forward.1} parent=1 // pred_check
      _
    $region71: #{cnn_fused_forward.1} parent=1 // pred_check_branch
      %10487 = sbr.rel (0) target = $region73
    $region72: #{cnn_fused_forward.1} parent=1 // pred_region
      _
    $region73: #{cnn_fused_forward.1} parent=1 // pred_fallthru
      _
    %10488 = vsyncpa [#allocation5], 1
    %10489 = vsyncpa [#allocation7], 1
    %10490 = vsyncpa [#allocation10], 1
    %10491 = vsyncpa [#allocation13], 1

</llo_original>
